<compile_context>
chip_gen: v5e
topology: v5e:2x2
jax: 0.10.0
libtpu: 0.0.40
codegen_flags: <defaults>
</compile_context>

<pallas_src>
import functools

import jax
import jax.numpy as jnp
from jax.experimental import pallas as pl
from jax.experimental.pallas import tpu as pltpu


# ------------------------------ Pallas kernel -------------------------------

def _shift_rows(x, offset):
    """result[r, :] == x[(r + offset) % Mp, :]  (static offset, circular).

    Only interior (non-halo) rows of the result are consumed downstream, and for
    those the shifted index never wraps nor crosses an image boundary, so the
    circular wrap is harmless.  Lowered as two static sublane slices + concat.
    """
    k = offset % x.shape[0]
    if k == 0:
        return x
    return jnp.concatenate([x[k:], x[:k]], axis=0)


def _fused_deconv2_kernel(xp_ref, mask_ref,
                          w1_ref, b1_ref, g1_ref, be1_ref,
                          w2_ref, b2_ref, g2_ref, be2_ref,
                          out_ref, *, width, inv_m, eps, matmul_dtype):
    """Two fused (3x3 SAME conv -> train-mode BN -> ReLU) layers, all in VMEM.

    xp_ref  : (Mp, C1)  zero-padded NHWC input flattened over (N, H+2, W+2)
    mask_ref: (Mp, 1)   1.0 on interior rows, 0.0 on halo rows
    w*_ref  : (9*Cin, Cout) flipped/transposed ConvTranspose2d weights
    b*/g*/be*: (1, Cout) bias / BN gamma / BN beta
    out_ref : (Mp, C2)  padded-layout output of layer 2 (halo rows zeroed)
    """
    mask = mask_ref[...]                                   # (Mp, 1)

    def conv_bn_relu(xp, w, b, gamma, beta):
        # In-kernel im2col: 9 statically shifted row views -> (Mp, 9*Cin).
        cols = []
        for ky in range(3):
            for kx in range(3):
                off = (ky - 1) * (width + 2) + (kx - 1)
                cols.append(_shift_rows(xp, off))
        patches = jnp.concatenate(cols, axis=-1)
        y = jnp.dot(patches.astype(matmul_dtype), w.astype(matmul_dtype),
                    preferred_element_type=jnp.float32) + b
        # Train-mode BatchNorm over the N*H*W interior rows (biased variance),
        # two-pass for numerical stability.  f32 throughout.
        mean = jnp.sum(y * mask, axis=0, keepdims=True) * inv_m
        d = (y - mean) * mask
        var = jnp.sum(d * d, axis=0, keepdims=True) * inv_m
        scale = gamma * jax.lax.rsqrt(var + eps)
        shift = beta - mean * scale
        # Mask halo rows back to zero: that is exactly the zero padding the next
        # 3x3 SAME conv needs, so layer 2 can consume this directly.
        return jnp.maximum(y * scale + shift, 0.0) * mask

    h1 = conv_bn_relu(xp_ref[...], w1_ref[...], b1_ref[...],
                      g1_ref[...], be1_ref[...])
    out_ref[...] = conv_bn_relu(h1, w2_ref[...], b2_ref[...],
                                g2_ref[...], be2_ref[...])


# ------------------------------- glue (JAX) ---------------------------------

def _deconv_weight_to_matmul(w_tconv):
    """PyTorch ConvTranspose2d weight (C_in, C_out, 3, 3) -> (9*C_in, C_out).

    With stride=1, padding=1 the transposed conv equals a regular SAME conv with
    Wc[ky, kx, ci, co] = W[ci, co, 2-ky, 2-kx].
    """
    ci, co = w_tconv.shape[0], w_tconv.shape[1]
    wc = jnp.flip(w_tconv, axis=(2, 3)).transpose(2, 3, 0, 1)   # (3, 3, Ci, Co)
    return wc.reshape(9 * ci, co).astype(jnp.float32)


def create_deconv_2_in_forward(x_nchw, params, eps=1e-5,
                               matmul_dtype=jnp.float32):
    """Forward pass equivalent to the PyTorch module (default train-mode BN)."""
    N, _, H, W = x_nchw.shape
    M = N * H * W
    Mp = N * (H + 2) * (W + 2)

    x = jnp.transpose(x_nchw, (0, 2, 3, 1)).astype(jnp.float32)      # NCHW->NHWC
    xp = jnp.pad(x, ((0, 0), (1, 1), (1, 1), (0, 0))).reshape(Mp, -1)
    c1 = xp.shape[1]

    mask = jnp.pad(jnp.ones((N, H, W, 1), jnp.float32),
                   ((0, 0), (1, 1), (1, 1), (0, 0))).reshape(Mp, 1)

    p1, p2 = params["l1"], params["l2"]
    w1 = _deconv_weight_to_matmul(p1["w"])
    w2 = _deconv_weight_to_matmul(p2["w"])
    c2 = w1.shape[1]

    row = lambda v: v.reshape(1, -1).astype(jnp.float32)

    # Rough VMEM sanity check for the fully fused, single-step, VMEM-resident
    # kernel (inputs + both patch tiles + activations), in f32 bytes.
    vmem_est = 4 * Mp * (c1 + 1 + 9 * c1 + 9 * c2 + 3 * c2) + 4 * 9 * (c1 + c2) * c2
    assert vmem_est < 48 * 1024 * 1024, (
        "activations too large for the fused VMEM-resident kernel; "
        "use a row-tiled variant (see TODO at top of file)")

    kernel = functools.partial(
        _fused_deconv2_kernel, width=W, inv_m=1.0 / M, eps=eps,
        matmul_dtype=matmul_dtype)

    full = lambda shape: pl.BlockSpec(shape, lambda i: (0, 0))

    out = pl.pallas_call(
        kernel,
        out_shape=jax.ShapeDtypeStruct((Mp, c2), jnp.float32),
        grid_spec=pltpu.PrefetchScalarGridSpec(
            num_scalar_prefetch=0,
            grid=(1,),                              # whole problem in one step
            in_specs=[
                full((Mp, c1)), full((Mp, 1)),
                full((9 * c1, c2)), full((1, c2)), full((1, c2)), full((1, c2)),
                full((9 * c2, c2)), full((1, c2)), full((1, c2)), full((1, c2)),
            ],
            out_specs=full((Mp, c2)),
        ),
        compiler_params=pltpu.CompilerParams(
            dimension_semantics=("arbitrary",)),
    )(xp, mask,
      w1, row(p1["b"]), row(p1["gamma"]), row(p1["beta"]),
      w2, row(p2["b"]), row(p2["gamma"]), row(p2["beta"]))

    y = out.reshape(N, H + 2, W + 2, c2)[:, 1:H + 1, 1:W + 1, :]
    return jnp.transpose(y, (0, 3, 1, 2))                            # NHWC->NCHW


# --------------------------- pure-JAX reference ------------------------------

def _reference(x_nchw, params, eps=1e-5):
    x = jnp.transpose(x_nchw, (0, 2, 3, 1)).astype(jnp.float32)
    for layer in ("l1", "l2"):
        p = params[layer]
        wc = jnp.flip(p["w"], axis=(2, 3)).transpose(2, 3, 0, 1)     # HWIO
        y = jax.lax.conv_general_dilated(
            x, wc, window_strides=(1, 1), padding=((1, 1), (1, 1)),
            dimension_numbers=("NHWC", "HWIO", "NHWC")) + p["b"]
        mean = jnp.mean(y, axis=(0, 1, 2))
        var = jnp.mean((y - mean) ** 2, axis=(0, 1, 2))
        y = (y - mean) * jax.lax.rsqrt(var + eps) * p["gamma"] + p["beta"]
        x = jnp.maximum(y, 0.0)
    return jnp.transpose(x, (0, 3, 1, 2))


# ---------------------------------- main -------------------------------------

if __name__ == "__main__":
    N, C1, C2, H, W = 2, 4, 8, 16, 16
    key = jax.random.PRNGKey(0)
    k = jax.random.split(key, 8)

    params = {
        "l1": {
            "w": 0.1 * jax.random.normal(k[0], (C1, C2, 3, 3), jnp.float32),
            "b": 0.1 * jax.random.normal(k[1], (C2,), jnp.float32),
            "gamma": 1.0 + 0.1 * jax.random.normal(k[2], (C2,), jnp.float32),
            "beta": 0.1 * jax.random.normal(k[3], (C2,), jnp.float32),
        },
        "l2": {
            "w": 0.1 * jax.random.normal(k[4], (C2, C2, 3, 3), jnp.float32),
            "b": 0.1 * jax.random.normal(k[5], (C2,), jnp.float32),
            "gamma": 1.0 + 0.1 * jax.random.normal(k[6], (C2,), jnp.float32),
            "beta": 0.1 * jax.random.normal(k[7], (C2,), jnp.float32),
        },
    }

    x = jax.random.normal(jax.random.PRNGKey(42), (N, C1, H, W), jnp.float32)

    out = jax.block_until_ready(jax.jit(create_deconv_2_in_forward)(x, params))
    ref = jax.block_until_ready(_reference(x, params))

    assert out.shape == (N, C2, H, W), out.shape
    assert jnp.allclose(out, ref, atol=1e-4, rtol=1e-4), (
        float(jnp.max(jnp.abs(out - ref))))
    print("KERNEL_OK")
</pallas_src>

<mosaic_0001>
module attributes {stable_mosaic.version = 11 : i64} {
  func.func @_fused_deconv2_kernel(%arg0: i32, %arg1: memref<648x4xf32, #tpu.memory_space<vmem>>, %arg2: memref<648x1xf32, #tpu.memory_space<vmem>>, %arg3: memref<36x8xf32, #tpu.memory_space<vmem>>, %arg4: memref<1x8xf32, #tpu.memory_space<vmem>>, %arg5: memref<1x8xf32, #tpu.memory_space<vmem>>, %arg6: memref<1x8xf32, #tpu.memory_space<vmem>>, %arg7: memref<72x8xf32, #tpu.memory_space<vmem>>, %arg8: memref<1x8xf32, #tpu.memory_space<vmem>>, %arg9: memref<1x8xf32, #tpu.memory_space<vmem>>, %arg10: memref<1x8xf32, #tpu.memory_space<vmem>>, %arg11: memref<648x8xf32, #tpu.memory_space<vmem>>) attributes {dimension_semantics = [#tpu.dimension_semantics<arbitrary>], iteration_bounds = array<i64: 1>, scalar_prefetch = 0 : i64, scratch_operands = 0 : i64, tpu.core_type = #tpu.core_type<tc>, window_params = [{pipeline_mode = #tpu.pipeline_mode<synchronous>, transform_indices = @transform_0, window_bounds = array<i64: 648, 4>}, {pipeline_mode = #tpu.pipeline_mode<synchronous>, transform_indices = @transform_1, window_bounds = array<i64: 648, 1>}, {pipeline_mode = #tpu.pipeline_mode<synchronous>, transform_indices = @transform_2, window_bounds = array<i64: 36, 8>}, {pipeline_mode = #tpu.pipeline_mode<synchronous>, transform_indices = @transform_3, window_bounds = array<i64: 1, 8>}, {pipeline_mode = #tpu.pipeline_mode<synchronous>, transform_indices = @transform_4, window_bounds = array<i64: 1, 8>}, {pipeline_mode = #tpu.pipeline_mode<synchronous>, transform_indices = @transform_5, window_bounds = array<i64: 1, 8>}, {pipeline_mode = #tpu.pipeline_mode<synchronous>, transform_indices = @transform_6, window_bounds = array<i64: 72, 8>}, {pipeline_mode = #tpu.pipeline_mode<synchronous>, transform_indices = @transform_7, window_bounds = array<i64: 1, 8>}, {pipeline_mode = #tpu.pipeline_mode<synchronous>, transform_indices = @transform_8, window_bounds = array<i64: 1, 8>}, {pipeline_mode = #tpu.pipeline_mode<synchronous>, transform_indices = @transform_9, window_bounds = array<i64: 1, 8>}, {pipeline_mode = #tpu.pipeline_mode<synchronous>, transform_indices = @transform_10, window_bounds = array<i64: 648, 8>}]} {
    %c0 = arith.constant 0 : index
    %c0_0 = arith.constant 0 : index
    %0 = vector.load %arg2[%c0, %c0_0] : memref<648x1xf32, #tpu.memory_space<vmem>>, vector<648x1xf32>
    %c0_1 = arith.constant 0 : index
    %c0_2 = arith.constant 0 : index
    %1 = vector.load %arg1[%c0_1, %c0_2] : memref<648x4xf32, #tpu.memory_space<vmem>>, vector<648x4xf32>
    %c0_3 = arith.constant 0 : index
    %c0_4 = arith.constant 0 : index
    %2 = vector.load %arg3[%c0_3, %c0_4] : memref<36x8xf32, #tpu.memory_space<vmem>>, vector<36x8xf32>
    %c0_5 = arith.constant 0 : index
    %c0_6 = arith.constant 0 : index
    %3 = vector.load %arg4[%c0_5, %c0_6] : memref<1x8xf32, #tpu.memory_space<vmem>>, vector<1x8xf32>
    %c0_7 = arith.constant 0 : index
    %c0_8 = arith.constant 0 : index
    %4 = vector.load %arg5[%c0_7, %c0_8] : memref<1x8xf32, #tpu.memory_space<vmem>>, vector<1x8xf32>
    %c0_9 = arith.constant 0 : index
    %c0_10 = arith.constant 0 : index
    %5 = vector.load %arg6[%c0_9, %c0_10] : memref<1x8xf32, #tpu.memory_space<vmem>>, vector<1x8xf32>
    %6 = vector.extract_strided_slice %1 {offsets = [629, 0], sizes = [19, 4], strides = [1, 1]} : vector<648x4xf32> to vector<19x4xf32>
    %7 = vector.extract_strided_slice %1 {offsets = [0, 0], sizes = [629, 4], strides = [1, 1]} : vector<648x4xf32> to vector<629x4xf32>
    %8 = tpu.concatenate %6, %7 in 0 : vector<19x4xf32>, vector<629x4xf32> -> vector<648x4xf32>
    %9 = vector.extract_strided_slice %1 {offsets = [630, 0], sizes = [18, 4], strides = [1, 1]} : vector<648x4xf32> to vector<18x4xf32>
    %10 = vector.extract_strided_slice %1 {offsets = [0, 0], sizes = [630, 4], strides = [1, 1]} : vector<648x4xf32> to vector<630x4xf32>
    %11 = tpu.concatenate %9, %10 in 0 : vector<18x4xf32>, vector<630x4xf32> -> vector<648x4xf32>
    %12 = vector.extract_strided_slice %1 {offsets = [631, 0], sizes = [17, 4], strides = [1, 1]} : vector<648x4xf32> to vector<17x4xf32>
    %13 = vector.extract_strided_slice %1 {offsets = [0, 0], sizes = [631, 4], strides = [1, 1]} : vector<648x4xf32> to vector<631x4xf32>
    %14 = tpu.concatenate %12, %13 in 0 : vector<17x4xf32>, vector<631x4xf32> -> vector<648x4xf32>
    %15 = vector.extract_strided_slice %1 {offsets = [647, 0], sizes = [1, 4], strides = [1, 1]} : vector<648x4xf32> to vector<1x4xf32>
    %16 = vector.extract_strided_slice %1 {offsets = [0, 0], sizes = [647, 4], strides = [1, 1]} : vector<648x4xf32> to vector<647x4xf32>
    %17 = tpu.concatenate %15, %16 in 0 : vector<1x4xf32>, vector<647x4xf32> -> vector<648x4xf32>
    %18 = vector.extract_strided_slice %1 {offsets = [1, 0], sizes = [647, 4], strides = [1, 1]} : vector<648x4xf32> to vector<647x4xf32>
    %19 = vector.extract_strided_slice %1 {offsets = [0, 0], sizes = [1, 4], strides = [1, 1]} : vector<648x4xf32> to vector<1x4xf32>
    %20 = tpu.concatenate %18, %19 in 0 : vector<647x4xf32>, vector<1x4xf32> -> vector<648x4xf32>
    %21 = vector.extract_strided_slice %1 {offsets = [17, 0], sizes = [631, 4], strides = [1, 1]} : vector<648x4xf32> to vector<631x4xf32>
    %22 = vector.extract_strided_slice %1 {offsets = [0, 0], sizes = [17, 4], strides = [1, 1]} : vector<648x4xf32> to vector<17x4xf32>
    %23 = tpu.concatenate %21, %22 in 0 : vector<631x4xf32>, vector<17x4xf32> -> vector<648x4xf32>
    %24 = vector.extract_strided_slice %1 {offsets = [18, 0], sizes = [630, 4], strides = [1, 1]} : vector<648x4xf32> to vector<630x4xf32>
    %25 = vector.extract_strided_slice %1 {offsets = [0, 0], sizes = [18, 4], strides = [1, 1]} : vector<648x4xf32> to vector<18x4xf32>
    %26 = tpu.concatenate %24, %25 in 0 : vector<630x4xf32>, vector<18x4xf32> -> vector<648x4xf32>
    %27 = vector.extract_strided_slice %1 {offsets = [19, 0], sizes = [629, 4], strides = [1, 1]} : vector<648x4xf32> to vector<629x4xf32>
    %28 = vector.extract_strided_slice %1 {offsets = [0, 0], sizes = [19, 4], strides = [1, 1]} : vector<648x4xf32> to vector<19x4xf32>
    %29 = tpu.concatenate %27, %28 in 0 : vector<629x4xf32>, vector<19x4xf32> -> vector<648x4xf32>
    %30 = tpu.concatenate %8, %11, %14, %17, %1, %20, %23, %26, %29 in 1 : vector<648x4xf32>, vector<648x4xf32>, vector<648x4xf32>, vector<648x4xf32>, vector<648x4xf32>, vector<648x4xf32>, vector<648x4xf32>, vector<648x4xf32>, vector<648x4xf32> -> vector<648x36xf32>
    %cst = arith.constant dense<0.000000e+00> : vector<648x8xf32>
    %31 = tpu.matmul %30, %2, %cst {dimension_numbers = #tpu.dot_dimension_numbers<[1], [0], [0], [1], [0, 0, 1, 1], [], []>} : vector<648x36xf32>, vector<36x8xf32>, vector<648x8xf32> -> vector<648x8xf32>
    %32 = vector.broadcast %3 : vector<1x8xf32> to vector<648x8xf32>
    %33 = arith.addf %31, %32 : vector<648x8xf32>
    %34 = vector.broadcast %0 : vector<648x1xf32> to vector<648x8xf32>
    %35 = arith.mulf %33, %34 : vector<648x8xf32>
    %cst_11 = arith.constant dense<0.000000e+00> : vector<8xf32>
    %36 = vector.multi_reduction <add>, %35, %cst_11 [0] : vector<648x8xf32> to vector<8xf32>
    %37 = vector.shape_cast %36 : vector<8xf32> to vector<1x8xf32>
    %cst_12 = arith.constant 0.001953125 : f32
    %38 = vector.broadcast %cst_12 : f32 to vector<1x8xf32>
    %39 = arith.mulf %37, %38 : vector<1x8xf32>
    %40 = vector.broadcast %39 : vector<1x8xf32> to vector<648x8xf32>
    %41 = arith.subf %33, %40 : vector<648x8xf32>
    %42 = vector.broadcast %0 : vector<648x1xf32> to vector<648x8xf32>
    %43 = arith.mulf %41, %42 : vector<648x8xf32>
    %44 = arith.mulf %43, %43 : vector<648x8xf32>
    %cst_13 = arith.constant dense<0.000000e+00> : vector<8xf32>
    %45 = vector.multi_reduction <add>, %44, %cst_13 [0] : vector<648x8xf32> to vector<8xf32>
    %46 = vector.shape_cast %45 : vector<8xf32> to vector<1x8xf32>
    %cst_14 = arith.constant 0.001953125 : f32
    %47 = vector.broadcast %cst_14 : f32 to vector<1x8xf32>
    %48 = arith.mulf %46, %47 : vector<1x8xf32>
    %cst_15 = arith.constant 9.99999974E-6 : f32
    %49 = vector.broadcast %cst_15 : f32 to vector<1x8xf32>
    %50 = arith.addf %48, %49 : vector<1x8xf32>
    %51 = math.rsqrt %50 : vector<1x8xf32>
    %52 = arith.mulf %4, %51 : vector<1x8xf32>
    %53 = arith.mulf %39, %52 : vector<1x8xf32>
    %54 = arith.subf %5, %53 : vector<1x8xf32>
    %55 = vector.broadcast %52 : vector<1x8xf32> to vector<648x8xf32>
    %56 = arith.mulf %33, %55 : vector<648x8xf32>
    %57 = vector.broadcast %54 : vector<1x8xf32> to vector<648x8xf32>
    %58 = arith.addf %56, %57 : vector<648x8xf32>
    %cst_16 = arith.constant 0.000000e+00 : f32
    %59 = vector.broadcast %cst_16 : f32 to vector<648x8xf32>
    %60 = arith.maximumf %58, %59 : vector<648x8xf32>
    %61 = vector.broadcast %0 : vector<648x1xf32> to vector<648x8xf32>
    %62 = arith.mulf %60, %61 : vector<648x8xf32>
    %c0_17 = arith.constant 0 : index
    %c0_18 = arith.constant 0 : index
    %63 = vector.load %arg7[%c0_17, %c0_18] : memref<72x8xf32, #tpu.memory_space<vmem>>, vector<72x8xf32>
    %c0_19 = arith.constant 0 : index
    %c0_20 = arith.constant 0 : index
    %64 = vector.load %arg8[%c0_19, %c0_20] : memref<1x8xf32, #tpu.memory_space<vmem>>, vector<1x8xf32>
    %c0_21 = arith.constant 0 : index
    %c0_22 = arith.constant 0 : index
    %65 = vector.load %arg9[%c0_21, %c0_22] : memref<1x8xf32, #tpu.memory_space<vmem>>, vector<1x8xf32>
    %c0_23 = arith.constant 0 : index
    %c0_24 = arith.constant 0 : index
    %66 = vector.load %arg10[%c0_23, %c0_24] : memref<1x8xf32, #tpu.memory_space<vmem>>, vector<1x8xf32>
    %67 = vector.extract_strided_slice %62 {offsets = [629, 0], sizes = [19, 8], strides = [1, 1]} : vector<648x8xf32> to vector<19x8xf32>
    %68 = vector.extract_strided_slice %62 {offsets = [0, 0], sizes = [629, 8], strides = [1, 1]} : vector<648x8xf32> to vector<629x8xf32>
    %69 = tpu.concatenate %67, %68 in 0 : vector<19x8xf32>, vector<629x8xf32> -> vector<648x8xf32>
    %70 = vector.extract_strided_slice %62 {offsets = [630, 0], sizes = [18, 8], strides = [1, 1]} : vector<648x8xf32> to vector<18x8xf32>
    %71 = vector.extract_strided_slice %62 {offsets = [0, 0], sizes = [630, 8], strides = [1, 1]} : vector<648x8xf32> to vector<630x8xf32>
    %72 = tpu.concatenate %70, %71 in 0 : vector<18x8xf32>, vector<630x8xf32> -> vector<648x8xf32>
    %73 = vector.extract_strided_slice %62 {offsets = [631, 0], sizes = [17, 8], strides = [1, 1]} : vector<648x8xf32> to vector<17x8xf32>
    %74 = vector.extract_strided_slice %62 {offsets = [0, 0], sizes = [631, 8], strides = [1, 1]} : vector<648x8xf32> to vector<631x8xf32>
    %75 = tpu.concatenate %73, %74 in 0 : vector<17x8xf32>, vector<631x8xf32> -> vector<648x8xf32>
    %76 = vector.extract_strided_slice %62 {offsets = [647, 0], sizes = [1, 8], strides = [1, 1]} : vector<648x8xf32> to vector<1x8xf32>
    %77 = vector.extract_strided_slice %62 {offsets = [0, 0], sizes = [647, 8], strides = [1, 1]} : vector<648x8xf32> to vector<647x8xf32>
    %78 = tpu.concatenate %76, %77 in 0 : vector<1x8xf32>, vector<647x8xf32> -> vector<648x8xf32>
    %79 = vector.extract_strided_slice %62 {offsets = [1, 0], sizes = [647, 8], strides = [1, 1]} : vector<648x8xf32> to vector<647x8xf32>
    %80 = vector.extract_strided_slice %62 {offsets = [0, 0], sizes = [1, 8], strides = [1, 1]} : vector<648x8xf32> to vector<1x8xf32>
    %81 = tpu.concatenate %79, %80 in 0 : vector<647x8xf32>, vector<1x8xf32> -> vector<648x8xf32>
    %82 = vector.extract_strided_slice %62 {offsets = [17, 0], sizes = [631, 8], strides = [1, 1]} : vector<648x8xf32> to vector<631x8xf32>
    %83 = vector.extract_strided_slice %62 {offsets = [0, 0], sizes = [17, 8], strides = [1, 1]} : vector<648x8xf32> to vector<17x8xf32>
    %84 = tpu.concatenate %82, %83 in 0 : vector<631x8xf32>, vector<17x8xf32> -> vector<648x8xf32>
    %85 = vector.extract_strided_slice %62 {offsets = [18, 0], sizes = [630, 8], strides = [1, 1]} : vector<648x8xf32> to vector<630x8xf32>
    %86 = vector.extract_strided_slice %62 {offsets = [0, 0], sizes = [18, 8], strides = [1, 1]} : vector<648x8xf32> to vector<18x8xf32>
    %87 = tpu.concatenate %85, %86 in 0 : vector<630x8xf32>, vector<18x8xf32> -> vector<648x8xf32>
    %88 = vector.extract_strided_slice %62 {offsets = [19, 0], sizes = [629, 8], strides = [1, 1]} : vector<648x8xf32> to vector<629x8xf32>
    %89 = vector.extract_strided_slice %62 {offsets = [0, 0], sizes = [19, 8], strides = [1, 1]} : vector<648x8xf32> to vector<19x8xf32>
    %90 = tpu.concatenate %88, %89 in 0 : vector<629x8xf32>, vector<19x8xf32> -> vector<648x8xf32>
    %91 = tpu.concatenate %69, %72, %75, %78, %62, %81, %84, %87, %90 in 1 : vector<648x8xf32>, vector<648x8xf32>, vector<648x8xf32>, vector<648x8xf32>, vector<648x8xf32>, vector<648x8xf32>, vector<648x8xf32>, vector<648x8xf32>, vector<648x8xf32> -> vector<648x72xf32>
    %cst_25 = arith.constant dense<0.000000e+00> : vector<648x8xf32>
    %92 = tpu.matmul %91, %63, %cst_25 {dimension_numbers = #tpu.dot_dimension_numbers<[1], [0], [0], [1], [0, 0, 1, 1], [], []>} : vector<648x72xf32>, vector<72x8xf32>, vector<648x8xf32> -> vector<648x8xf32>
    %93 = vector.broadcast %64 : vector<1x8xf32> to vector<648x8xf32>
    %94 = arith.addf %92, %93 : vector<648x8xf32>
    %95 = vector.broadcast %0 : vector<648x1xf32> to vector<648x8xf32>
    %96 = arith.mulf %94, %95 : vector<648x8xf32>
    %cst_26 = arith.constant dense<0.000000e+00> : vector<8xf32>
    %97 = vector.multi_reduction <add>, %96, %cst_26 [0] : vector<648x8xf32> to vector<8xf32>
    %98 = vector.shape_cast %97 : vector<8xf32> to vector<1x8xf32>
    %cst_27 = arith.constant 0.001953125 : f32
    %99 = vector.broadcast %cst_27 : f32 to vector<1x8xf32>
    %100 = arith.mulf %98, %99 : vector<1x8xf32>
    %101 = vector.broadcast %100 : vector<1x8xf32> to vector<648x8xf32>
    %102 = arith.subf %94, %101 : vector<648x8xf32>
    %103 = vector.broadcast %0 : vector<648x1xf32> to vector<648x8xf32>
    %104 = arith.mulf %102, %103 : vector<648x8xf32>
    %105 = arith.mulf %104, %104 : vector<648x8xf32>
    %cst_28 = arith.constant dense<0.000000e+00> : vector<8xf32>
    %106 = vector.multi_reduction <add>, %105, %cst_28 [0] : vector<648x8xf32> to vector<8xf32>
    %107 = vector.shape_cast %106 : vector<8xf32> to vector<1x8xf32>
    %cst_29 = arith.constant 0.001953125 : f32
    %108 = vector.broadcast %cst_29 : f32 to vector<1x8xf32>
    %109 = arith.mulf %107, %108 : vector<1x8xf32>
    %cst_30 = arith.constant 9.99999974E-6 : f32
    %110 = vector.broadcast %cst_30 : f32 to vector<1x8xf32>
    %111 = arith.addf %109, %110 : vector<1x8xf32>
    %112 = math.rsqrt %111 : vector<1x8xf32>
    %113 = arith.mulf %65, %112 : vector<1x8xf32>
    %114 = arith.mulf %100, %113 : vector<1x8xf32>
    %115 = arith.subf %66, %114 : vector<1x8xf32>
    %116 = vector.broadcast %113 : vector<1x8xf32> to vector<648x8xf32>
    %117 = arith.mulf %94, %116 : vector<648x8xf32>
    %118 = vector.broadcast %115 : vector<1x8xf32> to vector<648x8xf32>
    %119 = arith.addf %117, %118 : vector<648x8xf32>
    %cst_31 = arith.constant 0.000000e+00 : f32
    %120 = vector.broadcast %cst_31 : f32 to vector<648x8xf32>
    %121 = arith.maximumf %119, %120 : vector<648x8xf32>
    %122 = vector.broadcast %0 : vector<648x1xf32> to vector<648x8xf32>
    %123 = arith.mulf %121, %122 : vector<648x8xf32>
    %c0_32 = arith.constant 0 : index
    %c0_33 = arith.constant 0 : index
    %124 = vector.load %arg11[%c0_32, %c0_33] : memref<648x8xf32, #tpu.memory_space<vmem>>, vector<648x8xf32>
    tpu.vector_store %arg11[%c0_32, %c0_33], %123 {strides = array<i32>} : memref<648x8xf32, #tpu.memory_space<vmem>>, vector<648x8xf32>,
    return
  }
  func.func @transform_0(%arg0: i32) -> (i32, i32) {
    %c0_i32 = arith.constant 0 : i32
    %c0_i32_0 = arith.constant 0 : i32
    %c0_i32_1 = arith.constant 0 : i32
    return %c0_i32, %c0_i32_0 : i32, i32
  }
  func.func @transform_1(%arg0: i32) -> (i32, i32) {
    %c0_i32 = arith.constant 0 : i32
    %c0_i32_0 = arith.constant 0 : i32
    %c0_i32_1 = arith.constant 0 : i32
    return %c0_i32, %c0_i32_0 : i32, i32
  }
  func.func @transform_2(%arg0: i32) -> (i32, i32) {
    %c0_i32 = arith.constant 0 : i32
    %c0_i32_0 = arith.constant 0 : i32
    %c0_i32_1 = arith.constant 0 : i32
    return %c0_i32, %c0_i32_0 : i32, i32
  }
  func.func @transform_3(%arg0: i32) -> (i32, i32) {
    %c0_i32 = arith.constant 0 : i32
    %c0_i32_0 = arith.constant 0 : i32
    %c0_i32_1 = arith.constant 0 : i32
    return %c0_i32, %c0_i32_0 : i32, i32
  }
  func.func @transform_4(%arg0: i32) -> (i32, i32) {
    %c0_i32 = arith.constant 0 : i32
    %c0_i32_0 = arith.constant 0 : i32
    %c0_i32_1 = arith.constant 0 : i32
    return %c0_i32, %c0_i32_0 : i32, i32
  }
  func.func @transform_5(%arg0: i32) -> (i32, i32) {
    %c0_i32 = arith.constant 0 : i32
    %c0_i32_0 = arith.constant 0 : i32
    %c0_i32_1 = arith.constant 0 : i32
    return %c0_i32, %c0_i32_0 : i32, i32
  }
  func.func @transform_6(%arg0: i32) -> (i32, i32) {
    %c0_i32 = arith.constant 0 : i32
    %c0_i32_0 = arith.constant 0 : i32
    %c0_i32_1 = arith.constant 0 : i32
    return %c0_i32, %c0_i32_0 : i32, i32
  }
  func.func @transform_7(%arg0: i32) -> (i32, i32) {
    %c0_i32 = arith.constant 0 : i32
    %c0_i32_0 = arith.constant 0 : i32
    %c0_i32_1 = arith.constant 0 : i32
    return %c0_i32, %c0_i32_0 : i32, i32
  }
  func.func @transform_8(%arg0: i32) -> (i32, i32) {
    %c0_i32 = arith.constant 0 : i32
    %c0_i32_0 = arith.constant 0 : i32
    %c0_i32_1 = arith.constant 0 : i32
    return %c0_i32, %c0_i32_0 : i32, i32
  }
  func.func @transform_9(%arg0: i32) -> (i32, i32) {
    %c0_i32 = arith.constant 0 : i32
    %c0_i32_0 = arith.constant 0 : i32
    %c0_i32_1 = arith.constant 0 : i32
    return %c0_i32, %c0_i32_0 : i32, i32
  }
  func.func @transform_10(%arg0: i32) -> (i32, i32) {
    %c0_i32 = arith.constant 0 : i32
    %c0_i32_0 = arith.constant 0 : i32
    %c0_i32_1 = arith.constant 0 : i32
    return %c0_i32, %c0_i32_0 : i32, i32
  }
}

</mosaic_0001>

<llo_original>
// kernel: create_deconv_2_in_forward.1
$region0: #{create_deconv_2_in_forward.1}
  #allocation0 [shape = 'u32[]', space=smem, size = 0x4, offset = 0x4, fixed_abs, tag = 'smem constant byte address 0x4 - core index']
  #allocation1 [shape = 'u32[72,128]{1,0:T(1,128)}', space=vmem, size = 0x9000, scoped, tag = 'internal scratch']
  %s0 = inlined_call_operand.vmem [shape: f32[648,4], index: 0, kind: input, shape index: {}]
  %s1 = inlined_call_operand.vmem [shape: f32[648,1], index: 1, kind: input, shape index: {}]
  %s2 = inlined_call_operand.vmem [shape: f32[36,8], index: 2, kind: input, shape index: {}]
  %s3 = inlined_call_operand.vmem [shape: f32[1,8], index: 3, kind: input, shape index: {}]
  %s4 = inlined_call_operand.vmem [shape: f32[1,8], index: 4, kind: input, shape index: {}]
  %s5 = inlined_call_operand.vmem [shape: f32[1,8], index: 5, kind: input, shape index: {}]
  %s6 = inlined_call_operand.vmem [shape: f32[72,8], index: 6, kind: input, shape index: {}]
  %s7 = inlined_call_operand.vmem [shape: f32[1,8], index: 7, kind: input, shape index: {}]
  %s8 = inlined_call_operand.vmem [shape: f32[1,8], index: 8, kind: input, shape index: {}]
  %s9 = inlined_call_operand.vmem [shape: f32[1,8], index: 9, kind: input, shape index: {}]
  %s10 = inlined_call_operand.vmem [shape: f32[648,8], index: 10, kind: output, shape index: {}]
  %s11 = sld [smem:[#allocation0]]
  $region50: #{create_deconv_2_in_forward.1} parent=0
    _
  %s13 = ssub.s32 1, %s11
  %s14 = scalar_select 0, %s13, %s11
  // Predicated region
  $region2: #{create_deconv_2_in_forward.1} parent=0 // pred_check
    _
  $region3: #{create_deconv_2_in_forward.1} parent=0 // pred_check_branch
    %16 = sbr.rel (0) target = $region5
  $region4: #{create_deconv_2_in_forward.1} parent=0 // pred_region
    _
  $region5: #{create_deconv_2_in_forward.1} parent=0 // pred_fallthru
    _
  // Predicated region
  $region6: #{create_deconv_2_in_forward.1} parent=0 // pred_check
    _
  $region7: #{create_deconv_2_in_forward.1} parent=0 // pred_check_branch
    %18 = sbr.rel (0) target = $region9
  $region8: #{create_deconv_2_in_forward.1} parent=0 // pred_region
    _
  $region9: #{create_deconv_2_in_forward.1} parent=0 // pred_fallthru
    _
  // Predicated region
  $region10: #{create_deconv_2_in_forward.1} parent=0 // pred_check
    _
  $region11: #{create_deconv_2_in_forward.1} parent=0 // pred_check_branch
    %20 = sbr.rel (0) target = $region13
  $region12: #{create_deconv_2_in_forward.1} parent=0 // pred_region
    _
  $region13: #{create_deconv_2_in_forward.1} parent=0 // pred_fallthru
    _
  // Predicated region
  $region14: #{create_deconv_2_in_forward.1} parent=0 // pred_check
    _
  $region15: #{create_deconv_2_in_forward.1} parent=0 // pred_check_branch
    %22 = sbr.rel (0) target = $region17
  $region16: #{create_deconv_2_in_forward.1} parent=0 // pred_region
    _
  $region17: #{create_deconv_2_in_forward.1} parent=0 // pred_fallthru
    _
  // Predicated region
  $region18: #{create_deconv_2_in_forward.1} parent=0 // pred_check
    _
  $region19: #{create_deconv_2_in_forward.1} parent=0 // pred_check_branch
    %24 = sbr.rel (0) target = $region21
  $region20: #{create_deconv_2_in_forward.1} parent=0 // pred_region
    _
  $region21: #{create_deconv_2_in_forward.1} parent=0 // pred_fallthru
    _
  // Predicated region
  $region22: #{create_deconv_2_in_forward.1} parent=0 // pred_check
    _
  $region23: #{create_deconv_2_in_forward.1} parent=0 // pred_check_branch
    %26 = sbr.rel (0) target = $region25
  $region24: #{create_deconv_2_in_forward.1} parent=0 // pred_region
    _
  $region25: #{create_deconv_2_in_forward.1} parent=0 // pred_fallthru
    _
  // Predicated region
  $region26: #{create_deconv_2_in_forward.1} parent=0 // pred_check
    _
  $region27: #{create_deconv_2_in_forward.1} parent=0 // pred_check_branch
    %28 = sbr.rel (0) target = $region29
  $region28: #{create_deconv_2_in_forward.1} parent=0 // pred_region
    _
  $region29: #{create_deconv_2_in_forward.1} parent=0 // pred_fallthru
    _
  // Predicated region
  $region30: #{create_deconv_2_in_forward.1} parent=0 // pred_check
    _
  $region31: #{create_deconv_2_in_forward.1} parent=0 // pred_check_branch
    %30 = sbr.rel (0) target = $region33
  $region32: #{create_deconv_2_in_forward.1} parent=0 // pred_region
    _
  $region33: #{create_deconv_2_in_forward.1} parent=0 // pred_fallthru
    _
  // Predicated region
  $region34: #{create_deconv_2_in_forward.1} parent=0 // pred_check
    _
  $region35: #{create_deconv_2_in_forward.1} parent=0 // pred_check_branch
    %32 = sbr.rel (0) target = $region37
  $region36: #{create_deconv_2_in_forward.1} parent=0 // pred_region
    _
  $region37: #{create_deconv_2_in_forward.1} parent=0 // pred_fallthru
    _
  // Predicated region
  $region38: #{create_deconv_2_in_forward.1} parent=0 // pred_check
    _
  $region39: #{create_deconv_2_in_forward.1} parent=0 // pred_check_branch
    %34 = sbr.rel (0) target = $region41
  $region40: #{create_deconv_2_in_forward.1} parent=0 // pred_region
    _
  $region41: #{create_deconv_2_in_forward.1} parent=0 // pred_fallthru
    _
  %v35 = vld [vmem:[%s1] sm:$0xff]
  %v36 = vld [vmem:[%s1 + $0x8] sm:$0xff]
  %v37 = vld [vmem:[%s1 + $0x10] sm:$0xff]
  %v38 = vld [vmem:[%s1 + $0x18] sm:$0xff]
  %v39 = vld [vmem:[%s1 + $0x20] sm:$0xff]
  %v40 = vld [vmem:[%s1 + $0x28] sm:$0xff]
  %v41 = vld [vmem:[%s1 + $0x30] sm:$0xff]
  %v42 = vld [vmem:[%s1 + $0x38] sm:$0xff]
  %v43 = vld [vmem:[%s1 + $0x40] sm:$0xff]
  %v44 = vld [vmem:[%s1 + $0x48] sm:$0xff]
  %v45 = vld [vmem:[%s1 + $0x50] sm:$0xff]
  %v46 = vld [vmem:[%s1 + $0x58] sm:$0xff]
  %v47 = vld [vmem:[%s1 + $0x60] sm:$0xff]
  %v48 = vld [vmem:[%s1 + $0x68] sm:$0xff]
  %v49 = vld [vmem:[%s1 + $0x70] sm:$0xff]
  %v50 = vld [vmem:[%s1 + $0x78] sm:$0xff]
  %v51 = vld [vmem:[%s1 + $0x80] sm:$0xff]
  %v52 = vld [vmem:[%s1 + $0x88] sm:$0xff]
  %v53 = vld [vmem:[%s1 + $0x90] sm:$0xff]
  %v54 = vld [vmem:[%s1 + $0x98] sm:$0xff]
  %v55 = vld [vmem:[%s1 + $0xa0] sm:$0xff]
  %v56 = vld [vmem:[%s1 + $0xa8] sm:$0xff]
  %v57 = vld [vmem:[%s1 + $0xb0] sm:$0xff]
  %v58 = vld [vmem:[%s1 + $0xb8] sm:$0xff]
  %v59 = vld [vmem:[%s1 + $0xc0] sm:$0xff]
  %v60 = vld [vmem:[%s1 + $0xc8] sm:$0xff]
  %v61 = vld [vmem:[%s1 + $0xd0] sm:$0xff]
  %v62 = vld [vmem:[%s1 + $0xd8] sm:$0xff]
  %v63 = vld [vmem:[%s1 + $0xe0] sm:$0xff]
  %v64 = vld [vmem:[%s1 + $0xe8] sm:$0xff]
  %v65 = vld [vmem:[%s1 + $0xf0] sm:$0xff]
  %v66 = vld [vmem:[%s1 + $0xf8] sm:$0xff]
  %v67 = vld [vmem:[%s1 + $0x100] sm:$0xff]
  %v68 = vld [vmem:[%s1 + $0x108] sm:$0xff]
  %v69 = vld [vmem:[%s1 + $0x110] sm:$0xff]
  %v70 = vld [vmem:[%s1 + $0x118] sm:$0xff]
  %v71 = vld [vmem:[%s1 + $0x120] sm:$0xff]
  %v72 = vld [vmem:[%s1 + $0x128] sm:$0xff]
  %v73 = vld [vmem:[%s1 + $0x130] sm:$0xff]
  %v74 = vld [vmem:[%s1 + $0x138] sm:$0xff]
  %v75 = vld [vmem:[%s1 + $0x140] sm:$0xff]
  %v76 = vld [vmem:[%s1 + $0x148] sm:$0xff]
  %v77 = vld [vmem:[%s1 + $0x150] sm:$0xff]
  %v78 = vld [vmem:[%s1 + $0x158] sm:$0xff]
  %v79 = vld [vmem:[%s1 + $0x160] sm:$0xff]
  %v80 = vld [vmem:[%s1 + $0x168] sm:$0xff]
  %v81 = vld [vmem:[%s1 + $0x170] sm:$0xff]
  %v82 = vld [vmem:[%s1 + $0x178] sm:$0xff]
  %v83 = vld [vmem:[%s1 + $0x180] sm:$0xff]
  %v84 = vld [vmem:[%s1 + $0x188] sm:$0xff]
  %v85 = vld [vmem:[%s1 + $0x190] sm:$0xff]
  %v86 = vld [vmem:[%s1 + $0x198] sm:$0xff]
  %v87 = vld [vmem:[%s1 + $0x1a0] sm:$0xff]
  %v88 = vld [vmem:[%s1 + $0x1a8] sm:$0xff]
  %v89 = vld [vmem:[%s1 + $0x1b0] sm:$0xff]
  %v90 = vld [vmem:[%s1 + $0x1b8] sm:$0xff]
  %v91 = vld [vmem:[%s1 + $0x1c0] sm:$0xff]
  %v92 = vld [vmem:[%s1 + $0x1c8] sm:$0xff]
  %v93 = vld [vmem:[%s1 + $0x1d0] sm:$0xff]
  %v94 = vld [vmem:[%s1 + $0x1d8] sm:$0xff]
  %v95 = vld [vmem:[%s1 + $0x1e0] sm:$0xff]
  %v96 = vld [vmem:[%s1 + $0x1e8] sm:$0xff]
  %v97 = vld [vmem:[%s1 + $0x1f0] sm:$0xff]
  %v98 = vld [vmem:[%s1 + $0x1f8] sm:$0xff]
  %v99 = vld [vmem:[%s1 + $0x200] sm:$0xff]
  %v100 = vld [vmem:[%s1 + $0x208] sm:$0xff]
  %v101 = vld [vmem:[%s1 + $0x210] sm:$0xff]
  %v102 = vld [vmem:[%s1 + $0x218] sm:$0xff]
  %v103 = vld [vmem:[%s1 + $0x220] sm:$0xff]
  %v104 = vld [vmem:[%s1 + $0x228] sm:$0xff]
  %v105 = vld [vmem:[%s1 + $0x230] sm:$0xff]
  %v106 = vld [vmem:[%s1 + $0x238] sm:$0xff]
  %v107 = vld [vmem:[%s1 + $0x240] sm:$0xff]
  %v108 = vld [vmem:[%s1 + $0x248] sm:$0xff]
  %v109 = vld [vmem:[%s1 + $0x250] sm:$0xff]
  %v110 = vld [vmem:[%s1 + $0x258] sm:$0xff]
  %v111 = vld [vmem:[%s1 + $0x260] sm:$0xff]
  %v112 = vld [vmem:[%s1 + $0x268] sm:$0xff]
  %v113 = vld [vmem:[%s1 + $0x270] sm:$0xff]
  %v114 = vld [vmem:[%s1 + $0x278] sm:$0xff]
  %v115 = vld [vmem:[%s1 + $0x280] sm:$0xff]
  %v116 = vld [vmem:[%s0] sm:$0xff]
  %v117 = vld [vmem:[%s0 + $0x8] sm:$0xff]
  %v118 = vld [vmem:[%s0 + $0x10] sm:$0xff]
  %v119 = vld [vmem:[%s0 + $0x18] sm:$0xff]
  %v120 = vld [vmem:[%s0 + $0x20] sm:$0xff]
  %v121 = vld [vmem:[%s0 + $0x28] sm:$0xff]
  %v122 = vld [vmem:[%s0 + $0x30] sm:$0xff]
  %v123 = vld [vmem:[%s0 + $0x38] sm:$0xff]
  %v124 = vld [vmem:[%s0 + $0x40] sm:$0xff]
  %v125 = vld [vmem:[%s0 + $0x48] sm:$0xff]
  %v126 = vld [vmem:[%s0 + $0x50] sm:$0xff]
  %v127 = vld [vmem:[%s0 + $0x58] sm:$0xff]
  %v128 = vld [vmem:[%s0 + $0x60] sm:$0xff]
  %v129 = vld [vmem:[%s0 + $0x68] sm:$0xff]
  %v130 = vld [vmem:[%s0 + $0x70] sm:$0xff]
  %v131 = vld [vmem:[%s0 + $0x78] sm:$0xff]
  %v132 = vld [vmem:[%s0 + $0x80] sm:$0xff]
  %v133 = vld [vmem:[%s0 + $0x88] sm:$0xff]
  %v134 = vld [vmem:[%s0 + $0x90] sm:$0xff]
  %v135 = vld [vmem:[%s0 + $0x98] sm:$0xff]
  %v136 = vld [vmem:[%s0 + $0xa0] sm:$0xff]
  %v137 = vld [vmem:[%s0 + $0xa8] sm:$0xff]
  %v138 = vld [vmem:[%s0 + $0xb0] sm:$0xff]
  %v139 = vld [vmem:[%s0 + $0xb8] sm:$0xff]
  %v140 = vld [vmem:[%s0 + $0xc0] sm:$0xff]
  %v141 = vld [vmem:[%s0 + $0xc8] sm:$0xff]
  %v142 = vld [vmem:[%s0 + $0xd0] sm:$0xff]
  %v143 = vld [vmem:[%s0 + $0xd8] sm:$0xff]
  %v144 = vld [vmem:[%s0 + $0xe0] sm:$0xff]
  %v145 = vld [vmem:[%s0 + $0xe8] sm:$0xff]
  %v146 = vld [vmem:[%s0 + $0xf0] sm:$0xff]
  %v147 = vld [vmem:[%s0 + $0xf8] sm:$0xff]
  %v148 = vld [vmem:[%s0 + $0x100] sm:$0xff]
  %v149 = vld [vmem:[%s0 + $0x108] sm:$0xff]
  %v150 = vld [vmem:[%s0 + $0x110] sm:$0xff]
  %v151 = vld [vmem:[%s0 + $0x118] sm:$0xff]
  %v152 = vld [vmem:[%s0 + $0x120] sm:$0xff]
  %v153 = vld [vmem:[%s0 + $0x128] sm:$0xff]
  %v154 = vld [vmem:[%s0 + $0x130] sm:$0xff]
  %v155 = vld [vmem:[%s0 + $0x138] sm:$0xff]
  %v156 = vld [vmem:[%s0 + $0x140] sm:$0xff]
  %v157 = vld [vmem:[%s0 + $0x148] sm:$0xff]
  %v158 = vld [vmem:[%s0 + $0x150] sm:$0xff]
  %v159 = vld [vmem:[%s0 + $0x158] sm:$0xff]
  %v160 = vld [vmem:[%s0 + $0x160] sm:$0xff]
  %v161 = vld [vmem:[%s0 + $0x168] sm:$0xff]
  %v162 = vld [vmem:[%s0 + $0x170] sm:$0xff]
  %v163 = vld [vmem:[%s0 + $0x178] sm:$0xff]
  %v164 = vld [vmem:[%s0 + $0x180] sm:$0xff]
  %v165 = vld [vmem:[%s0 + $0x188] sm:$0xff]
  %v166 = vld [vmem:[%s0 + $0x190] sm:$0xff]
  %v167 = vld [vmem:[%s0 + $0x198] sm:$0xff]
  %v168 = vld [vmem:[%s0 + $0x1a0] sm:$0xff]
  %v169 = vld [vmem:[%s0 + $0x1a8] sm:$0xff]
  %v170 = vld [vmem:[%s0 + $0x1b0] sm:$0xff]
  %v171 = vld [vmem:[%s0 + $0x1b8] sm:$0xff]
  %v172 = vld [vmem:[%s0 + $0x1c0] sm:$0xff]
  %v173 = vld [vmem:[%s0 + $0x1c8] sm:$0xff]
  %v174 = vld [vmem:[%s0 + $0x1d0] sm:$0xff]
  %v175 = vld [vmem:[%s0 + $0x1d8] sm:$0xff]
  %v176 = vld [vmem:[%s0 + $0x1e0] sm:$0xff]
  %v177 = vld [vmem:[%s0 + $0x1e8] sm:$0xff]
  %v178 = vld [vmem:[%s0 + $0x1f0] sm:$0xff]
  %v179 = vld [vmem:[%s0 + $0x1f8] sm:$0xff]
  %v180 = vld [vmem:[%s0 + $0x200] sm:$0xff]
  %v181 = vld [vmem:[%s0 + $0x208] sm:$0xff]
  %v182 = vld [vmem:[%s0 + $0x210] sm:$0xff]
  %v183 = vld [vmem:[%s0 + $0x218] sm:$0xff]
  %v184 = vld [vmem:[%s0 + $0x220] sm:$0xff]
  %v185 = vld [vmem:[%s0 + $0x228] sm:$0xff]
  %v186 = vld [vmem:[%s0 + $0x230] sm:$0xff]
  %v187 = vld [vmem:[%s0 + $0x238] sm:$0xff]
  %v188 = vld [vmem:[%s0 + $0x240] sm:$0xff]
  %v189 = vld [vmem:[%s0 + $0x248] sm:$0xff]
  %v190 = vld [vmem:[%s0 + $0x250] sm:$0xff]
  %v191 = vld [vmem:[%s0 + $0x258] sm:$0xff]
  %v192 = vld [vmem:[%s0 + $0x260] sm:$0xff]
  %v193 = vld [vmem:[%s0 + $0x268] sm:$0xff]
  %v194 = vld [vmem:[%s0 + $0x270] sm:$0xff]
  %v195 = vld [vmem:[%s0 + $0x278] sm:$0xff]
  %v196 = vld [vmem:[%s0 + $0x280] sm:$0xff]
  %v197 = vld [vmem:[%s2] sm:$0xff]
  %v198 = vld [vmem:[%s2 + $0x8] sm:$0xff]
  %v199 = vld [vmem:[%s2 + $0x10] sm:$0xff]
  %v200 = vld [vmem:[%s2 + $0x18] sm:$0xff]
  %v201 = vld [vmem:[%s2 + $0x20] sm:$0xf]
  %v202 = vld [vmem:[%s3] sm:$0x1]
  %v203 = vld [vmem:[%s4] sm:$0x1]
  %v204 = vld [vmem:[%s5] sm:$0x1]
  %vm208 = vcmask 1042432
  %v209 = vrot.slane %v194, 5
  %v210 = vrot.slane %v195, 5
  %v211 = vsel %vm208, %v209, %v210
  %v212 = vrot.slane %v196, 5
  %v213 = vsel %vm208, %v210, %v212
  %v295 = vrot.slane %v116, 5
  %v296 = vrot.slane %v117, 5
  %v297 = vsel %vm208, %v295, %v296
  %v298 = vrot.slane %v118, 5
  %v299 = vsel %vm208, %v296, %v298
  %v300 = vrot.slane %v119, 5
  %v301 = vsel %vm208, %v298, %v300
  %v302 = vrot.slane %v120, 5
  %v303 = vsel %vm208, %v300, %v302
  %v304 = vrot.slane %v121, 5
  %v305 = vsel %vm208, %v302, %v304
  %v306 = vrot.slane %v122, 5
  %v307 = vsel %vm208, %v304, %v306
  %v308 = vrot.slane %v123, 5
  %v309 = vsel %vm208, %v306, %v308
  %v310 = vrot.slane %v124, 5
  %v311 = vsel %vm208, %v308, %v310
  %v312 = vrot.slane %v125, 5
  %v313 = vsel %vm208, %v310, %v312
  %v314 = vrot.slane %v126, 5
  %v315 = vsel %vm208, %v312, %v314
  %v316 = vrot.slane %v127, 5
  %v317 = vsel %vm208, %v314, %v316
  %v318 = vrot.slane %v128, 5
  %v319 = vsel %vm208, %v316, %v318
  %v320 = vrot.slane %v129, 5
  %v321 = vsel %vm208, %v318, %v320
  %v322 = vrot.slane %v130, 5
  %v323 = vsel %vm208, %v320, %v322
  %v324 = vrot.slane %v131, 5
  %v325 = vsel %vm208, %v322, %v324
  %v326 = vrot.slane %v132, 5
  %v327 = vsel %vm208, %v324, %v326
  %v328 = vrot.slane %v133, 5
  %v329 = vsel %vm208, %v326, %v328
  %v330 = vrot.slane %v134, 5
  %v331 = vsel %vm208, %v328, %v330
  %v332 = vrot.slane %v135, 5
  %v333 = vsel %vm208, %v330, %v332
  %v334 = vrot.slane %v136, 5
  %v335 = vsel %vm208, %v332, %v334
  %v336 = vrot.slane %v137, 5
  %v337 = vsel %vm208, %v334, %v336
  %v338 = vrot.slane %v138, 5
  %v339 = vsel %vm208, %v336, %v338
  %v340 = vrot.slane %v139, 5
  %v341 = vsel %vm208, %v338, %v340
  %v342 = vrot.slane %v140, 5
  %v343 = vsel %vm208, %v340, %v342
  %v344 = vrot.slane %v141, 5
  %v345 = vsel %vm208, %v342, %v344
  %v346 = vrot.slane %v142, 5
  %v347 = vsel %vm208, %v344, %v346
  %v348 = vrot.slane %v143, 5
  %v349 = vsel %vm208, %v346, %v348
  %v350 = vrot.slane %v144, 5
  %v351 = vsel %vm208, %v348, %v350
  %v352 = vrot.slane %v145, 5
  %v353 = vsel %vm208, %v350, %v352
  %v354 = vrot.slane %v146, 5
  %v355 = vsel %vm208, %v352, %v354
  %v356 = vrot.slane %v147, 5
  %v357 = vsel %vm208, %v354, %v356
  %v358 = vrot.slane %v148, 5
  %v359 = vsel %vm208, %v356, %v358
  %v360 = vrot.slane %v149, 5
  %v361 = vsel %vm208, %v358, %v360
  %v362 = vrot.slane %v150, 5
  %v363 = vsel %vm208, %v360, %v362
  %v364 = vrot.slane %v151, 5
  %v365 = vsel %vm208, %v362, %v364
  %v366 = vrot.slane %v152, 5
  %v367 = vsel %vm208, %v364, %v366
  %v368 = vrot.slane %v153, 5
  %v369 = vsel %vm208, %v366, %v368
  %v370 = vrot.slane %v154, 5
  %v371 = vsel %vm208, %v368, %v370
  %v372 = vrot.slane %v155, 5
  %v373 = vsel %vm208, %v370, %v372
  %v374 = vrot.slane %v156, 5
  %v375 = vsel %vm208, %v372, %v374
  %v376 = vrot.slane %v157, 5
  %v377 = vsel %vm208, %v374, %v376
  %v378 = vrot.slane %v158, 5
  %v379 = vsel %vm208, %v376, %v378
  %v380 = vrot.slane %v159, 5
  %v381 = vsel %vm208, %v378, %v380
  %v382 = vrot.slane %v160, 5
  %v383 = vsel %vm208, %v380, %v382
  %v384 = vrot.slane %v161, 5
  %v385 = vsel %vm208, %v382, %v384
  %v386 = vrot.slane %v162, 5
  %v387 = vsel %vm208, %v384, %v386
  %v388 = vrot.slane %v163, 5
  %v389 = vsel %vm208, %v386, %v388
  %v390 = vrot.slane %v164, 5
  %v391 = vsel %vm208, %v388, %v390
  %v392 = vrot.slane %v165, 5
  %v393 = vsel %vm208, %v390, %v392
  %v394 = vrot.slane %v166, 5
  %v395 = vsel %vm208, %v392, %v394
  %v396 = vrot.slane %v167, 5
  %v397 = vsel %vm208, %v394, %v396
  %v398 = vrot.slane %v168, 5
  %v399 = vsel %vm208, %v396, %v398
  %v400 = vrot.slane %v169, 5
  %v401 = vsel %vm208, %v398, %v400
  %v402 = vrot.slane %v170, 5
  %v403 = vsel %vm208, %v400, %v402
  %v404 = vrot.slane %v171, 5
  %v405 = vsel %vm208, %v402, %v404
  %v406 = vrot.slane %v172, 5
  %v407 = vsel %vm208, %v404, %v406
  %v408 = vrot.slane %v173, 5
  %v409 = vsel %vm208, %v406, %v408
  %v410 = vrot.slane %v174, 5
  %v411 = vsel %vm208, %v408, %v410
  %v412 = vrot.slane %v175, 5
  %v413 = vsel %vm208, %v410, %v412
  %v414 = vrot.slane %v176, 5
  %v415 = vsel %vm208, %v412, %v414
  %v416 = vrot.slane %v177, 5
  %v417 = vsel %vm208, %v414, %v416
  %v418 = vrot.slane %v178, 5
  %v419 = vsel %vm208, %v416, %v418
  %v420 = vrot.slane %v179, 5
  %v421 = vsel %vm208, %v418, %v420
  %v422 = vrot.slane %v180, 5
  %v423 = vsel %vm208, %v420, %v422
  %v424 = vrot.slane %v181, 5
  %v425 = vsel %vm208, %v422, %v424
  %v426 = vrot.slane %v182, 5
  %v427 = vsel %vm208, %v424, %v426
  %v428 = vrot.slane %v183, 5
  %v429 = vsel %vm208, %v426, %v428
  %v430 = vrot.slane %v184, 5
  %v431 = vsel %vm208, %v428, %v430
  %v432 = vrot.slane %v185, 5
  %v433 = vsel %vm208, %v430, %v432
  %v434 = vrot.slane %v186, 5
  %v435 = vsel %vm208, %v432, %v434
  %v436 = vrot.slane %v187, 5
  %v437 = vsel %vm208, %v434, %v436
  %v438 = vrot.slane %v188, 5
  %v439 = vsel %vm208, %v436, %v438
  %v440 = vrot.slane %v189, 5
  %v441 = vsel %vm208, %v438, %v440
  %v442 = vrot.slane %v190, 5
  %v443 = vsel %vm208, %v440, %v442
  %v444 = vrot.slane %v191, 5
  %v445 = vsel %vm208, %v442, %v444
  %v446 = vrot.slane %v192, 5
  %v447 = vsel %vm208, %v444, %v446
  %v448 = vrot.slane %v193, 5
  %v449 = vsel %vm208, %v446, %v448
  %v450 = vsel %vm208, %v448, %v209
  %v530 = vsel %vm208, %v212, %v295
  %vm531 = vcmask 1041408
  %v532 = vrot.slane %v194, 6
  %v533 = vrot.slane %v195, 6
  %v534 = vsel %vm531, %v532, %v533
  %v535 = vrot.slane %v196, 6
  %v536 = vsel %vm531, %v533, %v535
  %v538 = vrot.slane %v116, 6
  %v539 = vrot.slane %v117, 6
  %v540 = vsel %vm531, %v538, %v539
  %v541 = vrot.slane %v118, 6
  %v542 = vsel %vm531, %v539, %v541
  %v543 = vrot.slane %v119, 6
  %v544 = vsel %vm531, %v541, %v543
  %v545 = vrot.slane %v120, 6
  %v546 = vsel %vm531, %v543, %v545
  %v547 = vrot.slane %v121, 6
  %v548 = vsel %vm531, %v545, %v547
  %v549 = vrot.slane %v122, 6
  %v550 = vsel %vm531, %v547, %v549
  %v551 = vrot.slane %v123, 6
  %v552 = vsel %vm531, %v549, %v551
  %v553 = vrot.slane %v124, 6
  %v554 = vsel %vm531, %v551, %v553
  %v555 = vrot.slane %v125, 6
  %v556 = vsel %vm531, %v553, %v555
  %v557 = vrot.slane %v126, 6
  %v558 = vsel %vm531, %v555, %v557
  %v559 = vrot.slane %v127, 6
  %v560 = vsel %vm531, %v557, %v559
  %v561 = vrot.slane %v128, 6
  %v562 = vsel %vm531, %v559, %v561
  %v563 = vrot.slane %v129, 6
  %v564 = vsel %vm531, %v561, %v563
  %v565 = vrot.slane %v130, 6
  %v566 = vsel %vm531, %v563, %v565
  %v567 = vrot.slane %v131, 6
  %v568 = vsel %vm531, %v565, %v567
  %v569 = vrot.slane %v132, 6
  %v570 = vsel %vm531, %v567, %v569
  %v571 = vrot.slane %v133, 6
  %v572 = vsel %vm531, %v569, %v571
  %v573 = vrot.slane %v134, 6
  %v574 = vsel %vm531, %v571, %v573
  %v575 = vrot.slane %v135, 6
  %v576 = vsel %vm531, %v573, %v575
  %v577 = vrot.slane %v136, 6
  %v578 = vsel %vm531, %v575, %v577
  %v579 = vrot.slane %v137, 6
  %v580 = vsel %vm531, %v577, %v579
  %v581 = vrot.slane %v138, 6
  %v582 = vsel %vm531, %v579, %v581
  %v583 = vrot.slane %v139, 6
  %v584 = vsel %vm531, %v581, %v583
  %v585 = vrot.slane %v140, 6
  %v586 = vsel %vm531, %v583, %v585
  %v587 = vrot.slane %v141, 6
  %v588 = vsel %vm531, %v585, %v587
  %v589 = vrot.slane %v142, 6
  %v590 = vsel %vm531, %v587, %v589
  %v591 = vrot.slane %v143, 6
  %v592 = vsel %vm531, %v589, %v591
  %v593 = vrot.slane %v144, 6
  %v594 = vsel %vm531, %v591, %v593
  %v595 = vrot.slane %v145, 6
  %v596 = vsel %vm531, %v593, %v595
  %v597 = vrot.slane %v146, 6
  %v598 = vsel %vm531, %v595, %v597
  %v599 = vrot.slane %v147, 6
  %v600 = vsel %vm531, %v597, %v599
  %v601 = vrot.slane %v148, 6
  %v602 = vsel %vm531, %v599, %v601
  %v603 = vrot.slane %v149, 6
  %v604 = vsel %vm531, %v601, %v603
  %v605 = vrot.slane %v150, 6
  %v606 = vsel %vm531, %v603, %v605
  %v607 = vrot.slane %v151, 6
  %v608 = vsel %vm531, %v605, %v607
  %v609 = vrot.slane %v152, 6
  %v610 = vsel %vm531, %v607, %v609
  %v611 = vrot.slane %v153, 6
  %v612 = vsel %vm531, %v609, %v611
  %v613 = vrot.slane %v154, 6
  %v614 = vsel %vm531, %v611, %v613
  %v615 = vrot.slane %v155, 6
  %v616 = vsel %vm531, %v613, %v615
  %v617 = vrot.slane %v156, 6
  %v618 = vsel %vm531, %v615, %v617
  %v619 = vrot.slane %v157, 6
  %v620 = vsel %vm531, %v617, %v619
  %v621 = vrot.slane %v158, 6
  %v622 = vsel %vm531, %v619, %v621
  %v623 = vrot.slane %v159, 6
  %v624 = vsel %vm531, %v621, %v623
  %v625 = vrot.slane %v160, 6
  %v626 = vsel %vm531, %v623, %v625
  %v627 = vrot.slane %v161, 6
  %v628 = vsel %vm531, %v625, %v627
  %v629 = vrot.slane %v162, 6
  %v630 = vsel %vm531, %v627, %v629
  %v631 = vrot.slane %v163, 6
  %v632 = vsel %vm531, %v629, %v631
  %v633 = vrot.slane %v164, 6
  %v634 = vsel %vm531, %v631, %v633
  %v635 = vrot.slane %v165, 6
  %v636 = vsel %vm531, %v633, %v635
  %v637 = vrot.slane %v166, 6
  %v638 = vsel %vm531, %v635, %v637
  %v639 = vrot.slane %v167, 6
  %v640 = vsel %vm531, %v637, %v639
  %v641 = vrot.slane %v168, 6
  %v642 = vsel %vm531, %v639, %v641
  %v643 = vrot.slane %v169, 6
  %v644 = vsel %vm531, %v641, %v643
  %v645 = vrot.slane %v170, 6
  %v646 = vsel %vm531, %v643, %v645
  %v647 = vrot.slane %v171, 6
  %v648 = vsel %vm531, %v645, %v647
  %v649 = vrot.slane %v172, 6
  %v650 = vsel %vm531, %v647, %v649
  %v651 = vrot.slane %v173, 6
  %v652 = vsel %vm531, %v649, %v651
  %v653 = vrot.slane %v174, 6
  %v654 = vsel %vm531, %v651, %v653
  %v655 = vrot.slane %v175, 6
  %v656 = vsel %vm531, %v653, %v655
  %v657 = vrot.slane %v176, 6
  %v658 = vsel %vm531, %v655, %v657
  %v659 = vrot.slane %v177, 6
  %v660 = vsel %vm531, %v657, %v659
  %v661 = vrot.slane %v178, 6
  %v662 = vsel %vm531, %v659, %v661
  %v663 = vrot.slane %v179, 6
  %v664 = vsel %vm531, %v661, %v663
  %v665 = vrot.slane %v180, 6
  %v666 = vsel %vm531, %v663, %v665
  %v667 = vrot.slane %v181, 6
  %v668 = vsel %vm531, %v665, %v667
  %v669 = vrot.slane %v182, 6
  %v670 = vsel %vm531, %v667, %v669
  %v671 = vrot.slane %v183, 6
  %v672 = vsel %vm531, %v669, %v671
  %v673 = vrot.slane %v184, 6
  %v674 = vsel %vm531, %v671, %v673
  %v675 = vrot.slane %v185, 6
  %v676 = vsel %vm531, %v673, %v675
  %v677 = vrot.slane %v186, 6
  %v678 = vsel %vm531, %v675, %v677
  %v679 = vrot.slane %v187, 6
  %v680 = vsel %vm531, %v677, %v679
  %v681 = vrot.slane %v188, 6
  %v682 = vsel %vm531, %v679, %v681
  %v683 = vrot.slane %v189, 6
  %v684 = vsel %vm531, %v681, %v683
  %v685 = vrot.slane %v190, 6
  %v686 = vsel %vm531, %v683, %v685
  %v687 = vrot.slane %v191, 6
  %v688 = vsel %vm531, %v685, %v687
  %v689 = vrot.slane %v192, 6
  %v690 = vsel %vm531, %v687, %v689
  %v691 = vrot.slane %v193, 6
  %v692 = vsel %vm531, %v689, %v691
  %v693 = vsel %vm531, %v691, %v532
  %v695 = vsel %vm531, %v535, %v538
  %vm696 = vcmask 1040384
  %v697 = vrot.slane %v194, 7
  %v698 = vrot.slane %v195, 7
  %v699 = vsel %vm696, %v697, %v698
  %v700 = vrot.slane %v196, 7
  %v701 = vsel %vm696, %v698, %v700
  %v703 = vrot.slane %v116, 7
  %v704 = vrot.slane %v117, 7
  %v705 = vsel %vm696, %v703, %v704
  %v706 = vrot.slane %v118, 7
  %v707 = vsel %vm696, %v704, %v706
  %v708 = vrot.slane %v119, 7
  %v709 = vsel %vm696, %v706, %v708
  %v710 = vrot.slane %v120, 7
  %v711 = vsel %vm696, %v708, %v710
  %v712 = vrot.slane %v121, 7
  %v713 = vsel %vm696, %v710, %v712
  %v714 = vrot.slane %v122, 7
  %v715 = vsel %vm696, %v712, %v714
  %v716 = vrot.slane %v123, 7
  %v717 = vsel %vm696, %v714, %v716
  %v718 = vrot.slane %v124, 7
  %v719 = vsel %vm696, %v716, %v718
  %v720 = vrot.slane %v125, 7
  %v721 = vsel %vm696, %v718, %v720
  %v722 = vrot.slane %v126, 7
  %v723 = vsel %vm696, %v720, %v722
  %v724 = vrot.slane %v127, 7
  %v725 = vsel %vm696, %v722, %v724
  %v726 = vrot.slane %v128, 7
  %v727 = vsel %vm696, %v724, %v726
  %v728 = vrot.slane %v129, 7
  %v729 = vsel %vm696, %v726, %v728
  %v730 = vrot.slane %v130, 7
  %v731 = vsel %vm696, %v728, %v730
  %v732 = vrot.slane %v131, 7
  %v733 = vsel %vm696, %v730, %v732
  %v734 = vrot.slane %v132, 7
  %v735 = vsel %vm696, %v732, %v734
  %v736 = vrot.slane %v133, 7
  %v737 = vsel %vm696, %v734, %v736
  %v738 = vrot.slane %v134, 7
  %v739 = vsel %vm696, %v736, %v738
  %v740 = vrot.slane %v135, 7
  %v741 = vsel %vm696, %v738, %v740
  %v742 = vrot.slane %v136, 7
  %v743 = vsel %vm696, %v740, %v742
  %v744 = vrot.slane %v137, 7
  %v745 = vsel %vm696, %v742, %v744
  %v746 = vrot.slane %v138, 7
  %v747 = vsel %vm696, %v744, %v746
  %v748 = vrot.slane %v139, 7
  %v749 = vsel %vm696, %v746, %v748
  %v750 = vrot.slane %v140, 7
  %v751 = vsel %vm696, %v748, %v750
  %v752 = vrot.slane %v141, 7
  %v753 = vsel %vm696, %v750, %v752
  %v754 = vrot.slane %v142, 7
  %v755 = vsel %vm696, %v752, %v754
  %v756 = vrot.slane %v143, 7
  %v757 = vsel %vm696, %v754, %v756
  %v758 = vrot.slane %v144, 7
  %v759 = vsel %vm696, %v756, %v758
  %v760 = vrot.slane %v145, 7
  %v761 = vsel %vm696, %v758, %v760
  %v762 = vrot.slane %v146, 7
  %v763 = vsel %vm696, %v760, %v762
  %v764 = vrot.slane %v147, 7
  %v765 = vsel %vm696, %v762, %v764
  %v766 = vrot.slane %v148, 7
  %v767 = vsel %vm696, %v764, %v766
  %v768 = vrot.slane %v149, 7
  %v769 = vsel %vm696, %v766, %v768
  %v770 = vrot.slane %v150, 7
  %v771 = vsel %vm696, %v768, %v770
  %v772 = vrot.slane %v151, 7
  %v773 = vsel %vm696, %v770, %v772
  %v774 = vrot.slane %v152, 7
  %v775 = vsel %vm696, %v772, %v774
  %v776 = vrot.slane %v153, 7
  %v777 = vsel %vm696, %v774, %v776
  %v778 = vrot.slane %v154, 7
  %v779 = vsel %vm696, %v776, %v778
  %v780 = vrot.slane %v155, 7
  %v781 = vsel %vm696, %v778, %v780
  %v782 = vrot.slane %v156, 7
  %v783 = vsel %vm696, %v780, %v782
  %v784 = vrot.slane %v157, 7
  %v785 = vsel %vm696, %v782, %v784
  %v786 = vrot.slane %v158, 7
  %v787 = vsel %vm696, %v784, %v786
  %v788 = vrot.slane %v159, 7
  %v789 = vsel %vm696, %v786, %v788
  %v790 = vrot.slane %v160, 7
  %v791 = vsel %vm696, %v788, %v790
  %v792 = vrot.slane %v161, 7
  %v793 = vsel %vm696, %v790, %v792
  %v794 = vrot.slane %v162, 7
  %v795 = vsel %vm696, %v792, %v794
  %v796 = vrot.slane %v163, 7
  %v797 = vsel %vm696, %v794, %v796
  %v798 = vrot.slane %v164, 7
  %v799 = vsel %vm696, %v796, %v798
  %v800 = vrot.slane %v165, 7
  %v801 = vsel %vm696, %v798, %v800
  %v802 = vrot.slane %v166, 7
  %v803 = vsel %vm696, %v800, %v802
  %v804 = vrot.slane %v167, 7
  %v805 = vsel %vm696, %v802, %v804
  %v806 = vrot.slane %v168, 7
  %v807 = vsel %vm696, %v804, %v806
  %v808 = vrot.slane %v169, 7
  %v809 = vsel %vm696, %v806, %v808
  %v810 = vrot.slane %v170, 7
  %v811 = vsel %vm696, %v808, %v810
  %v812 = vrot.slane %v171, 7
  %v813 = vsel %vm696, %v810, %v812
  %v814 = vrot.slane %v172, 7
  %v815 = vsel %vm696, %v812, %v814
  %v816 = vrot.slane %v173, 7
  %v817 = vsel %vm696, %v814, %v816
  %v818 = vrot.slane %v174, 7
  %v819 = vsel %vm696, %v816, %v818
  %v820 = vrot.slane %v175, 7
  %v821 = vsel %vm696, %v818, %v820
  %v822 = vrot.slane %v176, 7
  %v823 = vsel %vm696, %v820, %v822
  %v824 = vrot.slane %v177, 7
  %v825 = vsel %vm696, %v822, %v824
  %v826 = vrot.slane %v178, 7
  %v827 = vsel %vm696, %v824, %v826
  %v828 = vrot.slane %v179, 7
  %v829 = vsel %vm696, %v826, %v828
  %v830 = vrot.slane %v180, 7
  %v831 = vsel %vm696, %v828, %v830
  %v832 = vrot.slane %v181, 7
  %v833 = vsel %vm696, %v830, %v832
  %v834 = vrot.slane %v182, 7
  %v835 = vsel %vm696, %v832, %v834
  %v836 = vrot.slane %v183, 7
  %v837 = vsel %vm696, %v834, %v836
  %v838 = vrot.slane %v184, 7
  %v839 = vsel %vm696, %v836, %v838
  %v840 = vrot.slane %v185, 7
  %v841 = vsel %vm696, %v838, %v840
  %v842 = vrot.slane %v186, 7
  %v843 = vsel %vm696, %v840, %v842
  %v844 = vrot.slane %v187, 7
  %v845 = vsel %vm696, %v842, %v844
  %v846 = vrot.slane %v188, 7
  %v847 = vsel %vm696, %v844, %v846
  %v848 = vrot.slane %v189, 7
  %v849 = vsel %vm696, %v846, %v848
  %v850 = vrot.slane %v190, 7
  %v851 = vsel %vm696, %v848, %v850
  %v852 = vrot.slane %v191, 7
  %v853 = vsel %vm696, %v850, %v852
  %v854 = vrot.slane %v192, 7
  %v855 = vsel %vm696, %v852, %v854
  %v856 = vrot.slane %v193, 7
  %v857 = vsel %vm696, %v854, %v856
  %v858 = vsel %vm696, %v856, %v697
  %v860 = vsel %vm696, %v700, %v703
  %vm861 = vcmask 1046528
  %v862 = vrot.slane %v116, 1
  %v863 = vrot.slane %v117, 1
  %v864 = vsel %vm861, %v862, %v863
  %v865 = vrot.slane %v118, 1
  %v866 = vsel %vm861, %v863, %v865
  %v867 = vrot.slane %v119, 1
  %v868 = vsel %vm861, %v865, %v867
  %v869 = vrot.slane %v120, 1
  %v870 = vsel %vm861, %v867, %v869
  %v871 = vrot.slane %v121, 1
  %v872 = vsel %vm861, %v869, %v871
  %v873 = vrot.slane %v122, 1
  %v874 = vsel %vm861, %v871, %v873
  %v875 = vrot.slane %v123, 1
  %v876 = vsel %vm861, %v873, %v875
  %v877 = vrot.slane %v124, 1
  %v878 = vsel %vm861, %v875, %v877
  %v879 = vrot.slane %v125, 1
  %v880 = vsel %vm861, %v877, %v879
  %v881 = vrot.slane %v126, 1
  %v882 = vsel %vm861, %v879, %v881
  %v883 = vrot.slane %v127, 1
  %v884 = vsel %vm861, %v881, %v883
  %v885 = vrot.slane %v128, 1
  %v886 = vsel %vm861, %v883, %v885
  %v887 = vrot.slane %v129, 1
  %v888 = vsel %vm861, %v885, %v887
  %v889 = vrot.slane %v130, 1
  %v890 = vsel %vm861, %v887, %v889
  %v891 = vrot.slane %v131, 1
  %v892 = vsel %vm861, %v889, %v891
  %v893 = vrot.slane %v132, 1
  %v894 = vsel %vm861, %v891, %v893
  %v895 = vrot.slane %v133, 1
  %v896 = vsel %vm861, %v893, %v895
  %v897 = vrot.slane %v134, 1
  %v898 = vsel %vm861, %v895, %v897
  %v899 = vrot.slane %v135, 1
  %v900 = vsel %vm861, %v897, %v899
  %v901 = vrot.slane %v136, 1
  %v902 = vsel %vm861, %v899, %v901
  %v903 = vrot.slane %v137, 1
  %v904 = vsel %vm861, %v901, %v903
  %v905 = vrot.slane %v138, 1
  %v906 = vsel %vm861, %v903, %v905
  %v907 = vrot.slane %v139, 1
  %v908 = vsel %vm861, %v905, %v907
  %v909 = vrot.slane %v140, 1
  %v910 = vsel %vm861, %v907, %v909
  %v911 = vrot.slane %v141, 1
  %v912 = vsel %vm861, %v909, %v911
  %v913 = vrot.slane %v142, 1
  %v914 = vsel %vm861, %v911, %v913
  %v915 = vrot.slane %v143, 1
  %v916 = vsel %vm861, %v913, %v915
  %v917 = vrot.slane %v144, 1
  %v918 = vsel %vm861, %v915, %v917
  %v919 = vrot.slane %v145, 1
  %v920 = vsel %vm861, %v917, %v919
  %v921 = vrot.slane %v146, 1
  %v922 = vsel %vm861, %v919, %v921
  %v923 = vrot.slane %v147, 1
  %v924 = vsel %vm861, %v921, %v923
  %v925 = vrot.slane %v148, 1
  %v926 = vsel %vm861, %v923, %v925
  %v927 = vrot.slane %v149, 1
  %v928 = vsel %vm861, %v925, %v927
  %v929 = vrot.slane %v150, 1
  %v930 = vsel %vm861, %v927, %v929
  %v931 = vrot.slane %v151, 1
  %v932 = vsel %vm861, %v929, %v931
  %v933 = vrot.slane %v152, 1
  %v934 = vsel %vm861, %v931, %v933
  %v935 = vrot.slane %v153, 1
  %v936 = vsel %vm861, %v933, %v935
  %v937 = vrot.slane %v154, 1
  %v938 = vsel %vm861, %v935, %v937
  %v939 = vrot.slane %v155, 1
  %v940 = vsel %vm861, %v937, %v939
  %v941 = vrot.slane %v156, 1
  %v942 = vsel %vm861, %v939, %v941
  %v943 = vrot.slane %v157, 1
  %v944 = vsel %vm861, %v941, %v943
  %v945 = vrot.slane %v158, 1
  %v946 = vsel %vm861, %v943, %v945
  %v947 = vrot.slane %v159, 1
  %v948 = vsel %vm861, %v945, %v947
  %v949 = vrot.slane %v160, 1
  %v950 = vsel %vm861, %v947, %v949
  %v951 = vrot.slane %v161, 1
  %v952 = vsel %vm861, %v949, %v951
  %v953 = vrot.slane %v162, 1
  %v954 = vsel %vm861, %v951, %v953
  %v955 = vrot.slane %v163, 1
  %v956 = vsel %vm861, %v953, %v955
  %v957 = vrot.slane %v164, 1
  %v958 = vsel %vm861, %v955, %v957
  %v959 = vrot.slane %v165, 1
  %v960 = vsel %vm861, %v957, %v959
  %v961 = vrot.slane %v166, 1
  %v962 = vsel %vm861, %v959, %v961
  %v963 = vrot.slane %v167, 1
  %v964 = vsel %vm861, %v961, %v963
  %v965 = vrot.slane %v168, 1
  %v966 = vsel %vm861, %v963, %v965
  %v967 = vrot.slane %v169, 1
  %v968 = vsel %vm861, %v965, %v967
  %v969 = vrot.slane %v170, 1
  %v970 = vsel %vm861, %v967, %v969
  %v971 = vrot.slane %v171, 1
  %v972 = vsel %vm861, %v969, %v971
  %v973 = vrot.slane %v172, 1
  %v974 = vsel %vm861, %v971, %v973
  %v975 = vrot.slane %v173, 1
  %v976 = vsel %vm861, %v973, %v975
  %v977 = vrot.slane %v174, 1
  %v978 = vsel %vm861, %v975, %v977
  %v979 = vrot.slane %v175, 1
  %v980 = vsel %vm861, %v977, %v979
  %v981 = vrot.slane %v176, 1
  %v982 = vsel %vm861, %v979, %v981
  %v983 = vrot.slane %v177, 1
  %v984 = vsel %vm861, %v981, %v983
  %v985 = vrot.slane %v178, 1
  %v986 = vsel %vm861, %v983, %v985
  %v987 = vrot.slane %v179, 1
  %v988 = vsel %vm861, %v985, %v987
  %v989 = vrot.slane %v180, 1
  %v990 = vsel %vm861, %v987, %v989
  %v991 = vrot.slane %v181, 1
  %v992 = vsel %vm861, %v989, %v991
  %v993 = vrot.slane %v182, 1
  %v994 = vsel %vm861, %v991, %v993
  %v995 = vrot.slane %v183, 1
  %v996 = vsel %vm861, %v993, %v995
  %v997 = vrot.slane %v184, 1
  %v998 = vsel %vm861, %v995, %v997
  %v999 = vrot.slane %v185, 1
  %v1000 = vsel %vm861, %v997, %v999
  %v1001 = vrot.slane %v186, 1
  %v1002 = vsel %vm861, %v999, %v1001
  %v1003 = vrot.slane %v187, 1
  %v1004 = vsel %vm861, %v1001, %v1003
  %v1005 = vrot.slane %v188, 1
  %v1006 = vsel %vm861, %v1003, %v1005
  %v1007 = vrot.slane %v189, 1
  %v1008 = vsel %vm861, %v1005, %v1007
  %v1009 = vrot.slane %v190, 1
  %v1010 = vsel %vm861, %v1007, %v1009
  %v1011 = vrot.slane %v191, 1
  %v1012 = vsel %vm861, %v1009, %v1011
  %v1013 = vrot.slane %v192, 1
  %v1014 = vsel %vm861, %v1011, %v1013
  %v1015 = vrot.slane %v193, 1
  %v1016 = vsel %vm861, %v1013, %v1015
  %v1017 = vrot.slane %v194, 1
  %v1018 = vsel %vm861, %v1015, %v1017
  %v1019 = vrot.slane %v195, 1
  %v1020 = vsel %vm861, %v1017, %v1019
  %v1021 = vrot.slane %v196, 1
  %v1022 = vsel %vm861, %v1019, %v1021
  %v1025 = vsel %vm861, %v1021, %v862
  %vm1026 = vcmask 1045504
  %v1027 = vrot.slane %v118, 2
  %v1028 = vrot.slane %v119, 2
  %v1029 = vsel %vm1026, %v1027, %v1028
  %v1030 = vrot.slane %v120, 2
  %v1031 = vsel %vm1026, %v1028, %v1030
  %v1032 = vrot.slane %v121, 2
  %v1033 = vsel %vm1026, %v1030, %v1032
  %v1034 = vrot.slane %v122, 2
  %v1035 = vsel %vm1026, %v1032, %v1034
  %v1036 = vrot.slane %v123, 2
  %v1037 = vsel %vm1026, %v1034, %v1036
  %v1038 = vrot.slane %v124, 2
  %v1039 = vsel %vm1026, %v1036, %v1038
  %v1040 = vrot.slane %v125, 2
  %v1041 = vsel %vm1026, %v1038, %v1040
  %v1042 = vrot.slane %v126, 2
  %v1043 = vsel %vm1026, %v1040, %v1042
  %v1044 = vrot.slane %v127, 2
  %v1045 = vsel %vm1026, %v1042, %v1044
  %v1046 = vrot.slane %v128, 2
  %v1047 = vsel %vm1026, %v1044, %v1046
  %v1048 = vrot.slane %v129, 2
  %v1049 = vsel %vm1026, %v1046, %v1048
  %v1050 = vrot.slane %v130, 2
  %v1051 = vsel %vm1026, %v1048, %v1050
  %v1052 = vrot.slane %v131, 2
  %v1053 = vsel %vm1026, %v1050, %v1052
  %v1054 = vrot.slane %v132, 2
  %v1055 = vsel %vm1026, %v1052, %v1054
  %v1056 = vrot.slane %v133, 2
  %v1057 = vsel %vm1026, %v1054, %v1056
  %v1058 = vrot.slane %v134, 2
  %v1059 = vsel %vm1026, %v1056, %v1058
  %v1060 = vrot.slane %v135, 2
  %v1061 = vsel %vm1026, %v1058, %v1060
  %v1062 = vrot.slane %v136, 2
  %v1063 = vsel %vm1026, %v1060, %v1062
  %v1064 = vrot.slane %v137, 2
  %v1065 = vsel %vm1026, %v1062, %v1064
  %v1066 = vrot.slane %v138, 2
  %v1067 = vsel %vm1026, %v1064, %v1066
  %v1068 = vrot.slane %v139, 2
  %v1069 = vsel %vm1026, %v1066, %v1068
  %v1070 = vrot.slane %v140, 2
  %v1071 = vsel %vm1026, %v1068, %v1070
  %v1072 = vrot.slane %v141, 2
  %v1073 = vsel %vm1026, %v1070, %v1072
  %v1074 = vrot.slane %v142, 2
  %v1075 = vsel %vm1026, %v1072, %v1074
  %v1076 = vrot.slane %v143, 2
  %v1077 = vsel %vm1026, %v1074, %v1076
  %v1078 = vrot.slane %v144, 2
  %v1079 = vsel %vm1026, %v1076, %v1078
  %v1080 = vrot.slane %v145, 2
  %v1081 = vsel %vm1026, %v1078, %v1080
  %v1082 = vrot.slane %v146, 2
  %v1083 = vsel %vm1026, %v1080, %v1082
  %v1084 = vrot.slane %v147, 2
  %v1085 = vsel %vm1026, %v1082, %v1084
  %v1086 = vrot.slane %v148, 2
  %v1087 = vsel %vm1026, %v1084, %v1086
  %v1088 = vrot.slane %v149, 2
  %v1089 = vsel %vm1026, %v1086, %v1088
  %v1090 = vrot.slane %v150, 2
  %v1091 = vsel %vm1026, %v1088, %v1090
  %v1092 = vrot.slane %v151, 2
  %v1093 = vsel %vm1026, %v1090, %v1092
  %v1094 = vrot.slane %v152, 2
  %v1095 = vsel %vm1026, %v1092, %v1094
  %v1096 = vrot.slane %v153, 2
  %v1097 = vsel %vm1026, %v1094, %v1096
  %v1098 = vrot.slane %v154, 2
  %v1099 = vsel %vm1026, %v1096, %v1098
  %v1100 = vrot.slane %v155, 2
  %v1101 = vsel %vm1026, %v1098, %v1100
  %v1102 = vrot.slane %v156, 2
  %v1103 = vsel %vm1026, %v1100, %v1102
  %v1104 = vrot.slane %v157, 2
  %v1105 = vsel %vm1026, %v1102, %v1104
  %v1106 = vrot.slane %v158, 2
  %v1107 = vsel %vm1026, %v1104, %v1106
  %v1108 = vrot.slane %v159, 2
  %v1109 = vsel %vm1026, %v1106, %v1108
  %v1110 = vrot.slane %v160, 2
  %v1111 = vsel %vm1026, %v1108, %v1110
  %v1112 = vrot.slane %v161, 2
  %v1113 = vsel %vm1026, %v1110, %v1112
  %v1114 = vrot.slane %v162, 2
  %v1115 = vsel %vm1026, %v1112, %v1114
  %v1116 = vrot.slane %v163, 2
  %v1117 = vsel %vm1026, %v1114, %v1116
  %v1118 = vrot.slane %v164, 2
  %v1119 = vsel %vm1026, %v1116, %v1118
  %v1120 = vrot.slane %v165, 2
  %v1121 = vsel %vm1026, %v1118, %v1120
  %v1122 = vrot.slane %v166, 2
  %v1123 = vsel %vm1026, %v1120, %v1122
  %v1124 = vrot.slane %v167, 2
  %v1125 = vsel %vm1026, %v1122, %v1124
  %v1126 = vrot.slane %v168, 2
  %v1127 = vsel %vm1026, %v1124, %v1126
  %v1128 = vrot.slane %v169, 2
  %v1129 = vsel %vm1026, %v1126, %v1128
  %v1130 = vrot.slane %v170, 2
  %v1131 = vsel %vm1026, %v1128, %v1130
  %v1132 = vrot.slane %v171, 2
  %v1133 = vsel %vm1026, %v1130, %v1132
  %v1134 = vrot.slane %v172, 2
  %v1135 = vsel %vm1026, %v1132, %v1134
  %v1136 = vrot.slane %v173, 2
  %v1137 = vsel %vm1026, %v1134, %v1136
  %v1138 = vrot.slane %v174, 2
  %v1139 = vsel %vm1026, %v1136, %v1138
  %v1140 = vrot.slane %v175, 2
  %v1141 = vsel %vm1026, %v1138, %v1140
  %v1142 = vrot.slane %v176, 2
  %v1143 = vsel %vm1026, %v1140, %v1142
  %v1144 = vrot.slane %v177, 2
  %v1145 = vsel %vm1026, %v1142, %v1144
  %v1146 = vrot.slane %v178, 2
  %v1147 = vsel %vm1026, %v1144, %v1146
  %v1148 = vrot.slane %v179, 2
  %v1149 = vsel %vm1026, %v1146, %v1148
  %v1150 = vrot.slane %v180, 2
  %v1151 = vsel %vm1026, %v1148, %v1150
  %v1152 = vrot.slane %v181, 2
  %v1153 = vsel %vm1026, %v1150, %v1152
  %v1154 = vrot.slane %v182, 2
  %v1155 = vsel %vm1026, %v1152, %v1154
  %v1156 = vrot.slane %v183, 2
  %v1157 = vsel %vm1026, %v1154, %v1156
  %v1158 = vrot.slane %v184, 2
  %v1159 = vsel %vm1026, %v1156, %v1158
  %v1160 = vrot.slane %v185, 2
  %v1161 = vsel %vm1026, %v1158, %v1160
  %v1162 = vrot.slane %v186, 2
  %v1163 = vsel %vm1026, %v1160, %v1162
  %v1164 = vrot.slane %v187, 2
  %v1165 = vsel %vm1026, %v1162, %v1164
  %v1166 = vrot.slane %v188, 2
  %v1167 = vsel %vm1026, %v1164, %v1166
  %v1168 = vrot.slane %v189, 2
  %v1169 = vsel %vm1026, %v1166, %v1168
  %v1170 = vrot.slane %v190, 2
  %v1171 = vsel %vm1026, %v1168, %v1170
  %v1172 = vrot.slane %v191, 2
  %v1173 = vsel %vm1026, %v1170, %v1172
  %v1174 = vrot.slane %v192, 2
  %v1175 = vsel %vm1026, %v1172, %v1174
  %v1176 = vrot.slane %v193, 2
  %v1177 = vsel %vm1026, %v1174, %v1176
  %v1178 = vrot.slane %v194, 2
  %v1179 = vsel %vm1026, %v1176, %v1178
  %v1180 = vrot.slane %v195, 2
  %v1181 = vsel %vm1026, %v1178, %v1180
  %v1182 = vrot.slane %v196, 2
  %v1183 = vsel %vm1026, %v1180, %v1182
  %v1185 = vrot.slane %v116, 2
  %v1186 = vrot.slane %v117, 2
  %v1187 = vsel %vm1026, %v1185, %v1186
  %v1188 = vsel %vm1026, %v1186, %v1027
  %v1190 = vsel %vm1026, %v1182, %v1185
  %vm1191 = vcmask 1044480
  %v1192 = vrot.slane %v118, 3
  %v1193 = vrot.slane %v119, 3
  %v1194 = vsel %vm1191, %v1192, %v1193
  %v1195 = vrot.slane %v120, 3
  %v1196 = vsel %vm1191, %v1193, %v1195
  %v1197 = vrot.slane %v121, 3
  %v1198 = vsel %vm1191, %v1195, %v1197
  %v1199 = vrot.slane %v122, 3
  %v1200 = vsel %vm1191, %v1197, %v1199
  %v1201 = vrot.slane %v123, 3
  %v1202 = vsel %vm1191, %v1199, %v1201
  %v1203 = vrot.slane %v124, 3
  %v1204 = vsel %vm1191, %v1201, %v1203
  %v1205 = vrot.slane %v125, 3
  %v1206 = vsel %vm1191, %v1203, %v1205
  %v1207 = vrot.slane %v126, 3
  %v1208 = vsel %vm1191, %v1205, %v1207
  %v1209 = vrot.slane %v127, 3
  %v1210 = vsel %vm1191, %v1207, %v1209
  %v1211 = vrot.slane %v128, 3
  %v1212 = vsel %vm1191, %v1209, %v1211
  %v1213 = vrot.slane %v129, 3
  %v1214 = vsel %vm1191, %v1211, %v1213
  %v1215 = vrot.slane %v130, 3
  %v1216 = vsel %vm1191, %v1213, %v1215
  %v1217 = vrot.slane %v131, 3
  %v1218 = vsel %vm1191, %v1215, %v1217
  %v1219 = vrot.slane %v132, 3
  %v1220 = vsel %vm1191, %v1217, %v1219
  %v1221 = vrot.slane %v133, 3
  %v1222 = vsel %vm1191, %v1219, %v1221
  %v1223 = vrot.slane %v134, 3
  %v1224 = vsel %vm1191, %v1221, %v1223
  %v1225 = vrot.slane %v135, 3
  %v1226 = vsel %vm1191, %v1223, %v1225
  %v1227 = vrot.slane %v136, 3
  %v1228 = vsel %vm1191, %v1225, %v1227
  %v1229 = vrot.slane %v137, 3
  %v1230 = vsel %vm1191, %v1227, %v1229
  %v1231 = vrot.slane %v138, 3
  %v1232 = vsel %vm1191, %v1229, %v1231
  %v1233 = vrot.slane %v139, 3
  %v1234 = vsel %vm1191, %v1231, %v1233
  %v1235 = vrot.slane %v140, 3
  %v1236 = vsel %vm1191, %v1233, %v1235
  %v1237 = vrot.slane %v141, 3
  %v1238 = vsel %vm1191, %v1235, %v1237
  %v1239 = vrot.slane %v142, 3
  %v1240 = vsel %vm1191, %v1237, %v1239
  %v1241 = vrot.slane %v143, 3
  %v1242 = vsel %vm1191, %v1239, %v1241
  %v1243 = vrot.slane %v144, 3
  %v1244 = vsel %vm1191, %v1241, %v1243
  %v1245 = vrot.slane %v145, 3
  %v1246 = vsel %vm1191, %v1243, %v1245
  %v1247 = vrot.slane %v146, 3
  %v1248 = vsel %vm1191, %v1245, %v1247
  %v1249 = vrot.slane %v147, 3
  %v1250 = vsel %vm1191, %v1247, %v1249
  %v1251 = vrot.slane %v148, 3
  %v1252 = vsel %vm1191, %v1249, %v1251
  %v1253 = vrot.slane %v149, 3
  %v1254 = vsel %vm1191, %v1251, %v1253
  %v1255 = vrot.slane %v150, 3
  %v1256 = vsel %vm1191, %v1253, %v1255
  %v1257 = vrot.slane %v151, 3
  %v1258 = vsel %vm1191, %v1255, %v1257
  %v1259 = vrot.slane %v152, 3
  %v1260 = vsel %vm1191, %v1257, %v1259
  %v1261 = vrot.slane %v153, 3
  %v1262 = vsel %vm1191, %v1259, %v1261
  %v1263 = vrot.slane %v154, 3
  %v1264 = vsel %vm1191, %v1261, %v1263
  %v1265 = vrot.slane %v155, 3
  %v1266 = vsel %vm1191, %v1263, %v1265
  %v1267 = vrot.slane %v156, 3
  %v1268 = vsel %vm1191, %v1265, %v1267
  %v1269 = vrot.slane %v157, 3
  %v1270 = vsel %vm1191, %v1267, %v1269
  %v1271 = vrot.slane %v158, 3
  %v1272 = vsel %vm1191, %v1269, %v1271
  %v1273 = vrot.slane %v159, 3
  %v1274 = vsel %vm1191, %v1271, %v1273
  %v1275 = vrot.slane %v160, 3
  %v1276 = vsel %vm1191, %v1273, %v1275
  %v1277 = vrot.slane %v161, 3
  %v1278 = vsel %vm1191, %v1275, %v1277
  %v1279 = vrot.slane %v162, 3
  %v1280 = vsel %vm1191, %v1277, %v1279
  %v1281 = vrot.slane %v163, 3
  %v1282 = vsel %vm1191, %v1279, %v1281
  %v1283 = vrot.slane %v164, 3
  %v1284 = vsel %vm1191, %v1281, %v1283
  %v1285 = vrot.slane %v165, 3
  %v1286 = vsel %vm1191, %v1283, %v1285
  %v1287 = vrot.slane %v166, 3
  %v1288 = vsel %vm1191, %v1285, %v1287
  %v1289 = vrot.slane %v167, 3
  %v1290 = vsel %vm1191, %v1287, %v1289
  %v1291 = vrot.slane %v168, 3
  %v1292 = vsel %vm1191, %v1289, %v1291
  %v1293 = vrot.slane %v169, 3
  %v1294 = vsel %vm1191, %v1291, %v1293
  %v1295 = vrot.slane %v170, 3
  %v1296 = vsel %vm1191, %v1293, %v1295
  %v1297 = vrot.slane %v171, 3
  %v1298 = vsel %vm1191, %v1295, %v1297
  %v1299 = vrot.slane %v172, 3
  %v1300 = vsel %vm1191, %v1297, %v1299
  %v1301 = vrot.slane %v173, 3
  %v1302 = vsel %vm1191, %v1299, %v1301
  %v1303 = vrot.slane %v174, 3
  %v1304 = vsel %vm1191, %v1301, %v1303
  %v1305 = vrot.slane %v175, 3
  %v1306 = vsel %vm1191, %v1303, %v1305
  %v1307 = vrot.slane %v176, 3
  %v1308 = vsel %vm1191, %v1305, %v1307
  %v1309 = vrot.slane %v177, 3
  %v1310 = vsel %vm1191, %v1307, %v1309
  %v1311 = vrot.slane %v178, 3
  %v1312 = vsel %vm1191, %v1309, %v1311
  %v1313 = vrot.slane %v179, 3
  %v1314 = vsel %vm1191, %v1311, %v1313
  %v1315 = vrot.slane %v180, 3
  %v1316 = vsel %vm1191, %v1313, %v1315
  %v1317 = vrot.slane %v181, 3
  %v1318 = vsel %vm1191, %v1315, %v1317
  %v1319 = vrot.slane %v182, 3
  %v1320 = vsel %vm1191, %v1317, %v1319
  %v1321 = vrot.slane %v183, 3
  %v1322 = vsel %vm1191, %v1319, %v1321
  %v1323 = vrot.slane %v184, 3
  %v1324 = vsel %vm1191, %v1321, %v1323
  %v1325 = vrot.slane %v185, 3
  %v1326 = vsel %vm1191, %v1323, %v1325
  %v1327 = vrot.slane %v186, 3
  %v1328 = vsel %vm1191, %v1325, %v1327
  %v1329 = vrot.slane %v187, 3
  %v1330 = vsel %vm1191, %v1327, %v1329
  %v1331 = vrot.slane %v188, 3
  %v1332 = vsel %vm1191, %v1329, %v1331
  %v1333 = vrot.slane %v189, 3
  %v1334 = vsel %vm1191, %v1331, %v1333
  %v1335 = vrot.slane %v190, 3
  %v1336 = vsel %vm1191, %v1333, %v1335
  %v1337 = vrot.slane %v191, 3
  %v1338 = vsel %vm1191, %v1335, %v1337
  %v1339 = vrot.slane %v192, 3
  %v1340 = vsel %vm1191, %v1337, %v1339
  %v1341 = vrot.slane %v193, 3
  %v1342 = vsel %vm1191, %v1339, %v1341
  %v1343 = vrot.slane %v194, 3
  %v1344 = vsel %vm1191, %v1341, %v1343
  %v1345 = vrot.slane %v195, 3
  %v1346 = vsel %vm1191, %v1343, %v1345
  %v1347 = vrot.slane %v196, 3
  %v1348 = vsel %vm1191, %v1345, %v1347
  %v1350 = vrot.slane %v116, 3
  %v1351 = vrot.slane %v117, 3
  %v1352 = vsel %vm1191, %v1350, %v1351
  %v1353 = vsel %vm1191, %v1351, %v1192
  %v1355 = vsel %vm1191, %v1347, %v1350
  %1357 = vrot.lane.b32.xlu0 %v534, 4
  %v1358 = vpop.permute.xlu0 %1357
  %1359 = vrot.lane.b32.xlu0 %v536, 4
  %v1360 = vpop.permute.xlu0 %1359
  %1361 = vrot.lane.b32.xlu0 %v695, 4
  %v1362 = vpop.permute.xlu0 %1361
  %1363 = vrot.lane.b32.xlu0 %v540, 4
  %v1364 = vpop.permute.xlu0 %1363
  %1365 = vrot.lane.b32.xlu0 %v542, 4
  %v1366 = vpop.permute.xlu0 %1365
  %1367 = vrot.lane.b32.xlu0 %v544, 4
  %v1368 = vpop.permute.xlu0 %1367
  %1369 = vrot.lane.b32.xlu0 %v546, 4
  %v1370 = vpop.permute.xlu0 %1369
  %1371 = vrot.lane.b32.xlu0 %v548, 4
  %v1372 = vpop.permute.xlu0 %1371
  %1373 = vrot.lane.b32.xlu0 %v550, 4
  %v1374 = vpop.permute.xlu0 %1373
  %1375 = vrot.lane.b32.xlu0 %v552, 4
  %v1376 = vpop.permute.xlu0 %1375
  %1377 = vrot.lane.b32.xlu0 %v554, 4
  %v1378 = vpop.permute.xlu0 %1377
  %1379 = vrot.lane.b32.xlu0 %v556, 4
  %v1380 = vpop.permute.xlu0 %1379
  %1381 = vrot.lane.b32.xlu0 %v558, 4
  %v1382 = vpop.permute.xlu0 %1381
  %1383 = vrot.lane.b32.xlu0 %v560, 4
  %v1384 = vpop.permute.xlu0 %1383
  %1385 = vrot.lane.b32.xlu0 %v562, 4
  %v1386 = vpop.permute.xlu0 %1385
  %1387 = vrot.lane.b32.xlu0 %v564, 4
  %v1388 = vpop.permute.xlu0 %1387
  %1389 = vrot.lane.b32.xlu0 %v566, 4
  %v1390 = vpop.permute.xlu0 %1389
  %1391 = vrot.lane.b32.xlu0 %v568, 4
  %v1392 = vpop.permute.xlu0 %1391
  %1393 = vrot.lane.b32.xlu0 %v570, 4
  %v1394 = vpop.permute.xlu0 %1393
  %1395 = vrot.lane.b32.xlu0 %v572, 4
  %v1396 = vpop.permute.xlu0 %1395
  %1397 = vrot.lane.b32.xlu0 %v574, 4
  %v1398 = vpop.permute.xlu0 %1397
  %1399 = vrot.lane.b32.xlu0 %v576, 4
  %v1400 = vpop.permute.xlu0 %1399
  %1401 = vrot.lane.b32.xlu0 %v578, 4
  %v1402 = vpop.permute.xlu0 %1401
  %1403 = vrot.lane.b32.xlu0 %v580, 4
  %v1404 = vpop.permute.xlu0 %1403
  %1405 = vrot.lane.b32.xlu0 %v582, 4
  %v1406 = vpop.permute.xlu0 %1405
  %1407 = vrot.lane.b32.xlu0 %v584, 4
  %v1408 = vpop.permute.xlu0 %1407
  %1409 = vrot.lane.b32.xlu0 %v586, 4
  %v1410 = vpop.permute.xlu0 %1409
  %1411 = vrot.lane.b32.xlu0 %v588, 4
  %v1412 = vpop.permute.xlu0 %1411
  %1413 = vrot.lane.b32.xlu0 %v590, 4
  %v1414 = vpop.permute.xlu0 %1413
  %1415 = vrot.lane.b32.xlu0 %v592, 4
  %v1416 = vpop.permute.xlu0 %1415
  %1417 = vrot.lane.b32.xlu0 %v594, 4
  %v1418 = vpop.permute.xlu0 %1417
  %1419 = vrot.lane.b32.xlu0 %v596, 4
  %v1420 = vpop.permute.xlu0 %1419
  %1421 = vrot.lane.b32.xlu0 %v598, 4
  %v1422 = vpop.permute.xlu0 %1421
  %1423 = vrot.lane.b32.xlu0 %v600, 4
  %v1424 = vpop.permute.xlu0 %1423
  %1425 = vrot.lane.b32.xlu0 %v602, 4
  %v1426 = vpop.permute.xlu0 %1425
  %1427 = vrot.lane.b32.xlu0 %v604, 4
  %v1428 = vpop.permute.xlu0 %1427
  %1429 = vrot.lane.b32.xlu0 %v606, 4
  %v1430 = vpop.permute.xlu0 %1429
  %1431 = vrot.lane.b32.xlu0 %v608, 4
  %v1432 = vpop.permute.xlu0 %1431
  %1433 = vrot.lane.b32.xlu0 %v610, 4
  %v1434 = vpop.permute.xlu0 %1433
  %1435 = vrot.lane.b32.xlu0 %v612, 4
  %v1436 = vpop.permute.xlu0 %1435
  %1437 = vrot.lane.b32.xlu0 %v614, 4
  %v1438 = vpop.permute.xlu0 %1437
  %1439 = vrot.lane.b32.xlu0 %v616, 4
  %v1440 = vpop.permute.xlu0 %1439
  %1441 = vrot.lane.b32.xlu0 %v618, 4
  %v1442 = vpop.permute.xlu0 %1441
  %1443 = vrot.lane.b32.xlu0 %v620, 4
  %v1444 = vpop.permute.xlu0 %1443
  %1445 = vrot.lane.b32.xlu0 %v622, 4
  %v1446 = vpop.permute.xlu0 %1445
  %1447 = vrot.lane.b32.xlu0 %v624, 4
  %v1448 = vpop.permute.xlu0 %1447
  %1449 = vrot.lane.b32.xlu0 %v626, 4
  %v1450 = vpop.permute.xlu0 %1449
  %1451 = vrot.lane.b32.xlu0 %v628, 4
  %v1452 = vpop.permute.xlu0 %1451
  %1453 = vrot.lane.b32.xlu0 %v630, 4
  %v1454 = vpop.permute.xlu0 %1453
  %1455 = vrot.lane.b32.xlu0 %v632, 4
  %v1456 = vpop.permute.xlu0 %1455
  %1457 = vrot.lane.b32.xlu0 %v634, 4
  %v1458 = vpop.permute.xlu0 %1457
  %1459 = vrot.lane.b32.xlu0 %v636, 4
  %v1460 = vpop.permute.xlu0 %1459
  %1461 = vrot.lane.b32.xlu0 %v638, 4
  %v1462 = vpop.permute.xlu0 %1461
  %1463 = vrot.lane.b32.xlu0 %v640, 4
  %v1464 = vpop.permute.xlu0 %1463
  %1465 = vrot.lane.b32.xlu0 %v642, 4
  %v1466 = vpop.permute.xlu0 %1465
  %1467 = vrot.lane.b32.xlu0 %v644, 4
  %v1468 = vpop.permute.xlu0 %1467
  %1469 = vrot.lane.b32.xlu0 %v646, 4
  %v1470 = vpop.permute.xlu0 %1469
  %1471 = vrot.lane.b32.xlu0 %v648, 4
  %v1472 = vpop.permute.xlu0 %1471
  %1473 = vrot.lane.b32.xlu0 %v650, 4
  %v1474 = vpop.permute.xlu0 %1473
  %1475 = vrot.lane.b32.xlu0 %v652, 4
  %v1476 = vpop.permute.xlu0 %1475
  %1477 = vrot.lane.b32.xlu0 %v654, 4
  %v1478 = vpop.permute.xlu0 %1477
  %1479 = vrot.lane.b32.xlu0 %v656, 4
  %v1480 = vpop.permute.xlu0 %1479
  %1481 = vrot.lane.b32.xlu0 %v658, 4
  %v1482 = vpop.permute.xlu0 %1481
  %1483 = vrot.lane.b32.xlu0 %v660, 4
  %v1484 = vpop.permute.xlu0 %1483
  %1485 = vrot.lane.b32.xlu0 %v662, 4
  %v1486 = vpop.permute.xlu0 %1485
  %1487 = vrot.lane.b32.xlu0 %v664, 4
  %v1488 = vpop.permute.xlu0 %1487
  %1489 = vrot.lane.b32.xlu0 %v666, 4
  %v1490 = vpop.permute.xlu0 %1489
  %1491 = vrot.lane.b32.xlu0 %v668, 4
  %v1492 = vpop.permute.xlu0 %1491
  %1493 = vrot.lane.b32.xlu0 %v670, 4
  %v1494 = vpop.permute.xlu0 %1493
  %1495 = vrot.lane.b32.xlu0 %v672, 4
  %v1496 = vpop.permute.xlu0 %1495
  %1497 = vrot.lane.b32.xlu0 %v674, 4
  %v1498 = vpop.permute.xlu0 %1497
  %1499 = vrot.lane.b32.xlu0 %v676, 4
  %v1500 = vpop.permute.xlu0 %1499
  %1501 = vrot.lane.b32.xlu0 %v678, 4
  %v1502 = vpop.permute.xlu0 %1501
  %1503 = vrot.lane.b32.xlu0 %v680, 4
  %v1504 = vpop.permute.xlu0 %1503
  %1505 = vrot.lane.b32.xlu0 %v682, 4
  %v1506 = vpop.permute.xlu0 %1505
  %1507 = vrot.lane.b32.xlu0 %v684, 4
  %v1508 = vpop.permute.xlu0 %1507
  %1509 = vrot.lane.b32.xlu0 %v686, 4
  %v1510 = vpop.permute.xlu0 %1509
  %1511 = vrot.lane.b32.xlu0 %v688, 4
  %v1512 = vpop.permute.xlu0 %1511
  %1513 = vrot.lane.b32.xlu0 %v690, 4
  %v1514 = vpop.permute.xlu0 %1513
  %1515 = vrot.lane.b32.xlu0 %v692, 4
  %v1516 = vpop.permute.xlu0 %1515
  %1517 = vrot.lane.b32.xlu0 %v693, 4
  %v1518 = vpop.permute.xlu0 %1517
  %1601 = vrot.lane.b32.xlu0 %v699, 8
  %v1602 = vpop.permute.xlu0 %1601
  %1603 = vrot.lane.b32.xlu0 %v701, 8
  %v1604 = vpop.permute.xlu0 %1603
  %1605 = vrot.lane.b32.xlu0 %v860, 8
  %v1606 = vpop.permute.xlu0 %1605
  %1607 = vrot.lane.b32.xlu0 %v705, 8
  %v1608 = vpop.permute.xlu0 %1607
  %1609 = vrot.lane.b32.xlu0 %v707, 8
  %v1610 = vpop.permute.xlu0 %1609
  %1611 = vrot.lane.b32.xlu0 %v709, 8
  %v1612 = vpop.permute.xlu0 %1611
  %1613 = vrot.lane.b32.xlu0 %v711, 8
  %v1614 = vpop.permute.xlu0 %1613
  %1615 = vrot.lane.b32.xlu0 %v713, 8
  %v1616 = vpop.permute.xlu0 %1615
  %1617 = vrot.lane.b32.xlu0 %v715, 8
  %v1618 = vpop.permute.xlu0 %1617
  %1619 = vrot.lane.b32.xlu0 %v717, 8
  %v1620 = vpop.permute.xlu0 %1619
  %1621 = vrot.lane.b32.xlu0 %v719, 8
  %v1622 = vpop.permute.xlu0 %1621
  %1623 = vrot.lane.b32.xlu0 %v721, 8
  %v1624 = vpop.permute.xlu0 %1623
  %1625 = vrot.lane.b32.xlu0 %v723, 8
  %v1626 = vpop.permute.xlu0 %1625
  %1627 = vrot.lane.b32.xlu0 %v725, 8
  %v1628 = vpop.permute.xlu0 %1627
  %1629 = vrot.lane.b32.xlu0 %v727, 8
  %v1630 = vpop.permute.xlu0 %1629
  %1631 = vrot.lane.b32.xlu0 %v729, 8
  %v1632 = vpop.permute.xlu0 %1631
  %1633 = vrot.lane.b32.xlu0 %v731, 8
  %v1634 = vpop.permute.xlu0 %1633
  %1635 = vrot.lane.b32.xlu0 %v733, 8
  %v1636 = vpop.permute.xlu0 %1635
  %1637 = vrot.lane.b32.xlu0 %v735, 8
  %v1638 = vpop.permute.xlu0 %1637
  %1639 = vrot.lane.b32.xlu0 %v737, 8
  %v1640 = vpop.permute.xlu0 %1639
  %1641 = vrot.lane.b32.xlu0 %v739, 8
  %v1642 = vpop.permute.xlu0 %1641
  %1643 = vrot.lane.b32.xlu0 %v741, 8
  %v1644 = vpop.permute.xlu0 %1643
  %1645 = vrot.lane.b32.xlu0 %v743, 8
  %v1646 = vpop.permute.xlu0 %1645
  %1647 = vrot.lane.b32.xlu0 %v745, 8
  %v1648 = vpop.permute.xlu0 %1647
  %1649 = vrot.lane.b32.xlu0 %v747, 8
  %v1650 = vpop.permute.xlu0 %1649
  %1651 = vrot.lane.b32.xlu0 %v749, 8
  %v1652 = vpop.permute.xlu0 %1651
  %1653 = vrot.lane.b32.xlu0 %v751, 8
  %v1654 = vpop.permute.xlu0 %1653
  %1655 = vrot.lane.b32.xlu0 %v753, 8
  %v1656 = vpop.permute.xlu0 %1655
  %1657 = vrot.lane.b32.xlu0 %v755, 8
  %v1658 = vpop.permute.xlu0 %1657
  %1659 = vrot.lane.b32.xlu0 %v757, 8
  %v1660 = vpop.permute.xlu0 %1659
  %1661 = vrot.lane.b32.xlu0 %v759, 8
  %v1662 = vpop.permute.xlu0 %1661
  %1663 = vrot.lane.b32.xlu0 %v761, 8
  %v1664 = vpop.permute.xlu0 %1663
  %1665 = vrot.lane.b32.xlu0 %v763, 8
  %v1666 = vpop.permute.xlu0 %1665
  %1667 = vrot.lane.b32.xlu0 %v765, 8
  %v1668 = vpop.permute.xlu0 %1667
  %1669 = vrot.lane.b32.xlu0 %v767, 8
  %v1670 = vpop.permute.xlu0 %1669
  %1671 = vrot.lane.b32.xlu0 %v769, 8
  %v1672 = vpop.permute.xlu0 %1671
  %1673 = vrot.lane.b32.xlu0 %v771, 8
  %v1674 = vpop.permute.xlu0 %1673
  %1675 = vrot.lane.b32.xlu0 %v773, 8
  %v1676 = vpop.permute.xlu0 %1675
  %1677 = vrot.lane.b32.xlu0 %v775, 8
  %v1678 = vpop.permute.xlu0 %1677
  %1679 = vrot.lane.b32.xlu0 %v777, 8
  %v1680 = vpop.permute.xlu0 %1679
  %1681 = vrot.lane.b32.xlu0 %v779, 8
  %v1682 = vpop.permute.xlu0 %1681
  %1683 = vrot.lane.b32.xlu0 %v781, 8
  %v1684 = vpop.permute.xlu0 %1683
  %1685 = vrot.lane.b32.xlu0 %v783, 8
  %v1686 = vpop.permute.xlu0 %1685
  %1687 = vrot.lane.b32.xlu0 %v785, 8
  %v1688 = vpop.permute.xlu0 %1687
  %1689 = vrot.lane.b32.xlu0 %v787, 8
  %v1690 = vpop.permute.xlu0 %1689
  %1691 = vrot.lane.b32.xlu0 %v789, 8
  %v1692 = vpop.permute.xlu0 %1691
  %1693 = vrot.lane.b32.xlu0 %v791, 8
  %v1694 = vpop.permute.xlu0 %1693
  %1695 = vrot.lane.b32.xlu0 %v793, 8
  %v1696 = vpop.permute.xlu0 %1695
  %1697 = vrot.lane.b32.xlu0 %v795, 8
  %v1698 = vpop.permute.xlu0 %1697
  %1699 = vrot.lane.b32.xlu0 %v797, 8
  %v1700 = vpop.permute.xlu0 %1699
  %1701 = vrot.lane.b32.xlu0 %v799, 8
  %v1702 = vpop.permute.xlu0 %1701
  %1703 = vrot.lane.b32.xlu0 %v801, 8
  %v1704 = vpop.permute.xlu0 %1703
  %1705 = vrot.lane.b32.xlu0 %v803, 8
  %v1706 = vpop.permute.xlu0 %1705
  %1707 = vrot.lane.b32.xlu0 %v805, 8
  %v1708 = vpop.permute.xlu0 %1707
  %1709 = vrot.lane.b32.xlu0 %v807, 8
  %v1710 = vpop.permute.xlu0 %1709
  %1711 = vrot.lane.b32.xlu0 %v809, 8
  %v1712 = vpop.permute.xlu0 %1711
  %1713 = vrot.lane.b32.xlu0 %v811, 8
  %v1714 = vpop.permute.xlu0 %1713
  %1715 = vrot.lane.b32.xlu0 %v813, 8
  %v1716 = vpop.permute.xlu0 %1715
  %1717 = vrot.lane.b32.xlu0 %v815, 8
  %v1718 = vpop.permute.xlu0 %1717
  %1719 = vrot.lane.b32.xlu0 %v817, 8
  %v1720 = vpop.permute.xlu0 %1719
  %1721 = vrot.lane.b32.xlu0 %v819, 8
  %v1722 = vpop.permute.xlu0 %1721
  %1723 = vrot.lane.b32.xlu0 %v821, 8
  %v1724 = vpop.permute.xlu0 %1723
  %1725 = vrot.lane.b32.xlu0 %v823, 8
  %v1726 = vpop.permute.xlu0 %1725
  %1727 = vrot.lane.b32.xlu0 %v825, 8
  %v1728 = vpop.permute.xlu0 %1727
  %1729 = vrot.lane.b32.xlu0 %v827, 8
  %v1730 = vpop.permute.xlu0 %1729
  %1731 = vrot.lane.b32.xlu0 %v829, 8
  %v1732 = vpop.permute.xlu0 %1731
  %1733 = vrot.lane.b32.xlu0 %v831, 8
  %v1734 = vpop.permute.xlu0 %1733
  %1735 = vrot.lane.b32.xlu0 %v833, 8
  %v1736 = vpop.permute.xlu0 %1735
  %1737 = vrot.lane.b32.xlu0 %v835, 8
  %v1738 = vpop.permute.xlu0 %1737
  %1739 = vrot.lane.b32.xlu0 %v837, 8
  %v1740 = vpop.permute.xlu0 %1739
  %1741 = vrot.lane.b32.xlu0 %v839, 8
  %v1742 = vpop.permute.xlu0 %1741
  %1743 = vrot.lane.b32.xlu0 %v841, 8
  %v1744 = vpop.permute.xlu0 %1743
  %1745 = vrot.lane.b32.xlu0 %v843, 8
  %v1746 = vpop.permute.xlu0 %1745
  %1747 = vrot.lane.b32.xlu0 %v845, 8
  %v1748 = vpop.permute.xlu0 %1747
  %1749 = vrot.lane.b32.xlu0 %v847, 8
  %v1750 = vpop.permute.xlu0 %1749
  %1751 = vrot.lane.b32.xlu0 %v849, 8
  %v1752 = vpop.permute.xlu0 %1751
  %1753 = vrot.lane.b32.xlu0 %v851, 8
  %v1754 = vpop.permute.xlu0 %1753
  %1755 = vrot.lane.b32.xlu0 %v853, 8
  %v1756 = vpop.permute.xlu0 %1755
  %1757 = vrot.lane.b32.xlu0 %v855, 8
  %v1758 = vpop.permute.xlu0 %1757
  %1759 = vrot.lane.b32.xlu0 %v857, 8
  %v1760 = vpop.permute.xlu0 %1759
  %1761 = vrot.lane.b32.xlu0 %v858, 8
  %v1762 = vpop.permute.xlu0 %1761
  %1844 = vrot.lane.b32.xlu0 %v860, 12
  %v1845 = vpop.permute.xlu0 %1844
  %1846 = vrot.lane.b32.xlu0 %v705, 12
  %v1847 = vpop.permute.xlu0 %1846
  %1848 = vrot.lane.b32.xlu0 %v707, 12
  %v1849 = vpop.permute.xlu0 %1848
  %1850 = vrot.lane.b32.xlu0 %v709, 12
  %v1851 = vpop.permute.xlu0 %1850
  %1852 = vrot.lane.b32.xlu0 %v711, 12
  %v1853 = vpop.permute.xlu0 %1852
  %1854 = vrot.lane.b32.xlu0 %v713, 12
  %v1855 = vpop.permute.xlu0 %1854
  %1856 = vrot.lane.b32.xlu0 %v715, 12
  %v1857 = vpop.permute.xlu0 %1856
  %1858 = vrot.lane.b32.xlu0 %v717, 12
  %v1859 = vpop.permute.xlu0 %1858
  %1860 = vrot.lane.b32.xlu0 %v719, 12
  %v1861 = vpop.permute.xlu0 %1860
  %1862 = vrot.lane.b32.xlu0 %v721, 12
  %v1863 = vpop.permute.xlu0 %1862
  %1864 = vrot.lane.b32.xlu0 %v723, 12
  %v1865 = vpop.permute.xlu0 %1864
  %1866 = vrot.lane.b32.xlu0 %v725, 12
  %v1867 = vpop.permute.xlu0 %1866
  %1868 = vrot.lane.b32.xlu0 %v727, 12
  %v1869 = vpop.permute.xlu0 %1868
  %1870 = vrot.lane.b32.xlu0 %v729, 12
  %v1871 = vpop.permute.xlu0 %1870
  %1872 = vrot.lane.b32.xlu0 %v731, 12
  %v1873 = vpop.permute.xlu0 %1872
  %1874 = vrot.lane.b32.xlu0 %v733, 12
  %v1875 = vpop.permute.xlu0 %1874
  %1876 = vrot.lane.b32.xlu0 %v735, 12
  %v1877 = vpop.permute.xlu0 %1876
  %1878 = vrot.lane.b32.xlu0 %v737, 12
  %v1879 = vpop.permute.xlu0 %1878
  %1880 = vrot.lane.b32.xlu0 %v739, 12
  %v1881 = vpop.permute.xlu0 %1880
  %1882 = vrot.lane.b32.xlu0 %v741, 12
  %v1883 = vpop.permute.xlu0 %1882
  %1884 = vrot.lane.b32.xlu0 %v743, 12
  %v1885 = vpop.permute.xlu0 %1884
  %1886 = vrot.lane.b32.xlu0 %v745, 12
  %v1887 = vpop.permute.xlu0 %1886
  %1888 = vrot.lane.b32.xlu0 %v747, 12
  %v1889 = vpop.permute.xlu0 %1888
  %1890 = vrot.lane.b32.xlu0 %v749, 12
  %v1891 = vpop.permute.xlu0 %1890
  %1892 = vrot.lane.b32.xlu0 %v751, 12
  %v1893 = vpop.permute.xlu0 %1892
  %1894 = vrot.lane.b32.xlu0 %v753, 12
  %v1895 = vpop.permute.xlu0 %1894
  %1896 = vrot.lane.b32.xlu0 %v755, 12
  %v1897 = vpop.permute.xlu0 %1896
  %1898 = vrot.lane.b32.xlu0 %v757, 12
  %v1899 = vpop.permute.xlu0 %1898
  %1900 = vrot.lane.b32.xlu0 %v759, 12
  %v1901 = vpop.permute.xlu0 %1900
  %1902 = vrot.lane.b32.xlu0 %v761, 12
  %v1903 = vpop.permute.xlu0 %1902
  %1904 = vrot.lane.b32.xlu0 %v763, 12
  %v1905 = vpop.permute.xlu0 %1904
  %1906 = vrot.lane.b32.xlu0 %v765, 12
  %v1907 = vpop.permute.xlu0 %1906
  %1908 = vrot.lane.b32.xlu0 %v767, 12
  %v1909 = vpop.permute.xlu0 %1908
  %1910 = vrot.lane.b32.xlu0 %v769, 12
  %v1911 = vpop.permute.xlu0 %1910
  %1912 = vrot.lane.b32.xlu0 %v771, 12
  %v1913 = vpop.permute.xlu0 %1912
  %1914 = vrot.lane.b32.xlu0 %v773, 12
  %v1915 = vpop.permute.xlu0 %1914
  %1916 = vrot.lane.b32.xlu0 %v775, 12
  %v1917 = vpop.permute.xlu0 %1916
  %1918 = vrot.lane.b32.xlu0 %v777, 12
  %v1919 = vpop.permute.xlu0 %1918
  %1920 = vrot.lane.b32.xlu0 %v779, 12
  %v1921 = vpop.permute.xlu0 %1920
  %1922 = vrot.lane.b32.xlu0 %v781, 12
  %v1923 = vpop.permute.xlu0 %1922
  %1924 = vrot.lane.b32.xlu0 %v783, 12
  %v1925 = vpop.permute.xlu0 %1924
  %1926 = vrot.lane.b32.xlu0 %v785, 12
  %v1927 = vpop.permute.xlu0 %1926
  %1928 = vrot.lane.b32.xlu0 %v787, 12
  %v1929 = vpop.permute.xlu0 %1928
  %1930 = vrot.lane.b32.xlu0 %v789, 12
  %v1931 = vpop.permute.xlu0 %1930
  %1932 = vrot.lane.b32.xlu0 %v791, 12
  %v1933 = vpop.permute.xlu0 %1932
  %1934 = vrot.lane.b32.xlu0 %v793, 12
  %v1935 = vpop.permute.xlu0 %1934
  %1936 = vrot.lane.b32.xlu0 %v795, 12
  %v1937 = vpop.permute.xlu0 %1936
  %1938 = vrot.lane.b32.xlu0 %v797, 12
  %v1939 = vpop.permute.xlu0 %1938
  %1940 = vrot.lane.b32.xlu0 %v799, 12
  %v1941 = vpop.permute.xlu0 %1940
  %1942 = vrot.lane.b32.xlu0 %v801, 12
  %v1943 = vpop.permute.xlu0 %1942
  %1944 = vrot.lane.b32.xlu0 %v803, 12
  %v1945 = vpop.permute.xlu0 %1944
  %1946 = vrot.lane.b32.xlu0 %v805, 12
  %v1947 = vpop.permute.xlu0 %1946
  %1948 = vrot.lane.b32.xlu0 %v807, 12
  %v1949 = vpop.permute.xlu0 %1948
  %1950 = vrot.lane.b32.xlu0 %v809, 12
  %v1951 = vpop.permute.xlu0 %1950
  %1952 = vrot.lane.b32.xlu0 %v811, 12
  %v1953 = vpop.permute.xlu0 %1952
  %1954 = vrot.lane.b32.xlu0 %v813, 12
  %v1955 = vpop.permute.xlu0 %1954
  %1956 = vrot.lane.b32.xlu0 %v815, 12
  %v1957 = vpop.permute.xlu0 %1956
  %1958 = vrot.lane.b32.xlu0 %v817, 12
  %v1959 = vpop.permute.xlu0 %1958
  %1960 = vrot.lane.b32.xlu0 %v819, 12
  %v1961 = vpop.permute.xlu0 %1960
  %1962 = vrot.lane.b32.xlu0 %v821, 12
  %v1963 = vpop.permute.xlu0 %1962
  %1964 = vrot.lane.b32.xlu0 %v823, 12
  %v1965 = vpop.permute.xlu0 %1964
  %1966 = vrot.lane.b32.xlu0 %v825, 12
  %v1967 = vpop.permute.xlu0 %1966
  %1968 = vrot.lane.b32.xlu0 %v827, 12
  %v1969 = vpop.permute.xlu0 %1968
  %1970 = vrot.lane.b32.xlu0 %v829, 12
  %v1971 = vpop.permute.xlu0 %1970
  %1972 = vrot.lane.b32.xlu0 %v831, 12
  %v1973 = vpop.permute.xlu0 %1972
  %1974 = vrot.lane.b32.xlu0 %v833, 12
  %v1975 = vpop.permute.xlu0 %1974
  %1976 = vrot.lane.b32.xlu0 %v835, 12
  %v1977 = vpop.permute.xlu0 %1976
  %1978 = vrot.lane.b32.xlu0 %v837, 12
  %v1979 = vpop.permute.xlu0 %1978
  %1980 = vrot.lane.b32.xlu0 %v839, 12
  %v1981 = vpop.permute.xlu0 %1980
  %1982 = vrot.lane.b32.xlu0 %v841, 12
  %v1983 = vpop.permute.xlu0 %1982
  %1984 = vrot.lane.b32.xlu0 %v843, 12
  %v1985 = vpop.permute.xlu0 %1984
  %1986 = vrot.lane.b32.xlu0 %v845, 12
  %v1987 = vpop.permute.xlu0 %1986
  %1988 = vrot.lane.b32.xlu0 %v847, 12
  %v1989 = vpop.permute.xlu0 %1988
  %1990 = vrot.lane.b32.xlu0 %v849, 12
  %v1991 = vpop.permute.xlu0 %1990
  %1992 = vrot.lane.b32.xlu0 %v851, 12
  %v1993 = vpop.permute.xlu0 %1992
  %1994 = vrot.lane.b32.xlu0 %v853, 12
  %v1995 = vpop.permute.xlu0 %1994
  %1996 = vrot.lane.b32.xlu0 %v855, 12
  %v1997 = vpop.permute.xlu0 %1996
  %1998 = vrot.lane.b32.xlu0 %v857, 12
  %v1999 = vpop.permute.xlu0 %1998
  %2000 = vrot.lane.b32.xlu0 %v858, 12
  %v2001 = vpop.permute.xlu0 %2000
  %2002 = vrot.lane.b32.xlu0 %v699, 12
  %v2003 = vpop.permute.xlu0 %2002
  %2004 = vrot.lane.b32.xlu0 %v701, 12
  %v2005 = vpop.permute.xlu0 %2004
  %2087 = vrot.lane.b32.xlu0 %v116, 16
  %v2088 = vpop.permute.xlu0 %2087
  %2089 = vrot.lane.b32.xlu0 %v117, 16
  %v2090 = vpop.permute.xlu0 %2089
  %2091 = vrot.lane.b32.xlu0 %v118, 16
  %v2092 = vpop.permute.xlu0 %2091
  %2093 = vrot.lane.b32.xlu0 %v119, 16
  %v2094 = vpop.permute.xlu0 %2093
  %2095 = vrot.lane.b32.xlu0 %v120, 16
  %v2096 = vpop.permute.xlu0 %2095
  %2097 = vrot.lane.b32.xlu0 %v121, 16
  %v2098 = vpop.permute.xlu0 %2097
  %2099 = vrot.lane.b32.xlu0 %v122, 16
  %v2100 = vpop.permute.xlu0 %2099
  %2101 = vrot.lane.b32.xlu0 %v123, 16
  %v2102 = vpop.permute.xlu0 %2101
  %2103 = vrot.lane.b32.xlu0 %v124, 16
  %v2104 = vpop.permute.xlu0 %2103
  %2105 = vrot.lane.b32.xlu0 %v125, 16
  %v2106 = vpop.permute.xlu0 %2105
  %2107 = vrot.lane.b32.xlu0 %v126, 16
  %v2108 = vpop.permute.xlu0 %2107
  %2109 = vrot.lane.b32.xlu0 %v127, 16
  %v2110 = vpop.permute.xlu0 %2109
  %2111 = vrot.lane.b32.xlu0 %v128, 16
  %v2112 = vpop.permute.xlu0 %2111
  %2113 = vrot.lane.b32.xlu0 %v129, 16
  %v2114 = vpop.permute.xlu0 %2113
  %2115 = vrot.lane.b32.xlu0 %v130, 16
  %v2116 = vpop.permute.xlu0 %2115
  %2117 = vrot.lane.b32.xlu0 %v131, 16
  %v2118 = vpop.permute.xlu0 %2117
  %2119 = vrot.lane.b32.xlu0 %v132, 16
  %v2120 = vpop.permute.xlu0 %2119
  %2121 = vrot.lane.b32.xlu0 %v133, 16
  %v2122 = vpop.permute.xlu0 %2121
  %2123 = vrot.lane.b32.xlu0 %v134, 16
  %v2124 = vpop.permute.xlu0 %2123
  %2125 = vrot.lane.b32.xlu0 %v135, 16
  %v2126 = vpop.permute.xlu0 %2125
  %2127 = vrot.lane.b32.xlu0 %v136, 16
  %v2128 = vpop.permute.xlu0 %2127
  %2129 = vrot.lane.b32.xlu0 %v137, 16
  %v2130 = vpop.permute.xlu0 %2129
  %2131 = vrot.lane.b32.xlu0 %v138, 16
  %v2132 = vpop.permute.xlu0 %2131
  %2133 = vrot.lane.b32.xlu0 %v139, 16
  %v2134 = vpop.permute.xlu0 %2133
  %2135 = vrot.lane.b32.xlu0 %v140, 16
  %v2136 = vpop.permute.xlu0 %2135
  %2137 = vrot.lane.b32.xlu0 %v141, 16
  %v2138 = vpop.permute.xlu0 %2137
  %2139 = vrot.lane.b32.xlu0 %v142, 16
  %v2140 = vpop.permute.xlu0 %2139
  %2141 = vrot.lane.b32.xlu0 %v143, 16
  %v2142 = vpop.permute.xlu0 %2141
  %2143 = vrot.lane.b32.xlu0 %v144, 16
  %v2144 = vpop.permute.xlu0 %2143
  %2145 = vrot.lane.b32.xlu0 %v145, 16
  %v2146 = vpop.permute.xlu0 %2145
  %2147 = vrot.lane.b32.xlu0 %v146, 16
  %v2148 = vpop.permute.xlu0 %2147
  %2149 = vrot.lane.b32.xlu0 %v147, 16
  %v2150 = vpop.permute.xlu0 %2149
  %2151 = vrot.lane.b32.xlu0 %v148, 16
  %v2152 = vpop.permute.xlu0 %2151
  %2153 = vrot.lane.b32.xlu0 %v149, 16
  %v2154 = vpop.permute.xlu0 %2153
  %2155 = vrot.lane.b32.xlu0 %v150, 16
  %v2156 = vpop.permute.xlu0 %2155
  %2157 = vrot.lane.b32.xlu0 %v151, 16
  %v2158 = vpop.permute.xlu0 %2157
  %2159 = vrot.lane.b32.xlu0 %v152, 16
  %v2160 = vpop.permute.xlu0 %2159
  %2161 = vrot.lane.b32.xlu0 %v153, 16
  %v2162 = vpop.permute.xlu0 %2161
  %2163 = vrot.lane.b32.xlu0 %v154, 16
  %v2164 = vpop.permute.xlu0 %2163
  %2165 = vrot.lane.b32.xlu0 %v155, 16
  %v2166 = vpop.permute.xlu0 %2165
  %2167 = vrot.lane.b32.xlu0 %v156, 16
  %v2168 = vpop.permute.xlu0 %2167
  %2169 = vrot.lane.b32.xlu0 %v157, 16
  %v2170 = vpop.permute.xlu0 %2169
  %2171 = vrot.lane.b32.xlu0 %v158, 16
  %v2172 = vpop.permute.xlu0 %2171
  %2173 = vrot.lane.b32.xlu0 %v159, 16
  %v2174 = vpop.permute.xlu0 %2173
  %2175 = vrot.lane.b32.xlu0 %v160, 16
  %v2176 = vpop.permute.xlu0 %2175
  %2177 = vrot.lane.b32.xlu0 %v161, 16
  %v2178 = vpop.permute.xlu0 %2177
  %2179 = vrot.lane.b32.xlu0 %v162, 16
  %v2180 = vpop.permute.xlu0 %2179
  %2181 = vrot.lane.b32.xlu0 %v163, 16
  %v2182 = vpop.permute.xlu0 %2181
  %2183 = vrot.lane.b32.xlu0 %v164, 16
  %v2184 = vpop.permute.xlu0 %2183
  %2185 = vrot.lane.b32.xlu0 %v165, 16
  %v2186 = vpop.permute.xlu0 %2185
  %2187 = vrot.lane.b32.xlu0 %v166, 16
  %v2188 = vpop.permute.xlu0 %2187
  %2189 = vrot.lane.b32.xlu0 %v167, 16
  %v2190 = vpop.permute.xlu0 %2189
  %2191 = vrot.lane.b32.xlu0 %v168, 16
  %v2192 = vpop.permute.xlu0 %2191
  %2193 = vrot.lane.b32.xlu0 %v169, 16
  %v2194 = vpop.permute.xlu0 %2193
  %2195 = vrot.lane.b32.xlu0 %v170, 16
  %v2196 = vpop.permute.xlu0 %2195
  %2197 = vrot.lane.b32.xlu0 %v171, 16
  %v2198 = vpop.permute.xlu0 %2197
  %2199 = vrot.lane.b32.xlu0 %v172, 16
  %v2200 = vpop.permute.xlu0 %2199
  %2201 = vrot.lane.b32.xlu0 %v173, 16
  %v2202 = vpop.permute.xlu0 %2201
  %2203 = vrot.lane.b32.xlu0 %v174, 16
  %v2204 = vpop.permute.xlu0 %2203
  %2205 = vrot.lane.b32.xlu0 %v175, 16
  %v2206 = vpop.permute.xlu0 %2205
  %2207 = vrot.lane.b32.xlu0 %v176, 16
  %v2208 = vpop.permute.xlu0 %2207
  %2209 = vrot.lane.b32.xlu0 %v177, 16
  %v2210 = vpop.permute.xlu0 %2209
  %2211 = vrot.lane.b32.xlu0 %v178, 16
  %v2212 = vpop.permute.xlu0 %2211
  %2213 = vrot.lane.b32.xlu0 %v179, 16
  %v2214 = vpop.permute.xlu0 %2213
  %2215 = vrot.lane.b32.xlu0 %v180, 16
  %v2216 = vpop.permute.xlu0 %2215
  %2217 = vrot.lane.b32.xlu0 %v181, 16
  %v2218 = vpop.permute.xlu0 %2217
  %2219 = vrot.lane.b32.xlu0 %v182, 16
  %v2220 = vpop.permute.xlu0 %2219
  %2221 = vrot.lane.b32.xlu0 %v183, 16
  %v2222 = vpop.permute.xlu0 %2221
  %2223 = vrot.lane.b32.xlu0 %v184, 16
  %v2224 = vpop.permute.xlu0 %2223
  %2225 = vrot.lane.b32.xlu0 %v185, 16
  %v2226 = vpop.permute.xlu0 %2225
  %2227 = vrot.lane.b32.xlu0 %v186, 16
  %v2228 = vpop.permute.xlu0 %2227
  %2229 = vrot.lane.b32.xlu0 %v187, 16
  %v2230 = vpop.permute.xlu0 %2229
  %2231 = vrot.lane.b32.xlu0 %v188, 16
  %v2232 = vpop.permute.xlu0 %2231
  %2233 = vrot.lane.b32.xlu0 %v189, 16
  %v2234 = vpop.permute.xlu0 %2233
  %2235 = vrot.lane.b32.xlu0 %v190, 16
  %v2236 = vpop.permute.xlu0 %2235
  %2237 = vrot.lane.b32.xlu0 %v191, 16
  %v2238 = vpop.permute.xlu0 %2237
  %2239 = vrot.lane.b32.xlu0 %v192, 16
  %v2240 = vpop.permute.xlu0 %2239
  %2241 = vrot.lane.b32.xlu0 %v193, 16
  %v2242 = vpop.permute.xlu0 %2241
  %2243 = vrot.lane.b32.xlu0 %v194, 16
  %v2244 = vpop.permute.xlu0 %2243
  %2245 = vrot.lane.b32.xlu0 %v195, 16
  %v2246 = vpop.permute.xlu0 %2245
  %2247 = vrot.lane.b32.xlu0 %v196, 16
  %v2248 = vpop.permute.xlu0 %2247
  %2331 = vrot.lane.b32.xlu0 %v864, 20
  %v2332 = vpop.permute.xlu0 %2331
  %2333 = vrot.lane.b32.xlu0 %v866, 20
  %v2334 = vpop.permute.xlu0 %2333
  %2335 = vrot.lane.b32.xlu0 %v868, 20
  %v2336 = vpop.permute.xlu0 %2335
  %2337 = vrot.lane.b32.xlu0 %v870, 20
  %v2338 = vpop.permute.xlu0 %2337
  %2339 = vrot.lane.b32.xlu0 %v872, 20
  %v2340 = vpop.permute.xlu0 %2339
  %2341 = vrot.lane.b32.xlu0 %v874, 20
  %v2342 = vpop.permute.xlu0 %2341
  %2343 = vrot.lane.b32.xlu0 %v876, 20
  %v2344 = vpop.permute.xlu0 %2343
  %2345 = vrot.lane.b32.xlu0 %v878, 20
  %v2346 = vpop.permute.xlu0 %2345
  %2347 = vrot.lane.b32.xlu0 %v880, 20
  %v2348 = vpop.permute.xlu0 %2347
  %2349 = vrot.lane.b32.xlu0 %v882, 20
  %v2350 = vpop.permute.xlu0 %2349
  %2351 = vrot.lane.b32.xlu0 %v884, 20
  %v2352 = vpop.permute.xlu0 %2351
  %2353 = vrot.lane.b32.xlu0 %v886, 20
  %v2354 = vpop.permute.xlu0 %2353
  %2355 = vrot.lane.b32.xlu0 %v888, 20
  %v2356 = vpop.permute.xlu0 %2355
  %2357 = vrot.lane.b32.xlu0 %v890, 20
  %v2358 = vpop.permute.xlu0 %2357
  %2359 = vrot.lane.b32.xlu0 %v892, 20
  %v2360 = vpop.permute.xlu0 %2359
  %2361 = vrot.lane.b32.xlu0 %v894, 20
  %v2362 = vpop.permute.xlu0 %2361
  %2363 = vrot.lane.b32.xlu0 %v896, 20
  %v2364 = vpop.permute.xlu0 %2363
  %2365 = vrot.lane.b32.xlu0 %v898, 20
  %v2366 = vpop.permute.xlu0 %2365
  %2367 = vrot.lane.b32.xlu0 %v900, 20
  %v2368 = vpop.permute.xlu0 %2367
  %2369 = vrot.lane.b32.xlu0 %v902, 20
  %v2370 = vpop.permute.xlu0 %2369
  %2371 = vrot.lane.b32.xlu0 %v904, 20
  %v2372 = vpop.permute.xlu0 %2371
  %2373 = vrot.lane.b32.xlu0 %v906, 20
  %v2374 = vpop.permute.xlu0 %2373
  %2375 = vrot.lane.b32.xlu0 %v908, 20
  %v2376 = vpop.permute.xlu0 %2375
  %2377 = vrot.lane.b32.xlu0 %v910, 20
  %v2378 = vpop.permute.xlu0 %2377
  %2379 = vrot.lane.b32.xlu0 %v912, 20
  %v2380 = vpop.permute.xlu0 %2379
  %2381 = vrot.lane.b32.xlu0 %v914, 20
  %v2382 = vpop.permute.xlu0 %2381
  %2383 = vrot.lane.b32.xlu0 %v916, 20
  %v2384 = vpop.permute.xlu0 %2383
  %2385 = vrot.lane.b32.xlu0 %v918, 20
  %v2386 = vpop.permute.xlu0 %2385
  %2387 = vrot.lane.b32.xlu0 %v920, 20
  %v2388 = vpop.permute.xlu0 %2387
  %2389 = vrot.lane.b32.xlu0 %v922, 20
  %v2390 = vpop.permute.xlu0 %2389
  %2391 = vrot.lane.b32.xlu0 %v924, 20
  %v2392 = vpop.permute.xlu0 %2391
  %2393 = vrot.lane.b32.xlu0 %v926, 20
  %v2394 = vpop.permute.xlu0 %2393
  %2395 = vrot.lane.b32.xlu0 %v928, 20
  %v2396 = vpop.permute.xlu0 %2395
  %2397 = vrot.lane.b32.xlu0 %v930, 20
  %v2398 = vpop.permute.xlu0 %2397
  %2399 = vrot.lane.b32.xlu0 %v932, 20
  %v2400 = vpop.permute.xlu0 %2399
  %2401 = vrot.lane.b32.xlu0 %v934, 20
  %v2402 = vpop.permute.xlu0 %2401
  %2403 = vrot.lane.b32.xlu0 %v936, 20
  %v2404 = vpop.permute.xlu0 %2403
  %2405 = vrot.lane.b32.xlu0 %v938, 20
  %v2406 = vpop.permute.xlu0 %2405
  %2407 = vrot.lane.b32.xlu0 %v940, 20
  %v2408 = vpop.permute.xlu0 %2407
  %2409 = vrot.lane.b32.xlu0 %v942, 20
  %v2410 = vpop.permute.xlu0 %2409
  %2411 = vrot.lane.b32.xlu0 %v944, 20
  %v2412 = vpop.permute.xlu0 %2411
  %2413 = vrot.lane.b32.xlu0 %v946, 20
  %v2414 = vpop.permute.xlu0 %2413
  %2415 = vrot.lane.b32.xlu0 %v948, 20
  %v2416 = vpop.permute.xlu0 %2415
  %2417 = vrot.lane.b32.xlu0 %v950, 20
  %v2418 = vpop.permute.xlu0 %2417
  %2419 = vrot.lane.b32.xlu0 %v952, 20
  %v2420 = vpop.permute.xlu0 %2419
  %2421 = vrot.lane.b32.xlu0 %v954, 20
  %v2422 = vpop.permute.xlu0 %2421
  %2423 = vrot.lane.b32.xlu0 %v956, 20
  %v2424 = vpop.permute.xlu0 %2423
  %2425 = vrot.lane.b32.xlu0 %v958, 20
  %v2426 = vpop.permute.xlu0 %2425
  %2427 = vrot.lane.b32.xlu0 %v960, 20
  %v2428 = vpop.permute.xlu0 %2427
  %2429 = vrot.lane.b32.xlu0 %v962, 20
  %v2430 = vpop.permute.xlu0 %2429
  %2431 = vrot.lane.b32.xlu0 %v964, 20
  %v2432 = vpop.permute.xlu0 %2431
  %2433 = vrot.lane.b32.xlu0 %v966, 20
  %v2434 = vpop.permute.xlu0 %2433
  %2435 = vrot.lane.b32.xlu0 %v968, 20
  %v2436 = vpop.permute.xlu0 %2435
  %2437 = vrot.lane.b32.xlu0 %v970, 20
  %v2438 = vpop.permute.xlu0 %2437
  %2439 = vrot.lane.b32.xlu0 %v972, 20
  %v2440 = vpop.permute.xlu0 %2439
  %2441 = vrot.lane.b32.xlu0 %v974, 20
  %v2442 = vpop.permute.xlu0 %2441
  %2443 = vrot.lane.b32.xlu0 %v976, 20
  %v2444 = vpop.permute.xlu0 %2443
  %2445 = vrot.lane.b32.xlu0 %v978, 20
  %v2446 = vpop.permute.xlu0 %2445
  %2447 = vrot.lane.b32.xlu0 %v980, 20
  %v2448 = vpop.permute.xlu0 %2447
  %2449 = vrot.lane.b32.xlu0 %v982, 20
  %v2450 = vpop.permute.xlu0 %2449
  %2451 = vrot.lane.b32.xlu0 %v984, 20
  %v2452 = vpop.permute.xlu0 %2451
  %2453 = vrot.lane.b32.xlu0 %v986, 20
  %v2454 = vpop.permute.xlu0 %2453
  %2455 = vrot.lane.b32.xlu0 %v988, 20
  %v2456 = vpop.permute.xlu0 %2455
  %2457 = vrot.lane.b32.xlu0 %v990, 20
  %v2458 = vpop.permute.xlu0 %2457
  %2459 = vrot.lane.b32.xlu0 %v992, 20
  %v2460 = vpop.permute.xlu0 %2459
  %2461 = vrot.lane.b32.xlu0 %v994, 20
  %v2462 = vpop.permute.xlu0 %2461
  %2463 = vrot.lane.b32.xlu0 %v996, 20
  %v2464 = vpop.permute.xlu0 %2463
  %2465 = vrot.lane.b32.xlu0 %v998, 20
  %v2466 = vpop.permute.xlu0 %2465
  %2467 = vrot.lane.b32.xlu0 %v1000, 20
  %v2468 = vpop.permute.xlu0 %2467
  %2469 = vrot.lane.b32.xlu0 %v1002, 20
  %v2470 = vpop.permute.xlu0 %2469
  %2471 = vrot.lane.b32.xlu0 %v1004, 20
  %v2472 = vpop.permute.xlu0 %2471
  %2473 = vrot.lane.b32.xlu0 %v1006, 20
  %v2474 = vpop.permute.xlu0 %2473
  %2475 = vrot.lane.b32.xlu0 %v1008, 20
  %v2476 = vpop.permute.xlu0 %2475
  %2477 = vrot.lane.b32.xlu0 %v1010, 20
  %v2478 = vpop.permute.xlu0 %2477
  %2479 = vrot.lane.b32.xlu0 %v1012, 20
  %v2480 = vpop.permute.xlu0 %2479
  %2481 = vrot.lane.b32.xlu0 %v1014, 20
  %v2482 = vpop.permute.xlu0 %2481
  %2483 = vrot.lane.b32.xlu0 %v1016, 20
  %v2484 = vpop.permute.xlu0 %2483
  %2485 = vrot.lane.b32.xlu0 %v1018, 20
  %v2486 = vpop.permute.xlu0 %2485
  %2487 = vrot.lane.b32.xlu0 %v1020, 20
  %v2488 = vpop.permute.xlu0 %2487
  %2489 = vrot.lane.b32.xlu0 %v1022, 20
  %v2490 = vpop.permute.xlu0 %2489
  %2491 = vrot.lane.b32.xlu0 %v1025, 20
  %v2492 = vpop.permute.xlu0 %2491
  %2574 = vrot.lane.b32.xlu0 %v868, 24
  %v2575 = vpop.permute.xlu0 %2574
  %2576 = vrot.lane.b32.xlu0 %v870, 24
  %v2577 = vpop.permute.xlu0 %2576
  %2578 = vrot.lane.b32.xlu0 %v872, 24
  %v2579 = vpop.permute.xlu0 %2578
  %2580 = vrot.lane.b32.xlu0 %v874, 24
  %v2581 = vpop.permute.xlu0 %2580
  %2582 = vrot.lane.b32.xlu0 %v876, 24
  %v2583 = vpop.permute.xlu0 %2582
  %2584 = vrot.lane.b32.xlu0 %v878, 24
  %v2585 = vpop.permute.xlu0 %2584
  %2586 = vrot.lane.b32.xlu0 %v880, 24
  %v2587 = vpop.permute.xlu0 %2586
  %2588 = vrot.lane.b32.xlu0 %v882, 24
  %v2589 = vpop.permute.xlu0 %2588
  %2590 = vrot.lane.b32.xlu0 %v884, 24
  %v2591 = vpop.permute.xlu0 %2590
  %2592 = vrot.lane.b32.xlu0 %v886, 24
  %v2593 = vpop.permute.xlu0 %2592
  %2594 = vrot.lane.b32.xlu0 %v888, 24
  %v2595 = vpop.permute.xlu0 %2594
  %2596 = vrot.lane.b32.xlu0 %v890, 24
  %v2597 = vpop.permute.xlu0 %2596
  %2598 = vrot.lane.b32.xlu0 %v892, 24
  %v2599 = vpop.permute.xlu0 %2598
  %2600 = vrot.lane.b32.xlu0 %v894, 24
  %v2601 = vpop.permute.xlu0 %2600
  %2602 = vrot.lane.b32.xlu0 %v896, 24
  %v2603 = vpop.permute.xlu0 %2602
  %2604 = vrot.lane.b32.xlu0 %v898, 24
  %v2605 = vpop.permute.xlu0 %2604
  %2606 = vrot.lane.b32.xlu0 %v900, 24
  %v2607 = vpop.permute.xlu0 %2606
  %2608 = vrot.lane.b32.xlu0 %v902, 24
  %v2609 = vpop.permute.xlu0 %2608
  %2610 = vrot.lane.b32.xlu0 %v904, 24
  %v2611 = vpop.permute.xlu0 %2610
  %2612 = vrot.lane.b32.xlu0 %v906, 24
  %v2613 = vpop.permute.xlu0 %2612
  %2614 = vrot.lane.b32.xlu0 %v908, 24
  %v2615 = vpop.permute.xlu0 %2614
  %2616 = vrot.lane.b32.xlu0 %v910, 24
  %v2617 = vpop.permute.xlu0 %2616
  %2618 = vrot.lane.b32.xlu0 %v912, 24
  %v2619 = vpop.permute.xlu0 %2618
  %2620 = vrot.lane.b32.xlu0 %v914, 24
  %v2621 = vpop.permute.xlu0 %2620
  %2622 = vrot.lane.b32.xlu0 %v916, 24
  %v2623 = vpop.permute.xlu0 %2622
  %2624 = vrot.lane.b32.xlu0 %v918, 24
  %v2625 = vpop.permute.xlu0 %2624
  %2626 = vrot.lane.b32.xlu0 %v920, 24
  %v2627 = vpop.permute.xlu0 %2626
  %2628 = vrot.lane.b32.xlu0 %v922, 24
  %v2629 = vpop.permute.xlu0 %2628
  %2630 = vrot.lane.b32.xlu0 %v924, 24
  %v2631 = vpop.permute.xlu0 %2630
  %2632 = vrot.lane.b32.xlu0 %v926, 24
  %v2633 = vpop.permute.xlu0 %2632
  %2634 = vrot.lane.b32.xlu0 %v928, 24
  %v2635 = vpop.permute.xlu0 %2634
  %2636 = vrot.lane.b32.xlu0 %v930, 24
  %v2637 = vpop.permute.xlu0 %2636
  %2638 = vrot.lane.b32.xlu0 %v932, 24
  %v2639 = vpop.permute.xlu0 %2638
  %2640 = vrot.lane.b32.xlu0 %v934, 24
  %v2641 = vpop.permute.xlu0 %2640
  %2642 = vrot.lane.b32.xlu0 %v936, 24
  %v2643 = vpop.permute.xlu0 %2642
  %2644 = vrot.lane.b32.xlu0 %v938, 24
  %v2645 = vpop.permute.xlu0 %2644
  %2646 = vrot.lane.b32.xlu0 %v940, 24
  %v2647 = vpop.permute.xlu0 %2646
  %2648 = vrot.lane.b32.xlu0 %v942, 24
  %v2649 = vpop.permute.xlu0 %2648
  %2650 = vrot.lane.b32.xlu0 %v944, 24
  %v2651 = vpop.permute.xlu0 %2650
  %2652 = vrot.lane.b32.xlu0 %v946, 24
  %v2653 = vpop.permute.xlu0 %2652
  %2654 = vrot.lane.b32.xlu0 %v948, 24
  %v2655 = vpop.permute.xlu0 %2654
  %2656 = vrot.lane.b32.xlu0 %v950, 24
  %v2657 = vpop.permute.xlu0 %2656
  %2658 = vrot.lane.b32.xlu0 %v952, 24
  %v2659 = vpop.permute.xlu0 %2658
  %2660 = vrot.lane.b32.xlu0 %v954, 24
  %v2661 = vpop.permute.xlu0 %2660
  %2662 = vrot.lane.b32.xlu0 %v956, 24
  %v2663 = vpop.permute.xlu0 %2662
  %2664 = vrot.lane.b32.xlu0 %v958, 24
  %v2665 = vpop.permute.xlu0 %2664
  %2666 = vrot.lane.b32.xlu0 %v960, 24
  %v2667 = vpop.permute.xlu0 %2666
  %2668 = vrot.lane.b32.xlu0 %v962, 24
  %v2669 = vpop.permute.xlu0 %2668
  %2670 = vrot.lane.b32.xlu0 %v964, 24
  %v2671 = vpop.permute.xlu0 %2670
  %2672 = vrot.lane.b32.xlu0 %v966, 24
  %v2673 = vpop.permute.xlu0 %2672
  %2674 = vrot.lane.b32.xlu0 %v968, 24
  %v2675 = vpop.permute.xlu0 %2674
  %2676 = vrot.lane.b32.xlu0 %v970, 24
  %v2677 = vpop.permute.xlu0 %2676
  %2678 = vrot.lane.b32.xlu0 %v972, 24
  %v2679 = vpop.permute.xlu0 %2678
  %2680 = vrot.lane.b32.xlu0 %v974, 24
  %v2681 = vpop.permute.xlu0 %2680
  %2682 = vrot.lane.b32.xlu0 %v976, 24
  %v2683 = vpop.permute.xlu0 %2682
  %2684 = vrot.lane.b32.xlu0 %v978, 24
  %v2685 = vpop.permute.xlu0 %2684
  %2686 = vrot.lane.b32.xlu0 %v980, 24
  %v2687 = vpop.permute.xlu0 %2686
  %2688 = vrot.lane.b32.xlu0 %v982, 24
  %v2689 = vpop.permute.xlu0 %2688
  %2690 = vrot.lane.b32.xlu0 %v984, 24
  %v2691 = vpop.permute.xlu0 %2690
  %2692 = vrot.lane.b32.xlu0 %v986, 24
  %v2693 = vpop.permute.xlu0 %2692
  %2694 = vrot.lane.b32.xlu0 %v988, 24
  %v2695 = vpop.permute.xlu0 %2694
  %2696 = vrot.lane.b32.xlu0 %v990, 24
  %v2697 = vpop.permute.xlu0 %2696
  %2698 = vrot.lane.b32.xlu0 %v992, 24
  %v2699 = vpop.permute.xlu0 %2698
  %2700 = vrot.lane.b32.xlu0 %v994, 24
  %v2701 = vpop.permute.xlu0 %2700
  %2702 = vrot.lane.b32.xlu0 %v996, 24
  %v2703 = vpop.permute.xlu0 %2702
  %2704 = vrot.lane.b32.xlu0 %v998, 24
  %v2705 = vpop.permute.xlu0 %2704
  %2706 = vrot.lane.b32.xlu0 %v1000, 24
  %v2707 = vpop.permute.xlu0 %2706
  %2708 = vrot.lane.b32.xlu0 %v1002, 24
  %v2709 = vpop.permute.xlu0 %2708
  %2710 = vrot.lane.b32.xlu0 %v1004, 24
  %v2711 = vpop.permute.xlu0 %2710
  %2712 = vrot.lane.b32.xlu0 %v1006, 24
  %v2713 = vpop.permute.xlu0 %2712
  %2714 = vrot.lane.b32.xlu0 %v1008, 24
  %v2715 = vpop.permute.xlu0 %2714
  %2716 = vrot.lane.b32.xlu0 %v1010, 24
  %v2717 = vpop.permute.xlu0 %2716
  %2718 = vrot.lane.b32.xlu0 %v1012, 24
  %v2719 = vpop.permute.xlu0 %2718
  %2720 = vrot.lane.b32.xlu0 %v1014, 24
  %v2721 = vpop.permute.xlu0 %2720
  %2722 = vrot.lane.b32.xlu0 %v1016, 24
  %v2723 = vpop.permute.xlu0 %2722
  %2724 = vrot.lane.b32.xlu0 %v1018, 24
  %v2725 = vpop.permute.xlu0 %2724
  %2726 = vrot.lane.b32.xlu0 %v1020, 24
  %v2727 = vpop.permute.xlu0 %2726
  %2728 = vrot.lane.b32.xlu0 %v1022, 24
  %v2729 = vpop.permute.xlu0 %2728
  %2730 = vrot.lane.b32.xlu0 %v1025, 24
  %v2731 = vpop.permute.xlu0 %2730
  %2732 = vrot.lane.b32.xlu0 %v864, 24
  %v2733 = vpop.permute.xlu0 %2732
  %2734 = vrot.lane.b32.xlu0 %v866, 24
  %v2735 = vpop.permute.xlu0 %2734
  %2818 = vrot.lane.b32.xlu0 %v1029, 28
  %v2819 = vpop.permute.xlu0 %2818
  %2820 = vrot.lane.b32.xlu0 %v1031, 28
  %v2821 = vpop.permute.xlu0 %2820
  %2822 = vrot.lane.b32.xlu0 %v1033, 28
  %v2823 = vpop.permute.xlu0 %2822
  %2824 = vrot.lane.b32.xlu0 %v1035, 28
  %v2825 = vpop.permute.xlu0 %2824
  %2826 = vrot.lane.b32.xlu0 %v1037, 28
  %v2827 = vpop.permute.xlu0 %2826
  %2828 = vrot.lane.b32.xlu0 %v1039, 28
  %v2829 = vpop.permute.xlu0 %2828
  %2830 = vrot.lane.b32.xlu0 %v1041, 28
  %v2831 = vpop.permute.xlu0 %2830
  %2832 = vrot.lane.b32.xlu0 %v1043, 28
  %v2833 = vpop.permute.xlu0 %2832
  %2834 = vrot.lane.b32.xlu0 %v1045, 28
  %v2835 = vpop.permute.xlu0 %2834
  %2836 = vrot.lane.b32.xlu0 %v1047, 28
  %v2837 = vpop.permute.xlu0 %2836
  %2838 = vrot.lane.b32.xlu0 %v1049, 28
  %v2839 = vpop.permute.xlu0 %2838
  %2840 = vrot.lane.b32.xlu0 %v1051, 28
  %v2841 = vpop.permute.xlu0 %2840
  %2842 = vrot.lane.b32.xlu0 %v1053, 28
  %v2843 = vpop.permute.xlu0 %2842
  %2844 = vrot.lane.b32.xlu0 %v1055, 28
  %v2845 = vpop.permute.xlu0 %2844
  %2846 = vrot.lane.b32.xlu0 %v1057, 28
  %v2847 = vpop.permute.xlu0 %2846
  %2848 = vrot.lane.b32.xlu0 %v1059, 28
  %v2849 = vpop.permute.xlu0 %2848
  %2850 = vrot.lane.b32.xlu0 %v1061, 28
  %v2851 = vpop.permute.xlu0 %2850
  %2852 = vrot.lane.b32.xlu0 %v1063, 28
  %v2853 = vpop.permute.xlu0 %2852
  %2854 = vrot.lane.b32.xlu0 %v1065, 28
  %v2855 = vpop.permute.xlu0 %2854
  %2856 = vrot.lane.b32.xlu0 %v1067, 28
  %v2857 = vpop.permute.xlu0 %2856
  %2858 = vrot.lane.b32.xlu0 %v1069, 28
  %v2859 = vpop.permute.xlu0 %2858
  %2860 = vrot.lane.b32.xlu0 %v1071, 28
  %v2861 = vpop.permute.xlu0 %2860
  %2862 = vrot.lane.b32.xlu0 %v1073, 28
  %v2863 = vpop.permute.xlu0 %2862
  %2864 = vrot.lane.b32.xlu0 %v1075, 28
  %v2865 = vpop.permute.xlu0 %2864
  %2866 = vrot.lane.b32.xlu0 %v1077, 28
  %v2867 = vpop.permute.xlu0 %2866
  %2868 = vrot.lane.b32.xlu0 %v1079, 28
  %v2869 = vpop.permute.xlu0 %2868
  %2870 = vrot.lane.b32.xlu0 %v1081, 28
  %v2871 = vpop.permute.xlu0 %2870
  %2872 = vrot.lane.b32.xlu0 %v1083, 28
  %v2873 = vpop.permute.xlu0 %2872
  %2874 = vrot.lane.b32.xlu0 %v1085, 28
  %v2875 = vpop.permute.xlu0 %2874
  %2876 = vrot.lane.b32.xlu0 %v1087, 28
  %v2877 = vpop.permute.xlu0 %2876
  %2878 = vrot.lane.b32.xlu0 %v1089, 28
  %v2879 = vpop.permute.xlu0 %2878
  %2880 = vrot.lane.b32.xlu0 %v1091, 28
  %v2881 = vpop.permute.xlu0 %2880
  %2882 = vrot.lane.b32.xlu0 %v1093, 28
  %v2883 = vpop.permute.xlu0 %2882
  %2884 = vrot.lane.b32.xlu0 %v1095, 28
  %v2885 = vpop.permute.xlu0 %2884
  %2886 = vrot.lane.b32.xlu0 %v1097, 28
  %v2887 = vpop.permute.xlu0 %2886
  %2888 = vrot.lane.b32.xlu0 %v1099, 28
  %v2889 = vpop.permute.xlu0 %2888
  %2890 = vrot.lane.b32.xlu0 %v1101, 28
  %v2891 = vpop.permute.xlu0 %2890
  %2892 = vrot.lane.b32.xlu0 %v1103, 28
  %v2893 = vpop.permute.xlu0 %2892
  %2894 = vrot.lane.b32.xlu0 %v1105, 28
  %v2895 = vpop.permute.xlu0 %2894
  %2896 = vrot.lane.b32.xlu0 %v1107, 28
  %v2897 = vpop.permute.xlu0 %2896
  %2898 = vrot.lane.b32.xlu0 %v1109, 28
  %v2899 = vpop.permute.xlu0 %2898
  %2900 = vrot.lane.b32.xlu0 %v1111, 28
  %v2901 = vpop.permute.xlu0 %2900
  %2902 = vrot.lane.b32.xlu0 %v1113, 28
  %v2903 = vpop.permute.xlu0 %2902
  %2904 = vrot.lane.b32.xlu0 %v1115, 28
  %v2905 = vpop.permute.xlu0 %2904
  %2906 = vrot.lane.b32.xlu0 %v1117, 28
  %v2907 = vpop.permute.xlu0 %2906
  %2908 = vrot.lane.b32.xlu0 %v1119, 28
  %v2909 = vpop.permute.xlu0 %2908
  %2910 = vrot.lane.b32.xlu0 %v1121, 28
  %v2911 = vpop.permute.xlu0 %2910
  %2912 = vrot.lane.b32.xlu0 %v1123, 28
  %v2913 = vpop.permute.xlu0 %2912
  %2914 = vrot.lane.b32.xlu0 %v1125, 28
  %v2915 = vpop.permute.xlu0 %2914
  %2916 = vrot.lane.b32.xlu0 %v1127, 28
  %v2917 = vpop.permute.xlu0 %2916
  %2918 = vrot.lane.b32.xlu0 %v1129, 28
  %v2919 = vpop.permute.xlu0 %2918
  %2920 = vrot.lane.b32.xlu0 %v1131, 28
  %v2921 = vpop.permute.xlu0 %2920
  %2922 = vrot.lane.b32.xlu0 %v1133, 28
  %v2923 = vpop.permute.xlu0 %2922
  %2924 = vrot.lane.b32.xlu0 %v1135, 28
  %v2925 = vpop.permute.xlu0 %2924
  %2926 = vrot.lane.b32.xlu0 %v1137, 28
  %v2927 = vpop.permute.xlu0 %2926
  %2928 = vrot.lane.b32.xlu0 %v1139, 28
  %v2929 = vpop.permute.xlu0 %2928
  %2930 = vrot.lane.b32.xlu0 %v1141, 28
  %v2931 = vpop.permute.xlu0 %2930
  %2932 = vrot.lane.b32.xlu0 %v1143, 28
  %v2933 = vpop.permute.xlu0 %2932
  %2934 = vrot.lane.b32.xlu0 %v1145, 28
  %v2935 = vpop.permute.xlu0 %2934
  %2936 = vrot.lane.b32.xlu0 %v1147, 28
  %v2937 = vpop.permute.xlu0 %2936
  %2938 = vrot.lane.b32.xlu0 %v1149, 28
  %v2939 = vpop.permute.xlu0 %2938
  %2940 = vrot.lane.b32.xlu0 %v1151, 28
  %v2941 = vpop.permute.xlu0 %2940
  %2942 = vrot.lane.b32.xlu0 %v1153, 28
  %v2943 = vpop.permute.xlu0 %2942
  %2944 = vrot.lane.b32.xlu0 %v1155, 28
  %v2945 = vpop.permute.xlu0 %2944
  %2946 = vrot.lane.b32.xlu0 %v1157, 28
  %v2947 = vpop.permute.xlu0 %2946
  %2948 = vrot.lane.b32.xlu0 %v1159, 28
  %v2949 = vpop.permute.xlu0 %2948
  %2950 = vrot.lane.b32.xlu0 %v1161, 28
  %v2951 = vpop.permute.xlu0 %2950
  %2952 = vrot.lane.b32.xlu0 %v1163, 28
  %v2953 = vpop.permute.xlu0 %2952
  %2954 = vrot.lane.b32.xlu0 %v1165, 28
  %v2955 = vpop.permute.xlu0 %2954
  %2956 = vrot.lane.b32.xlu0 %v1167, 28
  %v2957 = vpop.permute.xlu0 %2956
  %2958 = vrot.lane.b32.xlu0 %v1169, 28
  %v2959 = vpop.permute.xlu0 %2958
  %2960 = vrot.lane.b32.xlu0 %v1171, 28
  %v2961 = vpop.permute.xlu0 %2960
  %2962 = vrot.lane.b32.xlu0 %v1173, 28
  %v2963 = vpop.permute.xlu0 %2962
  %2964 = vrot.lane.b32.xlu0 %v1175, 28
  %v2965 = vpop.permute.xlu0 %2964
  %2966 = vrot.lane.b32.xlu0 %v1177, 28
  %v2967 = vpop.permute.xlu0 %2966
  %2968 = vrot.lane.b32.xlu0 %v1179, 28
  %v2969 = vpop.permute.xlu0 %2968
  %2970 = vrot.lane.b32.xlu0 %v1181, 28
  %v2971 = vpop.permute.xlu0 %2970
  %2972 = vrot.lane.b32.xlu0 %v1183, 28
  %v2973 = vpop.permute.xlu0 %2972
  %2974 = vrot.lane.b32.xlu0 %v1190, 28
  %v2975 = vpop.permute.xlu0 %2974
  %2976 = vrot.lane.b32.xlu0 %v1187, 28
  %v2977 = vpop.permute.xlu0 %2976
  %2978 = vrot.lane.b32.xlu0 %v1188, 28
  %v2979 = vpop.permute.xlu0 %2978
  %3062 = vrot.lane.b32.xlu0 %v1194, 32
  %v3063 = vpop.permute.xlu0 %3062
  %3064 = vrot.lane.b32.xlu0 %v1196, 32
  %v3065 = vpop.permute.xlu0 %3064
  %3066 = vrot.lane.b32.xlu0 %v1198, 32
  %v3067 = vpop.permute.xlu0 %3066
  %3068 = vrot.lane.b32.xlu0 %v1200, 32
  %v3069 = vpop.permute.xlu0 %3068
  %3070 = vrot.lane.b32.xlu0 %v1202, 32
  %v3071 = vpop.permute.xlu0 %3070
  %3072 = vrot.lane.b32.xlu0 %v1204, 32
  %v3073 = vpop.permute.xlu0 %3072
  %3074 = vrot.lane.b32.xlu0 %v1206, 32
  %v3075 = vpop.permute.xlu0 %3074
  %3076 = vrot.lane.b32.xlu0 %v1208, 32
  %v3077 = vpop.permute.xlu0 %3076
  %3078 = vrot.lane.b32.xlu0 %v1210, 32
  %v3079 = vpop.permute.xlu0 %3078
  %3080 = vrot.lane.b32.xlu0 %v1212, 32
  %v3081 = vpop.permute.xlu0 %3080
  %3082 = vrot.lane.b32.xlu0 %v1214, 32
  %v3083 = vpop.permute.xlu0 %3082
  %3084 = vrot.lane.b32.xlu0 %v1216, 32
  %v3085 = vpop.permute.xlu0 %3084
  %3086 = vrot.lane.b32.xlu0 %v1218, 32
  %v3087 = vpop.permute.xlu0 %3086
  %3088 = vrot.lane.b32.xlu0 %v1220, 32
  %v3089 = vpop.permute.xlu0 %3088
  %3090 = vrot.lane.b32.xlu0 %v1222, 32
  %v3091 = vpop.permute.xlu0 %3090
  %3092 = vrot.lane.b32.xlu0 %v1224, 32
  %v3093 = vpop.permute.xlu0 %3092
  %3094 = vrot.lane.b32.xlu0 %v1226, 32
  %v3095 = vpop.permute.xlu0 %3094
  %3096 = vrot.lane.b32.xlu0 %v1228, 32
  %v3097 = vpop.permute.xlu0 %3096
  %3098 = vrot.lane.b32.xlu0 %v1230, 32
  %v3099 = vpop.permute.xlu0 %3098
  %3100 = vrot.lane.b32.xlu0 %v1232, 32
  %v3101 = vpop.permute.xlu0 %3100
  %3102 = vrot.lane.b32.xlu0 %v1234, 32
  %v3103 = vpop.permute.xlu0 %3102
  %3104 = vrot.lane.b32.xlu0 %v1236, 32
  %v3105 = vpop.permute.xlu0 %3104
  %3106 = vrot.lane.b32.xlu0 %v1238, 32
  %v3107 = vpop.permute.xlu0 %3106
  %3108 = vrot.lane.b32.xlu0 %v1240, 32
  %v3109 = vpop.permute.xlu0 %3108
  %3110 = vrot.lane.b32.xlu0 %v1242, 32
  %v3111 = vpop.permute.xlu0 %3110
  %3112 = vrot.lane.b32.xlu0 %v1244, 32
  %v3113 = vpop.permute.xlu0 %3112
  %3114 = vrot.lane.b32.xlu0 %v1246, 32
  %v3115 = vpop.permute.xlu0 %3114
  %3116 = vrot.lane.b32.xlu0 %v1248, 32
  %v3117 = vpop.permute.xlu0 %3116
  %3118 = vrot.lane.b32.xlu0 %v1250, 32
  %v3119 = vpop.permute.xlu0 %3118
  %3120 = vrot.lane.b32.xlu0 %v1252, 32
  %v3121 = vpop.permute.xlu0 %3120
  %3122 = vrot.lane.b32.xlu0 %v1254, 32
  %v3123 = vpop.permute.xlu0 %3122
  %3124 = vrot.lane.b32.xlu0 %v1256, 32
  %v3125 = vpop.permute.xlu0 %3124
  %3126 = vrot.lane.b32.xlu0 %v1258, 32
  %v3127 = vpop.permute.xlu0 %3126
  %3128 = vrot.lane.b32.xlu0 %v1260, 32
  %v3129 = vpop.permute.xlu0 %3128
  %3130 = vrot.lane.b32.xlu0 %v1262, 32
  %v3131 = vpop.permute.xlu0 %3130
  %3132 = vrot.lane.b32.xlu0 %v1264, 32
  %v3133 = vpop.permute.xlu0 %3132
  %3134 = vrot.lane.b32.xlu0 %v1266, 32
  %v3135 = vpop.permute.xlu0 %3134
  %3136 = vrot.lane.b32.xlu0 %v1268, 32
  %v3137 = vpop.permute.xlu0 %3136
  %3138 = vrot.lane.b32.xlu0 %v1270, 32
  %v3139 = vpop.permute.xlu0 %3138
  %3140 = vrot.lane.b32.xlu0 %v1272, 32
  %v3141 = vpop.permute.xlu0 %3140
  %3142 = vrot.lane.b32.xlu0 %v1274, 32
  %v3143 = vpop.permute.xlu0 %3142
  %3144 = vrot.lane.b32.xlu0 %v1276, 32
  %v3145 = vpop.permute.xlu0 %3144
  %3146 = vrot.lane.b32.xlu0 %v1278, 32
  %v3147 = vpop.permute.xlu0 %3146
  %3148 = vrot.lane.b32.xlu0 %v1280, 32
  %v3149 = vpop.permute.xlu0 %3148
  %3150 = vrot.lane.b32.xlu0 %v1282, 32
  %v3151 = vpop.permute.xlu0 %3150
  %3152 = vrot.lane.b32.xlu0 %v1284, 32
  %v3153 = vpop.permute.xlu0 %3152
  %3154 = vrot.lane.b32.xlu0 %v1286, 32
  %v3155 = vpop.permute.xlu0 %3154
  %3156 = vrot.lane.b32.xlu0 %v1288, 32
  %v3157 = vpop.permute.xlu0 %3156
  %3158 = vrot.lane.b32.xlu0 %v1290, 32
  %v3159 = vpop.permute.xlu0 %3158
  %3160 = vrot.lane.b32.xlu0 %v1292, 32
  %v3161 = vpop.permute.xlu0 %3160
  %3162 = vrot.lane.b32.xlu0 %v1294, 32
  %v3163 = vpop.permute.xlu0 %3162
  %3164 = vrot.lane.b32.xlu0 %v1296, 32
  %v3165 = vpop.permute.xlu0 %3164
  %3166 = vrot.lane.b32.xlu0 %v1298, 32
  %v3167 = vpop.permute.xlu0 %3166
  %3168 = vrot.lane.b32.xlu0 %v1300, 32
  %v3169 = vpop.permute.xlu0 %3168
  %3170 = vrot.lane.b32.xlu0 %v1302, 32
  %v3171 = vpop.permute.xlu0 %3170
  %3172 = vrot.lane.b32.xlu0 %v1304, 32
  %v3173 = vpop.permute.xlu0 %3172
  %3174 = vrot.lane.b32.xlu0 %v1306, 32
  %v3175 = vpop.permute.xlu0 %3174
  %3176 = vrot.lane.b32.xlu0 %v1308, 32
  %v3177 = vpop.permute.xlu0 %3176
  %3178 = vrot.lane.b32.xlu0 %v1310, 32
  %v3179 = vpop.permute.xlu0 %3178
  %3180 = vrot.lane.b32.xlu0 %v1312, 32
  %v3181 = vpop.permute.xlu0 %3180
  %3182 = vrot.lane.b32.xlu0 %v1314, 32
  %v3183 = vpop.permute.xlu0 %3182
  %3184 = vrot.lane.b32.xlu0 %v1316, 32
  %v3185 = vpop.permute.xlu0 %3184
  %3186 = vrot.lane.b32.xlu0 %v1318, 32
  %v3187 = vpop.permute.xlu0 %3186
  %3188 = vrot.lane.b32.xlu0 %v1320, 32
  %v3189 = vpop.permute.xlu0 %3188
  %3190 = vrot.lane.b32.xlu0 %v1322, 32
  %v3191 = vpop.permute.xlu0 %3190
  %3192 = vrot.lane.b32.xlu0 %v1324, 32
  %v3193 = vpop.permute.xlu0 %3192
  %3194 = vrot.lane.b32.xlu0 %v1326, 32
  %v3195 = vpop.permute.xlu0 %3194
  %3196 = vrot.lane.b32.xlu0 %v1328, 32
  %v3197 = vpop.permute.xlu0 %3196
  %3198 = vrot.lane.b32.xlu0 %v1330, 32
  %v3199 = vpop.permute.xlu0 %3198
  %3200 = vrot.lane.b32.xlu0 %v1332, 32
  %v3201 = vpop.permute.xlu0 %3200
  %3202 = vrot.lane.b32.xlu0 %v1334, 32
  %v3203 = vpop.permute.xlu0 %3202
  %3204 = vrot.lane.b32.xlu0 %v1336, 32
  %v3205 = vpop.permute.xlu0 %3204
  %3206 = vrot.lane.b32.xlu0 %v1338, 32
  %v3207 = vpop.permute.xlu0 %3206
  %3208 = vrot.lane.b32.xlu0 %v1340, 32
  %v3209 = vpop.permute.xlu0 %3208
  %3210 = vrot.lane.b32.xlu0 %v1342, 32
  %v3211 = vpop.permute.xlu0 %3210
  %3212 = vrot.lane.b32.xlu0 %v1344, 32
  %v3213 = vpop.permute.xlu0 %3212
  %3214 = vrot.lane.b32.xlu0 %v1346, 32
  %v3215 = vpop.permute.xlu0 %3214
  %3216 = vrot.lane.b32.xlu0 %v1348, 32
  %v3217 = vpop.permute.xlu0 %3216
  %3218 = vrot.lane.b32.xlu0 %v1355, 32
  %v3219 = vpop.permute.xlu0 %3218
  %3220 = vrot.lane.b32.xlu0 %v1352, 32
  %v3221 = vpop.permute.xlu0 %3220
  %3222 = vrot.lane.b32.xlu0 %v1353, 32
  %v3223 = vpop.permute.xlu0 %3222
  %vm3305 = vcmask 31744
  %v3306 = vsel %vm3305, %v211, %v1358
  %v3307 = vsel %vm3305, %v213, %v1360
  %v3308 = vsel %vm3305, %v530, %v1362
  %v3309 = vsel %vm3305, %v297, %v1364
  %v3310 = vsel %vm3305, %v299, %v1366
  %v3311 = vsel %vm3305, %v301, %v1368
  %v3312 = vsel %vm3305, %v303, %v1370
  %v3313 = vsel %vm3305, %v305, %v1372
  %v3314 = vsel %vm3305, %v307, %v1374
  %v3315 = vsel %vm3305, %v309, %v1376
  %v3316 = vsel %vm3305, %v311, %v1378
  %v3317 = vsel %vm3305, %v313, %v1380
  %v3318 = vsel %vm3305, %v315, %v1382
  %v3319 = vsel %vm3305, %v317, %v1384
  %v3320 = vsel %vm3305, %v319, %v1386
  %v3321 = vsel %vm3305, %v321, %v1388
  %v3322 = vsel %vm3305, %v323, %v1390
  %v3323 = vsel %vm3305, %v325, %v1392
  %v3324 = vsel %vm3305, %v327, %v1394
  %v3325 = vsel %vm3305, %v329, %v1396
  %v3326 = vsel %vm3305, %v331, %v1398
  %v3327 = vsel %vm3305, %v333, %v1400
  %v3328 = vsel %vm3305, %v335, %v1402
  %v3329 = vsel %vm3305, %v337, %v1404
  %v3330 = vsel %vm3305, %v339, %v1406
  %v3331 = vsel %vm3305, %v341, %v1408
  %v3332 = vsel %vm3305, %v343, %v1410
  %v3333 = vsel %vm3305, %v345, %v1412
  %v3334 = vsel %vm3305, %v347, %v1414
  %v3335 = vsel %vm3305, %v349, %v1416
  %v3336 = vsel %vm3305, %v351, %v1418
  %v3337 = vsel %vm3305, %v353, %v1420
  %v3338 = vsel %vm3305, %v355, %v1422
  %v3339 = vsel %vm3305, %v357, %v1424
  %v3340 = vsel %vm3305, %v359, %v1426
  %v3341 = vsel %vm3305, %v361, %v1428
  %v3342 = vsel %vm3305, %v363, %v1430
  %v3343 = vsel %vm3305, %v365, %v1432
  %v3344 = vsel %vm3305, %v367, %v1434
  %v3345 = vsel %vm3305, %v369, %v1436
  %v3346 = vsel %vm3305, %v371, %v1438
  %v3347 = vsel %vm3305, %v373, %v1440
  %v3348 = vsel %vm3305, %v375, %v1442
  %v3349 = vsel %vm3305, %v377, %v1444
  %v3350 = vsel %vm3305, %v379, %v1446
  %v3351 = vsel %vm3305, %v381, %v1448
  %v3352 = vsel %vm3305, %v383, %v1450
  %v3353 = vsel %vm3305, %v385, %v1452
  %v3354 = vsel %vm3305, %v387, %v1454
  %v3355 = vsel %vm3305, %v389, %v1456
  %v3356 = vsel %vm3305, %v391, %v1458
  %v3357 = vsel %vm3305, %v393, %v1460
  %v3358 = vsel %vm3305, %v395, %v1462
  %v3359 = vsel %vm3305, %v397, %v1464
  %v3360 = vsel %vm3305, %v399, %v1466
  %v3361 = vsel %vm3305, %v401, %v1468
  %v3362 = vsel %vm3305, %v403, %v1470
  %v3363 = vsel %vm3305, %v405, %v1472
  %v3364 = vsel %vm3305, %v407, %v1474
  %v3365 = vsel %vm3305, %v409, %v1476
  %v3366 = vsel %vm3305, %v411, %v1478
  %v3367 = vsel %vm3305, %v413, %v1480
  %v3368 = vsel %vm3305, %v415, %v1482
  %v3369 = vsel %vm3305, %v417, %v1484
  %v3370 = vsel %vm3305, %v419, %v1486
  %v3371 = vsel %vm3305, %v421, %v1488
  %v3372 = vsel %vm3305, %v423, %v1490
  %v3373 = vsel %vm3305, %v425, %v1492
  %v3374 = vsel %vm3305, %v427, %v1494
  %v3375 = vsel %vm3305, %v429, %v1496
  %v3376 = vsel %vm3305, %v431, %v1498
  %v3377 = vsel %vm3305, %v433, %v1500
  %v3378 = vsel %vm3305, %v435, %v1502
  %v3379 = vsel %vm3305, %v437, %v1504
  %v3380 = vsel %vm3305, %v439, %v1506
  %v3381 = vsel %vm3305, %v441, %v1508
  %v3382 = vsel %vm3305, %v443, %v1510
  %v3383 = vsel %vm3305, %v445, %v1512
  %v3384 = vsel %vm3305, %v447, %v1514
  %v3385 = vsel %vm3305, %v449, %v1516
  %v3386 = vsel %vm3305, %v450, %v1518
  %vm3387 = vcmask 64512
  %v3388 = vsel %vm3387, %v3306, %v1602
  %v3389 = vsel %vm3387, %v3307, %v1604
  %v3390 = vsel %vm3387, %v3308, %v1606
  %v3391 = vsel %vm3387, %v3309, %v1608
  %v3392 = vsel %vm3387, %v3310, %v1610
  %v3393 = vsel %vm3387, %v3311, %v1612
  %v3394 = vsel %vm3387, %v3312, %v1614
  %v3395 = vsel %vm3387, %v3313, %v1616
  %v3396 = vsel %vm3387, %v3314, %v1618
  %v3397 = vsel %vm3387, %v3315, %v1620
  %v3398 = vsel %vm3387, %v3316, %v1622
  %v3399 = vsel %vm3387, %v3317, %v1624
  %v3400 = vsel %vm3387, %v3318, %v1626
  %v3401 = vsel %vm3387, %v3319, %v1628
  %v3402 = vsel %vm3387, %v3320, %v1630
  %v3403 = vsel %vm3387, %v3321, %v1632
  %v3404 = vsel %vm3387, %v3322, %v1634
  %v3405 = vsel %vm3387, %v3323, %v1636
  %v3406 = vsel %vm3387, %v3324, %v1638
  %v3407 = vsel %vm3387, %v3325, %v1640
  %v3408 = vsel %vm3387, %v3326, %v1642
  %v3409 = vsel %vm3387, %v3327, %v1644
  %v3410 = vsel %vm3387, %v3328, %v1646
  %v3411 = vsel %vm3387, %v3329, %v1648
  %v3412 = vsel %vm3387, %v3330, %v1650
  %v3413 = vsel %vm3387, %v3331, %v1652
  %v3414 = vsel %vm3387, %v3332, %v1654
  %v3415 = vsel %vm3387, %v3333, %v1656
  %v3416 = vsel %vm3387, %v3334, %v1658
  %v3417 = vsel %vm3387, %v3335, %v1660
  %v3418 = vsel %vm3387, %v3336, %v1662
  %v3419 = vsel %vm3387, %v3337, %v1664
  %v3420 = vsel %vm3387, %v3338, %v1666
  %v3421 = vsel %vm3387, %v3339, %v1668
  %v3422 = vsel %vm3387, %v3340, %v1670
  %v3423 = vsel %vm3387, %v3341, %v1672
  %v3424 = vsel %vm3387, %v3342, %v1674
  %v3425 = vsel %vm3387, %v3343, %v1676
  %v3426 = vsel %vm3387, %v3344, %v1678
  %v3427 = vsel %vm3387, %v3345, %v1680
  %v3428 = vsel %vm3387, %v3346, %v1682
  %v3429 = vsel %vm3387, %v3347, %v1684
  %v3430 = vsel %vm3387, %v3348, %v1686
  %v3431 = vsel %vm3387, %v3349, %v1688
  %v3432 = vsel %vm3387, %v3350, %v1690
  %v3433 = vsel %vm3387, %v3351, %v1692
  %v3434 = vsel %vm3387, %v3352, %v1694
  %v3435 = vsel %vm3387, %v3353, %v1696
  %v3436 = vsel %vm3387, %v3354, %v1698
  %v3437 = vsel %vm3387, %v3355, %v1700
  %v3438 = vsel %vm3387, %v3356, %v1702
  %v3439 = vsel %vm3387, %v3357, %v1704
  %v3440 = vsel %vm3387, %v3358, %v1706
  %v3441 = vsel %vm3387, %v3359, %v1708
  %v3442 = vsel %vm3387, %v3360, %v1710
  %v3443 = vsel %vm3387, %v3361, %v1712
  %v3444 = vsel %vm3387, %v3362, %v1714
  %v3445 = vsel %vm3387, %v3363, %v1716
  %v3446 = vsel %vm3387, %v3364, %v1718
  %v3447 = vsel %vm3387, %v3365, %v1720
  %v3448 = vsel %vm3387, %v3366, %v1722
  %v3449 = vsel %vm3387, %v3367, %v1724
  %v3450 = vsel %vm3387, %v3368, %v1726
  %v3451 = vsel %vm3387, %v3369, %v1728
  %v3452 = vsel %vm3387, %v3370, %v1730
  %v3453 = vsel %vm3387, %v3371, %v1732
  %v3454 = vsel %vm3387, %v3372, %v1734
  %v3455 = vsel %vm3387, %v3373, %v1736
  %v3456 = vsel %vm3387, %v3374, %v1738
  %v3457 = vsel %vm3387, %v3375, %v1740
  %v3458 = vsel %vm3387, %v3376, %v1742
  %v3459 = vsel %vm3387, %v3377, %v1744
  %v3460 = vsel %vm3387, %v3378, %v1746
  %v3461 = vsel %vm3387, %v3379, %v1748
  %v3462 = vsel %vm3387, %v3380, %v1750
  %v3463 = vsel %vm3387, %v3381, %v1752
  %v3464 = vsel %vm3387, %v3382, %v1754
  %v3465 = vsel %vm3387, %v3383, %v1756
  %v3466 = vsel %vm3387, %v3384, %v1758
  %v3467 = vsel %vm3387, %v3385, %v1760
  %v3468 = vsel %vm3387, %v3386, %v1762
  %vm3469 = vcmask 97280
  %v3470 = vsel %vm3469, %v3388, %v1845
  %v3471 = vsel %vm3469, %v3389, %v1847
  %v3472 = vsel %vm3469, %v3390, %v1849
  %v3473 = vsel %vm3469, %v3391, %v1851
  %v3474 = vsel %vm3469, %v3392, %v1853
  %v3475 = vsel %vm3469, %v3393, %v1855
  %v3476 = vsel %vm3469, %v3394, %v1857
  %v3477 = vsel %vm3469, %v3395, %v1859
  %v3478 = vsel %vm3469, %v3396, %v1861
  %v3479 = vsel %vm3469, %v3397, %v1863
  %v3480 = vsel %vm3469, %v3398, %v1865
  %v3481 = vsel %vm3469, %v3399, %v1867
  %v3482 = vsel %vm3469, %v3400, %v1869
  %v3483 = vsel %vm3469, %v3401, %v1871
  %v3484 = vsel %vm3469, %v3402, %v1873
  %v3485 = vsel %vm3469, %v3403, %v1875
  %v3486 = vsel %vm3469, %v3404, %v1877
  %v3487 = vsel %vm3469, %v3405, %v1879
  %v3488 = vsel %vm3469, %v3406, %v1881
  %v3489 = vsel %vm3469, %v3407, %v1883
  %v3490 = vsel %vm3469, %v3408, %v1885
  %v3491 = vsel %vm3469, %v3409, %v1887
  %v3492 = vsel %vm3469, %v3410, %v1889
  %v3493 = vsel %vm3469, %v3411, %v1891
  %v3494 = vsel %vm3469, %v3412, %v1893
  %v3495 = vsel %vm3469, %v3413, %v1895
  %v3496 = vsel %vm3469, %v3414, %v1897
  %v3497 = vsel %vm3469, %v3415, %v1899
  %v3498 = vsel %vm3469, %v3416, %v1901
  %v3499 = vsel %vm3469, %v3417, %v1903
  %v3500 = vsel %vm3469, %v3418, %v1905
  %v3501 = vsel %vm3469, %v3419, %v1907
  %v3502 = vsel %vm3469, %v3420, %v1909
  %v3503 = vsel %vm3469, %v3421, %v1911
  %v3504 = vsel %vm3469, %v3422, %v1913
  %v3505 = vsel %vm3469, %v3423, %v1915
  %v3506 = vsel %vm3469, %v3424, %v1917
  %v3507 = vsel %vm3469, %v3425, %v1919
  %v3508 = vsel %vm3469, %v3426, %v1921
  %v3509 = vsel %vm3469, %v3427, %v1923
  %v3510 = vsel %vm3469, %v3428, %v1925
  %v3511 = vsel %vm3469, %v3429, %v1927
  %v3512 = vsel %vm3469, %v3430, %v1929
  %v3513 = vsel %vm3469, %v3431, %v1931
  %v3514 = vsel %vm3469, %v3432, %v1933
  %v3515 = vsel %vm3469, %v3433, %v1935
  %v3516 = vsel %vm3469, %v3434, %v1937
  %v3517 = vsel %vm3469, %v3435, %v1939
  %v3518 = vsel %vm3469, %v3436, %v1941
  %v3519 = vsel %vm3469, %v3437, %v1943
  %v3520 = vsel %vm3469, %v3438, %v1945
  %v3521 = vsel %vm3469, %v3439, %v1947
  %v3522 = vsel %vm3469, %v3440, %v1949
  %v3523 = vsel %vm3469, %v3441, %v1951
  %v3524 = vsel %vm3469, %v3442, %v1953
  %v3525 = vsel %vm3469, %v3443, %v1955
  %v3526 = vsel %vm3469, %v3444, %v1957
  %v3527 = vsel %vm3469, %v3445, %v1959
  %v3528 = vsel %vm3469, %v3446, %v1961
  %v3529 = vsel %vm3469, %v3447, %v1963
  %v3530 = vsel %vm3469, %v3448, %v1965
  %v3531 = vsel %vm3469, %v3449, %v1967
  %v3532 = vsel %vm3469, %v3450, %v1969
  %v3533 = vsel %vm3469, %v3451, %v1971
  %v3534 = vsel %vm3469, %v3452, %v1973
  %v3535 = vsel %vm3469, %v3453, %v1975
  %v3536 = vsel %vm3469, %v3454, %v1977
  %v3537 = vsel %vm3469, %v3455, %v1979
  %v3538 = vsel %vm3469, %v3456, %v1981
  %v3539 = vsel %vm3469, %v3457, %v1983
  %v3540 = vsel %vm3469, %v3458, %v1985
  %v3541 = vsel %vm3469, %v3459, %v1987
  %v3542 = vsel %vm3469, %v3460, %v1989
  %v3543 = vsel %vm3469, %v3461, %v1991
  %v3544 = vsel %vm3469, %v3462, %v1993
  %v3545 = vsel %vm3469, %v3463, %v1995
  %v3546 = vsel %vm3469, %v3464, %v1997
  %v3547 = vsel %vm3469, %v3465, %v1999
  %v3548 = vsel %vm3469, %v3466, %v2001
  %v3549 = vsel %vm3469, %v3467, %v2003
  %v3550 = vsel %vm3469, %v3468, %v2005
  %vm3551 = vcmask 130048
  %v3552 = vsel %vm3551, %v3470, %v2088
  %v3553 = vsel %vm3551, %v3471, %v2090
  %v3554 = vsel %vm3551, %v3472, %v2092
  %v3555 = vsel %vm3551, %v3473, %v2094
  %v3556 = vsel %vm3551, %v3474, %v2096
  %v3557 = vsel %vm3551, %v3475, %v2098
  %v3558 = vsel %vm3551, %v3476, %v2100
  %v3559 = vsel %vm3551, %v3477, %v2102
  %v3560 = vsel %vm3551, %v3478, %v2104
  %v3561 = vsel %vm3551, %v3479, %v2106
  %v3562 = vsel %vm3551, %v3480, %v2108
  %v3563 = vsel %vm3551, %v3481, %v2110
  %v3564 = vsel %vm3551, %v3482, %v2112
  %v3565 = vsel %vm3551, %v3483, %v2114
  %v3566 = vsel %vm3551, %v3484, %v2116
  %v3567 = vsel %vm3551, %v3485, %v2118
  %v3568 = vsel %vm3551, %v3486, %v2120
  %v3569 = vsel %vm3551, %v3487, %v2122
  %v3570 = vsel %vm3551, %v3488, %v2124
  %v3571 = vsel %vm3551, %v3489, %v2126
  %v3572 = vsel %vm3551, %v3490, %v2128
  %v3573 = vsel %vm3551, %v3491, %v2130
  %v3574 = vsel %vm3551, %v3492, %v2132
  %v3575 = vsel %vm3551, %v3493, %v2134
  %v3576 = vsel %vm3551, %v3494, %v2136
  %v3577 = vsel %vm3551, %v3495, %v2138
  %v3578 = vsel %vm3551, %v3496, %v2140
  %v3579 = vsel %vm3551, %v3497, %v2142
  %v3580 = vsel %vm3551, %v3498, %v2144
  %v3581 = vsel %vm3551, %v3499, %v2146
  %v3582 = vsel %vm3551, %v3500, %v2148
  %v3583 = vsel %vm3551, %v3501, %v2150
  %v3584 = vsel %vm3551, %v3502, %v2152
  %v3585 = vsel %vm3551, %v3503, %v2154
  %v3586 = vsel %vm3551, %v3504, %v2156
  %v3587 = vsel %vm3551, %v3505, %v2158
  %v3588 = vsel %vm3551, %v3506, %v2160
  %v3589 = vsel %vm3551, %v3507, %v2162
  %v3590 = vsel %vm3551, %v3508, %v2164
  %v3591 = vsel %vm3551, %v3509, %v2166
  %v3592 = vsel %vm3551, %v3510, %v2168
  %v3593 = vsel %vm3551, %v3511, %v2170
  %v3594 = vsel %vm3551, %v3512, %v2172
  %v3595 = vsel %vm3551, %v3513, %v2174
  %v3596 = vsel %vm3551, %v3514, %v2176
  %v3597 = vsel %vm3551, %v3515, %v2178
  %v3598 = vsel %vm3551, %v3516, %v2180
  %v3599 = vsel %vm3551, %v3517, %v2182
  %v3600 = vsel %vm3551, %v3518, %v2184
  %v3601 = vsel %vm3551, %v3519, %v2186
  %v3602 = vsel %vm3551, %v3520, %v2188
  %v3603 = vsel %vm3551, %v3521, %v2190
  %v3604 = vsel %vm3551, %v3522, %v2192
  %v3605 = vsel %vm3551, %v3523, %v2194
  %v3606 = vsel %vm3551, %v3524, %v2196
  %v3607 = vsel %vm3551, %v3525, %v2198
  %v3608 = vsel %vm3551, %v3526, %v2200
  %v3609 = vsel %vm3551, %v3527, %v2202
  %v3610 = vsel %vm3551, %v3528, %v2204
  %v3611 = vsel %vm3551, %v3529, %v2206
  %v3612 = vsel %vm3551, %v3530, %v2208
  %v3613 = vsel %vm3551, %v3531, %v2210
  %v3614 = vsel %vm3551, %v3532, %v2212
  %v3615 = vsel %vm3551, %v3533, %v2214
  %v3616 = vsel %vm3551, %v3534, %v2216
  %v3617 = vsel %vm3551, %v3535, %v2218
  %v3618 = vsel %vm3551, %v3536, %v2220
  %v3619 = vsel %vm3551, %v3537, %v2222
  %v3620 = vsel %vm3551, %v3538, %v2224
  %v3621 = vsel %vm3551, %v3539, %v2226
  %v3622 = vsel %vm3551, %v3540, %v2228
  %v3623 = vsel %vm3551, %v3541, %v2230
  %v3624 = vsel %vm3551, %v3542, %v2232
  %v3625 = vsel %vm3551, %v3543, %v2234
  %v3626 = vsel %vm3551, %v3544, %v2236
  %v3627 = vsel %vm3551, %v3545, %v2238
  %v3628 = vsel %vm3551, %v3546, %v2240
  %v3629 = vsel %vm3551, %v3547, %v2242
  %v3630 = vsel %vm3551, %v3548, %v2244
  %v3631 = vsel %vm3551, %v3549, %v2246
  %v3632 = vsel %vm3551, %v3550, %v2248
  %vm3633 = vcmask 162816
  %v3634 = vsel %vm3633, %v3552, %v2332
  %v3635 = vsel %vm3633, %v3553, %v2334
  %v3636 = vsel %vm3633, %v3554, %v2336
  %v3637 = vsel %vm3633, %v3555, %v2338
  %v3638 = vsel %vm3633, %v3556, %v2340
  %v3639 = vsel %vm3633, %v3557, %v2342
  %v3640 = vsel %vm3633, %v3558, %v2344
  %v3641 = vsel %vm3633, %v3559, %v2346
  %v3642 = vsel %vm3633, %v3560, %v2348
  %v3643 = vsel %vm3633, %v3561, %v2350
  %v3644 = vsel %vm3633, %v3562, %v2352
  %v3645 = vsel %vm3633, %v3563, %v2354
  %v3646 = vsel %vm3633, %v3564, %v2356
  %v3647 = vsel %vm3633, %v3565, %v2358
  %v3648 = vsel %vm3633, %v3566, %v2360
  %v3649 = vsel %vm3633, %v3567, %v2362
  %v3650 = vsel %vm3633, %v3568, %v2364
  %v3651 = vsel %vm3633, %v3569, %v2366
  %v3652 = vsel %vm3633, %v3570, %v2368
  %v3653 = vsel %vm3633, %v3571, %v2370
  %v3654 = vsel %vm3633, %v3572, %v2372
  %v3655 = vsel %vm3633, %v3573, %v2374
  %v3656 = vsel %vm3633, %v3574, %v2376
  %v3657 = vsel %vm3633, %v3575, %v2378
  %v3658 = vsel %vm3633, %v3576, %v2380
  %v3659 = vsel %vm3633, %v3577, %v2382
  %v3660 = vsel %vm3633, %v3578, %v2384
  %v3661 = vsel %vm3633, %v3579, %v2386
  %v3662 = vsel %vm3633, %v3580, %v2388
  %v3663 = vsel %vm3633, %v3581, %v2390
  %v3664 = vsel %vm3633, %v3582, %v2392
  %v3665 = vsel %vm3633, %v3583, %v2394
  %v3666 = vsel %vm3633, %v3584, %v2396
  %v3667 = vsel %vm3633, %v3585, %v2398
  %v3668 = vsel %vm3633, %v3586, %v2400
  %v3669 = vsel %vm3633, %v3587, %v2402
  %v3670 = vsel %vm3633, %v3588, %v2404
  %v3671 = vsel %vm3633, %v3589, %v2406
  %v3672 = vsel %vm3633, %v3590, %v2408
  %v3673 = vsel %vm3633, %v3591, %v2410
  %v3674 = vsel %vm3633, %v3592, %v2412
  %v3675 = vsel %vm3633, %v3593, %v2414
  %v3676 = vsel %vm3633, %v3594, %v2416
  %v3677 = vsel %vm3633, %v3595, %v2418
  %v3678 = vsel %vm3633, %v3596, %v2420
  %v3679 = vsel %vm3633, %v3597, %v2422
  %v3680 = vsel %vm3633, %v3598, %v2424
  %v3681 = vsel %vm3633, %v3599, %v2426
  %v3682 = vsel %vm3633, %v3600, %v2428
  %v3683 = vsel %vm3633, %v3601, %v2430
  %v3684 = vsel %vm3633, %v3602, %v2432
  %v3685 = vsel %vm3633, %v3603, %v2434
  %v3686 = vsel %vm3633, %v3604, %v2436
  %v3687 = vsel %vm3633, %v3605, %v2438
  %v3688 = vsel %vm3633, %v3606, %v2440
  %v3689 = vsel %vm3633, %v3607, %v2442
  %v3690 = vsel %vm3633, %v3608, %v2444
  %v3691 = vsel %vm3633, %v3609, %v2446
  %v3692 = vsel %vm3633, %v3610, %v2448
  %v3693 = vsel %vm3633, %v3611, %v2450
  %v3694 = vsel %vm3633, %v3612, %v2452
  %v3695 = vsel %vm3633, %v3613, %v2454
  %v3696 = vsel %vm3633, %v3614, %v2456
  %v3697 = vsel %vm3633, %v3615, %v2458
  %v3698 = vsel %vm3633, %v3616, %v2460
  %v3699 = vsel %vm3633, %v3617, %v2462
  %v3700 = vsel %vm3633, %v3618, %v2464
  %v3701 = vsel %vm3633, %v3619, %v2466
  %v3702 = vsel %vm3633, %v3620, %v2468
  %v3703 = vsel %vm3633, %v3621, %v2470
  %v3704 = vsel %vm3633, %v3622, %v2472
  %v3705 = vsel %vm3633, %v3623, %v2474
  %v3706 = vsel %vm3633, %v3624, %v2476
  %v3707 = vsel %vm3633, %v3625, %v2478
  %v3708 = vsel %vm3633, %v3626, %v2480
  %v3709 = vsel %vm3633, %v3627, %v2482
  %v3710 = vsel %vm3633, %v3628, %v2484
  %v3711 = vsel %vm3633, %v3629, %v2486
  %v3712 = vsel %vm3633, %v3630, %v2488
  %v3713 = vsel %vm3633, %v3631, %v2490
  %v3714 = vsel %vm3633, %v3632, %v2492
  %vm3715 = vcmask 195584
  %v3716 = vsel %vm3715, %v3634, %v2575
  %v3717 = vsel %vm3715, %v3635, %v2577
  %v3718 = vsel %vm3715, %v3636, %v2579
  %v3719 = vsel %vm3715, %v3637, %v2581
  %v3720 = vsel %vm3715, %v3638, %v2583
  %v3721 = vsel %vm3715, %v3639, %v2585
  %v3722 = vsel %vm3715, %v3640, %v2587
  %v3723 = vsel %vm3715, %v3641, %v2589
  %v3724 = vsel %vm3715, %v3642, %v2591
  %v3725 = vsel %vm3715, %v3643, %v2593
  %v3726 = vsel %vm3715, %v3644, %v2595
  %v3727 = vsel %vm3715, %v3645, %v2597
  %v3728 = vsel %vm3715, %v3646, %v2599
  %v3729 = vsel %vm3715, %v3647, %v2601
  %v3730 = vsel %vm3715, %v3648, %v2603
  %v3731 = vsel %vm3715, %v3649, %v2605
  %v3732 = vsel %vm3715, %v3650, %v2607
  %v3733 = vsel %vm3715, %v3651, %v2609
  %v3734 = vsel %vm3715, %v3652, %v2611
  %v3735 = vsel %vm3715, %v3653, %v2613
  %v3736 = vsel %vm3715, %v3654, %v2615
  %v3737 = vsel %vm3715, %v3655, %v2617
  %v3738 = vsel %vm3715, %v3656, %v2619
  %v3739 = vsel %vm3715, %v3657, %v2621
  %v3740 = vsel %vm3715, %v3658, %v2623
  %v3741 = vsel %vm3715, %v3659, %v2625
  %v3742 = vsel %vm3715, %v3660, %v2627
  %v3743 = vsel %vm3715, %v3661, %v2629
  %v3744 = vsel %vm3715, %v3662, %v2631
  %v3745 = vsel %vm3715, %v3663, %v2633
  %v3746 = vsel %vm3715, %v3664, %v2635
  %v3747 = vsel %vm3715, %v3665, %v2637
  %v3748 = vsel %vm3715, %v3666, %v2639
  %v3749 = vsel %vm3715, %v3667, %v2641
  %v3750 = vsel %vm3715, %v3668, %v2643
  %v3751 = vsel %vm3715, %v3669, %v2645
  %v3752 = vsel %vm3715, %v3670, %v2647
  %v3753 = vsel %vm3715, %v3671, %v2649
  %v3754 = vsel %vm3715, %v3672, %v2651
  %v3755 = vsel %vm3715, %v3673, %v2653
  %v3756 = vsel %vm3715, %v3674, %v2655
  %v3757 = vsel %vm3715, %v3675, %v2657
  %v3758 = vsel %vm3715, %v3676, %v2659
  %v3759 = vsel %vm3715, %v3677, %v2661
  %v3760 = vsel %vm3715, %v3678, %v2663
  %v3761 = vsel %vm3715, %v3679, %v2665
  %v3762 = vsel %vm3715, %v3680, %v2667
  %v3763 = vsel %vm3715, %v3681, %v2669
  %v3764 = vsel %vm3715, %v3682, %v2671
  %v3765 = vsel %vm3715, %v3683, %v2673
  %v3766 = vsel %vm3715, %v3684, %v2675
  %v3767 = vsel %vm3715, %v3685, %v2677
  %v3768 = vsel %vm3715, %v3686, %v2679
  %v3769 = vsel %vm3715, %v3687, %v2681
  %v3770 = vsel %vm3715, %v3688, %v2683
  %v3771 = vsel %vm3715, %v3689, %v2685
  %v3772 = vsel %vm3715, %v3690, %v2687
  %v3773 = vsel %vm3715, %v3691, %v2689
  %v3774 = vsel %vm3715, %v3692, %v2691
  %v3775 = vsel %vm3715, %v3693, %v2693
  %v3776 = vsel %vm3715, %v3694, %v2695
  %v3777 = vsel %vm3715, %v3695, %v2697
  %v3778 = vsel %vm3715, %v3696, %v2699
  %v3779 = vsel %vm3715, %v3697, %v2701
  %v3780 = vsel %vm3715, %v3698, %v2703
  %v3781 = vsel %vm3715, %v3699, %v2705
  %v3782 = vsel %vm3715, %v3700, %v2707
  %v3783 = vsel %vm3715, %v3701, %v2709
  %v3784 = vsel %vm3715, %v3702, %v2711
  %v3785 = vsel %vm3715, %v3703, %v2713
  %v3786 = vsel %vm3715, %v3704, %v2715
  %v3787 = vsel %vm3715, %v3705, %v2717
  %v3788 = vsel %vm3715, %v3706, %v2719
  %v3789 = vsel %vm3715, %v3707, %v2721
  %v3790 = vsel %vm3715, %v3708, %v2723
  %v3791 = vsel %vm3715, %v3709, %v2725
  %v3792 = vsel %vm3715, %v3710, %v2727
  %v3793 = vsel %vm3715, %v3711, %v2729
  %v3794 = vsel %vm3715, %v3712, %v2731
  %v3795 = vsel %vm3715, %v3713, %v2733
  %v3796 = vsel %vm3715, %v3714, %v2735
  %vm3797 = vcmask 228352
  %v3798 = vsel %vm3797, %v3716, %v2819
  %v3799 = vsel %vm3797, %v3717, %v2821
  %v3800 = vsel %vm3797, %v3718, %v2823
  %v3801 = vsel %vm3797, %v3719, %v2825
  %v3802 = vsel %vm3797, %v3720, %v2827
  %v3803 = vsel %vm3797, %v3721, %v2829
  %v3804 = vsel %vm3797, %v3722, %v2831
  %v3805 = vsel %vm3797, %v3723, %v2833
  %v3806 = vsel %vm3797, %v3724, %v2835
  %v3807 = vsel %vm3797, %v3725, %v2837
  %v3808 = vsel %vm3797, %v3726, %v2839
  %v3809 = vsel %vm3797, %v3727, %v2841
  %v3810 = vsel %vm3797, %v3728, %v2843
  %v3811 = vsel %vm3797, %v3729, %v2845
  %v3812 = vsel %vm3797, %v3730, %v2847
  %v3813 = vsel %vm3797, %v3731, %v2849
  %v3814 = vsel %vm3797, %v3732, %v2851
  %v3815 = vsel %vm3797, %v3733, %v2853
  %v3816 = vsel %vm3797, %v3734, %v2855
  %v3817 = vsel %vm3797, %v3735, %v2857
  %v3818 = vsel %vm3797, %v3736, %v2859
  %v3819 = vsel %vm3797, %v3737, %v2861
  %v3820 = vsel %vm3797, %v3738, %v2863
  %v3821 = vsel %vm3797, %v3739, %v2865
  %v3822 = vsel %vm3797, %v3740, %v2867
  %v3823 = vsel %vm3797, %v3741, %v2869
  %v3824 = vsel %vm3797, %v3742, %v2871
  %v3825 = vsel %vm3797, %v3743, %v2873
  %v3826 = vsel %vm3797, %v3744, %v2875
  %v3827 = vsel %vm3797, %v3745, %v2877
  %v3828 = vsel %vm3797, %v3746, %v2879
  %v3829 = vsel %vm3797, %v3747, %v2881
  %v3830 = vsel %vm3797, %v3748, %v2883
  %v3831 = vsel %vm3797, %v3749, %v2885
  %v3832 = vsel %vm3797, %v3750, %v2887
  %v3833 = vsel %vm3797, %v3751, %v2889
  %v3834 = vsel %vm3797, %v3752, %v2891
  %v3835 = vsel %vm3797, %v3753, %v2893
  %v3836 = vsel %vm3797, %v3754, %v2895
  %v3837 = vsel %vm3797, %v3755, %v2897
  %v3838 = vsel %vm3797, %v3756, %v2899
  %v3839 = vsel %vm3797, %v3757, %v2901
  %v3840 = vsel %vm3797, %v3758, %v2903
  %v3841 = vsel %vm3797, %v3759, %v2905
  %v3842 = vsel %vm3797, %v3760, %v2907
  %v3843 = vsel %vm3797, %v3761, %v2909
  %v3844 = vsel %vm3797, %v3762, %v2911
  %v3845 = vsel %vm3797, %v3763, %v2913
  %v3846 = vsel %vm3797, %v3764, %v2915
  %v3847 = vsel %vm3797, %v3765, %v2917
  %v3848 = vsel %vm3797, %v3766, %v2919
  %v3849 = vsel %vm3797, %v3767, %v2921
  %v3850 = vsel %vm3797, %v3768, %v2923
  %v3851 = vsel %vm3797, %v3769, %v2925
  %v3852 = vsel %vm3797, %v3770, %v2927
  %v3853 = vsel %vm3797, %v3771, %v2929
  %v3854 = vsel %vm3797, %v3772, %v2931
  %v3855 = vsel %vm3797, %v3773, %v2933
  %v3856 = vsel %vm3797, %v3774, %v2935
  %v3857 = vsel %vm3797, %v3775, %v2937
  %v3858 = vsel %vm3797, %v3776, %v2939
  %v3859 = vsel %vm3797, %v3777, %v2941
  %v3860 = vsel %vm3797, %v3778, %v2943
  %v3861 = vsel %vm3797, %v3779, %v2945
  %v3862 = vsel %vm3797, %v3780, %v2947
  %v3863 = vsel %vm3797, %v3781, %v2949
  %v3864 = vsel %vm3797, %v3782, %v2951
  %v3865 = vsel %vm3797, %v3783, %v2953
  %v3866 = vsel %vm3797, %v3784, %v2955
  %v3867 = vsel %vm3797, %v3785, %v2957
  %v3868 = vsel %vm3797, %v3786, %v2959
  %v3869 = vsel %vm3797, %v3787, %v2961
  %v3870 = vsel %vm3797, %v3788, %v2963
  %v3871 = vsel %vm3797, %v3789, %v2965
  %v3872 = vsel %vm3797, %v3790, %v2967
  %v3873 = vsel %vm3797, %v3791, %v2969
  %v3874 = vsel %vm3797, %v3792, %v2971
  %v3875 = vsel %vm3797, %v3793, %v2973
  %v3876 = vsel %vm3797, %v3794, %v2975
  %v3877 = vsel %vm3797, %v3795, %v2977
  %v3878 = vsel %vm3797, %v3796, %v2979
  %vm3879 = vcmask 261120
  %v3880 = vsel %vm3879, %v3798, %v3063
  %v3881 = vsel %vm3879, %v3799, %v3065
  %v3882 = vsel %vm3879, %v3800, %v3067
  %v3883 = vsel %vm3879, %v3801, %v3069
  %v3884 = vsel %vm3879, %v3802, %v3071
  %v3885 = vsel %vm3879, %v3803, %v3073
  %v3886 = vsel %vm3879, %v3804, %v3075
  %v3887 = vsel %vm3879, %v3805, %v3077
  %v3888 = vsel %vm3879, %v3806, %v3079
  %v3889 = vsel %vm3879, %v3807, %v3081
  %v3890 = vsel %vm3879, %v3808, %v3083
  %v3891 = vsel %vm3879, %v3809, %v3085
  %v3892 = vsel %vm3879, %v3810, %v3087
  %v3893 = vsel %vm3879, %v3811, %v3089
  %v3894 = vsel %vm3879, %v3812, %v3091
  %v3895 = vsel %vm3879, %v3813, %v3093
  %v3896 = vsel %vm3879, %v3814, %v3095
  %v3897 = vsel %vm3879, %v3815, %v3097
  %v3898 = vsel %vm3879, %v3816, %v3099
  %v3899 = vsel %vm3879, %v3817, %v3101
  %v3900 = vsel %vm3879, %v3818, %v3103
  %v3901 = vsel %vm3879, %v3819, %v3105
  %v3902 = vsel %vm3879, %v3820, %v3107
  %v3903 = vsel %vm3879, %v3821, %v3109
  %v3904 = vsel %vm3879, %v3822, %v3111
  %v3905 = vsel %vm3879, %v3823, %v3113
  %v3906 = vsel %vm3879, %v3824, %v3115
  %v3907 = vsel %vm3879, %v3825, %v3117
  %v3908 = vsel %vm3879, %v3826, %v3119
  %v3909 = vsel %vm3879, %v3827, %v3121
  %v3910 = vsel %vm3879, %v3828, %v3123
  %v3911 = vsel %vm3879, %v3829, %v3125
  %v3912 = vsel %vm3879, %v3830, %v3127
  %v3913 = vsel %vm3879, %v3831, %v3129
  %v3914 = vsel %vm3879, %v3832, %v3131
  %v3915 = vsel %vm3879, %v3833, %v3133
  %v3916 = vsel %vm3879, %v3834, %v3135
  %v3917 = vsel %vm3879, %v3835, %v3137
  %v3918 = vsel %vm3879, %v3836, %v3139
  %v3919 = vsel %vm3879, %v3837, %v3141
  %v3920 = vsel %vm3879, %v3838, %v3143
  %v3921 = vsel %vm3879, %v3839, %v3145
  %v3922 = vsel %vm3879, %v3840, %v3147
  %v3923 = vsel %vm3879, %v3841, %v3149
  %v3924 = vsel %vm3879, %v3842, %v3151
  %v3925 = vsel %vm3879, %v3843, %v3153
  %v3926 = vsel %vm3879, %v3844, %v3155
  %v3927 = vsel %vm3879, %v3845, %v3157
  %v3928 = vsel %vm3879, %v3846, %v3159
  %v3929 = vsel %vm3879, %v3847, %v3161
  %v3930 = vsel %vm3879, %v3848, %v3163
  %v3931 = vsel %vm3879, %v3849, %v3165
  %v3932 = vsel %vm3879, %v3850, %v3167
  %v3933 = vsel %vm3879, %v3851, %v3169
  %v3934 = vsel %vm3879, %v3852, %v3171
  %v3935 = vsel %vm3879, %v3853, %v3173
  %v3936 = vsel %vm3879, %v3854, %v3175
  %v3937 = vsel %vm3879, %v3855, %v3177
  %v3938 = vsel %vm3879, %v3856, %v3179
  %v3939 = vsel %vm3879, %v3857, %v3181
  %v3940 = vsel %vm3879, %v3858, %v3183
  %v3941 = vsel %vm3879, %v3859, %v3185
  %v3942 = vsel %vm3879, %v3860, %v3187
  %v3943 = vsel %vm3879, %v3861, %v3189
  %v3944 = vsel %vm3879, %v3862, %v3191
  %v3945 = vsel %vm3879, %v3863, %v3193
  %v3946 = vsel %vm3879, %v3864, %v3195
  %v3947 = vsel %vm3879, %v3865, %v3197
  %v3948 = vsel %vm3879, %v3866, %v3199
  %v3949 = vsel %vm3879, %v3867, %v3201
  %v3950 = vsel %vm3879, %v3868, %v3203
  %v3951 = vsel %vm3879, %v3869, %v3205
  %v3952 = vsel %vm3879, %v3870, %v3207
  %v3953 = vsel %vm3879, %v3871, %v3209
  %v3954 = vsel %vm3879, %v3872, %v3211
  %v3955 = vsel %vm3879, %v3873, %v3213
  %v3956 = vsel %vm3879, %v3874, %v3215
  %v3957 = vsel %vm3879, %v3875, %v3217
  %v3958 = vsel %vm3879, %v3876, %v3219
  %v3959 = vsel %vm3879, %v3877, %v3221
  %v3960 = vsel %vm3879, %v3878, %v3223
  %v3962 = vperm.slane %v202, 0
  %vm3964 = vcmask 293888
  %v3966 = vsel %vm3964, %v3880, 0
  %v3969 = vsel %vm3964, %v3881, 0
  %v3972 = vsel %vm3964, %v3882, 0
  %v3975 = vsel %vm3964, %v3883, 0
  %v3978 = vsel %vm3964, %v3884, 0
  %v3981 = vsel %vm3964, %v3885, 0
  %v3984 = vsel %vm3964, %v3886, 0
  %v3987 = vsel %vm3964, %v3887, 0
  %v3990 = vsel %vm3964, %v3888, 0
  %v3993 = vsel %vm3964, %v3889, 0
  %v3996 = vsel %vm3964, %v3890, 0
  %v3999 = vsel %vm3964, %v3891, 0
  %v4002 = vsel %vm3964, %v3892, 0
  %v4005 = vsel %vm3964, %v3893, 0
  %v4008 = vsel %vm3964, %v3894, 0
  %v4011 = vsel %vm3964, %v3895, 0
  %v4014 = vsel %vm3964, %v3896, 0
  %v4017 = vsel %vm3964, %v3897, 0
  %v4020 = vsel %vm3964, %v3898, 0
  %v4023 = vsel %vm3964, %v3899, 0
  %v4026 = vsel %vm3964, %v3900, 0
  %v4029 = vsel %vm3964, %v3901, 0
  %v4032 = vsel %vm3964, %v3902, 0
  %v4035 = vsel %vm3964, %v3903, 0
  %v4038 = vsel %vm3964, %v3904, 0
  %v4041 = vsel %vm3964, %v3905, 0
  %v4044 = vsel %vm3964, %v3906, 0
  %v4047 = vsel %vm3964, %v3907, 0
  %v4050 = vsel %vm3964, %v3908, 0
  %v4053 = vsel %vm3964, %v3909, 0
  %v4056 = vsel %vm3964, %v3910, 0
  %v4059 = vsel %vm3964, %v3911, 0
  %v4062 = vsel %vm3964, %v3912, 0
  %v4065 = vsel %vm3964, %v3913, 0
  %v4068 = vsel %vm3964, %v3914, 0
  %v4071 = vsel %vm3964, %v3915, 0
  %v4074 = vsel %vm3964, %v3916, 0
  %v4077 = vsel %vm3964, %v3917, 0
  %v4080 = vsel %vm3964, %v3918, 0
  %v4083 = vsel %vm3964, %v3919, 0
  %v4086 = vsel %vm3964, %v3920, 0
  %v4089 = vsel %vm3964, %v3921, 0
  %v4092 = vsel %vm3964, %v3922, 0
  %v4095 = vsel %vm3964, %v3923, 0
  %v4098 = vsel %vm3964, %v3924, 0
  %v4101 = vsel %vm3964, %v3925, 0
  %v4104 = vsel %vm3964, %v3926, 0
  %v4107 = vsel %vm3964, %v3927, 0
  %v4110 = vsel %vm3964, %v3928, 0
  %v4113 = vsel %vm3964, %v3929, 0
  %v4116 = vsel %vm3964, %v3930, 0
  %v4119 = vsel %vm3964, %v3931, 0
  %v4122 = vsel %vm3964, %v3932, 0
  %v4125 = vsel %vm3964, %v3933, 0
  %v4128 = vsel %vm3964, %v3934, 0
  %v4131 = vsel %vm3964, %v3935, 0
  %v4134 = vsel %vm3964, %v3936, 0
  %v4137 = vsel %vm3964, %v3937, 0
  %v4140 = vsel %vm3964, %v3938, 0
  %v4143 = vsel %vm3964, %v3939, 0
  %v4146 = vsel %vm3964, %v3940, 0
  %v4149 = vsel %vm3964, %v3941, 0
  %v4152 = vsel %vm3964, %v3942, 0
  %v4155 = vsel %vm3964, %v3943, 0
  %v4158 = vsel %vm3964, %v3944, 0
  %v4161 = vsel %vm3964, %v3945, 0
  %v4164 = vsel %vm3964, %v3946, 0
  %v4167 = vsel %vm3964, %v3947, 0
  %v4170 = vsel %vm3964, %v3948, 0
  %v4173 = vsel %vm3964, %v3949, 0
  %v4176 = vsel %vm3964, %v3950, 0
  %v4179 = vsel %vm3964, %v3951, 0
  %v4182 = vsel %vm3964, %v3952, 0
  %v4185 = vsel %vm3964, %v3953, 0
  %v4188 = vsel %vm3964, %v3954, 0
  %v4191 = vsel %vm3964, %v3955, 0
  %v4194 = vsel %vm3964, %v3956, 0
  %v4197 = vsel %vm3964, %v3957, 0
  %v4200 = vsel %vm3964, %v3958, 0
  %v4203 = vsel %vm3964, %v3959, 0
  %v4206 = vsel %vm3964, %v3960, 0
  %vm4208 = vcmask 1043456
  %v4210 = vsel %vm4208, %v201, 0
  %4212 = vmatpush.msra.mxu0 0.0
  %4213 = vmatpush.msra.mxu0 0.0
  %4214 = vmatpush.msra.mxu0 0.0
  %4215 = vmatpush.msra.mxu0 0.0
  %4216 = vmatpush.msra.mxu0 0.0
  %4217 = vmatpush.msra.mxu0 0.0
  %4218 = vmatpush.msra.mxu0 0.0
  %4219 = vmatpush.msra.mxu0 0.0
  %4220 = vmatpush.msra.mxu0 0.0
  %4221 = vmatpush.msra.mxu0 0.0
  %4222 = vmatpush.msra.mxu0 0.0
  %4223 = vmatpush.msra.mxu0 %v4210
  %4224 = vmatpush.msra.mxu0 %v200
  %4225 = vmatpush.msra.mxu0 %v199
  %4226 = vmatpush.msra.mxu0 %v198
  %4227 = vmatpush.msra.mxu0 %v197
  %4228 = vmatmul.f32.gmra.mxu0 %v3966
  %v4229 = vpop.f32.mrf.mxu0
  %v4230 = vadd.f32 %v3962, %v4229
  %4231 = vmatmul.f32.gmra.mxu0 %v3969
  %v4232 = vpop.f32.mrf.mxu0
  %v4233 = vadd.f32 %v3962, %v4232
  %4234 = vmatmul.f32.gmra.mxu0 %v3972
  %v4235 = vpop.f32.mrf.mxu0
  %v4236 = vadd.f32 %v3962, %v4235
  %4237 = vmatmul.f32.gmra.mxu0 %v3975
  %v4238 = vpop.f32.mrf.mxu0
  %v4239 = vadd.f32 %v3962, %v4238
  %4240 = vmatmul.f32.gmra.mxu0 %v3978
  %v4241 = vpop.f32.mrf.mxu0
  %v4242 = vadd.f32 %v3962, %v4241
  %4243 = vmatmul.f32.gmra.mxu0 %v3981
  %v4244 = vpop.f32.mrf.mxu0
  %v4245 = vadd.f32 %v3962, %v4244
  %4246 = vmatmul.f32.gmra.mxu0 %v3984
  %v4247 = vpop.f32.mrf.mxu0
  %v4248 = vadd.f32 %v3962, %v4247
  %4249 = vmatmul.f32.gmra.mxu0 %v3987
  %v4250 = vpop.f32.mrf.mxu0
  %v4251 = vadd.f32 %v3962, %v4250
  %4252 = vmatmul.f32.gmra.mxu0 %v3990
  %v4253 = vpop.f32.mrf.mxu0
  %v4254 = vadd.f32 %v3962, %v4253
  %4255 = vmatmul.f32.gmra.mxu0 %v3993
  %v4256 = vpop.f32.mrf.mxu0
  %v4257 = vadd.f32 %v3962, %v4256
  %4258 = vmatmul.f32.gmra.mxu0 %v3996
  %v4259 = vpop.f32.mrf.mxu0
  %v4260 = vadd.f32 %v3962, %v4259
  %4261 = vmatmul.f32.gmra.mxu0 %v3999
  %v4262 = vpop.f32.mrf.mxu0
  %v4263 = vadd.f32 %v3962, %v4262
  %4264 = vmatmul.f32.gmra.mxu0 %v4002
  %v4265 = vpop.f32.mrf.mxu0
  %v4266 = vadd.f32 %v3962, %v4265
  %4267 = vmatmul.f32.gmra.mxu0 %v4005
  %v4268 = vpop.f32.mrf.mxu0
  %v4269 = vadd.f32 %v3962, %v4268
  %4270 = vmatmul.f32.gmra.mxu0 %v4008
  %v4271 = vpop.f32.mrf.mxu0
  %v4272 = vadd.f32 %v3962, %v4271
  %4273 = vmatmul.f32.gmra.mxu0 %v4011
  %v4274 = vpop.f32.mrf.mxu0
  %v4275 = vadd.f32 %v3962, %v4274
  %4276 = vmatmul.f32.gmra.mxu0 %v4014
  %v4277 = vpop.f32.mrf.mxu0
  %v4278 = vadd.f32 %v3962, %v4277
  %4279 = vmatmul.f32.gmra.mxu0 %v4017
  %v4280 = vpop.f32.mrf.mxu0
  %v4281 = vadd.f32 %v3962, %v4280
  %4282 = vmatmul.f32.gmra.mxu0 %v4020
  %v4283 = vpop.f32.mrf.mxu0
  %v4284 = vadd.f32 %v3962, %v4283
  %4285 = vmatmul.f32.gmra.mxu0 %v4023
  %v4286 = vpop.f32.mrf.mxu0
  %v4287 = vadd.f32 %v3962, %v4286
  %4288 = vmatmul.f32.gmra.mxu0 %v4026
  %v4289 = vpop.f32.mrf.mxu0
  %v4290 = vadd.f32 %v3962, %v4289
  %4291 = vmatmul.f32.gmra.mxu0 %v4029
  %v4292 = vpop.f32.mrf.mxu0
  %v4293 = vadd.f32 %v3962, %v4292
  %4294 = vmatmul.f32.gmra.mxu0 %v4032
  %v4295 = vpop.f32.mrf.mxu0
  %v4296 = vadd.f32 %v3962, %v4295
  %4297 = vmatmul.f32.gmra.mxu0 %v4035
  %v4298 = vpop.f32.mrf.mxu0
  %v4299 = vadd.f32 %v3962, %v4298
  %4300 = vmatmul.f32.gmra.mxu0 %v4038
  %v4301 = vpop.f32.mrf.mxu0
  %v4302 = vadd.f32 %v3962, %v4301
  %4303 = vmatmul.f32.gmra.mxu0 %v4041
  %v4304 = vpop.f32.mrf.mxu0
  %v4305 = vadd.f32 %v3962, %v4304
  %4306 = vmatmul.f32.gmra.mxu0 %v4044
  %v4307 = vpop.f32.mrf.mxu0
  %v4308 = vadd.f32 %v3962, %v4307
  %4309 = vmatmul.f32.gmra.mxu0 %v4047
  %v4310 = vpop.f32.mrf.mxu0
  %v4311 = vadd.f32 %v3962, %v4310
  %4312 = vmatmul.f32.gmra.mxu0 %v4050
  %v4313 = vpop.f32.mrf.mxu0
  %v4314 = vadd.f32 %v3962, %v4313
  %4315 = vmatmul.f32.gmra.mxu0 %v4053
  %v4316 = vpop.f32.mrf.mxu0
  %v4317 = vadd.f32 %v3962, %v4316
  %4318 = vmatmul.f32.gmra.mxu0 %v4056
  %v4319 = vpop.f32.mrf.mxu0
  %v4320 = vadd.f32 %v3962, %v4319
  %4321 = vmatmul.f32.gmra.mxu0 %v4059
  %v4322 = vpop.f32.mrf.mxu0
  %v4323 = vadd.f32 %v3962, %v4322
  %4324 = vmatmul.f32.gmra.mxu0 %v4062
  %v4325 = vpop.f32.mrf.mxu0
  %v4326 = vadd.f32 %v3962, %v4325
  %4327 = vmatmul.f32.gmra.mxu0 %v4065
  %v4328 = vpop.f32.mrf.mxu0
  %v4329 = vadd.f32 %v3962, %v4328
  %4330 = vmatmul.f32.gmra.mxu0 %v4068
  %v4331 = vpop.f32.mrf.mxu0
  %v4332 = vadd.f32 %v3962, %v4331
  %4333 = vmatmul.f32.gmra.mxu0 %v4071
  %v4334 = vpop.f32.mrf.mxu0
  %v4335 = vadd.f32 %v3962, %v4334
  %4336 = vmatmul.f32.gmra.mxu0 %v4074
  %v4337 = vpop.f32.mrf.mxu0
  %v4338 = vadd.f32 %v3962, %v4337
  %4339 = vmatmul.f32.gmra.mxu0 %v4077
  %v4340 = vpop.f32.mrf.mxu0
  %v4341 = vadd.f32 %v3962, %v4340
  %4342 = vmatmul.f32.gmra.mxu0 %v4080
  %v4343 = vpop.f32.mrf.mxu0
  %v4344 = vadd.f32 %v3962, %v4343
  %4345 = vmatmul.f32.gmra.mxu0 %v4083
  %v4346 = vpop.f32.mrf.mxu0
  %v4347 = vadd.f32 %v3962, %v4346
  %4348 = vmatmul.f32.gmra.mxu0 %v4086
  %v4349 = vpop.f32.mrf.mxu0
  %v4350 = vadd.f32 %v3962, %v4349
  %4351 = vmatmul.f32.gmra.mxu0 %v4089
  %v4352 = vpop.f32.mrf.mxu0
  %v4353 = vadd.f32 %v3962, %v4352
  %4354 = vmatmul.f32.gmra.mxu0 %v4092
  %v4355 = vpop.f32.mrf.mxu0
  %v4356 = vadd.f32 %v3962, %v4355
  %4357 = vmatmul.f32.gmra.mxu0 %v4095
  %v4358 = vpop.f32.mrf.mxu0
  %v4359 = vadd.f32 %v3962, %v4358
  %4360 = vmatmul.f32.gmra.mxu0 %v4098
  %v4361 = vpop.f32.mrf.mxu0
  %v4362 = vadd.f32 %v3962, %v4361
  %4363 = vmatmul.f32.gmra.mxu0 %v4101
  %v4364 = vpop.f32.mrf.mxu0
  %v4365 = vadd.f32 %v3962, %v4364
  %4366 = vmatmul.f32.gmra.mxu0 %v4104
  %v4367 = vpop.f32.mrf.mxu0
  %v4368 = vadd.f32 %v3962, %v4367
  %4369 = vmatmul.f32.gmra.mxu0 %v4107
  %v4370 = vpop.f32.mrf.mxu0
  %v4371 = vadd.f32 %v3962, %v4370
  %4372 = vmatmul.f32.gmra.mxu0 %v4110
  %v4373 = vpop.f32.mrf.mxu0
  %v4374 = vadd.f32 %v3962, %v4373
  %4375 = vmatmul.f32.gmra.mxu0 %v4113
  %v4376 = vpop.f32.mrf.mxu0
  %v4377 = vadd.f32 %v3962, %v4376
  %4378 = vmatmul.f32.gmra.mxu0 %v4116
  %v4379 = vpop.f32.mrf.mxu0
  %v4380 = vadd.f32 %v3962, %v4379
  %4381 = vmatmul.f32.gmra.mxu0 %v4119
  %v4382 = vpop.f32.mrf.mxu0
  %v4383 = vadd.f32 %v3962, %v4382
  %4384 = vmatmul.f32.gmra.mxu0 %v4122
  %v4385 = vpop.f32.mrf.mxu0
  %v4386 = vadd.f32 %v3962, %v4385
  %4387 = vmatmul.f32.gmra.mxu0 %v4125
  %v4388 = vpop.f32.mrf.mxu0
  %v4389 = vadd.f32 %v3962, %v4388
  %4390 = vmatmul.f32.gmra.mxu0 %v4128
  %v4391 = vpop.f32.mrf.mxu0
  %v4392 = vadd.f32 %v3962, %v4391
  %4393 = vmatmul.f32.gmra.mxu0 %v4131
  %v4394 = vpop.f32.mrf.mxu0
  %v4395 = vadd.f32 %v3962, %v4394
  %4396 = vmatmul.f32.gmra.mxu0 %v4134
  %v4397 = vpop.f32.mrf.mxu0
  %v4398 = vadd.f32 %v3962, %v4397
  %4399 = vmatmul.f32.gmra.mxu0 %v4137
  %v4400 = vpop.f32.mrf.mxu0
  %v4401 = vadd.f32 %v3962, %v4400
  %4402 = vmatmul.f32.gmra.mxu0 %v4140
  %v4403 = vpop.f32.mrf.mxu0
  %v4404 = vadd.f32 %v3962, %v4403
  %4405 = vmatmul.f32.gmra.mxu0 %v4143
  %v4406 = vpop.f32.mrf.mxu0
  %v4407 = vadd.f32 %v3962, %v4406
  %4408 = vmatmul.f32.gmra.mxu0 %v4146
  %v4409 = vpop.f32.mrf.mxu0
  %v4410 = vadd.f32 %v3962, %v4409
  %4411 = vmatmul.f32.gmra.mxu0 %v4149
  %v4412 = vpop.f32.mrf.mxu0
  %v4413 = vadd.f32 %v3962, %v4412
  %4414 = vmatmul.f32.gmra.mxu0 %v4152
  %v4415 = vpop.f32.mrf.mxu0
  %v4416 = vadd.f32 %v3962, %v4415
  %4417 = vmatmul.f32.gmra.mxu0 %v4155
  %v4418 = vpop.f32.mrf.mxu0
  %v4419 = vadd.f32 %v3962, %v4418
  %4420 = vmatmul.f32.gmra.mxu0 %v4158
  %v4421 = vpop.f32.mrf.mxu0
  %v4422 = vadd.f32 %v3962, %v4421
  %4423 = vmatmul.f32.gmra.mxu0 %v4161
  %v4424 = vpop.f32.mrf.mxu0
  %v4425 = vadd.f32 %v3962, %v4424
  %4426 = vmatmul.f32.gmra.mxu0 %v4164
  %v4427 = vpop.f32.mrf.mxu0
  %v4428 = vadd.f32 %v3962, %v4427
  %4429 = vmatmul.f32.gmra.mxu0 %v4167
  %v4430 = vpop.f32.mrf.mxu0
  %v4431 = vadd.f32 %v3962, %v4430
  %4432 = vmatmul.f32.gmra.mxu0 %v4170
  %v4433 = vpop.f32.mrf.mxu0
  %v4434 = vadd.f32 %v3962, %v4433
  %4435 = vmatmul.f32.gmra.mxu0 %v4173
  %v4436 = vpop.f32.mrf.mxu0
  %v4437 = vadd.f32 %v3962, %v4436
  %4438 = vmatmul.f32.gmra.mxu0 %v4176
  %v4439 = vpop.f32.mrf.mxu0
  %v4440 = vadd.f32 %v3962, %v4439
  %4441 = vmatmul.f32.gmra.mxu0 %v4179
  %v4442 = vpop.f32.mrf.mxu0
  %v4443 = vadd.f32 %v3962, %v4442
  %4444 = vmatmul.f32.gmra.mxu0 %v4182
  %v4445 = vpop.f32.mrf.mxu0
  %v4446 = vadd.f32 %v3962, %v4445
  %4447 = vmatmul.f32.gmra.mxu0 %v4185
  %v4448 = vpop.f32.mrf.mxu0
  %v4449 = vadd.f32 %v3962, %v4448
  %4450 = vmatmul.f32.gmra.mxu0 %v4188
  %v4451 = vpop.f32.mrf.mxu0
  %v4452 = vadd.f32 %v3962, %v4451
  %4453 = vmatmul.f32.gmra.mxu0 %v4191
  %v4454 = vpop.f32.mrf.mxu0
  %v4455 = vadd.f32 %v3962, %v4454
  %4456 = vmatmul.f32.gmra.mxu0 %v4194
  %v4457 = vpop.f32.mrf.mxu0
  %v4458 = vadd.f32 %v3962, %v4457
  %4459 = vmatmul.f32.gmra.mxu0 %v4197
  %v4460 = vpop.f32.mrf.mxu0
  %v4461 = vadd.f32 %v3962, %v4460
  %4462 = vmatmul.f32.gmra.mxu0 %v4200
  %v4463 = vpop.f32.mrf.mxu0
  %v4464 = vadd.f32 %v3962, %v4463
  %4465 = vmatmul.f32.gmra.mxu0 %v4203
  %v4466 = vpop.f32.mrf.mxu0
  %v4467 = vadd.f32 %v3962, %v4466
  %4468 = vmatmul.f32.gmra.mxu0 %v4206
  %v4469 = vpop.f32.mrf.mxu0
  %v4470 = vadd.f32 %v3962, %v4469
  %4471 = vdwg.mxu0
  %4473 = vset.pattern.permute.xlu0 0
  %4474 = vperm.xlu0 %4473, %v35
  %v4475 = vpop.permute.xlu0 %4474
  %4478 = vset.pattern.permute.xlu0 0
  %4479 = vperm.xlu0 %4478, %v36
  %v4480 = vpop.permute.xlu0 %4479
  %4483 = vset.pattern.permute.xlu0 0
  %4484 = vperm.xlu0 %4483, %v37
  %v4485 = vpop.permute.xlu0 %4484
  %4488 = vset.pattern.permute.xlu0 0
  %4489 = vperm.xlu0 %4488, %v38
  %v4490 = vpop.permute.xlu0 %4489
  %4493 = vset.pattern.permute.xlu0 0
  %4494 = vperm.xlu0 %4493, %v39
  %v4495 = vpop.permute.xlu0 %4494
  %4498 = vset.pattern.permute.xlu0 0
  %4499 = vperm.xlu0 %4498, %v40
  %v4500 = vpop.permute.xlu0 %4499
  %4503 = vset.pattern.permute.xlu0 0
  %4504 = vperm.xlu0 %4503, %v41
  %v4505 = vpop.permute.xlu0 %4504
  %4508 = vset.pattern.permute.xlu0 0
  %4509 = vperm.xlu0 %4508, %v42
  %v4510 = vpop.permute.xlu0 %4509
  %4513 = vset.pattern.permute.xlu0 0
  %4514 = vperm.xlu0 %4513, %v43
  %v4515 = vpop.permute.xlu0 %4514
  %4518 = vset.pattern.permute.xlu0 0
  %4519 = vperm.xlu0 %4518, %v44
  %v4520 = vpop.permute.xlu0 %4519
  %4523 = vset.pattern.permute.xlu0 0
  %4524 = vperm.xlu0 %4523, %v45
  %v4525 = vpop.permute.xlu0 %4524
  %4528 = vset.pattern.permute.xlu0 0
  %4529 = vperm.xlu0 %4528, %v46
  %v4530 = vpop.permute.xlu0 %4529
  %4533 = vset.pattern.permute.xlu0 0
  %4534 = vperm.xlu0 %4533, %v47
  %v4535 = vpop.permute.xlu0 %4534
  %4538 = vset.pattern.permute.xlu0 0
  %4539 = vperm.xlu0 %4538, %v48
  %v4540 = vpop.permute.xlu0 %4539
  %4543 = vset.pattern.permute.xlu0 0
  %4544 = vperm.xlu0 %4543, %v49
  %v4545 = vpop.permute.xlu0 %4544
  %4548 = vset.pattern.permute.xlu0 0
  %4549 = vperm.xlu0 %4548, %v50
  %v4550 = vpop.permute.xlu0 %4549
  %4553 = vset.pattern.permute.xlu0 0
  %4554 = vperm.xlu0 %4553, %v51
  %v4555 = vpop.permute.xlu0 %4554
  %4558 = vset.pattern.permute.xlu0 0
  %4559 = vperm.xlu0 %4558, %v52
  %v4560 = vpop.permute.xlu0 %4559
  %4563 = vset.pattern.permute.xlu0 0
  %4564 = vperm.xlu0 %4563, %v53
  %v4565 = vpop.permute.xlu0 %4564
  %4568 = vset.pattern.permute.xlu0 0
  %4569 = vperm.xlu0 %4568, %v54
  %v4570 = vpop.permute.xlu0 %4569
  %4573 = vset.pattern.permute.xlu0 0
  %4574 = vperm.xlu0 %4573, %v55
  %v4575 = vpop.permute.xlu0 %4574
  %4578 = vset.pattern.permute.xlu0 0
  %4579 = vperm.xlu0 %4578, %v56
  %v4580 = vpop.permute.xlu0 %4579
  %4583 = vset.pattern.permute.xlu0 0
  %4584 = vperm.xlu0 %4583, %v57
  %v4585 = vpop.permute.xlu0 %4584
  %4588 = vset.pattern.permute.xlu0 0
  %4589 = vperm.xlu0 %4588, %v58
  %v4590 = vpop.permute.xlu0 %4589
  %4593 = vset.pattern.permute.xlu0 0
  %4594 = vperm.xlu0 %4593, %v59
  %v4595 = vpop.permute.xlu0 %4594
  %4598 = vset.pattern.permute.xlu0 0
  %4599 = vperm.xlu0 %4598, %v60
  %v4600 = vpop.permute.xlu0 %4599
  %4603 = vset.pattern.permute.xlu0 0
  %4604 = vperm.xlu0 %4603, %v61
  %v4605 = vpop.permute.xlu0 %4604
  %4608 = vset.pattern.permute.xlu0 0
  %4609 = vperm.xlu0 %4608, %v62
  %v4610 = vpop.permute.xlu0 %4609
  %4613 = vset.pattern.permute.xlu0 0
  %4614 = vperm.xlu0 %4613, %v63
  %v4615 = vpop.permute.xlu0 %4614
  %4618 = vset.pattern.permute.xlu0 0
  %4619 = vperm.xlu0 %4618, %v64
  %v4620 = vpop.permute.xlu0 %4619
  %4623 = vset.pattern.permute.xlu0 0
  %4624 = vperm.xlu0 %4623, %v65
  %v4625 = vpop.permute.xlu0 %4624
  %4628 = vset.pattern.permute.xlu0 0
  %4629 = vperm.xlu0 %4628, %v66
  %v4630 = vpop.permute.xlu0 %4629
  %4633 = vset.pattern.permute.xlu0 0
  %4634 = vperm.xlu0 %4633, %v67
  %v4635 = vpop.permute.xlu0 %4634
  %4638 = vset.pattern.permute.xlu0 0
  %4639 = vperm.xlu0 %4638, %v68
  %v4640 = vpop.permute.xlu0 %4639
  %4643 = vset.pattern.permute.xlu0 0
  %4644 = vperm.xlu0 %4643, %v69
  %v4645 = vpop.permute.xlu0 %4644
  %4648 = vset.pattern.permute.xlu0 0
  %4649 = vperm.xlu0 %4648, %v70
  %v4650 = vpop.permute.xlu0 %4649
  %4653 = vset.pattern.permute.xlu0 0
  %4654 = vperm.xlu0 %4653, %v71
  %v4655 = vpop.permute.xlu0 %4654
  %4658 = vset.pattern.permute.xlu0 0
  %4659 = vperm.xlu0 %4658, %v72
  %v4660 = vpop.permute.xlu0 %4659
  %4663 = vset.pattern.permute.xlu0 0
  %4664 = vperm.xlu0 %4663, %v73
  %v4665 = vpop.permute.xlu0 %4664
  %4668 = vset.pattern.permute.xlu0 0
  %4669 = vperm.xlu0 %4668, %v74
  %v4670 = vpop.permute.xlu0 %4669
  %4673 = vset.pattern.permute.xlu0 0
  %4674 = vperm.xlu0 %4673, %v75
  %v4675 = vpop.permute.xlu0 %4674
  %4678 = vset.pattern.permute.xlu0 0
  %4679 = vperm.xlu0 %4678, %v76
  %v4680 = vpop.permute.xlu0 %4679
  %4683 = vset.pattern.permute.xlu0 0
  %4684 = vperm.xlu0 %4683, %v77
  %v4685 = vpop.permute.xlu0 %4684
  %4688 = vset.pattern.permute.xlu0 0
  %4689 = vperm.xlu0 %4688, %v78
  %v4690 = vpop.permute.xlu0 %4689
  %4693 = vset.pattern.permute.xlu0 0
  %4694 = vperm.xlu0 %4693, %v79
  %v4695 = vpop.permute.xlu0 %4694
  %4698 = vset.pattern.permute.xlu0 0
  %4699 = vperm.xlu0 %4698, %v80
  %v4700 = vpop.permute.xlu0 %4699
  %4703 = vset.pattern.permute.xlu0 0
  %4704 = vperm.xlu0 %4703, %v81
  %v4705 = vpop.permute.xlu0 %4704
  %4708 = vset.pattern.permute.xlu0 0
  %4709 = vperm.xlu0 %4708, %v82
  %v4710 = vpop.permute.xlu0 %4709
  %4713 = vset.pattern.permute.xlu0 0
  %4714 = vperm.xlu0 %4713, %v83
  %v4715 = vpop.permute.xlu0 %4714
  %4718 = vset.pattern.permute.xlu0 0
  %4719 = vperm.xlu0 %4718, %v84
  %v4720 = vpop.permute.xlu0 %4719
  %4723 = vset.pattern.permute.xlu0 0
  %4724 = vperm.xlu0 %4723, %v85
  %v4725 = vpop.permute.xlu0 %4724
  %4728 = vset.pattern.permute.xlu0 0
  %4729 = vperm.xlu0 %4728, %v86
  %v4730 = vpop.permute.xlu0 %4729
  %4733 = vset.pattern.permute.xlu0 0
  %4734 = vperm.xlu0 %4733, %v87
  %v4735 = vpop.permute.xlu0 %4734
  %4738 = vset.pattern.permute.xlu0 0
  %4739 = vperm.xlu0 %4738, %v88
  %v4740 = vpop.permute.xlu0 %4739
  %4743 = vset.pattern.permute.xlu0 0
  %4744 = vperm.xlu0 %4743, %v89
  %v4745 = vpop.permute.xlu0 %4744
  %4748 = vset.pattern.permute.xlu0 0
  %4749 = vperm.xlu0 %4748, %v90
  %v4750 = vpop.permute.xlu0 %4749
  %4753 = vset.pattern.permute.xlu0 0
  %4754 = vperm.xlu0 %4753, %v91
  %v4755 = vpop.permute.xlu0 %4754
  %4758 = vset.pattern.permute.xlu0 0
  %4759 = vperm.xlu0 %4758, %v92
  %v4760 = vpop.permute.xlu0 %4759
  %4763 = vset.pattern.permute.xlu0 0
  %4764 = vperm.xlu0 %4763, %v93
  %v4765 = vpop.permute.xlu0 %4764
  %4768 = vset.pattern.permute.xlu0 0
  %4769 = vperm.xlu0 %4768, %v94
  %v4770 = vpop.permute.xlu0 %4769
  %4773 = vset.pattern.permute.xlu0 0
  %4774 = vperm.xlu0 %4773, %v95
  %v4775 = vpop.permute.xlu0 %4774
  %4778 = vset.pattern.permute.xlu0 0
  %4779 = vperm.xlu0 %4778, %v96
  %v4780 = vpop.permute.xlu0 %4779
  %4783 = vset.pattern.permute.xlu0 0
  %4784 = vperm.xlu0 %4783, %v97
  %v4785 = vpop.permute.xlu0 %4784
  %4788 = vset.pattern.permute.xlu0 0
  %4789 = vperm.xlu0 %4788, %v98
  %v4790 = vpop.permute.xlu0 %4789
  %4793 = vset.pattern.permute.xlu0 0
  %4794 = vperm.xlu0 %4793, %v99
  %v4795 = vpop.permute.xlu0 %4794
  %4798 = vset.pattern.permute.xlu0 0
  %4799 = vperm.xlu0 %4798, %v100
  %v4800 = vpop.permute.xlu0 %4799
  %4803 = vset.pattern.permute.xlu0 0
  %4804 = vperm.xlu0 %4803, %v101
  %v4805 = vpop.permute.xlu0 %4804
  %4808 = vset.pattern.permute.xlu0 0
  %4809 = vperm.xlu0 %4808, %v102
  %v4810 = vpop.permute.xlu0 %4809
  %4813 = vset.pattern.permute.xlu0 0
  %4814 = vperm.xlu0 %4813, %v103
  %v4815 = vpop.permute.xlu0 %4814
  %4818 = vset.pattern.permute.xlu0 0
  %4819 = vperm.xlu0 %4818, %v104
  %v4820 = vpop.permute.xlu0 %4819
  %4823 = vset.pattern.permute.xlu0 0
  %4824 = vperm.xlu0 %4823, %v105
  %v4825 = vpop.permute.xlu0 %4824
  %4828 = vset.pattern.permute.xlu0 0
  %4829 = vperm.xlu0 %4828, %v106
  %v4830 = vpop.permute.xlu0 %4829
  %4833 = vset.pattern.permute.xlu0 0
  %4834 = vperm.xlu0 %4833, %v107
  %v4835 = vpop.permute.xlu0 %4834
  %4838 = vset.pattern.permute.xlu0 0
  %4839 = vperm.xlu0 %4838, %v108
  %v4840 = vpop.permute.xlu0 %4839
  %4843 = vset.pattern.permute.xlu0 0
  %4844 = vperm.xlu0 %4843, %v109
  %v4845 = vpop.permute.xlu0 %4844
  %4848 = vset.pattern.permute.xlu0 0
  %4849 = vperm.xlu0 %4848, %v110
  %v4850 = vpop.permute.xlu0 %4849
  %4853 = vset.pattern.permute.xlu0 0
  %4854 = vperm.xlu0 %4853, %v111
  %v4855 = vpop.permute.xlu0 %4854
  %4858 = vset.pattern.permute.xlu0 0
  %4859 = vperm.xlu0 %4858, %v112
  %v4860 = vpop.permute.xlu0 %4859
  %4863 = vset.pattern.permute.xlu0 0
  %4864 = vperm.xlu0 %4863, %v113
  %v4865 = vpop.permute.xlu0 %4864
  %4868 = vset.pattern.permute.xlu0 0
  %4869 = vperm.xlu0 %4868, %v114
  %v4870 = vpop.permute.xlu0 %4869
  %4873 = vset.pattern.permute.xlu0 0
  %4874 = vperm.xlu0 %4873, %v115
  %v4875 = vpop.permute.xlu0 %4874
  %v4877 = vmul.f32 %v4230, %v4475
  %v4878 = vmul.f32 %v4233, %v4480
  %v4879 = vmul.f32 %v4236, %v4485
  %v4880 = vmul.f32 %v4239, %v4490
  %v4881 = vmul.f32 %v4242, %v4495
  %v4882 = vmul.f32 %v4245, %v4500
  %v4883 = vmul.f32 %v4248, %v4505
  %v4884 = vmul.f32 %v4251, %v4510
  %v4885 = vmul.f32 %v4254, %v4515
  %v4886 = vmul.f32 %v4257, %v4520
  %v4887 = vmul.f32 %v4260, %v4525
  %v4888 = vmul.f32 %v4263, %v4530
  %v4889 = vmul.f32 %v4266, %v4535
  %v4890 = vmul.f32 %v4269, %v4540
  %v4891 = vmul.f32 %v4272, %v4545
  %v4892 = vmul.f32 %v4275, %v4550
  %v4893 = vmul.f32 %v4278, %v4555
  %v4894 = vmul.f32 %v4281, %v4560
  %v4895 = vmul.f32 %v4284, %v4565
  %v4896 = vmul.f32 %v4287, %v4570
  %v4897 = vmul.f32 %v4290, %v4575
  %v4898 = vmul.f32 %v4293, %v4580
  %v4899 = vmul.f32 %v4296, %v4585
  %v4900 = vmul.f32 %v4299, %v4590
  %v4901 = vmul.f32 %v4302, %v4595
  %v4902 = vmul.f32 %v4305, %v4600
  %v4903 = vmul.f32 %v4308, %v4605
  %v4904 = vmul.f32 %v4311, %v4610
  %v4905 = vmul.f32 %v4314, %v4615
  %v4906 = vmul.f32 %v4317, %v4620
  %v4907 = vmul.f32 %v4320, %v4625
  %v4908 = vmul.f32 %v4323, %v4630
  %v4909 = vmul.f32 %v4326, %v4635
  %v4910 = vmul.f32 %v4329, %v4640
  %v4911 = vmul.f32 %v4332, %v4645
  %v4912 = vmul.f32 %v4335, %v4650
  %v4913 = vmul.f32 %v4338, %v4655
  %v4914 = vmul.f32 %v4341, %v4660
  %v4915 = vmul.f32 %v4344, %v4665
  %v4916 = vmul.f32 %v4347, %v4670
  %v4917 = vmul.f32 %v4350, %v4675
  %v4918 = vmul.f32 %v4353, %v4680
  %v4919 = vmul.f32 %v4356, %v4685
  %v4920 = vmul.f32 %v4359, %v4690
  %v4921 = vmul.f32 %v4362, %v4695
  %v4922 = vmul.f32 %v4365, %v4700
  %v4923 = vmul.f32 %v4368, %v4705
  %v4924 = vmul.f32 %v4371, %v4710
  %v4925 = vmul.f32 %v4374, %v4715
  %v4926 = vmul.f32 %v4377, %v4720
  %v4927 = vmul.f32 %v4380, %v4725
  %v4928 = vmul.f32 %v4383, %v4730
  %v4929 = vmul.f32 %v4386, %v4735
  %v4930 = vmul.f32 %v4389, %v4740
  %v4931 = vmul.f32 %v4392, %v4745
  %v4932 = vmul.f32 %v4395, %v4750
  %v4933 = vmul.f32 %v4398, %v4755
  %v4934 = vmul.f32 %v4401, %v4760
  %v4935 = vmul.f32 %v4404, %v4765
  %v4936 = vmul.f32 %v4407, %v4770
  %v4937 = vmul.f32 %v4410, %v4775
  %v4938 = vmul.f32 %v4413, %v4780
  %v4939 = vmul.f32 %v4416, %v4785
  %v4940 = vmul.f32 %v4419, %v4790
  %v4941 = vmul.f32 %v4422, %v4795
  %v4942 = vmul.f32 %v4425, %v4800
  %v4943 = vmul.f32 %v4428, %v4805
  %v4944 = vmul.f32 %v4431, %v4810
  %v4945 = vmul.f32 %v4434, %v4815
  %v4946 = vmul.f32 %v4437, %v4820
  %v4947 = vmul.f32 %v4440, %v4825
  %v4948 = vmul.f32 %v4443, %v4830
  %v4949 = vmul.f32 %v4446, %v4835
  %v4950 = vmul.f32 %v4449, %v4840
  %v4951 = vmul.f32 %v4452, %v4845
  %v4952 = vmul.f32 %v4455, %v4850
  %v4953 = vmul.f32 %v4458, %v4855
  %v4954 = vmul.f32 %v4461, %v4860
  %v4955 = vmul.f32 %v4464, %v4865
  %v4956 = vmul.f32 %v4467, %v4870
  %v4957 = vmul.f32 %v4470, %v4875
  %v4958 = vsel %vm3387, %v4877, 0.0
  %v4959 = vsel %vm3387, %v4878, 0.0
  %v4960 = vadd.f32 %v4958, %v4959
  %v4961 = vsel %vm3387, %v4879, 0.0
  %v4962 = vadd.f32 %v4960, %v4961
  %v4963 = vsel %vm3387, %v4880, 0.0
  %v4964 = vadd.f32 %v4962, %v4963
  %v4965 = vsel %vm3387, %v4881, 0.0
  %v4966 = vadd.f32 %v4964, %v4965
  %v4967 = vsel %vm3387, %v4882, 0.0
  %v4968 = vadd.f32 %v4966, %v4967
  %v4969 = vsel %vm3387, %v4883, 0.0
  %v4970 = vadd.f32 %v4968, %v4969
  %v4971 = vsel %vm3387, %v4884, 0.0
  %v4972 = vadd.f32 %v4970, %v4971
  %v4973 = vsel %vm3387, %v4885, 0.0
  %v4974 = vadd.f32 %v4972, %v4973
  %v4975 = vsel %vm3387, %v4886, 0.0
  %v4976 = vadd.f32 %v4974, %v4975
  %v4977 = vsel %vm3387, %v4887, 0.0
  %v4978 = vadd.f32 %v4976, %v4977
  %v4979 = vsel %vm3387, %v4888, 0.0
  %v4980 = vadd.f32 %v4978, %v4979
  %v4981 = vsel %vm3387, %v4889, 0.0
  %v4982 = vadd.f32 %v4980, %v4981
  %v4983 = vsel %vm3387, %v4890, 0.0
  %v4984 = vadd.f32 %v4982, %v4983
  %v4985 = vsel %vm3387, %v4891, 0.0
  %v4986 = vadd.f32 %v4984, %v4985
  %v4987 = vsel %vm3387, %v4892, 0.0
  %v4988 = vadd.f32 %v4986, %v4987
  %v4989 = vsel %vm3387, %v4893, 0.0
  %v4990 = vadd.f32 %v4988, %v4989
  %v4991 = vsel %vm3387, %v4894, 0.0
  %v4992 = vadd.f32 %v4990, %v4991
  %v4993 = vsel %vm3387, %v4895, 0.0
  %v4994 = vadd.f32 %v4992, %v4993
  %v4995 = vsel %vm3387, %v4896, 0.0
  %v4996 = vadd.f32 %v4994, %v4995
  %v4997 = vsel %vm3387, %v4897, 0.0
  %v4998 = vadd.f32 %v4996, %v4997
  %v4999 = vsel %vm3387, %v4898, 0.0
  %v5000 = vadd.f32 %v4998, %v4999
  %v5001 = vsel %vm3387, %v4899, 0.0
  %v5002 = vadd.f32 %v5000, %v5001
  %v5003 = vsel %vm3387, %v4900, 0.0
  %v5004 = vadd.f32 %v5002, %v5003
  %v5005 = vsel %vm3387, %v4901, 0.0
  %v5006 = vadd.f32 %v5004, %v5005
  %v5007 = vsel %vm3387, %v4902, 0.0
  %v5008 = vadd.f32 %v5006, %v5007
  %v5009 = vsel %vm3387, %v4903, 0.0
  %v5010 = vadd.f32 %v5008, %v5009
  %v5011 = vsel %vm3387, %v4904, 0.0
  %v5012 = vadd.f32 %v5010, %v5011
  %v5013 = vsel %vm3387, %v4905, 0.0
  %v5014 = vadd.f32 %v5012, %v5013
  %v5015 = vsel %vm3387, %v4906, 0.0
  %v5016 = vadd.f32 %v5014, %v5015
  %v5017 = vsel %vm3387, %v4907, 0.0
  %v5018 = vadd.f32 %v5016, %v5017
  %v5019 = vsel %vm3387, %v4908, 0.0
  %v5020 = vadd.f32 %v5018, %v5019
  %v5021 = vsel %vm3387, %v4909, 0.0
  %v5022 = vadd.f32 %v5020, %v5021
  %v5023 = vsel %vm3387, %v4910, 0.0
  %v5024 = vadd.f32 %v5022, %v5023
  %v5025 = vsel %vm3387, %v4911, 0.0
  %v5026 = vadd.f32 %v5024, %v5025
  %v5027 = vsel %vm3387, %v4912, 0.0
  %v5028 = vadd.f32 %v5026, %v5027
  %v5029 = vsel %vm3387, %v4913, 0.0
  %v5030 = vadd.f32 %v5028, %v5029
  %v5031 = vsel %vm3387, %v4914, 0.0
  %v5032 = vadd.f32 %v5030, %v5031
  %v5033 = vsel %vm3387, %v4915, 0.0
  %v5034 = vadd.f32 %v5032, %v5033
  %v5035 = vsel %vm3387, %v4916, 0.0
  %v5036 = vadd.f32 %v5034, %v5035
  %v5037 = vsel %vm3387, %v4917, 0.0
  %v5038 = vadd.f32 %v5036, %v5037
  %v5039 = vsel %vm3387, %v4918, 0.0
  %v5040 = vadd.f32 %v5038, %v5039
  %v5041 = vsel %vm3387, %v4919, 0.0
  %v5042 = vadd.f32 %v5040, %v5041
  %v5043 = vsel %vm3387, %v4920, 0.0
  %v5044 = vadd.f32 %v5042, %v5043
  %v5045 = vsel %vm3387, %v4921, 0.0
  %v5046 = vadd.f32 %v5044, %v5045
  %v5047 = vsel %vm3387, %v4922, 0.0
  %v5048 = vadd.f32 %v5046, %v5047
  %v5049 = vsel %vm3387, %v4923, 0.0
  %v5050 = vadd.f32 %v5048, %v5049
  %v5051 = vsel %vm3387, %v4924, 0.0
  %v5052 = vadd.f32 %v5050, %v5051
  %v5053 = vsel %vm3387, %v4925, 0.0
  %v5054 = vadd.f32 %v5052, %v5053
  %v5055 = vsel %vm3387, %v4926, 0.0
  %v5056 = vadd.f32 %v5054, %v5055
  %v5057 = vsel %vm3387, %v4927, 0.0
  %v5058 = vadd.f32 %v5056, %v5057
  %v5059 = vsel %vm3387, %v4928, 0.0
  %v5060 = vadd.f32 %v5058, %v5059
  %v5061 = vsel %vm3387, %v4929, 0.0
  %v5062 = vadd.f32 %v5060, %v5061
  %v5063 = vsel %vm3387, %v4930, 0.0
  %v5064 = vadd.f32 %v5062, %v5063
  %v5065 = vsel %vm3387, %v4931, 0.0
  %v5066 = vadd.f32 %v5064, %v5065
  %v5067 = vsel %vm3387, %v4932, 0.0
  %v5068 = vadd.f32 %v5066, %v5067
  %v5069 = vsel %vm3387, %v4933, 0.0
  %v5070 = vadd.f32 %v5068, %v5069
  %v5071 = vsel %vm3387, %v4934, 0.0
  %v5072 = vadd.f32 %v5070, %v5071
  %v5073 = vsel %vm3387, %v4935, 0.0
  %v5074 = vadd.f32 %v5072, %v5073
  %v5075 = vsel %vm3387, %v4936, 0.0
  %v5076 = vadd.f32 %v5074, %v5075
  %v5077 = vsel %vm3387, %v4937, 0.0
  %v5078 = vadd.f32 %v5076, %v5077
  %v5079 = vsel %vm3387, %v4938, 0.0
  %v5080 = vadd.f32 %v5078, %v5079
  %v5081 = vsel %vm3387, %v4939, 0.0
  %v5082 = vadd.f32 %v5080, %v5081
  %v5083 = vsel %vm3387, %v4940, 0.0
  %v5084 = vadd.f32 %v5082, %v5083
  %v5085 = vsel %vm3387, %v4941, 0.0
  %v5086 = vadd.f32 %v5084, %v5085
  %v5087 = vsel %vm3387, %v4942, 0.0
  %v5088 = vadd.f32 %v5086, %v5087
  %v5089 = vsel %vm3387, %v4943, 0.0
  %v5090 = vadd.f32 %v5088, %v5089
  %v5091 = vsel %vm3387, %v4944, 0.0
  %v5092 = vadd.f32 %v5090, %v5091
  %v5093 = vsel %vm3387, %v4945, 0.0
  %v5094 = vadd.f32 %v5092, %v5093
  %v5095 = vsel %vm3387, %v4946, 0.0
  %v5096 = vadd.f32 %v5094, %v5095
  %v5097 = vsel %vm3387, %v4947, 0.0
  %v5098 = vadd.f32 %v5096, %v5097
  %v5099 = vsel %vm3387, %v4948, 0.0
  %v5100 = vadd.f32 %v5098, %v5099
  %v5101 = vsel %vm3387, %v4949, 0.0
  %v5102 = vadd.f32 %v5100, %v5101
  %v5103 = vsel %vm3387, %v4950, 0.0
  %v5104 = vadd.f32 %v5102, %v5103
  %v5105 = vsel %vm3387, %v4951, 0.0
  %v5106 = vadd.f32 %v5104, %v5105
  %v5107 = vsel %vm3387, %v4952, 0.0
  %v5108 = vadd.f32 %v5106, %v5107
  %v5109 = vsel %vm3387, %v4953, 0.0
  %v5110 = vadd.f32 %v5108, %v5109
  %v5111 = vsel %vm3387, %v4954, 0.0
  %v5112 = vadd.f32 %v5110, %v5111
  %v5113 = vsel %vm3387, %v4955, 0.0
  %v5114 = vadd.f32 %v5112, %v5113
  %v5115 = vsel %vm3387, %v4956, 0.0
  %v5116 = vadd.f32 %v5114, %v5115
  %v5117 = vsel %vm3387, %v4957, 0.0
  %v5118 = vadd.f32 %v5116, %v5117
  %v5119 = vrot.slane %v5118, 4
  %v5120 = vadd.f32 %v5118, %v5119
  %v5121 = vrot.slane %v5120, 2
  %v5122 = vadd.f32 %v5120, %v5121
  %v5123 = vrot.slane %v5122, 1
  %v5124 = vadd.f32 %v5122, %v5123
  %v5125 = vmul.f32 %v5124, 0.001953125
  %v5126 = vsub.f32 %v4230, %v5125
  %v5127 = vsub.f32 %v4233, %v5125
  %v5128 = vsub.f32 %v4236, %v5125
  %v5129 = vsub.f32 %v4239, %v5125
  %v5130 = vsub.f32 %v4242, %v5125
  %v5131 = vsub.f32 %v4245, %v5125
  %v5132 = vsub.f32 %v4248, %v5125
  %v5133 = vsub.f32 %v4251, %v5125
  %v5134 = vsub.f32 %v4254, %v5125
  %v5135 = vsub.f32 %v4257, %v5125
  %v5136 = vsub.f32 %v4260, %v5125
  %v5137 = vsub.f32 %v4263, %v5125
  %v5138 = vsub.f32 %v4266, %v5125
  %v5139 = vsub.f32 %v4269, %v5125
  %v5140 = vsub.f32 %v4272, %v5125
  %v5141 = vsub.f32 %v4275, %v5125
  %v5142 = vsub.f32 %v4278, %v5125
  %v5143 = vsub.f32 %v4281, %v5125
  %v5144 = vsub.f32 %v4284, %v5125
  %v5145 = vsub.f32 %v4287, %v5125
  %v5146 = vsub.f32 %v4290, %v5125
  %v5147 = vsub.f32 %v4293, %v5125
  %v5148 = vsub.f32 %v4296, %v5125
  %v5149 = vsub.f32 %v4299, %v5125
  %v5150 = vsub.f32 %v4302, %v5125
  %v5151 = vsub.f32 %v4305, %v5125
  %v5152 = vsub.f32 %v4308, %v5125
  %v5153 = vsub.f32 %v4311, %v5125
  %v5154 = vsub.f32 %v4314, %v5125
  %v5155 = vsub.f32 %v4317, %v5125
  %v5156 = vsub.f32 %v4320, %v5125
  %v5157 = vsub.f32 %v4323, %v5125
  %v5158 = vsub.f32 %v4326, %v5125
  %v5159 = vsub.f32 %v4329, %v5125
  %v5160 = vsub.f32 %v4332, %v5125
  %v5161 = vsub.f32 %v4335, %v5125
  %v5162 = vsub.f32 %v4338, %v5125
  %v5163 = vsub.f32 %v4341, %v5125
  %v5164 = vsub.f32 %v4344, %v5125
  %v5165 = vsub.f32 %v4347, %v5125
  %v5166 = vsub.f32 %v4350, %v5125
  %v5167 = vsub.f32 %v4353, %v5125
  %v5168 = vsub.f32 %v4356, %v5125
  %v5169 = vsub.f32 %v4359, %v5125
  %v5170 = vsub.f32 %v4362, %v5125
  %v5171 = vsub.f32 %v4365, %v5125
  %v5172 = vsub.f32 %v4368, %v5125
  %v5173 = vsub.f32 %v4371, %v5125
  %v5174 = vsub.f32 %v4374, %v5125
  %v5175 = vsub.f32 %v4377, %v5125
  %v5176 = vsub.f32 %v4380, %v5125
  %v5177 = vsub.f32 %v4383, %v5125
  %v5178 = vsub.f32 %v4386, %v5125
  %v5179 = vsub.f32 %v4389, %v5125
  %v5180 = vsub.f32 %v4392, %v5125
  %v5181 = vsub.f32 %v4395, %v5125
  %v5182 = vsub.f32 %v4398, %v5125
  %v5183 = vsub.f32 %v4401, %v5125
  %v5184 = vsub.f32 %v4404, %v5125
  %v5185 = vsub.f32 %v4407, %v5125
  %v5186 = vsub.f32 %v4410, %v5125
  %v5187 = vsub.f32 %v4413, %v5125
  %v5188 = vsub.f32 %v4416, %v5125
  %v5189 = vsub.f32 %v4419, %v5125
  %v5190 = vsub.f32 %v4422, %v5125
  %v5191 = vsub.f32 %v4425, %v5125
  %v5192 = vsub.f32 %v4428, %v5125
  %v5193 = vsub.f32 %v4431, %v5125
  %v5194 = vsub.f32 %v4434, %v5125
  %v5195 = vsub.f32 %v4437, %v5125
  %v5196 = vsub.f32 %v4440, %v5125
  %v5197 = vsub.f32 %v4443, %v5125
  %v5198 = vsub.f32 %v4446, %v5125
  %v5199 = vsub.f32 %v4449, %v5125
  %v5200 = vsub.f32 %v4452, %v5125
  %v5201 = vsub.f32 %v4455, %v5125
  %v5202 = vsub.f32 %v4458, %v5125
  %v5203 = vsub.f32 %v4461, %v5125
  %v5204 = vsub.f32 %v4464, %v5125
  %v5205 = vsub.f32 %v4467, %v5125
  %v5206 = vsub.f32 %v4470, %v5125
  %v5207 = vmul.f32 %v5126, %v4475
  %v5208 = vmul.f32 %v5127, %v4480
  %v5209 = vmul.f32 %v5128, %v4485
  %v5210 = vmul.f32 %v5129, %v4490
  %v5211 = vmul.f32 %v5130, %v4495
  %v5212 = vmul.f32 %v5131, %v4500
  %v5213 = vmul.f32 %v5132, %v4505
  %v5214 = vmul.f32 %v5133, %v4510
  %v5215 = vmul.f32 %v5134, %v4515
  %v5216 = vmul.f32 %v5135, %v4520
  %v5217 = vmul.f32 %v5136, %v4525
  %v5218 = vmul.f32 %v5137, %v4530
  %v5219 = vmul.f32 %v5138, %v4535
  %v5220 = vmul.f32 %v5139, %v4540
  %v5221 = vmul.f32 %v5140, %v4545
  %v5222 = vmul.f32 %v5141, %v4550
  %v5223 = vmul.f32 %v5142, %v4555
  %v5224 = vmul.f32 %v5143, %v4560
  %v5225 = vmul.f32 %v5144, %v4565
  %v5226 = vmul.f32 %v5145, %v4570
  %v5227 = vmul.f32 %v5146, %v4575
  %v5228 = vmul.f32 %v5147, %v4580
  %v5229 = vmul.f32 %v5148, %v4585
  %v5230 = vmul.f32 %v5149, %v4590
  %v5231 = vmul.f32 %v5150, %v4595
  %v5232 = vmul.f32 %v5151, %v4600
  %v5233 = vmul.f32 %v5152, %v4605
  %v5234 = vmul.f32 %v5153, %v4610
  %v5235 = vmul.f32 %v5154, %v4615
  %v5236 = vmul.f32 %v5155, %v4620
  %v5237 = vmul.f32 %v5156, %v4625
  %v5238 = vmul.f32 %v5157, %v4630
  %v5239 = vmul.f32 %v5158, %v4635
  %v5240 = vmul.f32 %v5159, %v4640
  %v5241 = vmul.f32 %v5160, %v4645
  %v5242 = vmul.f32 %v5161, %v4650
  %v5243 = vmul.f32 %v5162, %v4655
  %v5244 = vmul.f32 %v5163, %v4660
  %v5245 = vmul.f32 %v5164, %v4665
  %v5246 = vmul.f32 %v5165, %v4670
  %v5247 = vmul.f32 %v5166, %v4675
  %v5248 = vmul.f32 %v5167, %v4680
  %v5249 = vmul.f32 %v5168, %v4685
  %v5250 = vmul.f32 %v5169, %v4690
  %v5251 = vmul.f32 %v5170, %v4695
  %v5252 = vmul.f32 %v5171, %v4700
  %v5253 = vmul.f32 %v5172, %v4705
  %v5254 = vmul.f32 %v5173, %v4710
  %v5255 = vmul.f32 %v5174, %v4715
  %v5256 = vmul.f32 %v5175, %v4720
  %v5257 = vmul.f32 %v5176, %v4725
  %v5258 = vmul.f32 %v5177, %v4730
  %v5259 = vmul.f32 %v5178, %v4735
  %v5260 = vmul.f32 %v5179, %v4740
  %v5261 = vmul.f32 %v5180, %v4745
  %v5262 = vmul.f32 %v5181, %v4750
  %v5263 = vmul.f32 %v5182, %v4755
  %v5264 = vmul.f32 %v5183, %v4760
  %v5265 = vmul.f32 %v5184, %v4765
  %v5266 = vmul.f32 %v5185, %v4770
  %v5267 = vmul.f32 %v5186, %v4775
  %v5268 = vmul.f32 %v5187, %v4780
  %v5269 = vmul.f32 %v5188, %v4785
  %v5270 = vmul.f32 %v5189, %v4790
  %v5271 = vmul.f32 %v5190, %v4795
  %v5272 = vmul.f32 %v5191, %v4800
  %v5273 = vmul.f32 %v5192, %v4805
  %v5274 = vmul.f32 %v5193, %v4810
  %v5275 = vmul.f32 %v5194, %v4815
  %v5276 = vmul.f32 %v5195, %v4820
  %v5277 = vmul.f32 %v5196, %v4825
  %v5278 = vmul.f32 %v5197, %v4830
  %v5279 = vmul.f32 %v5198, %v4835
  %v5280 = vmul.f32 %v5199, %v4840
  %v5281 = vmul.f32 %v5200, %v4845
  %v5282 = vmul.f32 %v5201, %v4850
  %v5283 = vmul.f32 %v5202, %v4855
  %v5284 = vmul.f32 %v5203, %v4860
  %v5285 = vmul.f32 %v5204, %v4865
  %v5286 = vmul.f32 %v5205, %v4870
  %v5287 = vmul.f32 %v5206, %v4875
  %v5288 = vmul.f32 %v5207, %v5207
  %v5289 = vmul.f32 %v5208, %v5208
  %v5290 = vmul.f32 %v5209, %v5209
  %v5291 = vmul.f32 %v5210, %v5210
  %v5292 = vmul.f32 %v5211, %v5211
  %v5293 = vmul.f32 %v5212, %v5212
  %v5294 = vmul.f32 %v5213, %v5213
  %v5295 = vmul.f32 %v5214, %v5214
  %v5296 = vmul.f32 %v5215, %v5215
  %v5297 = vmul.f32 %v5216, %v5216
  %v5298 = vmul.f32 %v5217, %v5217
  %v5299 = vmul.f32 %v5218, %v5218
  %v5300 = vmul.f32 %v5219, %v5219
  %v5301 = vmul.f32 %v5220, %v5220
  %v5302 = vmul.f32 %v5221, %v5221
  %v5303 = vmul.f32 %v5222, %v5222
  %v5304 = vmul.f32 %v5223, %v5223
  %v5305 = vmul.f32 %v5224, %v5224
  %v5306 = vmul.f32 %v5225, %v5225
  %v5307 = vmul.f32 %v5226, %v5226
  %v5308 = vmul.f32 %v5227, %v5227
  %v5309 = vmul.f32 %v5228, %v5228
  %v5310 = vmul.f32 %v5229, %v5229
  %v5311 = vmul.f32 %v5230, %v5230
  %v5312 = vmul.f32 %v5231, %v5231
  %v5313 = vmul.f32 %v5232, %v5232
  %v5314 = vmul.f32 %v5233, %v5233
  %v5315 = vmul.f32 %v5234, %v5234
  %v5316 = vmul.f32 %v5235, %v5235
  %v5317 = vmul.f32 %v5236, %v5236
  %v5318 = vmul.f32 %v5237, %v5237
  %v5319 = vmul.f32 %v5238, %v5238
  %v5320 = vmul.f32 %v5239, %v5239
  %v5321 = vmul.f32 %v5240, %v5240
  %v5322 = vmul.f32 %v5241, %v5241
  %v5323 = vmul.f32 %v5242, %v5242
  %v5324 = vmul.f32 %v5243, %v5243
  %v5325 = vmul.f32 %v5244, %v5244
  %v5326 = vmul.f32 %v5245, %v5245
  %v5327 = vmul.f32 %v5246, %v5246
  %v5328 = vmul.f32 %v5247, %v5247
  %v5329 = vmul.f32 %v5248, %v5248
  %v5330 = vmul.f32 %v5249, %v5249
  %v5331 = vmul.f32 %v5250, %v5250
  %v5332 = vmul.f32 %v5251, %v5251
  %v5333 = vmul.f32 %v5252, %v5252
  %v5334 = vmul.f32 %v5253, %v5253
  %v5335 = vmul.f32 %v5254, %v5254
  %v5336 = vmul.f32 %v5255, %v5255
  %v5337 = vmul.f32 %v5256, %v5256
  %v5338 = vmul.f32 %v5257, %v5257
  %v5339 = vmul.f32 %v5258, %v5258
  %v5340 = vmul.f32 %v5259, %v5259
  %v5341 = vmul.f32 %v5260, %v5260
  %v5342 = vmul.f32 %v5261, %v5261
  %v5343 = vmul.f32 %v5262, %v5262
  %v5344 = vmul.f32 %v5263, %v5263
  %v5345 = vmul.f32 %v5264, %v5264
  %v5346 = vmul.f32 %v5265, %v5265
  %v5347 = vmul.f32 %v5266, %v5266
  %v5348 = vmul.f32 %v5267, %v5267
  %v5349 = vmul.f32 %v5268, %v5268
  %v5350 = vmul.f32 %v5269, %v5269
  %v5351 = vmul.f32 %v5270, %v5270
  %v5352 = vmul.f32 %v5271, %v5271
  %v5353 = vmul.f32 %v5272, %v5272
  %v5354 = vmul.f32 %v5273, %v5273
  %v5355 = vmul.f32 %v5274, %v5274
  %v5356 = vmul.f32 %v5275, %v5275
  %v5357 = vmul.f32 %v5276, %v5276
  %v5358 = vmul.f32 %v5277, %v5277
  %v5359 = vmul.f32 %v5278, %v5278
  %v5360 = vmul.f32 %v5279, %v5279
  %v5361 = vmul.f32 %v5280, %v5280
  %v5362 = vmul.f32 %v5281, %v5281
  %v5363 = vmul.f32 %v5282, %v5282
  %v5364 = vmul.f32 %v5283, %v5283
  %v5365 = vmul.f32 %v5284, %v5284
  %v5366 = vmul.f32 %v5285, %v5285
  %v5367 = vmul.f32 %v5286, %v5286
  %v5368 = vmul.f32 %v5287, %v5287
  %v5369 = vsel %vm3387, %v5288, 0.0
  %v5370 = vsel %vm3387, %v5289, 0.0
  %v5371 = vadd.f32 %v5369, %v5370
  %v5372 = vsel %vm3387, %v5290, 0.0
  %v5373 = vadd.f32 %v5371, %v5372
  %v5374 = vsel %vm3387, %v5291, 0.0
  %v5375 = vadd.f32 %v5373, %v5374
  %v5376 = vsel %vm3387, %v5292, 0.0
  %v5377 = vadd.f32 %v5375, %v5376
  %v5378 = vsel %vm3387, %v5293, 0.0
  %v5379 = vadd.f32 %v5377, %v5378
  %v5380 = vsel %vm3387, %v5294, 0.0
  %v5381 = vadd.f32 %v5379, %v5380
  %v5382 = vsel %vm3387, %v5295, 0.0
  %v5383 = vadd.f32 %v5381, %v5382
  %v5384 = vsel %vm3387, %v5296, 0.0
  %v5385 = vadd.f32 %v5383, %v5384
  %v5386 = vsel %vm3387, %v5297, 0.0
  %v5387 = vadd.f32 %v5385, %v5386
  %v5388 = vsel %vm3387, %v5298, 0.0
  %v5389 = vadd.f32 %v5387, %v5388
  %v5390 = vsel %vm3387, %v5299, 0.0
  %v5391 = vadd.f32 %v5389, %v5390
  %v5392 = vsel %vm3387, %v5300, 0.0
  %v5393 = vadd.f32 %v5391, %v5392
  %v5394 = vsel %vm3387, %v5301, 0.0
  %v5395 = vadd.f32 %v5393, %v5394
  %v5396 = vsel %vm3387, %v5302, 0.0
  %v5397 = vadd.f32 %v5395, %v5396
  %v5398 = vsel %vm3387, %v5303, 0.0
  %v5399 = vadd.f32 %v5397, %v5398
  %v5400 = vsel %vm3387, %v5304, 0.0
  %v5401 = vadd.f32 %v5399, %v5400
  %v5402 = vsel %vm3387, %v5305, 0.0
  %v5403 = vadd.f32 %v5401, %v5402
  %v5404 = vsel %vm3387, %v5306, 0.0
  %v5405 = vadd.f32 %v5403, %v5404
  %v5406 = vsel %vm3387, %v5307, 0.0
  %v5407 = vadd.f32 %v5405, %v5406
  %v5408 = vsel %vm3387, %v5308, 0.0
  %v5409 = vadd.f32 %v5407, %v5408
  %v5410 = vsel %vm3387, %v5309, 0.0
  %v5411 = vadd.f32 %v5409, %v5410
  %v5412 = vsel %vm3387, %v5310, 0.0
  %v5413 = vadd.f32 %v5411, %v5412
  %v5414 = vsel %vm3387, %v5311, 0.0
  %v5415 = vadd.f32 %v5413, %v5414
  %v5416 = vsel %vm3387, %v5312, 0.0
  %v5417 = vadd.f32 %v5415, %v5416
  %v5418 = vsel %vm3387, %v5313, 0.0
  %v5419 = vadd.f32 %v5417, %v5418
  %v5420 = vsel %vm3387, %v5314, 0.0
  %v5421 = vadd.f32 %v5419, %v5420
  %v5422 = vsel %vm3387, %v5315, 0.0
  %v5423 = vadd.f32 %v5421, %v5422
  %v5424 = vsel %vm3387, %v5316, 0.0
  %v5425 = vadd.f32 %v5423, %v5424
  %v5426 = vsel %vm3387, %v5317, 0.0
  %v5427 = vadd.f32 %v5425, %v5426
  %v5428 = vsel %vm3387, %v5318, 0.0
  %v5429 = vadd.f32 %v5427, %v5428
  %v5430 = vsel %vm3387, %v5319, 0.0
  %v5431 = vadd.f32 %v5429, %v5430
  %v5432 = vsel %vm3387, %v5320, 0.0
  %v5433 = vadd.f32 %v5431, %v5432
  %v5434 = vsel %vm3387, %v5321, 0.0
  %v5435 = vadd.f32 %v5433, %v5434
  %v5436 = vsel %vm3387, %v5322, 0.0
  %v5437 = vadd.f32 %v5435, %v5436
  %v5438 = vsel %vm3387, %v5323, 0.0
  %v5439 = vadd.f32 %v5437, %v5438
  %v5440 = vsel %vm3387, %v5324, 0.0
  %v5441 = vadd.f32 %v5439, %v5440
  %v5442 = vsel %vm3387, %v5325, 0.0
  %v5443 = vadd.f32 %v5441, %v5442
  %v5444 = vsel %vm3387, %v5326, 0.0
  %v5445 = vadd.f32 %v5443, %v5444
  %v5446 = vsel %vm3387, %v5327, 0.0
  %v5447 = vadd.f32 %v5445, %v5446
  %v5448 = vsel %vm3387, %v5328, 0.0
  %v5449 = vadd.f32 %v5447, %v5448
  %v5450 = vsel %vm3387, %v5329, 0.0
  %v5451 = vadd.f32 %v5449, %v5450
  %v5452 = vsel %vm3387, %v5330, 0.0
  %v5453 = vadd.f32 %v5451, %v5452
  %v5454 = vsel %vm3387, %v5331, 0.0
  %v5455 = vadd.f32 %v5453, %v5454
  %v5456 = vsel %vm3387, %v5332, 0.0
  %v5457 = vadd.f32 %v5455, %v5456
  %v5458 = vsel %vm3387, %v5333, 0.0
  %v5459 = vadd.f32 %v5457, %v5458
  %v5460 = vsel %vm3387, %v5334, 0.0
  %v5461 = vadd.f32 %v5459, %v5460
  %v5462 = vsel %vm3387, %v5335, 0.0
  %v5463 = vadd.f32 %v5461, %v5462
  %v5464 = vsel %vm3387, %v5336, 0.0
  %v5465 = vadd.f32 %v5463, %v5464
  %v5466 = vsel %vm3387, %v5337, 0.0
  %v5467 = vadd.f32 %v5465, %v5466
  %v5468 = vsel %vm3387, %v5338, 0.0
  %v5469 = vadd.f32 %v5467, %v5468
  %v5470 = vsel %vm3387, %v5339, 0.0
  %v5471 = vadd.f32 %v5469, %v5470
  %v5472 = vsel %vm3387, %v5340, 0.0
  %v5473 = vadd.f32 %v5471, %v5472
  %v5474 = vsel %vm3387, %v5341, 0.0
  %v5475 = vadd.f32 %v5473, %v5474
  %v5476 = vsel %vm3387, %v5342, 0.0
  %v5477 = vadd.f32 %v5475, %v5476
  %v5478 = vsel %vm3387, %v5343, 0.0
  %v5479 = vadd.f32 %v5477, %v5478
  %v5480 = vsel %vm3387, %v5344, 0.0
  %v5481 = vadd.f32 %v5479, %v5480
  %v5482 = vsel %vm3387, %v5345, 0.0
  %v5483 = vadd.f32 %v5481, %v5482
  %v5484 = vsel %vm3387, %v5346, 0.0
  %v5485 = vadd.f32 %v5483, %v5484
  %v5486 = vsel %vm3387, %v5347, 0.0
  %v5487 = vadd.f32 %v5485, %v5486
  %v5488 = vsel %vm3387, %v5348, 0.0
  %v5489 = vadd.f32 %v5487, %v5488
  %v5490 = vsel %vm3387, %v5349, 0.0
  %v5491 = vadd.f32 %v5489, %v5490
  %v5492 = vsel %vm3387, %v5350, 0.0
  %v5493 = vadd.f32 %v5491, %v5492
  %v5494 = vsel %vm3387, %v5351, 0.0
  %v5495 = vadd.f32 %v5493, %v5494
  %v5496 = vsel %vm3387, %v5352, 0.0
  %v5497 = vadd.f32 %v5495, %v5496
  %v5498 = vsel %vm3387, %v5353, 0.0
  %v5499 = vadd.f32 %v5497, %v5498
  %v5500 = vsel %vm3387, %v5354, 0.0
  %v5501 = vadd.f32 %v5499, %v5500
  %v5502 = vsel %vm3387, %v5355, 0.0
  %v5503 = vadd.f32 %v5501, %v5502
  %v5504 = vsel %vm3387, %v5356, 0.0
  %v5505 = vadd.f32 %v5503, %v5504
  %v5506 = vsel %vm3387, %v5357, 0.0
  %v5507 = vadd.f32 %v5505, %v5506
  %v5508 = vsel %vm3387, %v5358, 0.0
  %v5509 = vadd.f32 %v5507, %v5508
  %v5510 = vsel %vm3387, %v5359, 0.0
  %v5511 = vadd.f32 %v5509, %v5510
  %v5512 = vsel %vm3387, %v5360, 0.0
  %v5513 = vadd.f32 %v5511, %v5512
  %v5514 = vsel %vm3387, %v5361, 0.0
  %v5515 = vadd.f32 %v5513, %v5514
  %v5516 = vsel %vm3387, %v5362, 0.0
  %v5517 = vadd.f32 %v5515, %v5516
  %v5518 = vsel %vm3387, %v5363, 0.0
  %v5519 = vadd.f32 %v5517, %v5518
  %v5520 = vsel %vm3387, %v5364, 0.0
  %v5521 = vadd.f32 %v5519, %v5520
  %v5522 = vsel %vm3387, %v5365, 0.0
  %v5523 = vadd.f32 %v5521, %v5522
  %v5524 = vsel %vm3387, %v5366, 0.0
  %v5525 = vadd.f32 %v5523, %v5524
  %v5526 = vsel %vm3387, %v5367, 0.0
  %v5527 = vadd.f32 %v5525, %v5526
  %v5528 = vsel %vm3387, %v5368, 0.0
  %v5529 = vadd.f32 %v5527, %v5528
  %v5530 = vrot.slane %v5529, 4
  %v5531 = vadd.f32 %v5529, %v5530
  %v5532 = vrot.slane %v5531, 2
  %v5533 = vadd.f32 %v5531, %v5532
  %v5534 = vrot.slane %v5533, 1
  %v5535 = vadd.f32 %v5533, %v5534
  %v5536 = vmul.f32 %v5535, 0.001953125
  %v5537 = vadd.f32 %v5536, 1e-05
  %v5538 = vrsqrt.pop %v5537
  %v5539 = vmul.f32 %v5538, %v5537
  %v5540 = vmul.f32 %v5539, %v5538
  %v5541 = vmul.f32 0.5, %v5540
  %v5542 = vsub.f32 1.5, %v5541
  %v5543 = vmul.f32 %v5538, %v5542
  %vm5544 = vweird.f32 %v5537
  %vm5545 = vweird.f32 %v5538
  %vm5546 = vmor %vm5544, %vm5545
  %v5547 = vsel %vm5546, %v5538, %v5543
  %v5548 = vmul.f32 %v203, %v5547
  %v5549 = vmul.f32 %v5125, %v5548
  %v5550 = vsub.f32 %v204, %v5549
  %v5552 = vperm.slane %v5548, 0
  %v5554 = vmul.f32 %v4230, %v5552
  %v5555 = vmul.f32 %v4233, %v5552
  %v5556 = vmul.f32 %v4236, %v5552
  %v5557 = vmul.f32 %v4239, %v5552
  %v5558 = vmul.f32 %v4242, %v5552
  %v5559 = vmul.f32 %v4245, %v5552
  %v5560 = vmul.f32 %v4248, %v5552
  %v5561 = vmul.f32 %v4251, %v5552
  %v5562 = vmul.f32 %v4254, %v5552
  %v5563 = vmul.f32 %v4257, %v5552
  %v5564 = vmul.f32 %v4260, %v5552
  %v5565 = vmul.f32 %v4263, %v5552
  %v5566 = vmul.f32 %v4266, %v5552
  %v5567 = vmul.f32 %v4269, %v5552
  %v5568 = vmul.f32 %v4272, %v5552
  %v5569 = vmul.f32 %v4275, %v5552
  %v5570 = vmul.f32 %v4278, %v5552
  %v5571 = vmul.f32 %v4281, %v5552
  %v5572 = vmul.f32 %v4284, %v5552
  %v5573 = vmul.f32 %v4287, %v5552
  %v5574 = vmul.f32 %v4290, %v5552
  %v5575 = vmul.f32 %v4293, %v5552
  %v5576 = vmul.f32 %v4296, %v5552
  %v5577 = vmul.f32 %v4299, %v5552
  %v5578 = vmul.f32 %v4302, %v5552
  %v5579 = vmul.f32 %v4305, %v5552
  %v5580 = vmul.f32 %v4308, %v5552
  %v5581 = vmul.f32 %v4311, %v5552
  %v5582 = vmul.f32 %v4314, %v5552
  %v5583 = vmul.f32 %v4317, %v5552
  %v5584 = vmul.f32 %v4320, %v5552
  %v5585 = vmul.f32 %v4323, %v5552
  %v5586 = vmul.f32 %v4326, %v5552
  %v5587 = vmul.f32 %v4329, %v5552
  %v5588 = vmul.f32 %v4332, %v5552
  %v5589 = vmul.f32 %v4335, %v5552
  %v5590 = vmul.f32 %v4338, %v5552
  %v5591 = vmul.f32 %v4341, %v5552
  %v5592 = vmul.f32 %v4344, %v5552
  %v5593 = vmul.f32 %v4347, %v5552
  %v5594 = vmul.f32 %v4350, %v5552
  %v5595 = vmul.f32 %v4353, %v5552
  %v5596 = vmul.f32 %v4356, %v5552
  %v5597 = vmul.f32 %v4359, %v5552
  %v5598 = vmul.f32 %v4362, %v5552
  %v5599 = vmul.f32 %v4365, %v5552
  %v5600 = vmul.f32 %v4368, %v5552
  %v5601 = vmul.f32 %v4371, %v5552
  %v5602 = vmul.f32 %v4374, %v5552
  %v5603 = vmul.f32 %v4377, %v5552
  %v5604 = vmul.f32 %v4380, %v5552
  %v5605 = vmul.f32 %v4383, %v5552
  %v5606 = vmul.f32 %v4386, %v5552
  %v5607 = vmul.f32 %v4389, %v5552
  %v5608 = vmul.f32 %v4392, %v5552
  %v5609 = vmul.f32 %v4395, %v5552
  %v5610 = vmul.f32 %v4398, %v5552
  %v5611 = vmul.f32 %v4401, %v5552
  %v5612 = vmul.f32 %v4404, %v5552
  %v5613 = vmul.f32 %v4407, %v5552
  %v5614 = vmul.f32 %v4410, %v5552
  %v5615 = vmul.f32 %v4413, %v5552
  %v5616 = vmul.f32 %v4416, %v5552
  %v5617 = vmul.f32 %v4419, %v5552
  %v5618 = vmul.f32 %v4422, %v5552
  %v5619 = vmul.f32 %v4425, %v5552
  %v5620 = vmul.f32 %v4428, %v5552
  %v5621 = vmul.f32 %v4431, %v5552
  %v5622 = vmul.f32 %v4434, %v5552
  %v5623 = vmul.f32 %v4437, %v5552
  %v5624 = vmul.f32 %v4440, %v5552
  %v5625 = vmul.f32 %v4443, %v5552
  %v5626 = vmul.f32 %v4446, %v5552
  %v5627 = vmul.f32 %v4449, %v5552
  %v5628 = vmul.f32 %v4452, %v5552
  %v5629 = vmul.f32 %v4455, %v5552
  %v5630 = vmul.f32 %v4458, %v5552
  %v5631 = vmul.f32 %v4461, %v5552
  %v5632 = vmul.f32 %v4464, %v5552
  %v5633 = vmul.f32 %v4467, %v5552
  %v5634 = vmul.f32 %v4470, %v5552
  %v5636 = vperm.slane %v5550, 0
  %v5638 = vadd.f32 %v5554, %v5636
  %v5639 = vadd.f32 %v5555, %v5636
  %v5640 = vadd.f32 %v5556, %v5636
  %v5641 = vadd.f32 %v5557, %v5636
  %v5642 = vadd.f32 %v5558, %v5636
  %v5643 = vadd.f32 %v5559, %v5636
  %v5644 = vadd.f32 %v5560, %v5636
  %v5645 = vadd.f32 %v5561, %v5636
  %v5646 = vadd.f32 %v5562, %v5636
  %v5647 = vadd.f32 %v5563, %v5636
  %v5648 = vadd.f32 %v5564, %v5636
  %v5649 = vadd.f32 %v5565, %v5636
  %v5650 = vadd.f32 %v5566, %v5636
  %v5651 = vadd.f32 %v5567, %v5636
  %v5652 = vadd.f32 %v5568, %v5636
  %v5653 = vadd.f32 %v5569, %v5636
  %v5654 = vadd.f32 %v5570, %v5636
  %v5655 = vadd.f32 %v5571, %v5636
  %v5656 = vadd.f32 %v5572, %v5636
  %v5657 = vadd.f32 %v5573, %v5636
  %v5658 = vadd.f32 %v5574, %v5636
  %v5659 = vadd.f32 %v5575, %v5636
  %v5660 = vadd.f32 %v5576, %v5636
  %v5661 = vadd.f32 %v5577, %v5636
  %v5662 = vadd.f32 %v5578, %v5636
  %v5663 = vadd.f32 %v5579, %v5636
  %v5664 = vadd.f32 %v5580, %v5636
  %v5665 = vadd.f32 %v5581, %v5636
  %v5666 = vadd.f32 %v5582, %v5636
  %v5667 = vadd.f32 %v5583, %v5636
  %v5668 = vadd.f32 %v5584, %v5636
  %v5669 = vadd.f32 %v5585, %v5636
  %v5670 = vadd.f32 %v5586, %v5636
  %v5671 = vadd.f32 %v5587, %v5636
  %v5672 = vadd.f32 %v5588, %v5636
  %v5673 = vadd.f32 %v5589, %v5636
  %v5674 = vadd.f32 %v5590, %v5636
  %v5675 = vadd.f32 %v5591, %v5636
  %v5676 = vadd.f32 %v5592, %v5636
  %v5677 = vadd.f32 %v5593, %v5636
  %v5678 = vadd.f32 %v5594, %v5636
  %v5679 = vadd.f32 %v5595, %v5636
  %v5680 = vadd.f32 %v5596, %v5636
  %v5681 = vadd.f32 %v5597, %v5636
  %v5682 = vadd.f32 %v5598, %v5636
  %v5683 = vadd.f32 %v5599, %v5636
  %v5684 = vadd.f32 %v5600, %v5636
  %v5685 = vadd.f32 %v5601, %v5636
  %v5686 = vadd.f32 %v5602, %v5636
  %v5687 = vadd.f32 %v5603, %v5636
  %v5688 = vadd.f32 %v5604, %v5636
  %v5689 = vadd.f32 %v5605, %v5636
  %v5690 = vadd.f32 %v5606, %v5636
  %v5691 = vadd.f32 %v5607, %v5636
  %v5692 = vadd.f32 %v5608, %v5636
  %v5693 = vadd.f32 %v5609, %v5636
  %v5694 = vadd.f32 %v5610, %v5636
  %v5695 = vadd.f32 %v5611, %v5636
  %v5696 = vadd.f32 %v5612, %v5636
  %v5697 = vadd.f32 %v5613, %v5636
  %v5698 = vadd.f32 %v5614, %v5636
  %v5699 = vadd.f32 %v5615, %v5636
  %v5700 = vadd.f32 %v5616, %v5636
  %v5701 = vadd.f32 %v5617, %v5636
  %v5702 = vadd.f32 %v5618, %v5636
  %v5703 = vadd.f32 %v5619, %v5636
  %v5704 = vadd.f32 %v5620, %v5636
  %v5705 = vadd.f32 %v5621, %v5636
  %v5706 = vadd.f32 %v5622, %v5636
  %v5707 = vadd.f32 %v5623, %v5636
  %v5708 = vadd.f32 %v5624, %v5636
  %v5709 = vadd.f32 %v5625, %v5636
  %v5710 = vadd.f32 %v5626, %v5636
  %v5711 = vadd.f32 %v5627, %v5636
  %v5712 = vadd.f32 %v5628, %v5636
  %v5713 = vadd.f32 %v5629, %v5636
  %v5714 = vadd.f32 %v5630, %v5636
  %v5715 = vadd.f32 %v5631, %v5636
  %v5716 = vadd.f32 %v5632, %v5636
  %v5717 = vadd.f32 %v5633, %v5636
  %v5718 = vadd.f32 %v5634, %v5636
  %v5719 = vmax.f32 %v5638, 0.0
  %v5720 = vmax.f32 %v5639, 0.0
  %v5721 = vmax.f32 %v5640, 0.0
  %v5722 = vmax.f32 %v5641, 0.0
  %v5723 = vmax.f32 %v5642, 0.0
  %v5724 = vmax.f32 %v5643, 0.0
  %v5725 = vmax.f32 %v5644, 0.0
  %v5726 = vmax.f32 %v5645, 0.0
  %v5727 = vmax.f32 %v5646, 0.0
  %v5728 = vmax.f32 %v5647, 0.0
  %v5729 = vmax.f32 %v5648, 0.0
  %v5730 = vmax.f32 %v5649, 0.0
  %v5731 = vmax.f32 %v5650, 0.0
  %v5732 = vmax.f32 %v5651, 0.0
  %v5733 = vmax.f32 %v5652, 0.0
  %v5734 = vmax.f32 %v5653, 0.0
  %v5735 = vmax.f32 %v5654, 0.0
  %v5736 = vmax.f32 %v5655, 0.0
  %v5737 = vmax.f32 %v5656, 0.0
  %v5738 = vmax.f32 %v5657, 0.0
  %v5739 = vmax.f32 %v5658, 0.0
  %v5740 = vmax.f32 %v5659, 0.0
  %v5741 = vmax.f32 %v5660, 0.0
  %v5742 = vmax.f32 %v5661, 0.0
  %v5743 = vmax.f32 %v5662, 0.0
  %v5744 = vmax.f32 %v5663, 0.0
  %v5745 = vmax.f32 %v5664, 0.0
  %v5746 = vmax.f32 %v5665, 0.0
  %v5747 = vmax.f32 %v5666, 0.0
  %v5748 = vmax.f32 %v5667, 0.0
  %v5749 = vmax.f32 %v5668, 0.0
  %v5750 = vmax.f32 %v5669, 0.0
  %v5751 = vmax.f32 %v5670, 0.0
  %v5752 = vmax.f32 %v5671, 0.0
  %v5753 = vmax.f32 %v5672, 0.0
  %v5754 = vmax.f32 %v5673, 0.0
  %v5755 = vmax.f32 %v5674, 0.0
  %v5756 = vmax.f32 %v5675, 0.0
  %v5757 = vmax.f32 %v5676, 0.0
  %v5758 = vmax.f32 %v5677, 0.0
  %v5759 = vmax.f32 %v5678, 0.0
  %v5760 = vmax.f32 %v5679, 0.0
  %v5761 = vmax.f32 %v5680, 0.0
  %v5762 = vmax.f32 %v5681, 0.0
  %v5763 = vmax.f32 %v5682, 0.0
  %v5764 = vmax.f32 %v5683, 0.0
  %v5765 = vmax.f32 %v5684, 0.0
  %v5766 = vmax.f32 %v5685, 0.0
  %v5767 = vmax.f32 %v5686, 0.0
  %v5768 = vmax.f32 %v5687, 0.0
  %v5769 = vmax.f32 %v5688, 0.0
  %v5770 = vmax.f32 %v5689, 0.0
  %v5771 = vmax.f32 %v5690, 0.0
  %v5772 = vmax.f32 %v5691, 0.0
  %v5773 = vmax.f32 %v5692, 0.0
  %v5774 = vmax.f32 %v5693, 0.0
  %v5775 = vmax.f32 %v5694, 0.0
  %v5776 = vmax.f32 %v5695, 0.0
  %v5777 = vmax.f32 %v5696, 0.0
  %v5778 = vmax.f32 %v5697, 0.0
  %v5779 = vmax.f32 %v5698, 0.0
  %v5780 = vmax.f32 %v5699, 0.0
  %v5781 = vmax.f32 %v5700, 0.0
  %v5782 = vmax.f32 %v5701, 0.0
  %v5783 = vmax.f32 %v5702, 0.0
  %v5784 = vmax.f32 %v5703, 0.0
  %v5785 = vmax.f32 %v5704, 0.0
  %v5786 = vmax.f32 %v5705, 0.0
  %v5787 = vmax.f32 %v5706, 0.0
  %v5788 = vmax.f32 %v5707, 0.0
  %v5789 = vmax.f32 %v5708, 0.0
  %v5790 = vmax.f32 %v5709, 0.0
  %v5791 = vmax.f32 %v5710, 0.0
  %v5792 = vmax.f32 %v5711, 0.0
  %v5793 = vmax.f32 %v5712, 0.0
  %v5794 = vmax.f32 %v5713, 0.0
  %v5795 = vmax.f32 %v5714, 0.0
  %v5796 = vmax.f32 %v5715, 0.0
  %v5797 = vmax.f32 %v5716, 0.0
  %v5798 = vmax.f32 %v5717, 0.0
  %v5799 = vmax.f32 %v5718, 0.0
  %v5800 = vmul.f32 %v5719, %v4475
  %v5801 = vmul.f32 %v5720, %v4480
  %v5802 = vmul.f32 %v5721, %v4485
  %v5803 = vmul.f32 %v5722, %v4490
  %v5804 = vmul.f32 %v5723, %v4495
  %v5805 = vmul.f32 %v5724, %v4500
  %v5806 = vmul.f32 %v5725, %v4505
  %v5807 = vmul.f32 %v5726, %v4510
  %v5808 = vmul.f32 %v5727, %v4515
  %v5809 = vmul.f32 %v5728, %v4520
  %v5810 = vmul.f32 %v5729, %v4525
  %v5811 = vmul.f32 %v5730, %v4530
  %v5812 = vmul.f32 %v5731, %v4535
  %v5813 = vmul.f32 %v5732, %v4540
  %v5814 = vmul.f32 %v5733, %v4545
  %v5815 = vmul.f32 %v5734, %v4550
  %v5816 = vmul.f32 %v5735, %v4555
  %v5817 = vmul.f32 %v5736, %v4560
  %v5818 = vmul.f32 %v5737, %v4565
  %v5819 = vmul.f32 %v5738, %v4570
  %v5820 = vmul.f32 %v5739, %v4575
  %v5821 = vmul.f32 %v5740, %v4580
  %v5822 = vmul.f32 %v5741, %v4585
  %v5823 = vmul.f32 %v5742, %v4590
  %v5824 = vmul.f32 %v5743, %v4595
  %v5825 = vmul.f32 %v5744, %v4600
  %v5826 = vmul.f32 %v5745, %v4605
  %v5827 = vmul.f32 %v5746, %v4610
  %v5828 = vmul.f32 %v5747, %v4615
  %v5829 = vmul.f32 %v5748, %v4620
  %v5830 = vmul.f32 %v5749, %v4625
  %v5831 = vmul.f32 %v5750, %v4630
  %v5832 = vmul.f32 %v5751, %v4635
  %v5833 = vmul.f32 %v5752, %v4640
  %v5834 = vmul.f32 %v5753, %v4645
  %v5835 = vmul.f32 %v5754, %v4650
  %v5836 = vmul.f32 %v5755, %v4655
  %v5837 = vmul.f32 %v5756, %v4660
  %v5838 = vmul.f32 %v5757, %v4665
  %v5839 = vmul.f32 %v5758, %v4670
  %v5840 = vmul.f32 %v5759, %v4675
  %v5841 = vmul.f32 %v5760, %v4680
  %v5842 = vmul.f32 %v5761, %v4685
  %v5843 = vmul.f32 %v5762, %v4690
  %v5844 = vmul.f32 %v5763, %v4695
  %v5845 = vmul.f32 %v5764, %v4700
  %v5846 = vmul.f32 %v5765, %v4705
  %v5847 = vmul.f32 %v5766, %v4710
  %v5848 = vmul.f32 %v5767, %v4715
  %v5849 = vmul.f32 %v5768, %v4720
  %v5850 = vmul.f32 %v5769, %v4725
  %v5851 = vmul.f32 %v5770, %v4730
  %v5852 = vmul.f32 %v5771, %v4735
  %v5853 = vmul.f32 %v5772, %v4740
  %v5854 = vmul.f32 %v5773, %v4745
  %v5855 = vmul.f32 %v5774, %v4750
  %v5856 = vmul.f32 %v5775, %v4755
  %v5857 = vmul.f32 %v5776, %v4760
  %v5858 = vmul.f32 %v5777, %v4765
  %v5859 = vmul.f32 %v5778, %v4770
  %v5860 = vmul.f32 %v5779, %v4775
  %v5861 = vmul.f32 %v5780, %v4780
  %v5862 = vmul.f32 %v5781, %v4785
  %v5863 = vmul.f32 %v5782, %v4790
  %v5864 = vmul.f32 %v5783, %v4795
  %v5865 = vmul.f32 %v5784, %v4800
  %v5866 = vmul.f32 %v5785, %v4805
  %v5867 = vmul.f32 %v5786, %v4810
  %v5868 = vmul.f32 %v5787, %v4815
  %v5869 = vmul.f32 %v5788, %v4820
  %v5870 = vmul.f32 %v5789, %v4825
  %v5871 = vmul.f32 %v5790, %v4830
  %v5872 = vmul.f32 %v5791, %v4835
  %v5873 = vmul.f32 %v5792, %v4840
  %v5874 = vmul.f32 %v5793, %v4845
  %v5875 = vmul.f32 %v5794, %v4850
  %v5876 = vmul.f32 %v5795, %v4855
  %v5877 = vmul.f32 %v5796, %v4860
  %v5878 = vmul.f32 %v5797, %v4865
  %v5879 = vmul.f32 %v5798, %v4870
  %v5880 = vmul.f32 %v5799, %v4875
  %v5881 = vld [vmem:[%s6] sm:$0xff]
  %v5882 = vld [vmem:[%s6 + $0x8] sm:$0xff]
  %v5883 = vld [vmem:[%s6 + $0x10] sm:$0xff]
  %v5884 = vld [vmem:[%s6 + $0x18] sm:$0xff]
  %v5885 = vld [vmem:[%s6 + $0x20] sm:$0xff]
  %v5886 = vld [vmem:[%s6 + $0x28] sm:$0xff]
  %v5887 = vld [vmem:[%s6 + $0x30] sm:$0xff]
  %v5888 = vld [vmem:[%s6 + $0x38] sm:$0xff]
  %v5889 = vld [vmem:[%s6 + $0x40] sm:$0xff]
  %v5890 = vld [vmem:[%s7] sm:$0x1]
  %v5891 = vld [vmem:[%s8] sm:$0x1]
  %v5892 = vld [vmem:[%s9] sm:$0x1]
  %v5896 = vrot.slane %v5878, 5
  %v5897 = vrot.slane %v5879, 5
  %v5898 = vsel %vm208, %v5896, %v5897
  %v5899 = vrot.slane %v5880, 5
  %v5900 = vsel %vm208, %v5897, %v5899
  %v5982 = vrot.slane %v5800, 5
  %v5983 = vrot.slane %v5801, 5
  %v5984 = vsel %vm208, %v5982, %v5983
  %v5985 = vrot.slane %v5802, 5
  %v5986 = vsel %vm208, %v5983, %v5985
  %v5987 = vrot.slane %v5803, 5
  %v5988 = vsel %vm208, %v5985, %v5987
  %v5989 = vrot.slane %v5804, 5
  %v5990 = vsel %vm208, %v5987, %v5989
  %v5991 = vrot.slane %v5805, 5
  %v5992 = vsel %vm208, %v5989, %v5991
  %v5993 = vrot.slane %v5806, 5
  %v5994 = vsel %vm208, %v5991, %v5993
  %v5995 = vrot.slane %v5807, 5
  %v5996 = vsel %vm208, %v5993, %v5995
  %v5997 = vrot.slane %v5808, 5
  %v5998 = vsel %vm208, %v5995, %v5997
  %v5999 = vrot.slane %v5809, 5
  %v6000 = vsel %vm208, %v5997, %v5999
  %v6001 = vrot.slane %v5810, 5
  %v6002 = vsel %vm208, %v5999, %v6001
  %v6003 = vrot.slane %v5811, 5
  %v6004 = vsel %vm208, %v6001, %v6003
  %v6005 = vrot.slane %v5812, 5
  %v6006 = vsel %vm208, %v6003, %v6005
  %v6007 = vrot.slane %v5813, 5
  %v6008 = vsel %vm208, %v6005, %v6007
  %v6009 = vrot.slane %v5814, 5
  %v6010 = vsel %vm208, %v6007, %v6009
  %v6011 = vrot.slane %v5815, 5
  %v6012 = vsel %vm208, %v6009, %v6011
  %v6013 = vrot.slane %v5816, 5
  %v6014 = vsel %vm208, %v6011, %v6013
  %v6015 = vrot.slane %v5817, 5
  %v6016 = vsel %vm208, %v6013, %v6015
  %v6017 = vrot.slane %v5818, 5
  %v6018 = vsel %vm208, %v6015, %v6017
  %v6019 = vrot.slane %v5819, 5
  %v6020 = vsel %vm208, %v6017, %v6019
  %v6021 = vrot.slane %v5820, 5
  %v6022 = vsel %vm208, %v6019, %v6021
  %v6023 = vrot.slane %v5821, 5
  %v6024 = vsel %vm208, %v6021, %v6023
  %v6025 = vrot.slane %v5822, 5
  %v6026 = vsel %vm208, %v6023, %v6025
  %v6027 = vrot.slane %v5823, 5
  %v6028 = vsel %vm208, %v6025, %v6027
  %v6029 = vrot.slane %v5824, 5
  %v6030 = vsel %vm208, %v6027, %v6029
  %v6031 = vrot.slane %v5825, 5
  %v6032 = vsel %vm208, %v6029, %v6031
  %v6033 = vrot.slane %v5826, 5
  %v6034 = vsel %vm208, %v6031, %v6033
  %v6035 = vrot.slane %v5827, 5
  %v6036 = vsel %vm208, %v6033, %v6035
  %v6037 = vrot.slane %v5828, 5
  %v6038 = vsel %vm208, %v6035, %v6037
  %v6039 = vrot.slane %v5829, 5
  %v6040 = vsel %vm208, %v6037, %v6039
  %v6041 = vrot.slane %v5830, 5
  %v6042 = vsel %vm208, %v6039, %v6041
  %v6043 = vrot.slane %v5831, 5
  %v6044 = vsel %vm208, %v6041, %v6043
  %v6045 = vrot.slane %v5832, 5
  %v6046 = vsel %vm208, %v6043, %v6045
  %v6047 = vrot.slane %v5833, 5
  %v6048 = vsel %vm208, %v6045, %v6047
  %v6049 = vrot.slane %v5834, 5
  %v6050 = vsel %vm208, %v6047, %v6049
  %v6051 = vrot.slane %v5835, 5
  %v6052 = vsel %vm208, %v6049, %v6051
  %v6053 = vrot.slane %v5836, 5
  %v6054 = vsel %vm208, %v6051, %v6053
  %v6055 = vrot.slane %v5837, 5
  %v6056 = vsel %vm208, %v6053, %v6055
  %v6057 = vrot.slane %v5838, 5
  %v6058 = vsel %vm208, %v6055, %v6057
  %v6059 = vrot.slane %v5839, 5
  %v6060 = vsel %vm208, %v6057, %v6059
  %v6061 = vrot.slane %v5840, 5
  %v6062 = vsel %vm208, %v6059, %v6061
  %v6063 = vrot.slane %v5841, 5
  %v6064 = vsel %vm208, %v6061, %v6063
  %v6065 = vrot.slane %v5842, 5
  %v6066 = vsel %vm208, %v6063, %v6065
  %v6067 = vrot.slane %v5843, 5
  %v6068 = vsel %vm208, %v6065, %v6067
  %v6069 = vrot.slane %v5844, 5
  %v6070 = vsel %vm208, %v6067, %v6069
  %v6071 = vrot.slane %v5845, 5
  %v6072 = vsel %vm208, %v6069, %v6071
  %v6073 = vrot.slane %v5846, 5
  %v6074 = vsel %vm208, %v6071, %v6073
  %v6075 = vrot.slane %v5847, 5
  %v6076 = vsel %vm208, %v6073, %v6075
  %v6077 = vrot.slane %v5848, 5
  %v6078 = vsel %vm208, %v6075, %v6077
  %v6079 = vrot.slane %v5849, 5
  %v6080 = vsel %vm208, %v6077, %v6079
  %v6081 = vrot.slane %v5850, 5
  %v6082 = vsel %vm208, %v6079, %v6081
  %v6083 = vrot.slane %v5851, 5
  %v6084 = vsel %vm208, %v6081, %v6083
  %v6085 = vrot.slane %v5852, 5
  %v6086 = vsel %vm208, %v6083, %v6085
  %v6087 = vrot.slane %v5853, 5
  %v6088 = vsel %vm208, %v6085, %v6087
  %v6089 = vrot.slane %v5854, 5
  %v6090 = vsel %vm208, %v6087, %v6089
  %v6091 = vrot.slane %v5855, 5
  %v6092 = vsel %vm208, %v6089, %v6091
  %v6093 = vrot.slane %v5856, 5
  %v6094 = vsel %vm208, %v6091, %v6093
  %v6095 = vrot.slane %v5857, 5
  %v6096 = vsel %vm208, %v6093, %v6095
  %v6097 = vrot.slane %v5858, 5
  %v6098 = vsel %vm208, %v6095, %v6097
  %v6099 = vrot.slane %v5859, 5
  %v6100 = vsel %vm208, %v6097, %v6099
  %v6101 = vrot.slane %v5860, 5
  %v6102 = vsel %vm208, %v6099, %v6101
  %v6103 = vrot.slane %v5861, 5
  %v6104 = vsel %vm208, %v6101, %v6103
  %v6105 = vrot.slane %v5862, 5
  %v6106 = vsel %vm208, %v6103, %v6105
  %v6107 = vrot.slane %v5863, 5
  %v6108 = vsel %vm208, %v6105, %v6107
  %v6109 = vrot.slane %v5864, 5
  %v6110 = vsel %vm208, %v6107, %v6109
  %v6111 = vrot.slane %v5865, 5
  %v6112 = vsel %vm208, %v6109, %v6111
  %v6113 = vrot.slane %v5866, 5
  %v6114 = vsel %vm208, %v6111, %v6113
  %v6115 = vrot.slane %v5867, 5
  %v6116 = vsel %vm208, %v6113, %v6115
  %v6117 = vrot.slane %v5868, 5
  %v6118 = vsel %vm208, %v6115, %v6117
  %v6119 = vrot.slane %v5869, 5
  %v6120 = vsel %vm208, %v6117, %v6119
  %v6121 = vrot.slane %v5870, 5
  %v6122 = vsel %vm208, %v6119, %v6121
  %v6123 = vrot.slane %v5871, 5
  %v6124 = vsel %vm208, %v6121, %v6123
  %v6125 = vrot.slane %v5872, 5
  %v6126 = vsel %vm208, %v6123, %v6125
  %v6127 = vrot.slane %v5873, 5
  %v6128 = vsel %vm208, %v6125, %v6127
  %v6129 = vrot.slane %v5874, 5
  %v6130 = vsel %vm208, %v6127, %v6129
  %v6131 = vrot.slane %v5875, 5
  %v6132 = vsel %vm208, %v6129, %v6131
  %v6133 = vrot.slane %v5876, 5
  %v6134 = vsel %vm208, %v6131, %v6133
  %v6135 = vrot.slane %v5877, 5
  %v6136 = vsel %vm208, %v6133, %v6135
  %v6137 = vsel %vm208, %v6135, %v5896
  %v6217 = vsel %vm208, %v5899, %v5982
  %v6218 = vrot.slane %v5878, 6
  %v6219 = vrot.slane %v5879, 6
  %v6220 = vsel %vm531, %v6218, %v6219
  %v6221 = vrot.slane %v5880, 6
  %v6222 = vsel %vm531, %v6219, %v6221
  %v6224 = vrot.slane %v5800, 6
  %v6225 = vrot.slane %v5801, 6
  %v6226 = vsel %vm531, %v6224, %v6225
  %v6227 = vrot.slane %v5802, 6
  %v6228 = vsel %vm531, %v6225, %v6227
  %v6229 = vrot.slane %v5803, 6
  %v6230 = vsel %vm531, %v6227, %v6229
  %v6231 = vrot.slane %v5804, 6
  %v6232 = vsel %vm531, %v6229, %v6231
  %v6233 = vrot.slane %v5805, 6
  %v6234 = vsel %vm531, %v6231, %v6233
  %v6235 = vrot.slane %v5806, 6
  %v6236 = vsel %vm531, %v6233, %v6235
  %v6237 = vrot.slane %v5807, 6
  %v6238 = vsel %vm531, %v6235, %v6237
  %v6239 = vrot.slane %v5808, 6
  %v6240 = vsel %vm531, %v6237, %v6239
  %v6241 = vrot.slane %v5809, 6
  %v6242 = vsel %vm531, %v6239, %v6241
  %v6243 = vrot.slane %v5810, 6
  %v6244 = vsel %vm531, %v6241, %v6243
  %v6245 = vrot.slane %v5811, 6
  %v6246 = vsel %vm531, %v6243, %v6245
  %v6247 = vrot.slane %v5812, 6
  %v6248 = vsel %vm531, %v6245, %v6247
  %v6249 = vrot.slane %v5813, 6
  %v6250 = vsel %vm531, %v6247, %v6249
  %v6251 = vrot.slane %v5814, 6
  %v6252 = vsel %vm531, %v6249, %v6251
  %v6253 = vrot.slane %v5815, 6
  %v6254 = vsel %vm531, %v6251, %v6253
  %v6255 = vrot.slane %v5816, 6
  %v6256 = vsel %vm531, %v6253, %v6255
  %v6257 = vrot.slane %v5817, 6
  %v6258 = vsel %vm531, %v6255, %v6257
  %v6259 = vrot.slane %v5818, 6
  %v6260 = vsel %vm531, %v6257, %v6259
  %v6261 = vrot.slane %v5819, 6
  %v6262 = vsel %vm531, %v6259, %v6261
  %v6263 = vrot.slane %v5820, 6
  %v6264 = vsel %vm531, %v6261, %v6263
  %v6265 = vrot.slane %v5821, 6
  %v6266 = vsel %vm531, %v6263, %v6265
  %v6267 = vrot.slane %v5822, 6
  %v6268 = vsel %vm531, %v6265, %v6267
  %v6269 = vrot.slane %v5823, 6
  %v6270 = vsel %vm531, %v6267, %v6269
  %v6271 = vrot.slane %v5824, 6
  %v6272 = vsel %vm531, %v6269, %v6271
  %v6273 = vrot.slane %v5825, 6
  %v6274 = vsel %vm531, %v6271, %v6273
  %v6275 = vrot.slane %v5826, 6
  %v6276 = vsel %vm531, %v6273, %v6275
  %v6277 = vrot.slane %v5827, 6
  %v6278 = vsel %vm531, %v6275, %v6277
  %v6279 = vrot.slane %v5828, 6
  %v6280 = vsel %vm531, %v6277, %v6279
  %v6281 = vrot.slane %v5829, 6
  %v6282 = vsel %vm531, %v6279, %v6281
  %v6283 = vrot.slane %v5830, 6
  %v6284 = vsel %vm531, %v6281, %v6283
  %v6285 = vrot.slane %v5831, 6
  %v6286 = vsel %vm531, %v6283, %v6285
  %v6287 = vrot.slane %v5832, 6
  %v6288 = vsel %vm531, %v6285, %v6287
  %v6289 = vrot.slane %v5833, 6
  %v6290 = vsel %vm531, %v6287, %v6289
  %v6291 = vrot.slane %v5834, 6
  %v6292 = vsel %vm531, %v6289, %v6291
  %v6293 = vrot.slane %v5835, 6
  %v6294 = vsel %vm531, %v6291, %v6293
  %v6295 = vrot.slane %v5836, 6
  %v6296 = vsel %vm531, %v6293, %v6295
  %v6297 = vrot.slane %v5837, 6
  %v6298 = vsel %vm531, %v6295, %v6297
  %v6299 = vrot.slane %v5838, 6
  %v6300 = vsel %vm531, %v6297, %v6299
  %v6301 = vrot.slane %v5839, 6
  %v6302 = vsel %vm531, %v6299, %v6301
  %v6303 = vrot.slane %v5840, 6
  %v6304 = vsel %vm531, %v6301, %v6303
  %v6305 = vrot.slane %v5841, 6
  %v6306 = vsel %vm531, %v6303, %v6305
  %v6307 = vrot.slane %v5842, 6
  %v6308 = vsel %vm531, %v6305, %v6307
  %v6309 = vrot.slane %v5843, 6
  %v6310 = vsel %vm531, %v6307, %v6309
  %v6311 = vrot.slane %v5844, 6
  %v6312 = vsel %vm531, %v6309, %v6311
  %v6313 = vrot.slane %v5845, 6
  %v6314 = vsel %vm531, %v6311, %v6313
  %v6315 = vrot.slane %v5846, 6
  %v6316 = vsel %vm531, %v6313, %v6315
  %v6317 = vrot.slane %v5847, 6
  %v6318 = vsel %vm531, %v6315, %v6317
  %v6319 = vrot.slane %v5848, 6
  %v6320 = vsel %vm531, %v6317, %v6319
  %v6321 = vrot.slane %v5849, 6
  %v6322 = vsel %vm531, %v6319, %v6321
  %v6323 = vrot.slane %v5850, 6
  %v6324 = vsel %vm531, %v6321, %v6323
  %v6325 = vrot.slane %v5851, 6
  %v6326 = vsel %vm531, %v6323, %v6325
  %v6327 = vrot.slane %v5852, 6
  %v6328 = vsel %vm531, %v6325, %v6327
  %v6329 = vrot.slane %v5853, 6
  %v6330 = vsel %vm531, %v6327, %v6329
  %v6331 = vrot.slane %v5854, 6
  %v6332 = vsel %vm531, %v6329, %v6331
  %v6333 = vrot.slane %v5855, 6
  %v6334 = vsel %vm531, %v6331, %v6333
  %v6335 = vrot.slane %v5856, 6
  %v6336 = vsel %vm531, %v6333, %v6335
  %v6337 = vrot.slane %v5857, 6
  %v6338 = vsel %vm531, %v6335, %v6337
  %v6339 = vrot.slane %v5858, 6
  %v6340 = vsel %vm531, %v6337, %v6339
  %v6341 = vrot.slane %v5859, 6
  %v6342 = vsel %vm531, %v6339, %v6341
  %v6343 = vrot.slane %v5860, 6
  %v6344 = vsel %vm531, %v6341, %v6343
  %v6345 = vrot.slane %v5861, 6
  %v6346 = vsel %vm531, %v6343, %v6345
  %v6347 = vrot.slane %v5862, 6
  %v6348 = vsel %vm531, %v6345, %v6347
  %v6349 = vrot.slane %v5863, 6
  %v6350 = vsel %vm531, %v6347, %v6349
  %v6351 = vrot.slane %v5864, 6
  %v6352 = vsel %vm531, %v6349, %v6351
  %v6353 = vrot.slane %v5865, 6
  %v6354 = vsel %vm531, %v6351, %v6353
  %v6355 = vrot.slane %v5866, 6
  %v6356 = vsel %vm531, %v6353, %v6355
  %v6357 = vrot.slane %v5867, 6
  %v6358 = vsel %vm531, %v6355, %v6357
  %v6359 = vrot.slane %v5868, 6
  %v6360 = vsel %vm531, %v6357, %v6359
  %v6361 = vrot.slane %v5869, 6
  %v6362 = vsel %vm531, %v6359, %v6361
  %v6363 = vrot.slane %v5870, 6
  %v6364 = vsel %vm531, %v6361, %v6363
  %v6365 = vrot.slane %v5871, 6
  %v6366 = vsel %vm531, %v6363, %v6365
  %v6367 = vrot.slane %v5872, 6
  %v6368 = vsel %vm531, %v6365, %v6367
  %v6369 = vrot.slane %v5873, 6
  %v6370 = vsel %vm531, %v6367, %v6369
  %v6371 = vrot.slane %v5874, 6
  %v6372 = vsel %vm531, %v6369, %v6371
  %v6373 = vrot.slane %v5875, 6
  %v6374 = vsel %vm531, %v6371, %v6373
  %v6375 = vrot.slane %v5876, 6
  %v6376 = vsel %vm531, %v6373, %v6375
  %v6377 = vrot.slane %v5877, 6
  %v6378 = vsel %vm531, %v6375, %v6377
  %v6379 = vsel %vm531, %v6377, %v6218
  %v6381 = vsel %vm531, %v6221, %v6224
  %v6382 = vrot.slane %v5878, 7
  %v6383 = vrot.slane %v5879, 7
  %v6384 = vsel %vm696, %v6382, %v6383
  %v6385 = vrot.slane %v5880, 7
  %v6386 = vsel %vm696, %v6383, %v6385
  %v6388 = vrot.slane %v5800, 7
  %v6389 = vrot.slane %v5801, 7
  %v6390 = vsel %vm696, %v6388, %v6389
  %v6391 = vrot.slane %v5802, 7
  %v6392 = vsel %vm696, %v6389, %v6391
  %v6393 = vrot.slane %v5803, 7
  %v6394 = vsel %vm696, %v6391, %v6393
  %v6395 = vrot.slane %v5804, 7
  %v6396 = vsel %vm696, %v6393, %v6395
  %v6397 = vrot.slane %v5805, 7
  %v6398 = vsel %vm696, %v6395, %v6397
  %v6399 = vrot.slane %v5806, 7
  %v6400 = vsel %vm696, %v6397, %v6399
  %v6401 = vrot.slane %v5807, 7
  %v6402 = vsel %vm696, %v6399, %v6401
  %v6403 = vrot.slane %v5808, 7
  %v6404 = vsel %vm696, %v6401, %v6403
  %v6405 = vrot.slane %v5809, 7
  %v6406 = vsel %vm696, %v6403, %v6405
  %v6407 = vrot.slane %v5810, 7
  %v6408 = vsel %vm696, %v6405, %v6407
  %v6409 = vrot.slane %v5811, 7
  %v6410 = vsel %vm696, %v6407, %v6409
  %v6411 = vrot.slane %v5812, 7
  %v6412 = vsel %vm696, %v6409, %v6411
  %v6413 = vrot.slane %v5813, 7
  %v6414 = vsel %vm696, %v6411, %v6413
  %v6415 = vrot.slane %v5814, 7
  %v6416 = vsel %vm696, %v6413, %v6415
  %v6417 = vrot.slane %v5815, 7
  %v6418 = vsel %vm696, %v6415, %v6417
  %v6419 = vrot.slane %v5816, 7
  %v6420 = vsel %vm696, %v6417, %v6419
  %v6421 = vrot.slane %v5817, 7
  %v6422 = vsel %vm696, %v6419, %v6421
  %v6423 = vrot.slane %v5818, 7
  %v6424 = vsel %vm696, %v6421, %v6423
  %v6425 = vrot.slane %v5819, 7
  %v6426 = vsel %vm696, %v6423, %v6425
  %v6427 = vrot.slane %v5820, 7
  %v6428 = vsel %vm696, %v6425, %v6427
  %v6429 = vrot.slane %v5821, 7
  %v6430 = vsel %vm696, %v6427, %v6429
  %v6431 = vrot.slane %v5822, 7
  %v6432 = vsel %vm696, %v6429, %v6431
  %v6433 = vrot.slane %v5823, 7
  %v6434 = vsel %vm696, %v6431, %v6433
  %v6435 = vrot.slane %v5824, 7
  %v6436 = vsel %vm696, %v6433, %v6435
  %v6437 = vrot.slane %v5825, 7
  %v6438 = vsel %vm696, %v6435, %v6437
  %v6439 = vrot.slane %v5826, 7
  %v6440 = vsel %vm696, %v6437, %v6439
  %v6441 = vrot.slane %v5827, 7
  %v6442 = vsel %vm696, %v6439, %v6441
  %v6443 = vrot.slane %v5828, 7
  %v6444 = vsel %vm696, %v6441, %v6443
  %v6445 = vrot.slane %v5829, 7
  %v6446 = vsel %vm696, %v6443, %v6445
  %v6447 = vrot.slane %v5830, 7
  %v6448 = vsel %vm696, %v6445, %v6447
  %v6449 = vrot.slane %v5831, 7
  %v6450 = vsel %vm696, %v6447, %v6449
  %v6451 = vrot.slane %v5832, 7
  %v6452 = vsel %vm696, %v6449, %v6451
  %v6453 = vrot.slane %v5833, 7
  %v6454 = vsel %vm696, %v6451, %v6453
  %v6455 = vrot.slane %v5834, 7
  %v6456 = vsel %vm696, %v6453, %v6455
  %v6457 = vrot.slane %v5835, 7
  %v6458 = vsel %vm696, %v6455, %v6457
  %v6459 = vrot.slane %v5836, 7
  %v6460 = vsel %vm696, %v6457, %v6459
  %v6461 = vrot.slane %v5837, 7
  %v6462 = vsel %vm696, %v6459, %v6461
  %v6463 = vrot.slane %v5838, 7
  %v6464 = vsel %vm696, %v6461, %v6463
  %v6465 = vrot.slane %v5839, 7
  %v6466 = vsel %vm696, %v6463, %v6465
  %v6467 = vrot.slane %v5840, 7
  %v6468 = vsel %vm696, %v6465, %v6467
  %v6469 = vrot.slane %v5841, 7
  %v6470 = vsel %vm696, %v6467, %v6469
  %v6471 = vrot.slane %v5842, 7
  %v6472 = vsel %vm696, %v6469, %v6471
  %v6473 = vrot.slane %v5843, 7
  %v6474 = vsel %vm696, %v6471, %v6473
  %v6475 = vrot.slane %v5844, 7
  %v6476 = vsel %vm696, %v6473, %v6475
  %v6477 = vrot.slane %v5845, 7
  %v6478 = vsel %vm696, %v6475, %v6477
  %v6479 = vrot.slane %v5846, 7
  %v6480 = vsel %vm696, %v6477, %v6479
  %v6481 = vrot.slane %v5847, 7
  %v6482 = vsel %vm696, %v6479, %v6481
  %v6483 = vrot.slane %v5848, 7
  %v6484 = vsel %vm696, %v6481, %v6483
  %v6485 = vrot.slane %v5849, 7
  %v6486 = vsel %vm696, %v6483, %v6485
  %v6487 = vrot.slane %v5850, 7
  %v6488 = vsel %vm696, %v6485, %v6487
  %v6489 = vrot.slane %v5851, 7
  %v6490 = vsel %vm696, %v6487, %v6489
  %v6491 = vrot.slane %v5852, 7
  %v6492 = vsel %vm696, %v6489, %v6491
  %v6493 = vrot.slane %v5853, 7
  %v6494 = vsel %vm696, %v6491, %v6493
  %v6495 = vrot.slane %v5854, 7
  %v6496 = vsel %vm696, %v6493, %v6495
  %v6497 = vrot.slane %v5855, 7
  %v6498 = vsel %vm696, %v6495, %v6497
  %v6499 = vrot.slane %v5856, 7
  %v6500 = vsel %vm696, %v6497, %v6499
  %v6501 = vrot.slane %v5857, 7
  %v6502 = vsel %vm696, %v6499, %v6501
  %v6503 = vrot.slane %v5858, 7
  %v6504 = vsel %vm696, %v6501, %v6503
  %v6505 = vrot.slane %v5859, 7
  %v6506 = vsel %vm696, %v6503, %v6505
  %v6507 = vrot.slane %v5860, 7
  %v6508 = vsel %vm696, %v6505, %v6507
  %v6509 = vrot.slane %v5861, 7
  %v6510 = vsel %vm696, %v6507, %v6509
  %v6511 = vrot.slane %v5862, 7
  %v6512 = vsel %vm696, %v6509, %v6511
  %v6513 = vrot.slane %v5863, 7
  %v6514 = vsel %vm696, %v6511, %v6513
  %v6515 = vrot.slane %v5864, 7
  %v6516 = vsel %vm696, %v6513, %v6515
  %v6517 = vrot.slane %v5865, 7
  %v6518 = vsel %vm696, %v6515, %v6517
  %v6519 = vrot.slane %v5866, 7
  %v6520 = vsel %vm696, %v6517, %v6519
  %v6521 = vrot.slane %v5867, 7
  %v6522 = vsel %vm696, %v6519, %v6521
  %v6523 = vrot.slane %v5868, 7
  %v6524 = vsel %vm696, %v6521, %v6523
  %v6525 = vrot.slane %v5869, 7
  %v6526 = vsel %vm696, %v6523, %v6525
  %v6527 = vrot.slane %v5870, 7
  %v6528 = vsel %vm696, %v6525, %v6527
  %v6529 = vrot.slane %v5871, 7
  %v6530 = vsel %vm696, %v6527, %v6529
  %v6531 = vrot.slane %v5872, 7
  %v6532 = vsel %vm696, %v6529, %v6531
  %v6533 = vrot.slane %v5873, 7
  %v6534 = vsel %vm696, %v6531, %v6533
  %v6535 = vrot.slane %v5874, 7
  %v6536 = vsel %vm696, %v6533, %v6535
  %v6537 = vrot.slane %v5875, 7
  %v6538 = vsel %vm696, %v6535, %v6537
  %v6539 = vrot.slane %v5876, 7
  %v6540 = vsel %vm696, %v6537, %v6539
  %v6541 = vrot.slane %v5877, 7
  %v6542 = vsel %vm696, %v6539, %v6541
  %v6543 = vsel %vm696, %v6541, %v6382
  %v6545 = vsel %vm696, %v6385, %v6388
  %v6546 = vrot.slane %v5800, 1
  %v6547 = vrot.slane %v5801, 1
  %v6548 = vsel %vm861, %v6546, %v6547
  %v6549 = vrot.slane %v5802, 1
  %v6550 = vsel %vm861, %v6547, %v6549
  %v6551 = vrot.slane %v5803, 1
  %v6552 = vsel %vm861, %v6549, %v6551
  %v6553 = vrot.slane %v5804, 1
  %v6554 = vsel %vm861, %v6551, %v6553
  %v6555 = vrot.slane %v5805, 1
  %v6556 = vsel %vm861, %v6553, %v6555
  %v6557 = vrot.slane %v5806, 1
  %v6558 = vsel %vm861, %v6555, %v6557
  %v6559 = vrot.slane %v5807, 1
  %v6560 = vsel %vm861, %v6557, %v6559
  %v6561 = vrot.slane %v5808, 1
  %v6562 = vsel %vm861, %v6559, %v6561
  %v6563 = vrot.slane %v5809, 1
  %v6564 = vsel %vm861, %v6561, %v6563
  %v6565 = vrot.slane %v5810, 1
  %v6566 = vsel %vm861, %v6563, %v6565
  %v6567 = vrot.slane %v5811, 1
  %v6568 = vsel %vm861, %v6565, %v6567
  %v6569 = vrot.slane %v5812, 1
  %v6570 = vsel %vm861, %v6567, %v6569
  %v6571 = vrot.slane %v5813, 1
  %v6572 = vsel %vm861, %v6569, %v6571
  %v6573 = vrot.slane %v5814, 1
  %v6574 = vsel %vm861, %v6571, %v6573
  %v6575 = vrot.slane %v5815, 1
  %v6576 = vsel %vm861, %v6573, %v6575
  %v6577 = vrot.slane %v5816, 1
  %v6578 = vsel %vm861, %v6575, %v6577
  %v6579 = vrot.slane %v5817, 1
  %v6580 = vsel %vm861, %v6577, %v6579
  %v6581 = vrot.slane %v5818, 1
  %v6582 = vsel %vm861, %v6579, %v6581
  %v6583 = vrot.slane %v5819, 1
  %v6584 = vsel %vm861, %v6581, %v6583
  %v6585 = vrot.slane %v5820, 1
  %v6586 = vsel %vm861, %v6583, %v6585
  %v6587 = vrot.slane %v5821, 1
  %v6588 = vsel %vm861, %v6585, %v6587
  %v6589 = vrot.slane %v5822, 1
  %v6590 = vsel %vm861, %v6587, %v6589
  %v6591 = vrot.slane %v5823, 1
  %v6592 = vsel %vm861, %v6589, %v6591
  %v6593 = vrot.slane %v5824, 1
  %v6594 = vsel %vm861, %v6591, %v6593
  %v6595 = vrot.slane %v5825, 1
  %v6596 = vsel %vm861, %v6593, %v6595
  %v6597 = vrot.slane %v5826, 1
  %v6598 = vsel %vm861, %v6595, %v6597
  %v6599 = vrot.slane %v5827, 1
  %v6600 = vsel %vm861, %v6597, %v6599
  %v6601 = vrot.slane %v5828, 1
  %v6602 = vsel %vm861, %v6599, %v6601
  %v6603 = vrot.slane %v5829, 1
  %v6604 = vsel %vm861, %v6601, %v6603
  %v6605 = vrot.slane %v5830, 1
  %v6606 = vsel %vm861, %v6603, %v6605
  %v6607 = vrot.slane %v5831, 1
  %v6608 = vsel %vm861, %v6605, %v6607
  %v6609 = vrot.slane %v5832, 1
  %v6610 = vsel %vm861, %v6607, %v6609
  %v6611 = vrot.slane %v5833, 1
  %v6612 = vsel %vm861, %v6609, %v6611
  %v6613 = vrot.slane %v5834, 1
  %v6614 = vsel %vm861, %v6611, %v6613
  %v6615 = vrot.slane %v5835, 1
  %v6616 = vsel %vm861, %v6613, %v6615
  %v6617 = vrot.slane %v5836, 1
  %v6618 = vsel %vm861, %v6615, %v6617
  %v6619 = vrot.slane %v5837, 1
  %v6620 = vsel %vm861, %v6617, %v6619
  %v6621 = vrot.slane %v5838, 1
  %v6622 = vsel %vm861, %v6619, %v6621
  %v6623 = vrot.slane %v5839, 1
  %v6624 = vsel %vm861, %v6621, %v6623
  %v6625 = vrot.slane %v5840, 1
  %v6626 = vsel %vm861, %v6623, %v6625
  %v6627 = vrot.slane %v5841, 1
  %v6628 = vsel %vm861, %v6625, %v6627
  %v6629 = vrot.slane %v5842, 1
  %v6630 = vsel %vm861, %v6627, %v6629
  %v6631 = vrot.slane %v5843, 1
  %v6632 = vsel %vm861, %v6629, %v6631
  %v6633 = vrot.slane %v5844, 1
  %v6634 = vsel %vm861, %v6631, %v6633
  %v6635 = vrot.slane %v5845, 1
  %v6636 = vsel %vm861, %v6633, %v6635
  %v6637 = vrot.slane %v5846, 1
  %v6638 = vsel %vm861, %v6635, %v6637
  %v6639 = vrot.slane %v5847, 1
  %v6640 = vsel %vm861, %v6637, %v6639
  %v6641 = vrot.slane %v5848, 1
  %v6642 = vsel %vm861, %v6639, %v6641
  %v6643 = vrot.slane %v5849, 1
  %v6644 = vsel %vm861, %v6641, %v6643
  %v6645 = vrot.slane %v5850, 1
  %v6646 = vsel %vm861, %v6643, %v6645
  %v6647 = vrot.slane %v5851, 1
  %v6648 = vsel %vm861, %v6645, %v6647
  %v6649 = vrot.slane %v5852, 1
  %v6650 = vsel %vm861, %v6647, %v6649
  %v6651 = vrot.slane %v5853, 1
  %v6652 = vsel %vm861, %v6649, %v6651
  %v6653 = vrot.slane %v5854, 1
  %v6654 = vsel %vm861, %v6651, %v6653
  %v6655 = vrot.slane %v5855, 1
  %v6656 = vsel %vm861, %v6653, %v6655
  %v6657 = vrot.slane %v5856, 1
  %v6658 = vsel %vm861, %v6655, %v6657
  %v6659 = vrot.slane %v5857, 1
  %v6660 = vsel %vm861, %v6657, %v6659
  %v6661 = vrot.slane %v5858, 1
  %v6662 = vsel %vm861, %v6659, %v6661
  %v6663 = vrot.slane %v5859, 1
  %v6664 = vsel %vm861, %v6661, %v6663
  %v6665 = vrot.slane %v5860, 1
  %v6666 = vsel %vm861, %v6663, %v6665
  %v6667 = vrot.slane %v5861, 1
  %v6668 = vsel %vm861, %v6665, %v6667
  %v6669 = vrot.slane %v5862, 1
  %v6670 = vsel %vm861, %v6667, %v6669
  %v6671 = vrot.slane %v5863, 1
  %v6672 = vsel %vm861, %v6669, %v6671
  %v6673 = vrot.slane %v5864, 1
  %v6674 = vsel %vm861, %v6671, %v6673
  %v6675 = vrot.slane %v5865, 1
  %v6676 = vsel %vm861, %v6673, %v6675
  %v6677 = vrot.slane %v5866, 1
  %v6678 = vsel %vm861, %v6675, %v6677
  %v6679 = vrot.slane %v5867, 1
  %v6680 = vsel %vm861, %v6677, %v6679
  %v6681 = vrot.slane %v5868, 1
  %v6682 = vsel %vm861, %v6679, %v6681
  %v6683 = vrot.slane %v5869, 1
  %v6684 = vsel %vm861, %v6681, %v6683
  %v6685 = vrot.slane %v5870, 1
  %v6686 = vsel %vm861, %v6683, %v6685
  %v6687 = vrot.slane %v5871, 1
  %v6688 = vsel %vm861, %v6685, %v6687
  %v6689 = vrot.slane %v5872, 1
  %v6690 = vsel %vm861, %v6687, %v6689
  %v6691 = vrot.slane %v5873, 1
  %v6692 = vsel %vm861, %v6689, %v6691
  %v6693 = vrot.slane %v5874, 1
  %v6694 = vsel %vm861, %v6691, %v6693
  %v6695 = vrot.slane %v5875, 1
  %v6696 = vsel %vm861, %v6693, %v6695
  %v6697 = vrot.slane %v5876, 1
  %v6698 = vsel %vm861, %v6695, %v6697
  %v6699 = vrot.slane %v5877, 1
  %v6700 = vsel %vm861, %v6697, %v6699
  %v6701 = vrot.slane %v5878, 1
  %v6702 = vsel %vm861, %v6699, %v6701
  %v6703 = vrot.slane %v5879, 1
  %v6704 = vsel %vm861, %v6701, %v6703
  %v6705 = vrot.slane %v5880, 1
  %v6706 = vsel %vm861, %v6703, %v6705
  %v6709 = vsel %vm861, %v6705, %v6546
  %v6710 = vrot.slane %v5802, 2
  %v6711 = vrot.slane %v5803, 2
  %v6712 = vsel %vm1026, %v6710, %v6711
  %v6713 = vrot.slane %v5804, 2
  %v6714 = vsel %vm1026, %v6711, %v6713
  %v6715 = vrot.slane %v5805, 2
  %v6716 = vsel %vm1026, %v6713, %v6715
  %v6717 = vrot.slane %v5806, 2
  %v6718 = vsel %vm1026, %v6715, %v6717
  %v6719 = vrot.slane %v5807, 2
  %v6720 = vsel %vm1026, %v6717, %v6719
  %v6721 = vrot.slane %v5808, 2
  %v6722 = vsel %vm1026, %v6719, %v6721
  %v6723 = vrot.slane %v5809, 2
  %v6724 = vsel %vm1026, %v6721, %v6723
  %v6725 = vrot.slane %v5810, 2
  %v6726 = vsel %vm1026, %v6723, %v6725
  %v6727 = vrot.slane %v5811, 2
  %v6728 = vsel %vm1026, %v6725, %v6727
  %v6729 = vrot.slane %v5812, 2
  %v6730 = vsel %vm1026, %v6727, %v6729
  %v6731 = vrot.slane %v5813, 2
  %v6732 = vsel %vm1026, %v6729, %v6731
  %v6733 = vrot.slane %v5814, 2
  %v6734 = vsel %vm1026, %v6731, %v6733
  %v6735 = vrot.slane %v5815, 2
  %v6736 = vsel %vm1026, %v6733, %v6735
  %v6737 = vrot.slane %v5816, 2
  %v6738 = vsel %vm1026, %v6735, %v6737
  %v6739 = vrot.slane %v5817, 2
  %v6740 = vsel %vm1026, %v6737, %v6739
  %v6741 = vrot.slane %v5818, 2
  %v6742 = vsel %vm1026, %v6739, %v6741
  %v6743 = vrot.slane %v5819, 2
  %v6744 = vsel %vm1026, %v6741, %v6743
  %v6745 = vrot.slane %v5820, 2
  %v6746 = vsel %vm1026, %v6743, %v6745
  %v6747 = vrot.slane %v5821, 2
  %v6748 = vsel %vm1026, %v6745, %v6747
  %v6749 = vrot.slane %v5822, 2
  %v6750 = vsel %vm1026, %v6747, %v6749
  %v6751 = vrot.slane %v5823, 2
  %v6752 = vsel %vm1026, %v6749, %v6751
  %v6753 = vrot.slane %v5824, 2
  %v6754 = vsel %vm1026, %v6751, %v6753
  %v6755 = vrot.slane %v5825, 2
  %v6756 = vsel %vm1026, %v6753, %v6755
  %v6757 = vrot.slane %v5826, 2
  %v6758 = vsel %vm1026, %v6755, %v6757
  %v6759 = vrot.slane %v5827, 2
  %v6760 = vsel %vm1026, %v6757, %v6759
  %v6761 = vrot.slane %v5828, 2
  %v6762 = vsel %vm1026, %v6759, %v6761
  %v6763 = vrot.slane %v5829, 2
  %v6764 = vsel %vm1026, %v6761, %v6763
  %v6765 = vrot.slane %v5830, 2
  %v6766 = vsel %vm1026, %v6763, %v6765
  %v6767 = vrot.slane %v5831, 2
  %v6768 = vsel %vm1026, %v6765, %v6767
  %v6769 = vrot.slane %v5832, 2
  %v6770 = vsel %vm1026, %v6767, %v6769
  %v6771 = vrot.slane %v5833, 2
  %v6772 = vsel %vm1026, %v6769, %v6771
  %v6773 = vrot.slane %v5834, 2
  %v6774 = vsel %vm1026, %v6771, %v6773
  %v6775 = vrot.slane %v5835, 2
  %v6776 = vsel %vm1026, %v6773, %v6775
  %v6777 = vrot.slane %v5836, 2
  %v6778 = vsel %vm1026, %v6775, %v6777
  %v6779 = vrot.slane %v5837, 2
  %v6780 = vsel %vm1026, %v6777, %v6779
  %v6781 = vrot.slane %v5838, 2
  %v6782 = vsel %vm1026, %v6779, %v6781
  %v6783 = vrot.slane %v5839, 2
  %v6784 = vsel %vm1026, %v6781, %v6783
  %v6785 = vrot.slane %v5840, 2
  %v6786 = vsel %vm1026, %v6783, %v6785
  %v6787 = vrot.slane %v5841, 2
  %v6788 = vsel %vm1026, %v6785, %v6787
  %v6789 = vrot.slane %v5842, 2
  %v6790 = vsel %vm1026, %v6787, %v6789
  %v6791 = vrot.slane %v5843, 2
  %v6792 = vsel %vm1026, %v6789, %v6791
  %v6793 = vrot.slane %v5844, 2
  %v6794 = vsel %vm1026, %v6791, %v6793
  %v6795 = vrot.slane %v5845, 2
  %v6796 = vsel %vm1026, %v6793, %v6795
  %v6797 = vrot.slane %v5846, 2
  %v6798 = vsel %vm1026, %v6795, %v6797
  %v6799 = vrot.slane %v5847, 2
  %v6800 = vsel %vm1026, %v6797, %v6799
  %v6801 = vrot.slane %v5848, 2
  %v6802 = vsel %vm1026, %v6799, %v6801
  %v6803 = vrot.slane %v5849, 2
  %v6804 = vsel %vm1026, %v6801, %v6803
  %v6805 = vrot.slane %v5850, 2
  %v6806 = vsel %vm1026, %v6803, %v6805
  %v6807 = vrot.slane %v5851, 2
  %v6808 = vsel %vm1026, %v6805, %v6807
  %v6809 = vrot.slane %v5852, 2
  %v6810 = vsel %vm1026, %v6807, %v6809
  %v6811 = vrot.slane %v5853, 2
  %v6812 = vsel %vm1026, %v6809, %v6811
  %v6813 = vrot.slane %v5854, 2
  %v6814 = vsel %vm1026, %v6811, %v6813
  %v6815 = vrot.slane %v5855, 2
  %v6816 = vsel %vm1026, %v6813, %v6815
  %v6817 = vrot.slane %v5856, 2
  %v6818 = vsel %vm1026, %v6815, %v6817
  %v6819 = vrot.slane %v5857, 2
  %v6820 = vsel %vm1026, %v6817, %v6819
  %v6821 = vrot.slane %v5858, 2
  %v6822 = vsel %vm1026, %v6819, %v6821
  %v6823 = vrot.slane %v5859, 2
  %v6824 = vsel %vm1026, %v6821, %v6823
  %v6825 = vrot.slane %v5860, 2
  %v6826 = vsel %vm1026, %v6823, %v6825
  %v6827 = vrot.slane %v5861, 2
  %v6828 = vsel %vm1026, %v6825, %v6827
  %v6829 = vrot.slane %v5862, 2
  %v6830 = vsel %vm1026, %v6827, %v6829
  %v6831 = vrot.slane %v5863, 2
  %v6832 = vsel %vm1026, %v6829, %v6831
  %v6833 = vrot.slane %v5864, 2
  %v6834 = vsel %vm1026, %v6831, %v6833
  %v6835 = vrot.slane %v5865, 2
  %v6836 = vsel %vm1026, %v6833, %v6835
  %v6837 = vrot.slane %v5866, 2
  %v6838 = vsel %vm1026, %v6835, %v6837
  %v6839 = vrot.slane %v5867, 2
  %v6840 = vsel %vm1026, %v6837, %v6839
  %v6841 = vrot.slane %v5868, 2
  %v6842 = vsel %vm1026, %v6839, %v6841
  %v6843 = vrot.slane %v5869, 2
  %v6844 = vsel %vm1026, %v6841, %v6843
  %v6845 = vrot.slane %v5870, 2
  %v6846 = vsel %vm1026, %v6843, %v6845
  %v6847 = vrot.slane %v5871, 2
  %v6848 = vsel %vm1026, %v6845, %v6847
  %v6849 = vrot.slane %v5872, 2
  %v6850 = vsel %vm1026, %v6847, %v6849
  %v6851 = vrot.slane %v5873, 2
  %v6852 = vsel %vm1026, %v6849, %v6851
  %v6853 = vrot.slane %v5874, 2
  %v6854 = vsel %vm1026, %v6851, %v6853
  %v6855 = vrot.slane %v5875, 2
  %v6856 = vsel %vm1026, %v6853, %v6855
  %v6857 = vrot.slane %v5876, 2
  %v6858 = vsel %vm1026, %v6855, %v6857
  %v6859 = vrot.slane %v5877, 2
  %v6860 = vsel %vm1026, %v6857, %v6859
  %v6861 = vrot.slane %v5878, 2
  %v6862 = vsel %vm1026, %v6859, %v6861
  %v6863 = vrot.slane %v5879, 2
  %v6864 = vsel %vm1026, %v6861, %v6863
  %v6865 = vrot.slane %v5880, 2
  %v6866 = vsel %vm1026, %v6863, %v6865
  %v6868 = vrot.slane %v5800, 2
  %v6869 = vrot.slane %v5801, 2
  %v6870 = vsel %vm1026, %v6868, %v6869
  %v6871 = vsel %vm1026, %v6869, %v6710
  %v6873 = vsel %vm1026, %v6865, %v6868
  %v6874 = vrot.slane %v5802, 3
  %v6875 = vrot.slane %v5803, 3
  %v6876 = vsel %vm1191, %v6874, %v6875
  %v6877 = vrot.slane %v5804, 3
  %v6878 = vsel %vm1191, %v6875, %v6877
  %v6879 = vrot.slane %v5805, 3
  %v6880 = vsel %vm1191, %v6877, %v6879
  %v6881 = vrot.slane %v5806, 3
  %v6882 = vsel %vm1191, %v6879, %v6881
  %v6883 = vrot.slane %v5807, 3
  %v6884 = vsel %vm1191, %v6881, %v6883
  %v6885 = vrot.slane %v5808, 3
  %v6886 = vsel %vm1191, %v6883, %v6885
  %v6887 = vrot.slane %v5809, 3
  %v6888 = vsel %vm1191, %v6885, %v6887
  %v6889 = vrot.slane %v5810, 3
  %v6890 = vsel %vm1191, %v6887, %v6889
  %v6891 = vrot.slane %v5811, 3
  %v6892 = vsel %vm1191, %v6889, %v6891
  %v6893 = vrot.slane %v5812, 3
  %v6894 = vsel %vm1191, %v6891, %v6893
  %v6895 = vrot.slane %v5813, 3
  %v6896 = vsel %vm1191, %v6893, %v6895
  %v6897 = vrot.slane %v5814, 3
  %v6898 = vsel %vm1191, %v6895, %v6897
  %v6899 = vrot.slane %v5815, 3
  %v6900 = vsel %vm1191, %v6897, %v6899
  %v6901 = vrot.slane %v5816, 3
  %v6902 = vsel %vm1191, %v6899, %v6901
  %v6903 = vrot.slane %v5817, 3
  %v6904 = vsel %vm1191, %v6901, %v6903
  %v6905 = vrot.slane %v5818, 3
  %v6906 = vsel %vm1191, %v6903, %v6905
  %v6907 = vrot.slane %v5819, 3
  %v6908 = vsel %vm1191, %v6905, %v6907
  %v6909 = vrot.slane %v5820, 3
  %v6910 = vsel %vm1191, %v6907, %v6909
  %v6911 = vrot.slane %v5821, 3
  %v6912 = vsel %vm1191, %v6909, %v6911
  %v6913 = vrot.slane %v5822, 3
  %v6914 = vsel %vm1191, %v6911, %v6913
  %v6915 = vrot.slane %v5823, 3
  %v6916 = vsel %vm1191, %v6913, %v6915
  %v6917 = vrot.slane %v5824, 3
  %v6918 = vsel %vm1191, %v6915, %v6917
  %v6919 = vrot.slane %v5825, 3
  %v6920 = vsel %vm1191, %v6917, %v6919
  %v6921 = vrot.slane %v5826, 3
  %v6922 = vsel %vm1191, %v6919, %v6921
  %v6923 = vrot.slane %v5827, 3
  %v6924 = vsel %vm1191, %v6921, %v6923
  %v6925 = vrot.slane %v5828, 3
  %v6926 = vsel %vm1191, %v6923, %v6925
  %v6927 = vrot.slane %v5829, 3
  %v6928 = vsel %vm1191, %v6925, %v6927
  %v6929 = vrot.slane %v5830, 3
  %v6930 = vsel %vm1191, %v6927, %v6929
  %v6931 = vrot.slane %v5831, 3
  %v6932 = vsel %vm1191, %v6929, %v6931
  %v6933 = vrot.slane %v5832, 3
  %v6934 = vsel %vm1191, %v6931, %v6933
  %v6935 = vrot.slane %v5833, 3
  %v6936 = vsel %vm1191, %v6933, %v6935
  %v6937 = vrot.slane %v5834, 3
  %v6938 = vsel %vm1191, %v6935, %v6937
  %v6939 = vrot.slane %v5835, 3
  %v6940 = vsel %vm1191, %v6937, %v6939
  %v6941 = vrot.slane %v5836, 3
  %v6942 = vsel %vm1191, %v6939, %v6941
  %v6943 = vrot.slane %v5837, 3
  %v6944 = vsel %vm1191, %v6941, %v6943
  %v6945 = vrot.slane %v5838, 3
  %v6946 = vsel %vm1191, %v6943, %v6945
  %v6947 = vrot.slane %v5839, 3
  %v6948 = vsel %vm1191, %v6945, %v6947
  %v6949 = vrot.slane %v5840, 3
  %v6950 = vsel %vm1191, %v6947, %v6949
  %v6951 = vrot.slane %v5841, 3
  %v6952 = vsel %vm1191, %v6949, %v6951
  %v6953 = vrot.slane %v5842, 3
  %v6954 = vsel %vm1191, %v6951, %v6953
  %v6955 = vrot.slane %v5843, 3
  %v6956 = vsel %vm1191, %v6953, %v6955
  %v6957 = vrot.slane %v5844, 3
  %v6958 = vsel %vm1191, %v6955, %v6957
  %v6959 = vrot.slane %v5845, 3
  %v6960 = vsel %vm1191, %v6957, %v6959
  %v6961 = vrot.slane %v5846, 3
  %v6962 = vsel %vm1191, %v6959, %v6961
  %v6963 = vrot.slane %v5847, 3
  %v6964 = vsel %vm1191, %v6961, %v6963
  %v6965 = vrot.slane %v5848, 3
  %v6966 = vsel %vm1191, %v6963, %v6965
  %v6967 = vrot.slane %v5849, 3
  %v6968 = vsel %vm1191, %v6965, %v6967
  %v6969 = vrot.slane %v5850, 3
  %v6970 = vsel %vm1191, %v6967, %v6969
  %v6971 = vrot.slane %v5851, 3
  %v6972 = vsel %vm1191, %v6969, %v6971
  %v6973 = vrot.slane %v5852, 3
  %v6974 = vsel %vm1191, %v6971, %v6973
  %v6975 = vrot.slane %v5853, 3
  %v6976 = vsel %vm1191, %v6973, %v6975
  %v6977 = vrot.slane %v5854, 3
  %v6978 = vsel %vm1191, %v6975, %v6977
  %v6979 = vrot.slane %v5855, 3
  %v6980 = vsel %vm1191, %v6977, %v6979
  %v6981 = vrot.slane %v5856, 3
  %v6982 = vsel %vm1191, %v6979, %v6981
  %v6983 = vrot.slane %v5857, 3
  %v6984 = vsel %vm1191, %v6981, %v6983
  %v6985 = vrot.slane %v5858, 3
  %v6986 = vsel %vm1191, %v6983, %v6985
  %v6987 = vrot.slane %v5859, 3
  %v6988 = vsel %vm1191, %v6985, %v6987
  %v6989 = vrot.slane %v5860, 3
  %v6990 = vsel %vm1191, %v6987, %v6989
  %v6991 = vrot.slane %v5861, 3
  %v6992 = vsel %vm1191, %v6989, %v6991
  %v6993 = vrot.slane %v5862, 3
  %v6994 = vsel %vm1191, %v6991, %v6993
  %v6995 = vrot.slane %v5863, 3
  %v6996 = vsel %vm1191, %v6993, %v6995
  %v6997 = vrot.slane %v5864, 3
  %v6998 = vsel %vm1191, %v6995, %v6997
  %v6999 = vrot.slane %v5865, 3
  %v7000 = vsel %vm1191, %v6997, %v6999
  %v7001 = vrot.slane %v5866, 3
  %v7002 = vsel %vm1191, %v6999, %v7001
  %v7003 = vrot.slane %v5867, 3
  %v7004 = vsel %vm1191, %v7001, %v7003
  %v7005 = vrot.slane %v5868, 3
  %v7006 = vsel %vm1191, %v7003, %v7005
  %v7007 = vrot.slane %v5869, 3
  %v7008 = vsel %vm1191, %v7005, %v7007
  %v7009 = vrot.slane %v5870, 3
  %v7010 = vsel %vm1191, %v7007, %v7009
  %v7011 = vrot.slane %v5871, 3
  %v7012 = vsel %vm1191, %v7009, %v7011
  %v7013 = vrot.slane %v5872, 3
  %v7014 = vsel %vm1191, %v7011, %v7013
  %v7015 = vrot.slane %v5873, 3
  %v7016 = vsel %vm1191, %v7013, %v7015
  %v7017 = vrot.slane %v5874, 3
  %v7018 = vsel %vm1191, %v7015, %v7017
  %v7019 = vrot.slane %v5875, 3
  %v7020 = vsel %vm1191, %v7017, %v7019
  %v7021 = vrot.slane %v5876, 3
  %v7022 = vsel %vm1191, %v7019, %v7021
  %v7023 = vrot.slane %v5877, 3
  %v7024 = vsel %vm1191, %v7021, %v7023
  %v7025 = vrot.slane %v5878, 3
  %v7026 = vsel %vm1191, %v7023, %v7025
  %v7027 = vrot.slane %v5879, 3
  %v7028 = vsel %vm1191, %v7025, %v7027
  %v7029 = vrot.slane %v5880, 3
  %v7030 = vsel %vm1191, %v7027, %v7029
  %v7032 = vrot.slane %v5800, 3
  %v7033 = vrot.slane %v5801, 3
  %v7034 = vsel %vm1191, %v7032, %v7033
  %v7035 = vsel %vm1191, %v7033, %v6874
  %v7037 = vsel %vm1191, %v7029, %v7032
  %7039 = vrot.lane.b32.xlu0 %v6220, 8
  %v7040 = vpop.permute.xlu0 %7039
  %7041 = vrot.lane.b32.xlu0 %v6222, 8
  %v7042 = vpop.permute.xlu0 %7041
  %7043 = vrot.lane.b32.xlu0 %v6381, 8
  %v7044 = vpop.permute.xlu0 %7043
  %7045 = vrot.lane.b32.xlu0 %v6226, 8
  %v7046 = vpop.permute.xlu0 %7045
  %7047 = vrot.lane.b32.xlu0 %v6228, 8
  %v7048 = vpop.permute.xlu0 %7047
  %7049 = vrot.lane.b32.xlu0 %v6230, 8
  %v7050 = vpop.permute.xlu0 %7049
  %7051 = vrot.lane.b32.xlu0 %v6232, 8
  %v7052 = vpop.permute.xlu0 %7051
  %7053 = vrot.lane.b32.xlu0 %v6234, 8
  %v7054 = vpop.permute.xlu0 %7053
  %7055 = vrot.lane.b32.xlu0 %v6236, 8
  %v7056 = vpop.permute.xlu0 %7055
  %7057 = vrot.lane.b32.xlu0 %v6238, 8
  %v7058 = vpop.permute.xlu0 %7057
  %7059 = vrot.lane.b32.xlu0 %v6240, 8
  %v7060 = vpop.permute.xlu0 %7059
  %7061 = vrot.lane.b32.xlu0 %v6242, 8
  %v7062 = vpop.permute.xlu0 %7061
  %7063 = vrot.lane.b32.xlu0 %v6244, 8
  %v7064 = vpop.permute.xlu0 %7063
  %7065 = vrot.lane.b32.xlu0 %v6246, 8
  %v7066 = vpop.permute.xlu0 %7065
  %7067 = vrot.lane.b32.xlu0 %v6248, 8
  %v7068 = vpop.permute.xlu0 %7067
  %7069 = vrot.lane.b32.xlu0 %v6250, 8
  %v7070 = vpop.permute.xlu0 %7069
  %7071 = vrot.lane.b32.xlu0 %v6252, 8
  %v7072 = vpop.permute.xlu0 %7071
  %7073 = vrot.lane.b32.xlu0 %v6254, 8
  %v7074 = vpop.permute.xlu0 %7073
  %7075 = vrot.lane.b32.xlu0 %v6256, 8
  %v7076 = vpop.permute.xlu0 %7075
  %7077 = vrot.lane.b32.xlu0 %v6258, 8
  %v7078 = vpop.permute.xlu0 %7077
  %7079 = vrot.lane.b32.xlu0 %v6260, 8
  %v7080 = vpop.permute.xlu0 %7079
  %7081 = vrot.lane.b32.xlu0 %v6262, 8
  %v7082 = vpop.permute.xlu0 %7081
  %7083 = vrot.lane.b32.xlu0 %v6264, 8
  %v7084 = vpop.permute.xlu0 %7083
  %7085 = vrot.lane.b32.xlu0 %v6266, 8
  %v7086 = vpop.permute.xlu0 %7085
  %7087 = vrot.lane.b32.xlu0 %v6268, 8
  %v7088 = vpop.permute.xlu0 %7087
  %7089 = vrot.lane.b32.xlu0 %v6270, 8
  %v7090 = vpop.permute.xlu0 %7089
  %7091 = vrot.lane.b32.xlu0 %v6272, 8
  %v7092 = vpop.permute.xlu0 %7091
  %7093 = vrot.lane.b32.xlu0 %v6274, 8
  %v7094 = vpop.permute.xlu0 %7093
  %7095 = vrot.lane.b32.xlu0 %v6276, 8
  %v7096 = vpop.permute.xlu0 %7095
  %7097 = vrot.lane.b32.xlu0 %v6278, 8
  %v7098 = vpop.permute.xlu0 %7097
  %7099 = vrot.lane.b32.xlu0 %v6280, 8
  %v7100 = vpop.permute.xlu0 %7099
  %7101 = vrot.lane.b32.xlu0 %v6282, 8
  %v7102 = vpop.permute.xlu0 %7101
  %7103 = vrot.lane.b32.xlu0 %v6284, 8
  %v7104 = vpop.permute.xlu0 %7103
  %7105 = vrot.lane.b32.xlu0 %v6286, 8
  %v7106 = vpop.permute.xlu0 %7105
  %7107 = vrot.lane.b32.xlu0 %v6288, 8
  %v7108 = vpop.permute.xlu0 %7107
  %7109 = vrot.lane.b32.xlu0 %v6290, 8
  %v7110 = vpop.permute.xlu0 %7109
  %7111 = vrot.lane.b32.xlu0 %v6292, 8
  %v7112 = vpop.permute.xlu0 %7111
  %7113 = vrot.lane.b32.xlu0 %v6294, 8
  %v7114 = vpop.permute.xlu0 %7113
  %7115 = vrot.lane.b32.xlu0 %v6296, 8
  %v7116 = vpop.permute.xlu0 %7115
  %7117 = vrot.lane.b32.xlu0 %v6298, 8
  %v7118 = vpop.permute.xlu0 %7117
  %7119 = vrot.lane.b32.xlu0 %v6300, 8
  %v7120 = vpop.permute.xlu0 %7119
  %7121 = vrot.lane.b32.xlu0 %v6302, 8
  %v7122 = vpop.permute.xlu0 %7121
  %7123 = vrot.lane.b32.xlu0 %v6304, 8
  %v7124 = vpop.permute.xlu0 %7123
  %7125 = vrot.lane.b32.xlu0 %v6306, 8
  %v7126 = vpop.permute.xlu0 %7125
  %7127 = vrot.lane.b32.xlu0 %v6308, 8
  %v7128 = vpop.permute.xlu0 %7127
  %7129 = vrot.lane.b32.xlu0 %v6310, 8
  %v7130 = vpop.permute.xlu0 %7129
  %7131 = vrot.lane.b32.xlu0 %v6312, 8
  %v7132 = vpop.permute.xlu0 %7131
  %7133 = vrot.lane.b32.xlu0 %v6314, 8
  %v7134 = vpop.permute.xlu0 %7133
  %7135 = vrot.lane.b32.xlu0 %v6316, 8
  %v7136 = vpop.permute.xlu0 %7135
  %7137 = vrot.lane.b32.xlu0 %v6318, 8
  %v7138 = vpop.permute.xlu0 %7137
  %7139 = vrot.lane.b32.xlu0 %v6320, 8
  %v7140 = vpop.permute.xlu0 %7139
  %7141 = vrot.lane.b32.xlu0 %v6322, 8
  %v7142 = vpop.permute.xlu0 %7141
  %7143 = vrot.lane.b32.xlu0 %v6324, 8
  %v7144 = vpop.permute.xlu0 %7143
  %7145 = vrot.lane.b32.xlu0 %v6326, 8
  %v7146 = vpop.permute.xlu0 %7145
  %7147 = vrot.lane.b32.xlu0 %v6328, 8
  %v7148 = vpop.permute.xlu0 %7147
  %7149 = vrot.lane.b32.xlu0 %v6330, 8
  %v7150 = vpop.permute.xlu0 %7149
  %7151 = vrot.lane.b32.xlu0 %v6332, 8
  %v7152 = vpop.permute.xlu0 %7151
  %7153 = vrot.lane.b32.xlu0 %v6334, 8
  %v7154 = vpop.permute.xlu0 %7153
  %7155 = vrot.lane.b32.xlu0 %v6336, 8
  %v7156 = vpop.permute.xlu0 %7155
  %7157 = vrot.lane.b32.xlu0 %v6338, 8
  %v7158 = vpop.permute.xlu0 %7157
  %7159 = vrot.lane.b32.xlu0 %v6340, 8
  %v7160 = vpop.permute.xlu0 %7159
  %7161 = vrot.lane.b32.xlu0 %v6342, 8
  %v7162 = vpop.permute.xlu0 %7161
  %7163 = vrot.lane.b32.xlu0 %v6344, 8
  %v7164 = vpop.permute.xlu0 %7163
  %7165 = vrot.lane.b32.xlu0 %v6346, 8
  %v7166 = vpop.permute.xlu0 %7165
  %7167 = vrot.lane.b32.xlu0 %v6348, 8
  %v7168 = vpop.permute.xlu0 %7167
  %7169 = vrot.lane.b32.xlu0 %v6350, 8
  %v7170 = vpop.permute.xlu0 %7169
  %7171 = vrot.lane.b32.xlu0 %v6352, 8
  %v7172 = vpop.permute.xlu0 %7171
  %7173 = vrot.lane.b32.xlu0 %v6354, 8
  %v7174 = vpop.permute.xlu0 %7173
  %7175 = vrot.lane.b32.xlu0 %v6356, 8
  %v7176 = vpop.permute.xlu0 %7175
  %7177 = vrot.lane.b32.xlu0 %v6358, 8
  %v7178 = vpop.permute.xlu0 %7177
  %7179 = vrot.lane.b32.xlu0 %v6360, 8
  %v7180 = vpop.permute.xlu0 %7179
  %7181 = vrot.lane.b32.xlu0 %v6362, 8
  %v7182 = vpop.permute.xlu0 %7181
  %7183 = vrot.lane.b32.xlu0 %v6364, 8
  %v7184 = vpop.permute.xlu0 %7183
  %7185 = vrot.lane.b32.xlu0 %v6366, 8
  %v7186 = vpop.permute.xlu0 %7185
  %7187 = vrot.lane.b32.xlu0 %v6368, 8
  %v7188 = vpop.permute.xlu0 %7187
  %7189 = vrot.lane.b32.xlu0 %v6370, 8
  %v7190 = vpop.permute.xlu0 %7189
  %7191 = vrot.lane.b32.xlu0 %v6372, 8
  %v7192 = vpop.permute.xlu0 %7191
  %7193 = vrot.lane.b32.xlu0 %v6374, 8
  %v7194 = vpop.permute.xlu0 %7193
  %7195 = vrot.lane.b32.xlu0 %v6376, 8
  %v7196 = vpop.permute.xlu0 %7195
  %7197 = vrot.lane.b32.xlu0 %v6378, 8
  %v7198 = vpop.permute.xlu0 %7197
  %7199 = vrot.lane.b32.xlu0 %v6379, 8
  %v7200 = vpop.permute.xlu0 %7199
  %7283 = vrot.lane.b32.xlu0 %v6384, 16
  %v7284 = vpop.permute.xlu0 %7283
  %7285 = vrot.lane.b32.xlu0 %v6386, 16
  %v7286 = vpop.permute.xlu0 %7285
  %7287 = vrot.lane.b32.xlu0 %v6545, 16
  %v7288 = vpop.permute.xlu0 %7287
  %7289 = vrot.lane.b32.xlu0 %v6390, 16
  %v7290 = vpop.permute.xlu0 %7289
  %7291 = vrot.lane.b32.xlu0 %v6392, 16
  %v7292 = vpop.permute.xlu0 %7291
  %7293 = vrot.lane.b32.xlu0 %v6394, 16
  %v7294 = vpop.permute.xlu0 %7293
  %7295 = vrot.lane.b32.xlu0 %v6396, 16
  %v7296 = vpop.permute.xlu0 %7295
  %7297 = vrot.lane.b32.xlu0 %v6398, 16
  %v7298 = vpop.permute.xlu0 %7297
  %7299 = vrot.lane.b32.xlu0 %v6400, 16
  %v7300 = vpop.permute.xlu0 %7299
  %7301 = vrot.lane.b32.xlu0 %v6402, 16
  %v7302 = vpop.permute.xlu0 %7301
  %7303 = vrot.lane.b32.xlu0 %v6404, 16
  %v7304 = vpop.permute.xlu0 %7303
  %7305 = vrot.lane.b32.xlu0 %v6406, 16
  %v7306 = vpop.permute.xlu0 %7305
  %7307 = vrot.lane.b32.xlu0 %v6408, 16
  %v7308 = vpop.permute.xlu0 %7307
  %7309 = vrot.lane.b32.xlu0 %v6410, 16
  %v7310 = vpop.permute.xlu0 %7309
  %7311 = vrot.lane.b32.xlu0 %v6412, 16
  %v7312 = vpop.permute.xlu0 %7311
  %7313 = vrot.lane.b32.xlu0 %v6414, 16
  %v7314 = vpop.permute.xlu0 %7313
  %7315 = vrot.lane.b32.xlu0 %v6416, 16
  %v7316 = vpop.permute.xlu0 %7315
  %7317 = vrot.lane.b32.xlu0 %v6418, 16
  %v7318 = vpop.permute.xlu0 %7317
  %7319 = vrot.lane.b32.xlu0 %v6420, 16
  %v7320 = vpop.permute.xlu0 %7319
  %7321 = vrot.lane.b32.xlu0 %v6422, 16
  %v7322 = vpop.permute.xlu0 %7321
  %7323 = vrot.lane.b32.xlu0 %v6424, 16
  %v7324 = vpop.permute.xlu0 %7323
  %7325 = vrot.lane.b32.xlu0 %v6426, 16
  %v7326 = vpop.permute.xlu0 %7325
  %7327 = vrot.lane.b32.xlu0 %v6428, 16
  %v7328 = vpop.permute.xlu0 %7327
  %7329 = vrot.lane.b32.xlu0 %v6430, 16
  %v7330 = vpop.permute.xlu0 %7329
  %7331 = vrot.lane.b32.xlu0 %v6432, 16
  %v7332 = vpop.permute.xlu0 %7331
  %7333 = vrot.lane.b32.xlu0 %v6434, 16
  %v7334 = vpop.permute.xlu0 %7333
  %7335 = vrot.lane.b32.xlu0 %v6436, 16
  %v7336 = vpop.permute.xlu0 %7335
  %7337 = vrot.lane.b32.xlu0 %v6438, 16
  %v7338 = vpop.permute.xlu0 %7337
  %7339 = vrot.lane.b32.xlu0 %v6440, 16
  %v7340 = vpop.permute.xlu0 %7339
  %7341 = vrot.lane.b32.xlu0 %v6442, 16
  %v7342 = vpop.permute.xlu0 %7341
  %7343 = vrot.lane.b32.xlu0 %v6444, 16
  %v7344 = vpop.permute.xlu0 %7343
  %7345 = vrot.lane.b32.xlu0 %v6446, 16
  %v7346 = vpop.permute.xlu0 %7345
  %7347 = vrot.lane.b32.xlu0 %v6448, 16
  %v7348 = vpop.permute.xlu0 %7347
  %7349 = vrot.lane.b32.xlu0 %v6450, 16
  %v7350 = vpop.permute.xlu0 %7349
  %7351 = vrot.lane.b32.xlu0 %v6452, 16
  %v7352 = vpop.permute.xlu0 %7351
  %7353 = vrot.lane.b32.xlu0 %v6454, 16
  %v7354 = vpop.permute.xlu0 %7353
  %7355 = vrot.lane.b32.xlu0 %v6456, 16
  %v7356 = vpop.permute.xlu0 %7355
  %7357 = vrot.lane.b32.xlu0 %v6458, 16
  %v7358 = vpop.permute.xlu0 %7357
  %7359 = vrot.lane.b32.xlu0 %v6460, 16
  %v7360 = vpop.permute.xlu0 %7359
  %7361 = vrot.lane.b32.xlu0 %v6462, 16
  %v7362 = vpop.permute.xlu0 %7361
  %7363 = vrot.lane.b32.xlu0 %v6464, 16
  %v7364 = vpop.permute.xlu0 %7363
  %7365 = vrot.lane.b32.xlu0 %v6466, 16
  %v7366 = vpop.permute.xlu0 %7365
  %7367 = vrot.lane.b32.xlu0 %v6468, 16
  %v7368 = vpop.permute.xlu0 %7367
  %7369 = vrot.lane.b32.xlu0 %v6470, 16
  %v7370 = vpop.permute.xlu0 %7369
  %7371 = vrot.lane.b32.xlu0 %v6472, 16
  %v7372 = vpop.permute.xlu0 %7371
  %7373 = vrot.lane.b32.xlu0 %v6474, 16
  %v7374 = vpop.permute.xlu0 %7373
  %7375 = vrot.lane.b32.xlu0 %v6476, 16
  %v7376 = vpop.permute.xlu0 %7375
  %7377 = vrot.lane.b32.xlu0 %v6478, 16
  %v7378 = vpop.permute.xlu0 %7377
  %7379 = vrot.lane.b32.xlu0 %v6480, 16
  %v7380 = vpop.permute.xlu0 %7379
  %7381 = vrot.lane.b32.xlu0 %v6482, 16
  %v7382 = vpop.permute.xlu0 %7381
  %7383 = vrot.lane.b32.xlu0 %v6484, 16
  %v7384 = vpop.permute.xlu0 %7383
  %7385 = vrot.lane.b32.xlu0 %v6486, 16
  %v7386 = vpop.permute.xlu0 %7385
  %7387 = vrot.lane.b32.xlu0 %v6488, 16
  %v7388 = vpop.permute.xlu0 %7387
  %7389 = vrot.lane.b32.xlu0 %v6490, 16
  %v7390 = vpop.permute.xlu0 %7389
  %7391 = vrot.lane.b32.xlu0 %v6492, 16
  %v7392 = vpop.permute.xlu0 %7391
  %7393 = vrot.lane.b32.xlu0 %v6494, 16
  %v7394 = vpop.permute.xlu0 %7393
  %7395 = vrot.lane.b32.xlu0 %v6496, 16
  %v7396 = vpop.permute.xlu0 %7395
  %7397 = vrot.lane.b32.xlu0 %v6498, 16
  %v7398 = vpop.permute.xlu0 %7397
  %7399 = vrot.lane.b32.xlu0 %v6500, 16
  %v7400 = vpop.permute.xlu0 %7399
  %7401 = vrot.lane.b32.xlu0 %v6502, 16
  %v7402 = vpop.permute.xlu0 %7401
  %7403 = vrot.lane.b32.xlu0 %v6504, 16
  %v7404 = vpop.permute.xlu0 %7403
  %7405 = vrot.lane.b32.xlu0 %v6506, 16
  %v7406 = vpop.permute.xlu0 %7405
  %7407 = vrot.lane.b32.xlu0 %v6508, 16
  %v7408 = vpop.permute.xlu0 %7407
  %7409 = vrot.lane.b32.xlu0 %v6510, 16
  %v7410 = vpop.permute.xlu0 %7409
  %7411 = vrot.lane.b32.xlu0 %v6512, 16
  %v7412 = vpop.permute.xlu0 %7411
  %7413 = vrot.lane.b32.xlu0 %v6514, 16
  %v7414 = vpop.permute.xlu0 %7413
  %7415 = vrot.lane.b32.xlu0 %v6516, 16
  %v7416 = vpop.permute.xlu0 %7415
  %7417 = vrot.lane.b32.xlu0 %v6518, 16
  %v7418 = vpop.permute.xlu0 %7417
  %7419 = vrot.lane.b32.xlu0 %v6520, 16
  %v7420 = vpop.permute.xlu0 %7419
  %7421 = vrot.lane.b32.xlu0 %v6522, 16
  %v7422 = vpop.permute.xlu0 %7421
  %7423 = vrot.lane.b32.xlu0 %v6524, 16
  %v7424 = vpop.permute.xlu0 %7423
  %7425 = vrot.lane.b32.xlu0 %v6526, 16
  %v7426 = vpop.permute.xlu0 %7425
  %7427 = vrot.lane.b32.xlu0 %v6528, 16
  %v7428 = vpop.permute.xlu0 %7427
  %7429 = vrot.lane.b32.xlu0 %v6530, 16
  %v7430 = vpop.permute.xlu0 %7429
  %7431 = vrot.lane.b32.xlu0 %v6532, 16
  %v7432 = vpop.permute.xlu0 %7431
  %7433 = vrot.lane.b32.xlu0 %v6534, 16
  %v7434 = vpop.permute.xlu0 %7433
  %7435 = vrot.lane.b32.xlu0 %v6536, 16
  %v7436 = vpop.permute.xlu0 %7435
  %7437 = vrot.lane.b32.xlu0 %v6538, 16
  %v7438 = vpop.permute.xlu0 %7437
  %7439 = vrot.lane.b32.xlu0 %v6540, 16
  %v7440 = vpop.permute.xlu0 %7439
  %7441 = vrot.lane.b32.xlu0 %v6542, 16
  %v7442 = vpop.permute.xlu0 %7441
  %7443 = vrot.lane.b32.xlu0 %v6543, 16
  %v7444 = vpop.permute.xlu0 %7443
  %7526 = vrot.lane.b32.xlu0 %v6545, 24
  %v7527 = vpop.permute.xlu0 %7526
  %7528 = vrot.lane.b32.xlu0 %v6390, 24
  %v7529 = vpop.permute.xlu0 %7528
  %7530 = vrot.lane.b32.xlu0 %v6392, 24
  %v7531 = vpop.permute.xlu0 %7530
  %7532 = vrot.lane.b32.xlu0 %v6394, 24
  %v7533 = vpop.permute.xlu0 %7532
  %7534 = vrot.lane.b32.xlu0 %v6396, 24
  %v7535 = vpop.permute.xlu0 %7534
  %7536 = vrot.lane.b32.xlu0 %v6398, 24
  %v7537 = vpop.permute.xlu0 %7536
  %7538 = vrot.lane.b32.xlu0 %v6400, 24
  %v7539 = vpop.permute.xlu0 %7538
  %7540 = vrot.lane.b32.xlu0 %v6402, 24
  %v7541 = vpop.permute.xlu0 %7540
  %7542 = vrot.lane.b32.xlu0 %v6404, 24
  %v7543 = vpop.permute.xlu0 %7542
  %7544 = vrot.lane.b32.xlu0 %v6406, 24
  %v7545 = vpop.permute.xlu0 %7544
  %7546 = vrot.lane.b32.xlu0 %v6408, 24
  %v7547 = vpop.permute.xlu0 %7546
  %7548 = vrot.lane.b32.xlu0 %v6410, 24
  %v7549 = vpop.permute.xlu0 %7548
  %7550 = vrot.lane.b32.xlu0 %v6412, 24
  %v7551 = vpop.permute.xlu0 %7550
  %7552 = vrot.lane.b32.xlu0 %v6414, 24
  %v7553 = vpop.permute.xlu0 %7552
  %7554 = vrot.lane.b32.xlu0 %v6416, 24
  %v7555 = vpop.permute.xlu0 %7554
  %7556 = vrot.lane.b32.xlu0 %v6418, 24
  %v7557 = vpop.permute.xlu0 %7556
  %7558 = vrot.lane.b32.xlu0 %v6420, 24
  %v7559 = vpop.permute.xlu0 %7558
  %7560 = vrot.lane.b32.xlu0 %v6422, 24
  %v7561 = vpop.permute.xlu0 %7560
  %7562 = vrot.lane.b32.xlu0 %v6424, 24
  %v7563 = vpop.permute.xlu0 %7562
  %7564 = vrot.lane.b32.xlu0 %v6426, 24
  %v7565 = vpop.permute.xlu0 %7564
  %7566 = vrot.lane.b32.xlu0 %v6428, 24
  %v7567 = vpop.permute.xlu0 %7566
  %7568 = vrot.lane.b32.xlu0 %v6430, 24
  %v7569 = vpop.permute.xlu0 %7568
  %7570 = vrot.lane.b32.xlu0 %v6432, 24
  %v7571 = vpop.permute.xlu0 %7570
  %7572 = vrot.lane.b32.xlu0 %v6434, 24
  %v7573 = vpop.permute.xlu0 %7572
  %7574 = vrot.lane.b32.xlu0 %v6436, 24
  %v7575 = vpop.permute.xlu0 %7574
  %7576 = vrot.lane.b32.xlu0 %v6438, 24
  %v7577 = vpop.permute.xlu0 %7576
  %7578 = vrot.lane.b32.xlu0 %v6440, 24
  %v7579 = vpop.permute.xlu0 %7578
  %7580 = vrot.lane.b32.xlu0 %v6442, 24
  %v7581 = vpop.permute.xlu0 %7580
  %7582 = vrot.lane.b32.xlu0 %v6444, 24
  %v7583 = vpop.permute.xlu0 %7582
  %7584 = vrot.lane.b32.xlu0 %v6446, 24
  %v7585 = vpop.permute.xlu0 %7584
  %7586 = vrot.lane.b32.xlu0 %v6448, 24
  %v7587 = vpop.permute.xlu0 %7586
  %7588 = vrot.lane.b32.xlu0 %v6450, 24
  %v7589 = vpop.permute.xlu0 %7588
  %7590 = vrot.lane.b32.xlu0 %v6452, 24
  %v7591 = vpop.permute.xlu0 %7590
  %7592 = vrot.lane.b32.xlu0 %v6454, 24
  %v7593 = vpop.permute.xlu0 %7592
  %7594 = vrot.lane.b32.xlu0 %v6456, 24
  %v7595 = vpop.permute.xlu0 %7594
  %7596 = vrot.lane.b32.xlu0 %v6458, 24
  %v7597 = vpop.permute.xlu0 %7596
  %7598 = vrot.lane.b32.xlu0 %v6460, 24
  %v7599 = vpop.permute.xlu0 %7598
  %7600 = vrot.lane.b32.xlu0 %v6462, 24
  %v7601 = vpop.permute.xlu0 %7600
  %7602 = vrot.lane.b32.xlu0 %v6464, 24
  %v7603 = vpop.permute.xlu0 %7602
  %7604 = vrot.lane.b32.xlu0 %v6466, 24
  %v7605 = vpop.permute.xlu0 %7604
  %7606 = vrot.lane.b32.xlu0 %v6468, 24
  %v7607 = vpop.permute.xlu0 %7606
  %7608 = vrot.lane.b32.xlu0 %v6470, 24
  %v7609 = vpop.permute.xlu0 %7608
  %7610 = vrot.lane.b32.xlu0 %v6472, 24
  %v7611 = vpop.permute.xlu0 %7610
  %7612 = vrot.lane.b32.xlu0 %v6474, 24
  %v7613 = vpop.permute.xlu0 %7612
  %7614 = vrot.lane.b32.xlu0 %v6476, 24
  %v7615 = vpop.permute.xlu0 %7614
  %7616 = vrot.lane.b32.xlu0 %v6478, 24
  %v7617 = vpop.permute.xlu0 %7616
  %7618 = vrot.lane.b32.xlu0 %v6480, 24
  %v7619 = vpop.permute.xlu0 %7618
  %7620 = vrot.lane.b32.xlu0 %v6482, 24
  %v7621 = vpop.permute.xlu0 %7620
  %7622 = vrot.lane.b32.xlu0 %v6484, 24
  %v7623 = vpop.permute.xlu0 %7622
  %7624 = vrot.lane.b32.xlu0 %v6486, 24
  %v7625 = vpop.permute.xlu0 %7624
  %7626 = vrot.lane.b32.xlu0 %v6488, 24
  %v7627 = vpop.permute.xlu0 %7626
  %7628 = vrot.lane.b32.xlu0 %v6490, 24
  %v7629 = vpop.permute.xlu0 %7628
  %7630 = vrot.lane.b32.xlu0 %v6492, 24
  %v7631 = vpop.permute.xlu0 %7630
  %7632 = vrot.lane.b32.xlu0 %v6494, 24
  %v7633 = vpop.permute.xlu0 %7632
  %7634 = vrot.lane.b32.xlu0 %v6496, 24
  %v7635 = vpop.permute.xlu0 %7634
  %7636 = vrot.lane.b32.xlu0 %v6498, 24
  %v7637 = vpop.permute.xlu0 %7636
  %7638 = vrot.lane.b32.xlu0 %v6500, 24
  %v7639 = vpop.permute.xlu0 %7638
  %7640 = vrot.lane.b32.xlu0 %v6502, 24
  %v7641 = vpop.permute.xlu0 %7640
  %7642 = vrot.lane.b32.xlu0 %v6504, 24
  %v7643 = vpop.permute.xlu0 %7642
  %7644 = vrot.lane.b32.xlu0 %v6506, 24
  %v7645 = vpop.permute.xlu0 %7644
  %7646 = vrot.lane.b32.xlu0 %v6508, 24
  %v7647 = vpop.permute.xlu0 %7646
  %7648 = vrot.lane.b32.xlu0 %v6510, 24
  %v7649 = vpop.permute.xlu0 %7648
  %7650 = vrot.lane.b32.xlu0 %v6512, 24
  %v7651 = vpop.permute.xlu0 %7650
  %7652 = vrot.lane.b32.xlu0 %v6514, 24
  %v7653 = vpop.permute.xlu0 %7652
  %7654 = vrot.lane.b32.xlu0 %v6516, 24
  %v7655 = vpop.permute.xlu0 %7654
  %7656 = vrot.lane.b32.xlu0 %v6518, 24
  %v7657 = vpop.permute.xlu0 %7656
  %7658 = vrot.lane.b32.xlu0 %v6520, 24
  %v7659 = vpop.permute.xlu0 %7658
  %7660 = vrot.lane.b32.xlu0 %v6522, 24
  %v7661 = vpop.permute.xlu0 %7660
  %7662 = vrot.lane.b32.xlu0 %v6524, 24
  %v7663 = vpop.permute.xlu0 %7662
  %7664 = vrot.lane.b32.xlu0 %v6526, 24
  %v7665 = vpop.permute.xlu0 %7664
  %7666 = vrot.lane.b32.xlu0 %v6528, 24
  %v7667 = vpop.permute.xlu0 %7666
  %7668 = vrot.lane.b32.xlu0 %v6530, 24
  %v7669 = vpop.permute.xlu0 %7668
  %7670 = vrot.lane.b32.xlu0 %v6532, 24
  %v7671 = vpop.permute.xlu0 %7670
  %7672 = vrot.lane.b32.xlu0 %v6534, 24
  %v7673 = vpop.permute.xlu0 %7672
  %7674 = vrot.lane.b32.xlu0 %v6536, 24
  %v7675 = vpop.permute.xlu0 %7674
  %7676 = vrot.lane.b32.xlu0 %v6538, 24
  %v7677 = vpop.permute.xlu0 %7676
  %7678 = vrot.lane.b32.xlu0 %v6540, 24
  %v7679 = vpop.permute.xlu0 %7678
  %7680 = vrot.lane.b32.xlu0 %v6542, 24
  %v7681 = vpop.permute.xlu0 %7680
  %7682 = vrot.lane.b32.xlu0 %v6543, 24
  %v7683 = vpop.permute.xlu0 %7682
  %7684 = vrot.lane.b32.xlu0 %v6384, 24
  %v7685 = vpop.permute.xlu0 %7684
  %7686 = vrot.lane.b32.xlu0 %v6386, 24
  %v7687 = vpop.permute.xlu0 %7686
  %7769 = vrot.lane.b32.xlu0 %v5800, 32
  %v7770 = vpop.permute.xlu0 %7769
  %7771 = vrot.lane.b32.xlu0 %v5801, 32
  %v7772 = vpop.permute.xlu0 %7771
  %7773 = vrot.lane.b32.xlu0 %v5802, 32
  %v7774 = vpop.permute.xlu0 %7773
  %7775 = vrot.lane.b32.xlu0 %v5803, 32
  %v7776 = vpop.permute.xlu0 %7775
  %7777 = vrot.lane.b32.xlu0 %v5804, 32
  %v7778 = vpop.permute.xlu0 %7777
  %7779 = vrot.lane.b32.xlu0 %v5805, 32
  %v7780 = vpop.permute.xlu0 %7779
  %7781 = vrot.lane.b32.xlu0 %v5806, 32
  %v7782 = vpop.permute.xlu0 %7781
  %7783 = vrot.lane.b32.xlu0 %v5807, 32
  %v7784 = vpop.permute.xlu0 %7783
  %7785 = vrot.lane.b32.xlu0 %v5808, 32
  %v7786 = vpop.permute.xlu0 %7785
  %7787 = vrot.lane.b32.xlu0 %v5809, 32
  %v7788 = vpop.permute.xlu0 %7787
  %7789 = vrot.lane.b32.xlu0 %v5810, 32
  %v7790 = vpop.permute.xlu0 %7789
  %7791 = vrot.lane.b32.xlu0 %v5811, 32
  %v7792 = vpop.permute.xlu0 %7791
  %7793 = vrot.lane.b32.xlu0 %v5812, 32
  %v7794 = vpop.permute.xlu0 %7793
  %7795 = vrot.lane.b32.xlu0 %v5813, 32
  %v7796 = vpop.permute.xlu0 %7795
  %7797 = vrot.lane.b32.xlu0 %v5814, 32
  %v7798 = vpop.permute.xlu0 %7797
  %7799 = vrot.lane.b32.xlu0 %v5815, 32
  %v7800 = vpop.permute.xlu0 %7799
  %7801 = vrot.lane.b32.xlu0 %v5816, 32
  %v7802 = vpop.permute.xlu0 %7801
  %7803 = vrot.lane.b32.xlu0 %v5817, 32
  %v7804 = vpop.permute.xlu0 %7803
  %7805 = vrot.lane.b32.xlu0 %v5818, 32
  %v7806 = vpop.permute.xlu0 %7805
  %7807 = vrot.lane.b32.xlu0 %v5819, 32
  %v7808 = vpop.permute.xlu0 %7807
  %7809 = vrot.lane.b32.xlu0 %v5820, 32
  %v7810 = vpop.permute.xlu0 %7809
  %7811 = vrot.lane.b32.xlu0 %v5821, 32
  %v7812 = vpop.permute.xlu0 %7811
  %7813 = vrot.lane.b32.xlu0 %v5822, 32
  %v7814 = vpop.permute.xlu0 %7813
  %7815 = vrot.lane.b32.xlu0 %v5823, 32
  %v7816 = vpop.permute.xlu0 %7815
  %7817 = vrot.lane.b32.xlu0 %v5824, 32
  %v7818 = vpop.permute.xlu0 %7817
  %7819 = vrot.lane.b32.xlu0 %v5825, 32
  %v7820 = vpop.permute.xlu0 %7819
  %7821 = vrot.lane.b32.xlu0 %v5826, 32
  %v7822 = vpop.permute.xlu0 %7821
  %7823 = vrot.lane.b32.xlu0 %v5827, 32
  %v7824 = vpop.permute.xlu0 %7823
  %7825 = vrot.lane.b32.xlu0 %v5828, 32
  %v7826 = vpop.permute.xlu0 %7825
  %7827 = vrot.lane.b32.xlu0 %v5829, 32
  %v7828 = vpop.permute.xlu0 %7827
  %7829 = vrot.lane.b32.xlu0 %v5830, 32
  %v7830 = vpop.permute.xlu0 %7829
  %7831 = vrot.lane.b32.xlu0 %v5831, 32
  %v7832 = vpop.permute.xlu0 %7831
  %7833 = vrot.lane.b32.xlu0 %v5832, 32
  %v7834 = vpop.permute.xlu0 %7833
  %7835 = vrot.lane.b32.xlu0 %v5833, 32
  %v7836 = vpop.permute.xlu0 %7835
  %7837 = vrot.lane.b32.xlu0 %v5834, 32
  %v7838 = vpop.permute.xlu0 %7837
  %7839 = vrot.lane.b32.xlu0 %v5835, 32
  %v7840 = vpop.permute.xlu0 %7839
  %7841 = vrot.lane.b32.xlu0 %v5836, 32
  %v7842 = vpop.permute.xlu0 %7841
  %7843 = vrot.lane.b32.xlu0 %v5837, 32
  %v7844 = vpop.permute.xlu0 %7843
  %7845 = vrot.lane.b32.xlu0 %v5838, 32
  %v7846 = vpop.permute.xlu0 %7845
  %7847 = vrot.lane.b32.xlu0 %v5839, 32
  %v7848 = vpop.permute.xlu0 %7847
  %7849 = vrot.lane.b32.xlu0 %v5840, 32
  %v7850 = vpop.permute.xlu0 %7849
  %7851 = vrot.lane.b32.xlu0 %v5841, 32
  %v7852 = vpop.permute.xlu0 %7851
  %7853 = vrot.lane.b32.xlu0 %v5842, 32
  %v7854 = vpop.permute.xlu0 %7853
  %7855 = vrot.lane.b32.xlu0 %v5843, 32
  %v7856 = vpop.permute.xlu0 %7855
  %7857 = vrot.lane.b32.xlu0 %v5844, 32
  %v7858 = vpop.permute.xlu0 %7857
  %7859 = vrot.lane.b32.xlu0 %v5845, 32
  %v7860 = vpop.permute.xlu0 %7859
  %7861 = vrot.lane.b32.xlu0 %v5846, 32
  %v7862 = vpop.permute.xlu0 %7861
  %7863 = vrot.lane.b32.xlu0 %v5847, 32
  %v7864 = vpop.permute.xlu0 %7863
  %7865 = vrot.lane.b32.xlu0 %v5848, 32
  %v7866 = vpop.permute.xlu0 %7865
  %7867 = vrot.lane.b32.xlu0 %v5849, 32
  %v7868 = vpop.permute.xlu0 %7867
  %7869 = vrot.lane.b32.xlu0 %v5850, 32
  %v7870 = vpop.permute.xlu0 %7869
  %7871 = vrot.lane.b32.xlu0 %v5851, 32
  %v7872 = vpop.permute.xlu0 %7871
  %7873 = vrot.lane.b32.xlu0 %v5852, 32
  %v7874 = vpop.permute.xlu0 %7873
  %7875 = vrot.lane.b32.xlu0 %v5853, 32
  %v7876 = vpop.permute.xlu0 %7875
  %7877 = vrot.lane.b32.xlu0 %v5854, 32
  %v7878 = vpop.permute.xlu0 %7877
  %7879 = vrot.lane.b32.xlu0 %v5855, 32
  %v7880 = vpop.permute.xlu0 %7879
  %7881 = vrot.lane.b32.xlu0 %v5856, 32
  %v7882 = vpop.permute.xlu0 %7881
  %7883 = vrot.lane.b32.xlu0 %v5857, 32
  %v7884 = vpop.permute.xlu0 %7883
  %7885 = vrot.lane.b32.xlu0 %v5858, 32
  %v7886 = vpop.permute.xlu0 %7885
  %7887 = vrot.lane.b32.xlu0 %v5859, 32
  %v7888 = vpop.permute.xlu0 %7887
  %7889 = vrot.lane.b32.xlu0 %v5860, 32
  %v7890 = vpop.permute.xlu0 %7889
  %7891 = vrot.lane.b32.xlu0 %v5861, 32
  %v7892 = vpop.permute.xlu0 %7891
  %7893 = vrot.lane.b32.xlu0 %v5862, 32
  %v7894 = vpop.permute.xlu0 %7893
  %7895 = vrot.lane.b32.xlu0 %v5863, 32
  %v7896 = vpop.permute.xlu0 %7895
  %7897 = vrot.lane.b32.xlu0 %v5864, 32
  %v7898 = vpop.permute.xlu0 %7897
  %7899 = vrot.lane.b32.xlu0 %v5865, 32
  %v7900 = vpop.permute.xlu0 %7899
  %7901 = vrot.lane.b32.xlu0 %v5866, 32
  %v7902 = vpop.permute.xlu0 %7901
  %7903 = vrot.lane.b32.xlu0 %v5867, 32
  %v7904 = vpop.permute.xlu0 %7903
  %7905 = vrot.lane.b32.xlu0 %v5868, 32
  %v7906 = vpop.permute.xlu0 %7905
  %7907 = vrot.lane.b32.xlu0 %v5869, 32
  %v7908 = vpop.permute.xlu0 %7907
  %7909 = vrot.lane.b32.xlu0 %v5870, 32
  %v7910 = vpop.permute.xlu0 %7909
  %7911 = vrot.lane.b32.xlu0 %v5871, 32
  %v7912 = vpop.permute.xlu0 %7911
  %7913 = vrot.lane.b32.xlu0 %v5872, 32
  %v7914 = vpop.permute.xlu0 %7913
  %7915 = vrot.lane.b32.xlu0 %v5873, 32
  %v7916 = vpop.permute.xlu0 %7915
  %7917 = vrot.lane.b32.xlu0 %v5874, 32
  %v7918 = vpop.permute.xlu0 %7917
  %7919 = vrot.lane.b32.xlu0 %v5875, 32
  %v7920 = vpop.permute.xlu0 %7919
  %7921 = vrot.lane.b32.xlu0 %v5876, 32
  %v7922 = vpop.permute.xlu0 %7921
  %7923 = vrot.lane.b32.xlu0 %v5877, 32
  %v7924 = vpop.permute.xlu0 %7923
  %7925 = vrot.lane.b32.xlu0 %v5878, 32
  %v7926 = vpop.permute.xlu0 %7925
  %7927 = vrot.lane.b32.xlu0 %v5879, 32
  %v7928 = vpop.permute.xlu0 %7927
  %7929 = vrot.lane.b32.xlu0 %v5880, 32
  %v7930 = vpop.permute.xlu0 %7929
  %8013 = vrot.lane.b32.xlu0 %v6548, 40
  %v8014 = vpop.permute.xlu0 %8013
  %8015 = vrot.lane.b32.xlu0 %v6550, 40
  %v8016 = vpop.permute.xlu0 %8015
  %8017 = vrot.lane.b32.xlu0 %v6552, 40
  %v8018 = vpop.permute.xlu0 %8017
  %8019 = vrot.lane.b32.xlu0 %v6554, 40
  %v8020 = vpop.permute.xlu0 %8019
  %8021 = vrot.lane.b32.xlu0 %v6556, 40
  %v8022 = vpop.permute.xlu0 %8021
  %8023 = vrot.lane.b32.xlu0 %v6558, 40
  %v8024 = vpop.permute.xlu0 %8023
  %8025 = vrot.lane.b32.xlu0 %v6560, 40
  %v8026 = vpop.permute.xlu0 %8025
  %8027 = vrot.lane.b32.xlu0 %v6562, 40
  %v8028 = vpop.permute.xlu0 %8027
  %8029 = vrot.lane.b32.xlu0 %v6564, 40
  %v8030 = vpop.permute.xlu0 %8029
  %8031 = vrot.lane.b32.xlu0 %v6566, 40
  %v8032 = vpop.permute.xlu0 %8031
  %8033 = vrot.lane.b32.xlu0 %v6568, 40
  %v8034 = vpop.permute.xlu0 %8033
  %8035 = vrot.lane.b32.xlu0 %v6570, 40
  %v8036 = vpop.permute.xlu0 %8035
  %8037 = vrot.lane.b32.xlu0 %v6572, 40
  %v8038 = vpop.permute.xlu0 %8037
  %8039 = vrot.lane.b32.xlu0 %v6574, 40
  %v8040 = vpop.permute.xlu0 %8039
  %8041 = vrot.lane.b32.xlu0 %v6576, 40
  %v8042 = vpop.permute.xlu0 %8041
  %8043 = vrot.lane.b32.xlu0 %v6578, 40
  %v8044 = vpop.permute.xlu0 %8043
  %8045 = vrot.lane.b32.xlu0 %v6580, 40
  %v8046 = vpop.permute.xlu0 %8045
  %8047 = vrot.lane.b32.xlu0 %v6582, 40
  %v8048 = vpop.permute.xlu0 %8047
  %8049 = vrot.lane.b32.xlu0 %v6584, 40
  %v8050 = vpop.permute.xlu0 %8049
  %8051 = vrot.lane.b32.xlu0 %v6586, 40
  %v8052 = vpop.permute.xlu0 %8051
  %8053 = vrot.lane.b32.xlu0 %v6588, 40
  %v8054 = vpop.permute.xlu0 %8053
  %8055 = vrot.lane.b32.xlu0 %v6590, 40
  %v8056 = vpop.permute.xlu0 %8055
  %8057 = vrot.lane.b32.xlu0 %v6592, 40
  %v8058 = vpop.permute.xlu0 %8057
  %8059 = vrot.lane.b32.xlu0 %v6594, 40
  %v8060 = vpop.permute.xlu0 %8059
  %8061 = vrot.lane.b32.xlu0 %v6596, 40
  %v8062 = vpop.permute.xlu0 %8061
  %8063 = vrot.lane.b32.xlu0 %v6598, 40
  %v8064 = vpop.permute.xlu0 %8063
  %8065 = vrot.lane.b32.xlu0 %v6600, 40
  %v8066 = vpop.permute.xlu0 %8065
  %8067 = vrot.lane.b32.xlu0 %v6602, 40
  %v8068 = vpop.permute.xlu0 %8067
  %8069 = vrot.lane.b32.xlu0 %v6604, 40
  %v8070 = vpop.permute.xlu0 %8069
  %8071 = vrot.lane.b32.xlu0 %v6606, 40
  %v8072 = vpop.permute.xlu0 %8071
  %8073 = vrot.lane.b32.xlu0 %v6608, 40
  %v8074 = vpop.permute.xlu0 %8073
  %8075 = vrot.lane.b32.xlu0 %v6610, 40
  %v8076 = vpop.permute.xlu0 %8075
  %8077 = vrot.lane.b32.xlu0 %v6612, 40
  %v8078 = vpop.permute.xlu0 %8077
  %8079 = vrot.lane.b32.xlu0 %v6614, 40
  %v8080 = vpop.permute.xlu0 %8079
  %8081 = vrot.lane.b32.xlu0 %v6616, 40
  %v8082 = vpop.permute.xlu0 %8081
  %8083 = vrot.lane.b32.xlu0 %v6618, 40
  %v8084 = vpop.permute.xlu0 %8083
  %8085 = vrot.lane.b32.xlu0 %v6620, 40
  %v8086 = vpop.permute.xlu0 %8085
  %8087 = vrot.lane.b32.xlu0 %v6622, 40
  %v8088 = vpop.permute.xlu0 %8087
  %8089 = vrot.lane.b32.xlu0 %v6624, 40
  %v8090 = vpop.permute.xlu0 %8089
  %8091 = vrot.lane.b32.xlu0 %v6626, 40
  %v8092 = vpop.permute.xlu0 %8091
  %8093 = vrot.lane.b32.xlu0 %v6628, 40
  %v8094 = vpop.permute.xlu0 %8093
  %8095 = vrot.lane.b32.xlu0 %v6630, 40
  %v8096 = vpop.permute.xlu0 %8095
  %8097 = vrot.lane.b32.xlu0 %v6632, 40
  %v8098 = vpop.permute.xlu0 %8097
  %8099 = vrot.lane.b32.xlu0 %v6634, 40
  %v8100 = vpop.permute.xlu0 %8099
  %8101 = vrot.lane.b32.xlu0 %v6636, 40
  %v8102 = vpop.permute.xlu0 %8101
  %8103 = vrot.lane.b32.xlu0 %v6638, 40
  %v8104 = vpop.permute.xlu0 %8103
  %8105 = vrot.lane.b32.xlu0 %v6640, 40
  %v8106 = vpop.permute.xlu0 %8105
  %8107 = vrot.lane.b32.xlu0 %v6642, 40
  %v8108 = vpop.permute.xlu0 %8107
  %8109 = vrot.lane.b32.xlu0 %v6644, 40
  %v8110 = vpop.permute.xlu0 %8109
  %8111 = vrot.lane.b32.xlu0 %v6646, 40
  %v8112 = vpop.permute.xlu0 %8111
  %8113 = vrot.lane.b32.xlu0 %v6648, 40
  %v8114 = vpop.permute.xlu0 %8113
  %8115 = vrot.lane.b32.xlu0 %v6650, 40
  %v8116 = vpop.permute.xlu0 %8115
  %8117 = vrot.lane.b32.xlu0 %v6652, 40
  %v8118 = vpop.permute.xlu0 %8117
  %8119 = vrot.lane.b32.xlu0 %v6654, 40
  %v8120 = vpop.permute.xlu0 %8119
  %8121 = vrot.lane.b32.xlu0 %v6656, 40
  %v8122 = vpop.permute.xlu0 %8121
  %8123 = vrot.lane.b32.xlu0 %v6658, 40
  %v8124 = vpop.permute.xlu0 %8123
  %8125 = vrot.lane.b32.xlu0 %v6660, 40
  %v8126 = vpop.permute.xlu0 %8125
  %8127 = vrot.lane.b32.xlu0 %v6662, 40
  %v8128 = vpop.permute.xlu0 %8127
  %8129 = vrot.lane.b32.xlu0 %v6664, 40
  %v8130 = vpop.permute.xlu0 %8129
  %8131 = vrot.lane.b32.xlu0 %v6666, 40
  %v8132 = vpop.permute.xlu0 %8131
  %8133 = vrot.lane.b32.xlu0 %v6668, 40
  %v8134 = vpop.permute.xlu0 %8133
  %8135 = vrot.lane.b32.xlu0 %v6670, 40
  %v8136 = vpop.permute.xlu0 %8135
  %8137 = vrot.lane.b32.xlu0 %v6672, 40
  %v8138 = vpop.permute.xlu0 %8137
  %8139 = vrot.lane.b32.xlu0 %v6674, 40
  %v8140 = vpop.permute.xlu0 %8139
  %8141 = vrot.lane.b32.xlu0 %v6676, 40
  %v8142 = vpop.permute.xlu0 %8141
  %8143 = vrot.lane.b32.xlu0 %v6678, 40
  %v8144 = vpop.permute.xlu0 %8143
  %8145 = vrot.lane.b32.xlu0 %v6680, 40
  %v8146 = vpop.permute.xlu0 %8145
  %8147 = vrot.lane.b32.xlu0 %v6682, 40
  %v8148 = vpop.permute.xlu0 %8147
  %8149 = vrot.lane.b32.xlu0 %v6684, 40
  %v8150 = vpop.permute.xlu0 %8149
  %8151 = vrot.lane.b32.xlu0 %v6686, 40
  %v8152 = vpop.permute.xlu0 %8151
  %8153 = vrot.lane.b32.xlu0 %v6688, 40
  %v8154 = vpop.permute.xlu0 %8153
  %8155 = vrot.lane.b32.xlu0 %v6690, 40
  %v8156 = vpop.permute.xlu0 %8155
  %8157 = vrot.lane.b32.xlu0 %v6692, 40
  %v8158 = vpop.permute.xlu0 %8157
  %8159 = vrot.lane.b32.xlu0 %v6694, 40
  %v8160 = vpop.permute.xlu0 %8159
  %8161 = vrot.lane.b32.xlu0 %v6696, 40
  %v8162 = vpop.permute.xlu0 %8161
  %8163 = vrot.lane.b32.xlu0 %v6698, 40
  %v8164 = vpop.permute.xlu0 %8163
  %8165 = vrot.lane.b32.xlu0 %v6700, 40
  %v8166 = vpop.permute.xlu0 %8165
  %8167 = vrot.lane.b32.xlu0 %v6702, 40
  %v8168 = vpop.permute.xlu0 %8167
  %8169 = vrot.lane.b32.xlu0 %v6704, 40
  %v8170 = vpop.permute.xlu0 %8169
  %8171 = vrot.lane.b32.xlu0 %v6706, 40
  %v8172 = vpop.permute.xlu0 %8171
  %8173 = vrot.lane.b32.xlu0 %v6709, 40
  %v8174 = vpop.permute.xlu0 %8173
  %8256 = vrot.lane.b32.xlu0 %v6552, 48
  %v8257 = vpop.permute.xlu0 %8256
  %8258 = vrot.lane.b32.xlu0 %v6554, 48
  %v8259 = vpop.permute.xlu0 %8258
  %8260 = vrot.lane.b32.xlu0 %v6556, 48
  %v8261 = vpop.permute.xlu0 %8260
  %8262 = vrot.lane.b32.xlu0 %v6558, 48
  %v8263 = vpop.permute.xlu0 %8262
  %8264 = vrot.lane.b32.xlu0 %v6560, 48
  %v8265 = vpop.permute.xlu0 %8264
  %8266 = vrot.lane.b32.xlu0 %v6562, 48
  %v8267 = vpop.permute.xlu0 %8266
  %8268 = vrot.lane.b32.xlu0 %v6564, 48
  %v8269 = vpop.permute.xlu0 %8268
  %8270 = vrot.lane.b32.xlu0 %v6566, 48
  %v8271 = vpop.permute.xlu0 %8270
  %8272 = vrot.lane.b32.xlu0 %v6568, 48
  %v8273 = vpop.permute.xlu0 %8272
  %8274 = vrot.lane.b32.xlu0 %v6570, 48
  %v8275 = vpop.permute.xlu0 %8274
  %8276 = vrot.lane.b32.xlu0 %v6572, 48
  %v8277 = vpop.permute.xlu0 %8276
  %8278 = vrot.lane.b32.xlu0 %v6574, 48
  %v8279 = vpop.permute.xlu0 %8278
  %8280 = vrot.lane.b32.xlu0 %v6576, 48
  %v8281 = vpop.permute.xlu0 %8280
  %8282 = vrot.lane.b32.xlu0 %v6578, 48
  %v8283 = vpop.permute.xlu0 %8282
  %8284 = vrot.lane.b32.xlu0 %v6580, 48
  %v8285 = vpop.permute.xlu0 %8284
  %8286 = vrot.lane.b32.xlu0 %v6582, 48
  %v8287 = vpop.permute.xlu0 %8286
  %8288 = vrot.lane.b32.xlu0 %v6584, 48
  %v8289 = vpop.permute.xlu0 %8288
  %8290 = vrot.lane.b32.xlu0 %v6586, 48
  %v8291 = vpop.permute.xlu0 %8290
  %8292 = vrot.lane.b32.xlu0 %v6588, 48
  %v8293 = vpop.permute.xlu0 %8292
  %8294 = vrot.lane.b32.xlu0 %v6590, 48
  %v8295 = vpop.permute.xlu0 %8294
  %8296 = vrot.lane.b32.xlu0 %v6592, 48
  %v8297 = vpop.permute.xlu0 %8296
  %8298 = vrot.lane.b32.xlu0 %v6594, 48
  %v8299 = vpop.permute.xlu0 %8298
  %8300 = vrot.lane.b32.xlu0 %v6596, 48
  %v8301 = vpop.permute.xlu0 %8300
  %8302 = vrot.lane.b32.xlu0 %v6598, 48
  %v8303 = vpop.permute.xlu0 %8302
  %8304 = vrot.lane.b32.xlu0 %v6600, 48
  %v8305 = vpop.permute.xlu0 %8304
  %8306 = vrot.lane.b32.xlu0 %v6602, 48
  %v8307 = vpop.permute.xlu0 %8306
  %8308 = vrot.lane.b32.xlu0 %v6604, 48
  %v8309 = vpop.permute.xlu0 %8308
  %8310 = vrot.lane.b32.xlu0 %v6606, 48
  %v8311 = vpop.permute.xlu0 %8310
  %8312 = vrot.lane.b32.xlu0 %v6608, 48
  %v8313 = vpop.permute.xlu0 %8312
  %8314 = vrot.lane.b32.xlu0 %v6610, 48
  %v8315 = vpop.permute.xlu0 %8314
  %8316 = vrot.lane.b32.xlu0 %v6612, 48
  %v8317 = vpop.permute.xlu0 %8316
  %8318 = vrot.lane.b32.xlu0 %v6614, 48
  %v8319 = vpop.permute.xlu0 %8318
  %8320 = vrot.lane.b32.xlu0 %v6616, 48
  %v8321 = vpop.permute.xlu0 %8320
  %8322 = vrot.lane.b32.xlu0 %v6618, 48
  %v8323 = vpop.permute.xlu0 %8322
  %8324 = vrot.lane.b32.xlu0 %v6620, 48
  %v8325 = vpop.permute.xlu0 %8324
  %8326 = vrot.lane.b32.xlu0 %v6622, 48
  %v8327 = vpop.permute.xlu0 %8326
  %8328 = vrot.lane.b32.xlu0 %v6624, 48
  %v8329 = vpop.permute.xlu0 %8328
  %8330 = vrot.lane.b32.xlu0 %v6626, 48
  %v8331 = vpop.permute.xlu0 %8330
  %8332 = vrot.lane.b32.xlu0 %v6628, 48
  %v8333 = vpop.permute.xlu0 %8332
  %8334 = vrot.lane.b32.xlu0 %v6630, 48
  %v8335 = vpop.permute.xlu0 %8334
  %8336 = vrot.lane.b32.xlu0 %v6632, 48
  %v8337 = vpop.permute.xlu0 %8336
  %8338 = vrot.lane.b32.xlu0 %v6634, 48
  %v8339 = vpop.permute.xlu0 %8338
  %8340 = vrot.lane.b32.xlu0 %v6636, 48
  %v8341 = vpop.permute.xlu0 %8340
  %8342 = vrot.lane.b32.xlu0 %v6638, 48
  %v8343 = vpop.permute.xlu0 %8342
  %8344 = vrot.lane.b32.xlu0 %v6640, 48
  %v8345 = vpop.permute.xlu0 %8344
  %8346 = vrot.lane.b32.xlu0 %v6642, 48
  %v8347 = vpop.permute.xlu0 %8346
  %8348 = vrot.lane.b32.xlu0 %v6644, 48
  %v8349 = vpop.permute.xlu0 %8348
  %8350 = vrot.lane.b32.xlu0 %v6646, 48
  %v8351 = vpop.permute.xlu0 %8350
  %8352 = vrot.lane.b32.xlu0 %v6648, 48
  %v8353 = vpop.permute.xlu0 %8352
  %8354 = vrot.lane.b32.xlu0 %v6650, 48
  %v8355 = vpop.permute.xlu0 %8354
  %8356 = vrot.lane.b32.xlu0 %v6652, 48
  %v8357 = vpop.permute.xlu0 %8356
  %8358 = vrot.lane.b32.xlu0 %v6654, 48
  %v8359 = vpop.permute.xlu0 %8358
  %8360 = vrot.lane.b32.xlu0 %v6656, 48
  %v8361 = vpop.permute.xlu0 %8360
  %8362 = vrot.lane.b32.xlu0 %v6658, 48
  %v8363 = vpop.permute.xlu0 %8362
  %8364 = vrot.lane.b32.xlu0 %v6660, 48
  %v8365 = vpop.permute.xlu0 %8364
  %8366 = vrot.lane.b32.xlu0 %v6662, 48
  %v8367 = vpop.permute.xlu0 %8366
  %8368 = vrot.lane.b32.xlu0 %v6664, 48
  %v8369 = vpop.permute.xlu0 %8368
  %8370 = vrot.lane.b32.xlu0 %v6666, 48
  %v8371 = vpop.permute.xlu0 %8370
  %8372 = vrot.lane.b32.xlu0 %v6668, 48
  %v8373 = vpop.permute.xlu0 %8372
  %8374 = vrot.lane.b32.xlu0 %v6670, 48
  %v8375 = vpop.permute.xlu0 %8374
  %8376 = vrot.lane.b32.xlu0 %v6672, 48
  %v8377 = vpop.permute.xlu0 %8376
  %8378 = vrot.lane.b32.xlu0 %v6674, 48
  %v8379 = vpop.permute.xlu0 %8378
  %8380 = vrot.lane.b32.xlu0 %v6676, 48
  %v8381 = vpop.permute.xlu0 %8380
  %8382 = vrot.lane.b32.xlu0 %v6678, 48
  %v8383 = vpop.permute.xlu0 %8382
  %8384 = vrot.lane.b32.xlu0 %v6680, 48
  %v8385 = vpop.permute.xlu0 %8384
  %8386 = vrot.lane.b32.xlu0 %v6682, 48
  %v8387 = vpop.permute.xlu0 %8386
  %8388 = vrot.lane.b32.xlu0 %v6684, 48
  %v8389 = vpop.permute.xlu0 %8388
  %8390 = vrot.lane.b32.xlu0 %v6686, 48
  %v8391 = vpop.permute.xlu0 %8390
  %8392 = vrot.lane.b32.xlu0 %v6688, 48
  %v8393 = vpop.permute.xlu0 %8392
  %8394 = vrot.lane.b32.xlu0 %v6690, 48
  %v8395 = vpop.permute.xlu0 %8394
  %8396 = vrot.lane.b32.xlu0 %v6692, 48
  %v8397 = vpop.permute.xlu0 %8396
  %8398 = vrot.lane.b32.xlu0 %v6694, 48
  %v8399 = vpop.permute.xlu0 %8398
  %8400 = vrot.lane.b32.xlu0 %v6696, 48
  %v8401 = vpop.permute.xlu0 %8400
  %8402 = vrot.lane.b32.xlu0 %v6698, 48
  %v8403 = vpop.permute.xlu0 %8402
  %8404 = vrot.lane.b32.xlu0 %v6700, 48
  %v8405 = vpop.permute.xlu0 %8404
  %8406 = vrot.lane.b32.xlu0 %v6702, 48
  %v8407 = vpop.permute.xlu0 %8406
  %8408 = vrot.lane.b32.xlu0 %v6704, 48
  %v8409 = vpop.permute.xlu0 %8408
  %8410 = vrot.lane.b32.xlu0 %v6706, 48
  %v8411 = vpop.permute.xlu0 %8410
  %8412 = vrot.lane.b32.xlu0 %v6709, 48
  %v8413 = vpop.permute.xlu0 %8412
  %8414 = vrot.lane.b32.xlu0 %v6548, 48
  %v8415 = vpop.permute.xlu0 %8414
  %8416 = vrot.lane.b32.xlu0 %v6550, 48
  %v8417 = vpop.permute.xlu0 %8416
  %8500 = vrot.lane.b32.xlu0 %v6712, 56
  %v8501 = vpop.permute.xlu0 %8500
  %8502 = vrot.lane.b32.xlu0 %v6714, 56
  %v8503 = vpop.permute.xlu0 %8502
  %8504 = vrot.lane.b32.xlu0 %v6716, 56
  %v8505 = vpop.permute.xlu0 %8504
  %8506 = vrot.lane.b32.xlu0 %v6718, 56
  %v8507 = vpop.permute.xlu0 %8506
  %8508 = vrot.lane.b32.xlu0 %v6720, 56
  %v8509 = vpop.permute.xlu0 %8508
  %8510 = vrot.lane.b32.xlu0 %v6722, 56
  %v8511 = vpop.permute.xlu0 %8510
  %8512 = vrot.lane.b32.xlu0 %v6724, 56
  %v8513 = vpop.permute.xlu0 %8512
  %8514 = vrot.lane.b32.xlu0 %v6726, 56
  %v8515 = vpop.permute.xlu0 %8514
  %8516 = vrot.lane.b32.xlu0 %v6728, 56
  %v8517 = vpop.permute.xlu0 %8516
  %8518 = vrot.lane.b32.xlu0 %v6730, 56
  %v8519 = vpop.permute.xlu0 %8518
  %8520 = vrot.lane.b32.xlu0 %v6732, 56
  %v8521 = vpop.permute.xlu0 %8520
  %8522 = vrot.lane.b32.xlu0 %v6734, 56
  %v8523 = vpop.permute.xlu0 %8522
  %8524 = vrot.lane.b32.xlu0 %v6736, 56
  %v8525 = vpop.permute.xlu0 %8524
  %8526 = vrot.lane.b32.xlu0 %v6738, 56
  %v8527 = vpop.permute.xlu0 %8526
  %8528 = vrot.lane.b32.xlu0 %v6740, 56
  %v8529 = vpop.permute.xlu0 %8528
  %8530 = vrot.lane.b32.xlu0 %v6742, 56
  %v8531 = vpop.permute.xlu0 %8530
  %8532 = vrot.lane.b32.xlu0 %v6744, 56
  %v8533 = vpop.permute.xlu0 %8532
  %8534 = vrot.lane.b32.xlu0 %v6746, 56
  %v8535 = vpop.permute.xlu0 %8534
  %8536 = vrot.lane.b32.xlu0 %v6748, 56
  %v8537 = vpop.permute.xlu0 %8536
  %8538 = vrot.lane.b32.xlu0 %v6750, 56
  %v8539 = vpop.permute.xlu0 %8538
  %8540 = vrot.lane.b32.xlu0 %v6752, 56
  %v8541 = vpop.permute.xlu0 %8540
  %8542 = vrot.lane.b32.xlu0 %v6754, 56
  %v8543 = vpop.permute.xlu0 %8542
  %8544 = vrot.lane.b32.xlu0 %v6756, 56
  %v8545 = vpop.permute.xlu0 %8544
  %8546 = vrot.lane.b32.xlu0 %v6758, 56
  %v8547 = vpop.permute.xlu0 %8546
  %8548 = vrot.lane.b32.xlu0 %v6760, 56
  %v8549 = vpop.permute.xlu0 %8548
  %8550 = vrot.lane.b32.xlu0 %v6762, 56
  %v8551 = vpop.permute.xlu0 %8550
  %8552 = vrot.lane.b32.xlu0 %v6764, 56
  %v8553 = vpop.permute.xlu0 %8552
  %8554 = vrot.lane.b32.xlu0 %v6766, 56
  %v8555 = vpop.permute.xlu0 %8554
  %8556 = vrot.lane.b32.xlu0 %v6768, 56
  %v8557 = vpop.permute.xlu0 %8556
  %8558 = vrot.lane.b32.xlu0 %v6770, 56
  %v8559 = vpop.permute.xlu0 %8558
  %8560 = vrot.lane.b32.xlu0 %v6772, 56
  %v8561 = vpop.permute.xlu0 %8560
  %8562 = vrot.lane.b32.xlu0 %v6774, 56
  %v8563 = vpop.permute.xlu0 %8562
  %8564 = vrot.lane.b32.xlu0 %v6776, 56
  %v8565 = vpop.permute.xlu0 %8564
  %8566 = vrot.lane.b32.xlu0 %v6778, 56
  %v8567 = vpop.permute.xlu0 %8566
  %8568 = vrot.lane.b32.xlu0 %v6780, 56
  %v8569 = vpop.permute.xlu0 %8568
  %8570 = vrot.lane.b32.xlu0 %v6782, 56
  %v8571 = vpop.permute.xlu0 %8570
  %8572 = vrot.lane.b32.xlu0 %v6784, 56
  %v8573 = vpop.permute.xlu0 %8572
  %8574 = vrot.lane.b32.xlu0 %v6786, 56
  %v8575 = vpop.permute.xlu0 %8574
  %8576 = vrot.lane.b32.xlu0 %v6788, 56
  %v8577 = vpop.permute.xlu0 %8576
  %8578 = vrot.lane.b32.xlu0 %v6790, 56
  %v8579 = vpop.permute.xlu0 %8578
  %8580 = vrot.lane.b32.xlu0 %v6792, 56
  %v8581 = vpop.permute.xlu0 %8580
  %8582 = vrot.lane.b32.xlu0 %v6794, 56
  %v8583 = vpop.permute.xlu0 %8582
  %8584 = vrot.lane.b32.xlu0 %v6796, 56
  %v8585 = vpop.permute.xlu0 %8584
  %8586 = vrot.lane.b32.xlu0 %v6798, 56
  %v8587 = vpop.permute.xlu0 %8586
  %8588 = vrot.lane.b32.xlu0 %v6800, 56
  %v8589 = vpop.permute.xlu0 %8588
  %8590 = vrot.lane.b32.xlu0 %v6802, 56
  %v8591 = vpop.permute.xlu0 %8590
  %8592 = vrot.lane.b32.xlu0 %v6804, 56
  %v8593 = vpop.permute.xlu0 %8592
  %8594 = vrot.lane.b32.xlu0 %v6806, 56
  %v8595 = vpop.permute.xlu0 %8594
  %8596 = vrot.lane.b32.xlu0 %v6808, 56
  %v8597 = vpop.permute.xlu0 %8596
  %8598 = vrot.lane.b32.xlu0 %v6810, 56
  %v8599 = vpop.permute.xlu0 %8598
  %8600 = vrot.lane.b32.xlu0 %v6812, 56
  %v8601 = vpop.permute.xlu0 %8600
  %8602 = vrot.lane.b32.xlu0 %v6814, 56
  %v8603 = vpop.permute.xlu0 %8602
  %8604 = vrot.lane.b32.xlu0 %v6816, 56
  %v8605 = vpop.permute.xlu0 %8604
  %8606 = vrot.lane.b32.xlu0 %v6818, 56
  %v8607 = vpop.permute.xlu0 %8606
  %8608 = vrot.lane.b32.xlu0 %v6820, 56
  %v8609 = vpop.permute.xlu0 %8608
  %8610 = vrot.lane.b32.xlu0 %v6822, 56
  %v8611 = vpop.permute.xlu0 %8610
  %8612 = vrot.lane.b32.xlu0 %v6824, 56
  %v8613 = vpop.permute.xlu0 %8612
  %8614 = vrot.lane.b32.xlu0 %v6826, 56
  %v8615 = vpop.permute.xlu0 %8614
  %8616 = vrot.lane.b32.xlu0 %v6828, 56
  %v8617 = vpop.permute.xlu0 %8616
  %8618 = vrot.lane.b32.xlu0 %v6830, 56
  %v8619 = vpop.permute.xlu0 %8618
  %8620 = vrot.lane.b32.xlu0 %v6832, 56
  %v8621 = vpop.permute.xlu0 %8620
  %8622 = vrot.lane.b32.xlu0 %v6834, 56
  %v8623 = vpop.permute.xlu0 %8622
  %8624 = vrot.lane.b32.xlu0 %v6836, 56
  %v8625 = vpop.permute.xlu0 %8624
  %8626 = vrot.lane.b32.xlu0 %v6838, 56
  %v8627 = vpop.permute.xlu0 %8626
  %8628 = vrot.lane.b32.xlu0 %v6840, 56
  %v8629 = vpop.permute.xlu0 %8628
  %8630 = vrot.lane.b32.xlu0 %v6842, 56
  %v8631 = vpop.permute.xlu0 %8630
  %8632 = vrot.lane.b32.xlu0 %v6844, 56
  %v8633 = vpop.permute.xlu0 %8632
  %8634 = vrot.lane.b32.xlu0 %v6846, 56
  %v8635 = vpop.permute.xlu0 %8634
  %8636 = vrot.lane.b32.xlu0 %v6848, 56
  %v8637 = vpop.permute.xlu0 %8636
  %8638 = vrot.lane.b32.xlu0 %v6850, 56
  %v8639 = vpop.permute.xlu0 %8638
  %8640 = vrot.lane.b32.xlu0 %v6852, 56
  %v8641 = vpop.permute.xlu0 %8640
  %8642 = vrot.lane.b32.xlu0 %v6854, 56
  %v8643 = vpop.permute.xlu0 %8642
  %8644 = vrot.lane.b32.xlu0 %v6856, 56
  %v8645 = vpop.permute.xlu0 %8644
  %8646 = vrot.lane.b32.xlu0 %v6858, 56
  %v8647 = vpop.permute.xlu0 %8646
  %8648 = vrot.lane.b32.xlu0 %v6860, 56
  %v8649 = vpop.permute.xlu0 %8648
  %8650 = vrot.lane.b32.xlu0 %v6862, 56
  %v8651 = vpop.permute.xlu0 %8650
  %8652 = vrot.lane.b32.xlu0 %v6864, 56
  %v8653 = vpop.permute.xlu0 %8652
  %8654 = vrot.lane.b32.xlu0 %v6866, 56
  %v8655 = vpop.permute.xlu0 %8654
  %8656 = vrot.lane.b32.xlu0 %v6873, 56
  %v8657 = vpop.permute.xlu0 %8656
  %8658 = vrot.lane.b32.xlu0 %v6870, 56
  %v8659 = vpop.permute.xlu0 %8658
  %8660 = vrot.lane.b32.xlu0 %v6871, 56
  %v8661 = vpop.permute.xlu0 %8660
  %8744 = vrot.lane.b32.xlu0 %v6876, 64
  %v8745 = vpop.permute.xlu0 %8744
  %8746 = vrot.lane.b32.xlu0 %v6878, 64
  %v8747 = vpop.permute.xlu0 %8746
  %8748 = vrot.lane.b32.xlu0 %v6880, 64
  %v8749 = vpop.permute.xlu0 %8748
  %8750 = vrot.lane.b32.xlu0 %v6882, 64
  %v8751 = vpop.permute.xlu0 %8750
  %8752 = vrot.lane.b32.xlu0 %v6884, 64
  %v8753 = vpop.permute.xlu0 %8752
  %8754 = vrot.lane.b32.xlu0 %v6886, 64
  %v8755 = vpop.permute.xlu0 %8754
  %8756 = vrot.lane.b32.xlu0 %v6888, 64
  %v8757 = vpop.permute.xlu0 %8756
  %8758 = vrot.lane.b32.xlu0 %v6890, 64
  %v8759 = vpop.permute.xlu0 %8758
  %8760 = vrot.lane.b32.xlu0 %v6892, 64
  %v8761 = vpop.permute.xlu0 %8760
  %8762 = vrot.lane.b32.xlu0 %v6894, 64
  %v8763 = vpop.permute.xlu0 %8762
  %8764 = vrot.lane.b32.xlu0 %v6896, 64
  %v8765 = vpop.permute.xlu0 %8764
  %8766 = vrot.lane.b32.xlu0 %v6898, 64
  %v8767 = vpop.permute.xlu0 %8766
  %8768 = vrot.lane.b32.xlu0 %v6900, 64
  %v8769 = vpop.permute.xlu0 %8768
  %8770 = vrot.lane.b32.xlu0 %v6902, 64
  %v8771 = vpop.permute.xlu0 %8770
  %8772 = vrot.lane.b32.xlu0 %v6904, 64
  %v8773 = vpop.permute.xlu0 %8772
  %8774 = vrot.lane.b32.xlu0 %v6906, 64
  %v8775 = vpop.permute.xlu0 %8774
  %8776 = vrot.lane.b32.xlu0 %v6908, 64
  %v8777 = vpop.permute.xlu0 %8776
  %8778 = vrot.lane.b32.xlu0 %v6910, 64
  %v8779 = vpop.permute.xlu0 %8778
  %8780 = vrot.lane.b32.xlu0 %v6912, 64
  %v8781 = vpop.permute.xlu0 %8780
  %8782 = vrot.lane.b32.xlu0 %v6914, 64
  %v8783 = vpop.permute.xlu0 %8782
  %8784 = vrot.lane.b32.xlu0 %v6916, 64
  %v8785 = vpop.permute.xlu0 %8784
  %8786 = vrot.lane.b32.xlu0 %v6918, 64
  %v8787 = vpop.permute.xlu0 %8786
  %8788 = vrot.lane.b32.xlu0 %v6920, 64
  %v8789 = vpop.permute.xlu0 %8788
  %8790 = vrot.lane.b32.xlu0 %v6922, 64
  %v8791 = vpop.permute.xlu0 %8790
  %8792 = vrot.lane.b32.xlu0 %v6924, 64
  %v8793 = vpop.permute.xlu0 %8792
  %8794 = vrot.lane.b32.xlu0 %v6926, 64
  %v8795 = vpop.permute.xlu0 %8794
  %8796 = vrot.lane.b32.xlu0 %v6928, 64
  %v8797 = vpop.permute.xlu0 %8796
  %8798 = vrot.lane.b32.xlu0 %v6930, 64
  %v8799 = vpop.permute.xlu0 %8798
  %8800 = vrot.lane.b32.xlu0 %v6932, 64
  %v8801 = vpop.permute.xlu0 %8800
  %8802 = vrot.lane.b32.xlu0 %v6934, 64
  %v8803 = vpop.permute.xlu0 %8802
  %8804 = vrot.lane.b32.xlu0 %v6936, 64
  %v8805 = vpop.permute.xlu0 %8804
  %8806 = vrot.lane.b32.xlu0 %v6938, 64
  %v8807 = vpop.permute.xlu0 %8806
  %8808 = vrot.lane.b32.xlu0 %v6940, 64
  %v8809 = vpop.permute.xlu0 %8808
  %8810 = vrot.lane.b32.xlu0 %v6942, 64
  %v8811 = vpop.permute.xlu0 %8810
  %8812 = vrot.lane.b32.xlu0 %v6944, 64
  %v8813 = vpop.permute.xlu0 %8812
  %8814 = vrot.lane.b32.xlu0 %v6946, 64
  %v8815 = vpop.permute.xlu0 %8814
  %8816 = vrot.lane.b32.xlu0 %v6948, 64
  %v8817 = vpop.permute.xlu0 %8816
  %8818 = vrot.lane.b32.xlu0 %v6950, 64
  %v8819 = vpop.permute.xlu0 %8818
  %8820 = vrot.lane.b32.xlu0 %v6952, 64
  %v8821 = vpop.permute.xlu0 %8820
  %8822 = vrot.lane.b32.xlu0 %v6954, 64
  %v8823 = vpop.permute.xlu0 %8822
  %8824 = vrot.lane.b32.xlu0 %v6956, 64
  %v8825 = vpop.permute.xlu0 %8824
  %8826 = vrot.lane.b32.xlu0 %v6958, 64
  %v8827 = vpop.permute.xlu0 %8826
  %8828 = vrot.lane.b32.xlu0 %v6960, 64
  %v8829 = vpop.permute.xlu0 %8828
  %8830 = vrot.lane.b32.xlu0 %v6962, 64
  %v8831 = vpop.permute.xlu0 %8830
  %8832 = vrot.lane.b32.xlu0 %v6964, 64
  %v8833 = vpop.permute.xlu0 %8832
  %8834 = vrot.lane.b32.xlu0 %v6966, 64
  %v8835 = vpop.permute.xlu0 %8834
  %8836 = vrot.lane.b32.xlu0 %v6968, 64
  %v8837 = vpop.permute.xlu0 %8836
  %8838 = vrot.lane.b32.xlu0 %v6970, 64
  %v8839 = vpop.permute.xlu0 %8838
  %8840 = vrot.lane.b32.xlu0 %v6972, 64
  %v8841 = vpop.permute.xlu0 %8840
  %8842 = vrot.lane.b32.xlu0 %v6974, 64
  %v8843 = vpop.permute.xlu0 %8842
  %8844 = vrot.lane.b32.xlu0 %v6976, 64
  %v8845 = vpop.permute.xlu0 %8844
  %8846 = vrot.lane.b32.xlu0 %v6978, 64
  %v8847 = vpop.permute.xlu0 %8846
  %8848 = vrot.lane.b32.xlu0 %v6980, 64
  %v8849 = vpop.permute.xlu0 %8848
  %8850 = vrot.lane.b32.xlu0 %v6982, 64
  %v8851 = vpop.permute.xlu0 %8850
  %8852 = vrot.lane.b32.xlu0 %v6984, 64
  %v8853 = vpop.permute.xlu0 %8852
  %8854 = vrot.lane.b32.xlu0 %v6986, 64
  %v8855 = vpop.permute.xlu0 %8854
  %8856 = vrot.lane.b32.xlu0 %v6988, 64
  %v8857 = vpop.permute.xlu0 %8856
  %8858 = vrot.lane.b32.xlu0 %v6990, 64
  %v8859 = vpop.permute.xlu0 %8858
  %8860 = vrot.lane.b32.xlu0 %v6992, 64
  %v8861 = vpop.permute.xlu0 %8860
  %8862 = vrot.lane.b32.xlu0 %v6994, 64
  %v8863 = vpop.permute.xlu0 %8862
  %8864 = vrot.lane.b32.xlu0 %v6996, 64
  %v8865 = vpop.permute.xlu0 %8864
  %8866 = vrot.lane.b32.xlu0 %v6998, 64
  %v8867 = vpop.permute.xlu0 %8866
  %8868 = vrot.lane.b32.xlu0 %v7000, 64
  %v8869 = vpop.permute.xlu0 %8868
  %8870 = vrot.lane.b32.xlu0 %v7002, 64
  %v8871 = vpop.permute.xlu0 %8870
  %8872 = vrot.lane.b32.xlu0 %v7004, 64
  %v8873 = vpop.permute.xlu0 %8872
  %8874 = vrot.lane.b32.xlu0 %v7006, 64
  %v8875 = vpop.permute.xlu0 %8874
  %8876 = vrot.lane.b32.xlu0 %v7008, 64
  %v8877 = vpop.permute.xlu0 %8876
  %8878 = vrot.lane.b32.xlu0 %v7010, 64
  %v8879 = vpop.permute.xlu0 %8878
  %8880 = vrot.lane.b32.xlu0 %v7012, 64
  %v8881 = vpop.permute.xlu0 %8880
  %8882 = vrot.lane.b32.xlu0 %v7014, 64
  %v8883 = vpop.permute.xlu0 %8882
  %8884 = vrot.lane.b32.xlu0 %v7016, 64
  %v8885 = vpop.permute.xlu0 %8884
  %8886 = vrot.lane.b32.xlu0 %v7018, 64
  %v8887 = vpop.permute.xlu0 %8886
  %8888 = vrot.lane.b32.xlu0 %v7020, 64
  %v8889 = vpop.permute.xlu0 %8888
  %8890 = vrot.lane.b32.xlu0 %v7022, 64
  %v8891 = vpop.permute.xlu0 %8890
  %8892 = vrot.lane.b32.xlu0 %v7024, 64
  %v8893 = vpop.permute.xlu0 %8892
  %8894 = vrot.lane.b32.xlu0 %v7026, 64
  %v8895 = vpop.permute.xlu0 %8894
  %8896 = vrot.lane.b32.xlu0 %v7028, 64
  %v8897 = vpop.permute.xlu0 %8896
  %8898 = vrot.lane.b32.xlu0 %v7030, 64
  %v8899 = vpop.permute.xlu0 %8898
  %8900 = vrot.lane.b32.xlu0 %v7037, 64
  %v8901 = vpop.permute.xlu0 %8900
  %8902 = vrot.lane.b32.xlu0 %v7034, 64
  %v8903 = vpop.permute.xlu0 %8902
  %8904 = vrot.lane.b32.xlu0 %v7035, 64
  %v8905 = vpop.permute.xlu0 %8904
  %v8987 = vsel %vm3387, %v5898, %v7040
  %v8988 = vsel %vm3387, %v5900, %v7042
  %v8989 = vsel %vm3387, %v6217, %v7044
  %v8990 = vsel %vm3387, %v5984, %v7046
  %v8991 = vsel %vm3387, %v5986, %v7048
  %v8992 = vsel %vm3387, %v5988, %v7050
  %v8993 = vsel %vm3387, %v5990, %v7052
  %v8994 = vsel %vm3387, %v5992, %v7054
  %v8995 = vsel %vm3387, %v5994, %v7056
  %v8996 = vsel %vm3387, %v5996, %v7058
  %v8997 = vsel %vm3387, %v5998, %v7060
  %v8998 = vsel %vm3387, %v6000, %v7062
  %v8999 = vsel %vm3387, %v6002, %v7064
  %v9000 = vsel %vm3387, %v6004, %v7066
  %v9001 = vsel %vm3387, %v6006, %v7068
  %v9002 = vsel %vm3387, %v6008, %v7070
  %v9003 = vsel %vm3387, %v6010, %v7072
  %v9004 = vsel %vm3387, %v6012, %v7074
  %v9005 = vsel %vm3387, %v6014, %v7076
  %v9006 = vsel %vm3387, %v6016, %v7078
  %v9007 = vsel %vm3387, %v6018, %v7080
  %v9008 = vsel %vm3387, %v6020, %v7082
  %v9009 = vsel %vm3387, %v6022, %v7084
  %v9010 = vsel %vm3387, %v6024, %v7086
  %v9011 = vsel %vm3387, %v6026, %v7088
  %v9012 = vsel %vm3387, %v6028, %v7090
  %v9013 = vsel %vm3387, %v6030, %v7092
  %v9014 = vsel %vm3387, %v6032, %v7094
  %v9015 = vsel %vm3387, %v6034, %v7096
  %v9016 = vsel %vm3387, %v6036, %v7098
  %v9017 = vsel %vm3387, %v6038, %v7100
  %v9018 = vsel %vm3387, %v6040, %v7102
  %v9019 = vsel %vm3387, %v6042, %v7104
  %v9020 = vsel %vm3387, %v6044, %v7106
  %v9021 = vsel %vm3387, %v6046, %v7108
  %v9022 = vsel %vm3387, %v6048, %v7110
  %v9023 = vsel %vm3387, %v6050, %v7112
  %v9024 = vsel %vm3387, %v6052, %v7114
  %v9025 = vsel %vm3387, %v6054, %v7116
  %v9026 = vsel %vm3387, %v6056, %v7118
  %v9027 = vsel %vm3387, %v6058, %v7120
  %v9028 = vsel %vm3387, %v6060, %v7122
  %v9029 = vsel %vm3387, %v6062, %v7124
  %v9030 = vsel %vm3387, %v6064, %v7126
  %v9031 = vsel %vm3387, %v6066, %v7128
  %v9032 = vsel %vm3387, %v6068, %v7130
  %v9033 = vsel %vm3387, %v6070, %v7132
  %v9034 = vsel %vm3387, %v6072, %v7134
  %v9035 = vsel %vm3387, %v6074, %v7136
  %v9036 = vsel %vm3387, %v6076, %v7138
  %v9037 = vsel %vm3387, %v6078, %v7140
  %v9038 = vsel %vm3387, %v6080, %v7142
  %v9039 = vsel %vm3387, %v6082, %v7144
  %v9040 = vsel %vm3387, %v6084, %v7146
  %v9041 = vsel %vm3387, %v6086, %v7148
  %v9042 = vsel %vm3387, %v6088, %v7150
  %v9043 = vsel %vm3387, %v6090, %v7152
  %v9044 = vsel %vm3387, %v6092, %v7154
  %v9045 = vsel %vm3387, %v6094, %v7156
  %v9046 = vsel %vm3387, %v6096, %v7158
  %v9047 = vsel %vm3387, %v6098, %v7160
  %v9048 = vsel %vm3387, %v6100, %v7162
  %v9049 = vsel %vm3387, %v6102, %v7164
  %v9050 = vsel %vm3387, %v6104, %v7166
  %v9051 = vsel %vm3387, %v6106, %v7168
  %v9052 = vsel %vm3387, %v6108, %v7170
  %v9053 = vsel %vm3387, %v6110, %v7172
  %v9054 = vsel %vm3387, %v6112, %v7174
  %v9055 = vsel %vm3387, %v6114, %v7176
  %v9056 = vsel %vm3387, %v6116, %v7178
  %v9057 = vsel %vm3387, %v6118, %v7180
  %v9058 = vsel %vm3387, %v6120, %v7182
  %v9059 = vsel %vm3387, %v6122, %v7184
  %v9060 = vsel %vm3387, %v6124, %v7186
  %v9061 = vsel %vm3387, %v6126, %v7188
  %v9062 = vsel %vm3387, %v6128, %v7190
  %v9063 = vsel %vm3387, %v6130, %v7192
  %v9064 = vsel %vm3387, %v6132, %v7194
  %v9065 = vsel %vm3387, %v6134, %v7196
  %v9066 = vsel %vm3387, %v6136, %v7198
  %v9067 = vsel %vm3387, %v6137, %v7200
  %v9068 = vsel %vm3551, %v8987, %v7284
  %v9069 = vsel %vm3551, %v8988, %v7286
  %v9070 = vsel %vm3551, %v8989, %v7288
  %v9071 = vsel %vm3551, %v8990, %v7290
  %v9072 = vsel %vm3551, %v8991, %v7292
  %v9073 = vsel %vm3551, %v8992, %v7294
  %v9074 = vsel %vm3551, %v8993, %v7296
  %v9075 = vsel %vm3551, %v8994, %v7298
  %v9076 = vsel %vm3551, %v8995, %v7300
  %v9077 = vsel %vm3551, %v8996, %v7302
  %v9078 = vsel %vm3551, %v8997, %v7304
  %v9079 = vsel %vm3551, %v8998, %v7306
  %v9080 = vsel %vm3551, %v8999, %v7308
  %v9081 = vsel %vm3551, %v9000, %v7310
  %v9082 = vsel %vm3551, %v9001, %v7312
  %v9083 = vsel %vm3551, %v9002, %v7314
  %v9084 = vsel %vm3551, %v9003, %v7316
  %v9085 = vsel %vm3551, %v9004, %v7318
  %v9086 = vsel %vm3551, %v9005, %v7320
  %v9087 = vsel %vm3551, %v9006, %v7322
  %v9088 = vsel %vm3551, %v9007, %v7324
  %v9089 = vsel %vm3551, %v9008, %v7326
  %v9090 = vsel %vm3551, %v9009, %v7328
  %v9091 = vsel %vm3551, %v9010, %v7330
  %v9092 = vsel %vm3551, %v9011, %v7332
  %v9093 = vsel %vm3551, %v9012, %v7334
  %v9094 = vsel %vm3551, %v9013, %v7336
  %v9095 = vsel %vm3551, %v9014, %v7338
  %v9096 = vsel %vm3551, %v9015, %v7340
  %v9097 = vsel %vm3551, %v9016, %v7342
  %v9098 = vsel %vm3551, %v9017, %v7344
  %v9099 = vsel %vm3551, %v9018, %v7346
  %v9100 = vsel %vm3551, %v9019, %v7348
  %v9101 = vsel %vm3551, %v9020, %v7350
  %v9102 = vsel %vm3551, %v9021, %v7352
  %v9103 = vsel %vm3551, %v9022, %v7354
  %v9104 = vsel %vm3551, %v9023, %v7356
  %v9105 = vsel %vm3551, %v9024, %v7358
  %v9106 = vsel %vm3551, %v9025, %v7360
  %v9107 = vsel %vm3551, %v9026, %v7362
  %v9108 = vsel %vm3551, %v9027, %v7364
  %v9109 = vsel %vm3551, %v9028, %v7366
  %v9110 = vsel %vm3551, %v9029, %v7368
  %v9111 = vsel %vm3551, %v9030, %v7370
  %v9112 = vsel %vm3551, %v9031, %v7372
  %v9113 = vsel %vm3551, %v9032, %v7374
  %v9114 = vsel %vm3551, %v9033, %v7376
  %v9115 = vsel %vm3551, %v9034, %v7378
  %v9116 = vsel %vm3551, %v9035, %v7380
  %v9117 = vsel %vm3551, %v9036, %v7382
  %v9118 = vsel %vm3551, %v9037, %v7384
  %v9119 = vsel %vm3551, %v9038, %v7386
  %v9120 = vsel %vm3551, %v9039, %v7388
  %v9121 = vsel %vm3551, %v9040, %v7390
  %v9122 = vsel %vm3551, %v9041, %v7392
  %v9123 = vsel %vm3551, %v9042, %v7394
  %v9124 = vsel %vm3551, %v9043, %v7396
  %v9125 = vsel %vm3551, %v9044, %v7398
  %v9126 = vsel %vm3551, %v9045, %v7400
  %v9127 = vsel %vm3551, %v9046, %v7402
  %v9128 = vsel %vm3551, %v9047, %v7404
  %v9129 = vsel %vm3551, %v9048, %v7406
  %v9130 = vsel %vm3551, %v9049, %v7408
  %v9131 = vsel %vm3551, %v9050, %v7410
  %v9132 = vsel %vm3551, %v9051, %v7412
  %v9133 = vsel %vm3551, %v9052, %v7414
  %v9134 = vsel %vm3551, %v9053, %v7416
  %v9135 = vsel %vm3551, %v9054, %v7418
  %v9136 = vsel %vm3551, %v9055, %v7420
  %v9137 = vsel %vm3551, %v9056, %v7422
  %v9138 = vsel %vm3551, %v9057, %v7424
  %v9139 = vsel %vm3551, %v9058, %v7426
  %v9140 = vsel %vm3551, %v9059, %v7428
  %v9141 = vsel %vm3551, %v9060, %v7430
  %v9142 = vsel %vm3551, %v9061, %v7432
  %v9143 = vsel %vm3551, %v9062, %v7434
  %v9144 = vsel %vm3551, %v9063, %v7436
  %v9145 = vsel %vm3551, %v9064, %v7438
  %v9146 = vsel %vm3551, %v9065, %v7440
  %v9147 = vsel %vm3551, %v9066, %v7442
  %v9148 = vsel %vm3551, %v9067, %v7444
  %v9149 = vsel %vm3715, %v9068, %v7527
  %v9150 = vsel %vm3715, %v9069, %v7529
  %v9151 = vsel %vm3715, %v9070, %v7531
  %v9152 = vsel %vm3715, %v9071, %v7533
  %v9153 = vsel %vm3715, %v9072, %v7535
  %v9154 = vsel %vm3715, %v9073, %v7537
  %v9155 = vsel %vm3715, %v9074, %v7539
  %v9156 = vsel %vm3715, %v9075, %v7541
  %v9157 = vsel %vm3715, %v9076, %v7543
  %v9158 = vsel %vm3715, %v9077, %v7545
  %v9159 = vsel %vm3715, %v9078, %v7547
  %v9160 = vsel %vm3715, %v9079, %v7549
  %v9161 = vsel %vm3715, %v9080, %v7551
  %v9162 = vsel %vm3715, %v9081, %v7553
  %v9163 = vsel %vm3715, %v9082, %v7555
  %v9164 = vsel %vm3715, %v9083, %v7557
  %v9165 = vsel %vm3715, %v9084, %v7559
  %v9166 = vsel %vm3715, %v9085, %v7561
  %v9167 = vsel %vm3715, %v9086, %v7563
  %v9168 = vsel %vm3715, %v9087, %v7565
  %v9169 = vsel %vm3715, %v9088, %v7567
  %v9170 = vsel %vm3715, %v9089, %v7569
  %v9171 = vsel %vm3715, %v9090, %v7571
  %v9172 = vsel %vm3715, %v9091, %v7573
  %v9173 = vsel %vm3715, %v9092, %v7575
  %v9174 = vsel %vm3715, %v9093, %v7577
  %v9175 = vsel %vm3715, %v9094, %v7579
  %v9176 = vsel %vm3715, %v9095, %v7581
  %v9177 = vsel %vm3715, %v9096, %v7583
  %v9178 = vsel %vm3715, %v9097, %v7585
  %v9179 = vsel %vm3715, %v9098, %v7587
  %v9180 = vsel %vm3715, %v9099, %v7589
  %v9181 = vsel %vm3715, %v9100, %v7591
  %v9182 = vsel %vm3715, %v9101, %v7593
  %v9183 = vsel %vm3715, %v9102, %v7595
  %v9184 = vsel %vm3715, %v9103, %v7597
  %v9185 = vsel %vm3715, %v9104, %v7599
  %v9186 = vsel %vm3715, %v9105, %v7601
  %v9187 = vsel %vm3715, %v9106, %v7603
  %v9188 = vsel %vm3715, %v9107, %v7605
  %v9189 = vsel %vm3715, %v9108, %v7607
  %v9190 = vsel %vm3715, %v9109, %v7609
  %v9191 = vsel %vm3715, %v9110, %v7611
  %v9192 = vsel %vm3715, %v9111, %v7613
  %v9193 = vsel %vm3715, %v9112, %v7615
  %v9194 = vsel %vm3715, %v9113, %v7617
  %v9195 = vsel %vm3715, %v9114, %v7619
  %v9196 = vsel %vm3715, %v9115, %v7621
  %v9197 = vsel %vm3715, %v9116, %v7623
  %v9198 = vsel %vm3715, %v9117, %v7625
  %v9199 = vsel %vm3715, %v9118, %v7627
  %v9200 = vsel %vm3715, %v9119, %v7629
  %v9201 = vsel %vm3715, %v9120, %v7631
  %v9202 = vsel %vm3715, %v9121, %v7633
  %v9203 = vsel %vm3715, %v9122, %v7635
  %v9204 = vsel %vm3715, %v9123, %v7637
  %v9205 = vsel %vm3715, %v9124, %v7639
  %v9206 = vsel %vm3715, %v9125, %v7641
  %v9207 = vsel %vm3715, %v9126, %v7643
  %v9208 = vsel %vm3715, %v9127, %v7645
  %v9209 = vsel %vm3715, %v9128, %v7647
  %v9210 = vsel %vm3715, %v9129, %v7649
  %v9211 = vsel %vm3715, %v9130, %v7651
  %v9212 = vsel %vm3715, %v9131, %v7653
  %v9213 = vsel %vm3715, %v9132, %v7655
  %v9214 = vsel %vm3715, %v9133, %v7657
  %v9215 = vsel %vm3715, %v9134, %v7659
  %v9216 = vsel %vm3715, %v9135, %v7661
  %v9217 = vsel %vm3715, %v9136, %v7663
  %v9218 = vsel %vm3715, %v9137, %v7665
  %v9219 = vsel %vm3715, %v9138, %v7667
  %v9220 = vsel %vm3715, %v9139, %v7669
  %v9221 = vsel %vm3715, %v9140, %v7671
  %v9222 = vsel %vm3715, %v9141, %v7673
  %v9223 = vsel %vm3715, %v9142, %v7675
  %v9224 = vsel %vm3715, %v9143, %v7677
  %v9225 = vsel %vm3715, %v9144, %v7679
  %v9226 = vsel %vm3715, %v9145, %v7681
  %v9227 = vsel %vm3715, %v9146, %v7683
  %v9228 = vsel %vm3715, %v9147, %v7685
  %v9229 = vsel %vm3715, %v9148, %v7687
  %v9230 = vsel %vm3879, %v9149, %v7770
  %v9231 = vsel %vm3879, %v9150, %v7772
  %v9232 = vsel %vm3879, %v9151, %v7774
  %v9233 = vsel %vm3879, %v9152, %v7776
  %v9234 = vsel %vm3879, %v9153, %v7778
  %v9235 = vsel %vm3879, %v9154, %v7780
  %v9236 = vsel %vm3879, %v9155, %v7782
  %v9237 = vsel %vm3879, %v9156, %v7784
  %v9238 = vsel %vm3879, %v9157, %v7786
  %v9239 = vsel %vm3879, %v9158, %v7788
  %v9240 = vsel %vm3879, %v9159, %v7790
  %v9241 = vsel %vm3879, %v9160, %v7792
  %v9242 = vsel %vm3879, %v9161, %v7794
  %v9243 = vsel %vm3879, %v9162, %v7796
  %v9244 = vsel %vm3879, %v9163, %v7798
  %v9245 = vsel %vm3879, %v9164, %v7800
  %v9246 = vsel %vm3879, %v9165, %v7802
  %v9247 = vsel %vm3879, %v9166, %v7804
  %v9248 = vsel %vm3879, %v9167, %v7806
  %v9249 = vsel %vm3879, %v9168, %v7808
  %v9250 = vsel %vm3879, %v9169, %v7810
  %v9251 = vsel %vm3879, %v9170, %v7812
  %v9252 = vsel %vm3879, %v9171, %v7814
  %v9253 = vsel %vm3879, %v9172, %v7816
  %v9254 = vsel %vm3879, %v9173, %v7818
  %v9255 = vsel %vm3879, %v9174, %v7820
  %v9256 = vsel %vm3879, %v9175, %v7822
  %v9257 = vsel %vm3879, %v9176, %v7824
  %v9258 = vsel %vm3879, %v9177, %v7826
  %v9259 = vsel %vm3879, %v9178, %v7828
  %v9260 = vsel %vm3879, %v9179, %v7830
  %v9261 = vsel %vm3879, %v9180, %v7832
  %v9262 = vsel %vm3879, %v9181, %v7834
  %v9263 = vsel %vm3879, %v9182, %v7836
  %v9264 = vsel %vm3879, %v9183, %v7838
  %v9265 = vsel %vm3879, %v9184, %v7840
  %v9266 = vsel %vm3879, %v9185, %v7842
  %v9267 = vsel %vm3879, %v9186, %v7844
  %v9268 = vsel %vm3879, %v9187, %v7846
  %v9269 = vsel %vm3879, %v9188, %v7848
  %v9270 = vsel %vm3879, %v9189, %v7850
  %v9271 = vsel %vm3879, %v9190, %v7852
  %v9272 = vsel %vm3879, %v9191, %v7854
  %v9273 = vsel %vm3879, %v9192, %v7856
  %v9274 = vsel %vm3879, %v9193, %v7858
  %v9275 = vsel %vm3879, %v9194, %v7860
  %v9276 = vsel %vm3879, %v9195, %v7862
  %v9277 = vsel %vm3879, %v9196, %v7864
  %v9278 = vsel %vm3879, %v9197, %v7866
  %v9279 = vsel %vm3879, %v9198, %v7868
  %v9280 = vsel %vm3879, %v9199, %v7870
  %v9281 = vsel %vm3879, %v9200, %v7872
  %v9282 = vsel %vm3879, %v9201, %v7874
  %v9283 = vsel %vm3879, %v9202, %v7876
  %v9284 = vsel %vm3879, %v9203, %v7878
  %v9285 = vsel %vm3879, %v9204, %v7880
  %v9286 = vsel %vm3879, %v9205, %v7882
  %v9287 = vsel %vm3879, %v9206, %v7884
  %v9288 = vsel %vm3879, %v9207, %v7886
  %v9289 = vsel %vm3879, %v9208, %v7888
  %v9290 = vsel %vm3879, %v9209, %v7890
  %v9291 = vsel %vm3879, %v9210, %v7892
  %v9292 = vsel %vm3879, %v9211, %v7894
  %v9293 = vsel %vm3879, %v9212, %v7896
  %v9294 = vsel %vm3879, %v9213, %v7898
  %v9295 = vsel %vm3879, %v9214, %v7900
  %v9296 = vsel %vm3879, %v9215, %v7902
  %v9297 = vsel %vm3879, %v9216, %v7904
  %v9298 = vsel %vm3879, %v9217, %v7906
  %v9299 = vsel %vm3879, %v9218, %v7908
  %v9300 = vsel %vm3879, %v9219, %v7910
  %v9301 = vsel %vm3879, %v9220, %v7912
  %v9302 = vsel %vm3879, %v9221, %v7914
  %v9303 = vsel %vm3879, %v9222, %v7916
  %v9304 = vsel %vm3879, %v9223, %v7918
  %v9305 = vsel %vm3879, %v9224, %v7920
  %v9306 = vsel %vm3879, %v9225, %v7922
  %v9307 = vsel %vm3879, %v9226, %v7924
  %v9308 = vsel %vm3879, %v9227, %v7926
  %v9309 = vsel %vm3879, %v9228, %v7928
  %v9310 = vsel %vm3879, %v9229, %v7930
  %vm9311 = vcmask 326656
  %v9312 = vsel %vm9311, %v9230, %v8014
  %v9313 = vsel %vm9311, %v9231, %v8016
  %v9314 = vsel %vm9311, %v9232, %v8018
  %v9315 = vsel %vm9311, %v9233, %v8020
  %v9316 = vsel %vm9311, %v9234, %v8022
  %v9317 = vsel %vm9311, %v9235, %v8024
  %v9318 = vsel %vm9311, %v9236, %v8026
  %v9319 = vsel %vm9311, %v9237, %v8028
  %v9320 = vsel %vm9311, %v9238, %v8030
  %v9321 = vsel %vm9311, %v9239, %v8032
  %v9322 = vsel %vm9311, %v9240, %v8034
  %v9323 = vsel %vm9311, %v9241, %v8036
  %v9324 = vsel %vm9311, %v9242, %v8038
  %v9325 = vsel %vm9311, %v9243, %v8040
  %v9326 = vsel %vm9311, %v9244, %v8042
  %v9327 = vsel %vm9311, %v9245, %v8044
  %v9328 = vsel %vm9311, %v9246, %v8046
  %v9329 = vsel %vm9311, %v9247, %v8048
  %v9330 = vsel %vm9311, %v9248, %v8050
  %v9331 = vsel %vm9311, %v9249, %v8052
  %v9332 = vsel %vm9311, %v9250, %v8054
  %v9333 = vsel %vm9311, %v9251, %v8056
  %v9334 = vsel %vm9311, %v9252, %v8058
  %v9335 = vsel %vm9311, %v9253, %v8060
  %v9336 = vsel %vm9311, %v9254, %v8062
  %v9337 = vsel %vm9311, %v9255, %v8064
  %v9338 = vsel %vm9311, %v9256, %v8066
  %v9339 = vsel %vm9311, %v9257, %v8068
  %v9340 = vsel %vm9311, %v9258, %v8070
  %v9341 = vsel %vm9311, %v9259, %v8072
  %v9342 = vsel %vm9311, %v9260, %v8074
  %v9343 = vsel %vm9311, %v9261, %v8076
  %v9344 = vsel %vm9311, %v9262, %v8078
  %v9345 = vsel %vm9311, %v9263, %v8080
  %v9346 = vsel %vm9311, %v9264, %v8082
  %v9347 = vsel %vm9311, %v9265, %v8084
  %v9348 = vsel %vm9311, %v9266, %v8086
  %v9349 = vsel %vm9311, %v9267, %v8088
  %v9350 = vsel %vm9311, %v9268, %v8090
  %v9351 = vsel %vm9311, %v9269, %v8092
  %v9352 = vsel %vm9311, %v9270, %v8094
  %v9353 = vsel %vm9311, %v9271, %v8096
  %v9354 = vsel %vm9311, %v9272, %v8098
  %v9355 = vsel %vm9311, %v9273, %v8100
  %v9356 = vsel %vm9311, %v9274, %v8102
  %v9357 = vsel %vm9311, %v9275, %v8104
  %v9358 = vsel %vm9311, %v9276, %v8106
  %v9359 = vsel %vm9311, %v9277, %v8108
  %v9360 = vsel %vm9311, %v9278, %v8110
  %v9361 = vsel %vm9311, %v9279, %v8112
  %v9362 = vsel %vm9311, %v9280, %v8114
  %v9363 = vsel %vm9311, %v9281, %v8116
  %v9364 = vsel %vm9311, %v9282, %v8118
  %v9365 = vsel %vm9311, %v9283, %v8120
  %v9366 = vsel %vm9311, %v9284, %v8122
  %v9367 = vsel %vm9311, %v9285, %v8124
  %v9368 = vsel %vm9311, %v9286, %v8126
  %v9369 = vsel %vm9311, %v9287, %v8128
  %v9370 = vsel %vm9311, %v9288, %v8130
  %v9371 = vsel %vm9311, %v9289, %v8132
  %v9372 = vsel %vm9311, %v9290, %v8134
  %v9373 = vsel %vm9311, %v9291, %v8136
  %v9374 = vsel %vm9311, %v9292, %v8138
  %v9375 = vsel %vm9311, %v9293, %v8140
  %v9376 = vsel %vm9311, %v9294, %v8142
  %v9377 = vsel %vm9311, %v9295, %v8144
  %v9378 = vsel %vm9311, %v9296, %v8146
  %v9379 = vsel %vm9311, %v9297, %v8148
  %v9380 = vsel %vm9311, %v9298, %v8150
  %v9381 = vsel %vm9311, %v9299, %v8152
  %v9382 = vsel %vm9311, %v9300, %v8154
  %v9383 = vsel %vm9311, %v9301, %v8156
  %v9384 = vsel %vm9311, %v9302, %v8158
  %v9385 = vsel %vm9311, %v9303, %v8160
  %v9386 = vsel %vm9311, %v9304, %v8162
  %v9387 = vsel %vm9311, %v9305, %v8164
  %v9388 = vsel %vm9311, %v9306, %v8166
  %v9389 = vsel %vm9311, %v9307, %v8168
  %v9390 = vsel %vm9311, %v9308, %v8170
  %v9391 = vsel %vm9311, %v9309, %v8172
  %v9392 = vsel %vm9311, %v9310, %v8174
  %vm9393 = vcmask 392192
  %v9394 = vsel %vm9393, %v9312, %v8257
  %v9395 = vsel %vm9393, %v9313, %v8259
  %v9396 = vsel %vm9393, %v9314, %v8261
  %v9397 = vsel %vm9393, %v9315, %v8263
  %v9398 = vsel %vm9393, %v9316, %v8265
  %v9399 = vsel %vm9393, %v9317, %v8267
  %v9400 = vsel %vm9393, %v9318, %v8269
  %v9401 = vsel %vm9393, %v9319, %v8271
  %v9402 = vsel %vm9393, %v9320, %v8273
  %v9403 = vsel %vm9393, %v9321, %v8275
  %v9404 = vsel %vm9393, %v9322, %v8277
  %v9405 = vsel %vm9393, %v9323, %v8279
  %v9406 = vsel %vm9393, %v9324, %v8281
  %v9407 = vsel %vm9393, %v9325, %v8283
  %v9408 = vsel %vm9393, %v9326, %v8285
  %v9409 = vsel %vm9393, %v9327, %v8287
  %v9410 = vsel %vm9393, %v9328, %v8289
  %v9411 = vsel %vm9393, %v9329, %v8291
  %v9412 = vsel %vm9393, %v9330, %v8293
  %v9413 = vsel %vm9393, %v9331, %v8295
  %v9414 = vsel %vm9393, %v9332, %v8297
  %v9415 = vsel %vm9393, %v9333, %v8299
  %v9416 = vsel %vm9393, %v9334, %v8301
  %v9417 = vsel %vm9393, %v9335, %v8303
  %v9418 = vsel %vm9393, %v9336, %v8305
  %v9419 = vsel %vm9393, %v9337, %v8307
  %v9420 = vsel %vm9393, %v9338, %v8309
  %v9421 = vsel %vm9393, %v9339, %v8311
  %v9422 = vsel %vm9393, %v9340, %v8313
  %v9423 = vsel %vm9393, %v9341, %v8315
  %v9424 = vsel %vm9393, %v9342, %v8317
  %v9425 = vsel %vm9393, %v9343, %v8319
  %v9426 = vsel %vm9393, %v9344, %v8321
  %v9427 = vsel %vm9393, %v9345, %v8323
  %v9428 = vsel %vm9393, %v9346, %v8325
  %v9429 = vsel %vm9393, %v9347, %v8327
  %v9430 = vsel %vm9393, %v9348, %v8329
  %v9431 = vsel %vm9393, %v9349, %v8331
  %v9432 = vsel %vm9393, %v9350, %v8333
  %v9433 = vsel %vm9393, %v9351, %v8335
  %v9434 = vsel %vm9393, %v9352, %v8337
  %v9435 = vsel %vm9393, %v9353, %v8339
  %v9436 = vsel %vm9393, %v9354, %v8341
  %v9437 = vsel %vm9393, %v9355, %v8343
  %v9438 = vsel %vm9393, %v9356, %v8345
  %v9439 = vsel %vm9393, %v9357, %v8347
  %v9440 = vsel %vm9393, %v9358, %v8349
  %v9441 = vsel %vm9393, %v9359, %v8351
  %v9442 = vsel %vm9393, %v9360, %v8353
  %v9443 = vsel %vm9393, %v9361, %v8355
  %v9444 = vsel %vm9393, %v9362, %v8357
  %v9445 = vsel %vm9393, %v9363, %v8359
  %v9446 = vsel %vm9393, %v9364, %v8361
  %v9447 = vsel %vm9393, %v9365, %v8363
  %v9448 = vsel %vm9393, %v9366, %v8365
  %v9449 = vsel %vm9393, %v9367, %v8367
  %v9450 = vsel %vm9393, %v9368, %v8369
  %v9451 = vsel %vm9393, %v9369, %v8371
  %v9452 = vsel %vm9393, %v9370, %v8373
  %v9453 = vsel %vm9393, %v9371, %v8375
  %v9454 = vsel %vm9393, %v9372, %v8377
  %v9455 = vsel %vm9393, %v9373, %v8379
  %v9456 = vsel %vm9393, %v9374, %v8381
  %v9457 = vsel %vm9393, %v9375, %v8383
  %v9458 = vsel %vm9393, %v9376, %v8385
  %v9459 = vsel %vm9393, %v9377, %v8387
  %v9460 = vsel %vm9393, %v9378, %v8389
  %v9461 = vsel %vm9393, %v9379, %v8391
  %v9462 = vsel %vm9393, %v9380, %v8393
  %v9463 = vsel %vm9393, %v9381, %v8395
  %v9464 = vsel %vm9393, %v9382, %v8397
  %v9465 = vsel %vm9393, %v9383, %v8399
  %v9466 = vsel %vm9393, %v9384, %v8401
  %v9467 = vsel %vm9393, %v9385, %v8403
  %v9468 = vsel %vm9393, %v9386, %v8405
  %v9469 = vsel %vm9393, %v9387, %v8407
  %v9470 = vsel %vm9393, %v9388, %v8409
  %v9471 = vsel %vm9393, %v9389, %v8411
  %v9472 = vsel %vm9393, %v9390, %v8413
  %v9473 = vsel %vm9393, %v9391, %v8415
  %v9474 = vsel %vm9393, %v9392, %v8417
  %vm9475 = vcmask 457728
  %v9476 = vsel %vm9475, %v9394, %v8501
  %v9477 = vsel %vm9475, %v9395, %v8503
  %v9478 = vsel %vm9475, %v9396, %v8505
  %v9479 = vsel %vm9475, %v9397, %v8507
  %v9480 = vsel %vm9475, %v9398, %v8509
  %v9481 = vsel %vm9475, %v9399, %v8511
  %v9482 = vsel %vm9475, %v9400, %v8513
  %v9483 = vsel %vm9475, %v9401, %v8515
  %v9484 = vsel %vm9475, %v9402, %v8517
  %v9485 = vsel %vm9475, %v9403, %v8519
  %v9486 = vsel %vm9475, %v9404, %v8521
  %v9487 = vsel %vm9475, %v9405, %v8523
  %v9488 = vsel %vm9475, %v9406, %v8525
  %v9489 = vsel %vm9475, %v9407, %v8527
  %v9490 = vsel %vm9475, %v9408, %v8529
  %v9491 = vsel %vm9475, %v9409, %v8531
  %v9492 = vsel %vm9475, %v9410, %v8533
  %v9493 = vsel %vm9475, %v9411, %v8535
  %v9494 = vsel %vm9475, %v9412, %v8537
  %v9495 = vsel %vm9475, %v9413, %v8539
  %v9496 = vsel %vm9475, %v9414, %v8541
  %v9497 = vsel %vm9475, %v9415, %v8543
  %v9498 = vsel %vm9475, %v9416, %v8545
  %v9499 = vsel %vm9475, %v9417, %v8547
  %v9500 = vsel %vm9475, %v9418, %v8549
  %v9501 = vsel %vm9475, %v9419, %v8551
  %v9502 = vsel %vm9475, %v9420, %v8553
  %v9503 = vsel %vm9475, %v9421, %v8555
  %v9504 = vsel %vm9475, %v9422, %v8557
  %v9505 = vsel %vm9475, %v9423, %v8559
  %v9506 = vsel %vm9475, %v9424, %v8561
  %v9507 = vsel %vm9475, %v9425, %v8563
  %v9508 = vsel %vm9475, %v9426, %v8565
  %v9509 = vsel %vm9475, %v9427, %v8567
  %v9510 = vsel %vm9475, %v9428, %v8569
  %v9511 = vsel %vm9475, %v9429, %v8571
  %v9512 = vsel %vm9475, %v9430, %v8573
  %v9513 = vsel %vm9475, %v9431, %v8575
  %v9514 = vsel %vm9475, %v9432, %v8577
  %v9515 = vsel %vm9475, %v9433, %v8579
  %v9516 = vsel %vm9475, %v9434, %v8581
  %v9517 = vsel %vm9475, %v9435, %v8583
  %v9518 = vsel %vm9475, %v9436, %v8585
  %v9519 = vsel %vm9475, %v9437, %v8587
  %v9520 = vsel %vm9475, %v9438, %v8589
  %v9521 = vsel %vm9475, %v9439, %v8591
  %v9522 = vsel %vm9475, %v9440, %v8593
  %v9523 = vsel %vm9475, %v9441, %v8595
  %v9524 = vsel %vm9475, %v9442, %v8597
  %v9525 = vsel %vm9475, %v9443, %v8599
  %v9526 = vsel %vm9475, %v9444, %v8601
  %v9527 = vsel %vm9475, %v9445, %v8603
  %v9528 = vsel %vm9475, %v9446, %v8605
  %v9529 = vsel %vm9475, %v9447, %v8607
  %v9530 = vsel %vm9475, %v9448, %v8609
  %v9531 = vsel %vm9475, %v9449, %v8611
  %v9532 = vsel %vm9475, %v9450, %v8613
  %v9533 = vsel %vm9475, %v9451, %v8615
  %v9534 = vsel %vm9475, %v9452, %v8617
  %v9535 = vsel %vm9475, %v9453, %v8619
  %v9536 = vsel %vm9475, %v9454, %v8621
  %v9537 = vsel %vm9475, %v9455, %v8623
  %v9538 = vsel %vm9475, %v9456, %v8625
  %v9539 = vsel %vm9475, %v9457, %v8627
  %v9540 = vsel %vm9475, %v9458, %v8629
  %v9541 = vsel %vm9475, %v9459, %v8631
  %v9542 = vsel %vm9475, %v9460, %v8633
  %v9543 = vsel %vm9475, %v9461, %v8635
  %v9544 = vsel %vm9475, %v9462, %v8637
  %v9545 = vsel %vm9475, %v9463, %v8639
  %v9546 = vsel %vm9475, %v9464, %v8641
  %v9547 = vsel %vm9475, %v9465, %v8643
  %v9548 = vsel %vm9475, %v9466, %v8645
  %v9549 = vsel %vm9475, %v9467, %v8647
  %v9550 = vsel %vm9475, %v9468, %v8649
  %v9551 = vsel %vm9475, %v9469, %v8651
  %v9552 = vsel %vm9475, %v9470, %v8653
  %v9553 = vsel %vm9475, %v9471, %v8655
  %v9554 = vsel %vm9475, %v9472, %v8657
  %v9555 = vsel %vm9475, %v9473, %v8659
  %v9556 = vsel %vm9475, %v9474, %v8661
  %vm9557 = vcmask 523264
  %v9558 = vsel %vm9557, %v9476, %v8745
  %v9559 = vsel %vm9557, %v9477, %v8747
  %v9560 = vsel %vm9557, %v9478, %v8749
  %v9561 = vsel %vm9557, %v9479, %v8751
  %v9562 = vsel %vm9557, %v9480, %v8753
  %v9563 = vsel %vm9557, %v9481, %v8755
  %v9564 = vsel %vm9557, %v9482, %v8757
  %v9565 = vsel %vm9557, %v9483, %v8759
  %v9566 = vsel %vm9557, %v9484, %v8761
  %v9567 = vsel %vm9557, %v9485, %v8763
  %v9568 = vsel %vm9557, %v9486, %v8765
  %v9569 = vsel %vm9557, %v9487, %v8767
  %v9570 = vsel %vm9557, %v9488, %v8769
  %v9571 = vsel %vm9557, %v9489, %v8771
  %v9572 = vsel %vm9557, %v9490, %v8773
  %v9573 = vsel %vm9557, %v9491, %v8775
  %v9574 = vsel %vm9557, %v9492, %v8777
  %v9575 = vsel %vm9557, %v9493, %v8779
  %v9576 = vsel %vm9557, %v9494, %v8781
  %v9577 = vsel %vm9557, %v9495, %v8783
  %v9578 = vsel %vm9557, %v9496, %v8785
  %v9579 = vsel %vm9557, %v9497, %v8787
  %v9580 = vsel %vm9557, %v9498, %v8789
  %v9581 = vsel %vm9557, %v9499, %v8791
  %v9582 = vsel %vm9557, %v9500, %v8793
  %v9583 = vsel %vm9557, %v9501, %v8795
  %v9584 = vsel %vm9557, %v9502, %v8797
  %v9585 = vsel %vm9557, %v9503, %v8799
  %v9586 = vsel %vm9557, %v9504, %v8801
  %v9587 = vsel %vm9557, %v9505, %v8803
  %v9588 = vsel %vm9557, %v9506, %v8805
  %v9589 = vsel %vm9557, %v9507, %v8807
  %v9590 = vsel %vm9557, %v9508, %v8809
  %v9591 = vsel %vm9557, %v9509, %v8811
  %v9592 = vsel %vm9557, %v9510, %v8813
  %v9593 = vsel %vm9557, %v9511, %v8815
  %v9594 = vsel %vm9557, %v9512, %v8817
  %v9595 = vsel %vm9557, %v9513, %v8819
  %v9596 = vsel %vm9557, %v9514, %v8821
  %v9597 = vsel %vm9557, %v9515, %v8823
  %v9598 = vsel %vm9557, %v9516, %v8825
  %v9599 = vsel %vm9557, %v9517, %v8827
  %v9600 = vsel %vm9557, %v9518, %v8829
  %v9601 = vsel %vm9557, %v9519, %v8831
  %v9602 = vsel %vm9557, %v9520, %v8833
  %v9603 = vsel %vm9557, %v9521, %v8835
  %v9604 = vsel %vm9557, %v9522, %v8837
  %v9605 = vsel %vm9557, %v9523, %v8839
  %v9606 = vsel %vm9557, %v9524, %v8841
  %v9607 = vsel %vm9557, %v9525, %v8843
  %v9608 = vsel %vm9557, %v9526, %v8845
  %v9609 = vsel %vm9557, %v9527, %v8847
  %v9610 = vsel %vm9557, %v9528, %v8849
  %v9611 = vsel %vm9557, %v9529, %v8851
  %v9612 = vsel %vm9557, %v9530, %v8853
  %v9613 = vsel %vm9557, %v9531, %v8855
  %v9614 = vsel %vm9557, %v9532, %v8857
  %v9615 = vsel %vm9557, %v9533, %v8859
  %v9616 = vsel %vm9557, %v9534, %v8861
  %v9617 = vsel %vm9557, %v9535, %v8863
  %v9618 = vsel %vm9557, %v9536, %v8865
  %v9619 = vsel %vm9557, %v9537, %v8867
  %v9620 = vsel %vm9557, %v9538, %v8869
  %v9621 = vsel %vm9557, %v9539, %v8871
  %v9622 = vsel %vm9557, %v9540, %v8873
  %v9623 = vsel %vm9557, %v9541, %v8875
  %v9624 = vsel %vm9557, %v9542, %v8877
  %v9625 = vsel %vm9557, %v9543, %v8879
  %v9626 = vsel %vm9557, %v9544, %v8881
  %v9627 = vsel %vm9557, %v9545, %v8883
  %v9628 = vsel %vm9557, %v9546, %v8885
  %v9629 = vsel %vm9557, %v9547, %v8887
  %v9630 = vsel %vm9557, %v9548, %v8889
  %v9631 = vsel %vm9557, %v9549, %v8891
  %v9632 = vsel %vm9557, %v9550, %v8893
  %v9633 = vsel %vm9557, %v9551, %v8895
  %v9634 = vsel %vm9557, %v9552, %v8897
  %v9635 = vsel %vm9557, %v9553, %v8899
  %v9636 = vsel %vm9557, %v9554, %v8901
  %v9637 = vsel %vm9557, %v9555, %v8903
  %v9638 = vsel %vm9557, %v9556, %v8905
  %v9640 = vperm.slane %v5890, 0
  %vm9642 = vcmask 588800
  %v9644 = vsel %vm9642, %v9558, 0
  %v9647 = vsel %vm9642, %v9559, 0
  %v9650 = vsel %vm9642, %v9560, 0
  %v9653 = vsel %vm9642, %v9561, 0
  %v9656 = vsel %vm9642, %v9562, 0
  %v9659 = vsel %vm9642, %v9563, 0
  %v9662 = vsel %vm9642, %v9564, 0
  %v9665 = vsel %vm9642, %v9565, 0
  %v9668 = vsel %vm9642, %v9566, 0
  %v9671 = vsel %vm9642, %v9567, 0
  %v9674 = vsel %vm9642, %v9568, 0
  %v9677 = vsel %vm9642, %v9569, 0
  %v9680 = vsel %vm9642, %v9570, 0
  %v9683 = vsel %vm9642, %v9571, 0
  %v9686 = vsel %vm9642, %v9572, 0
  %v9689 = vsel %vm9642, %v9573, 0
  %v9692 = vsel %vm9642, %v9574, 0
  %v9695 = vsel %vm9642, %v9575, 0
  %v9698 = vsel %vm9642, %v9576, 0
  %v9701 = vsel %vm9642, %v9577, 0
  %v9704 = vsel %vm9642, %v9578, 0
  %v9707 = vsel %vm9642, %v9579, 0
  %v9710 = vsel %vm9642, %v9580, 0
  %v9713 = vsel %vm9642, %v9581, 0
  %v9716 = vsel %vm9642, %v9582, 0
  %v9719 = vsel %vm9642, %v9583, 0
  %v9722 = vsel %vm9642, %v9584, 0
  %v9725 = vsel %vm9642, %v9585, 0
  %v9728 = vsel %vm9642, %v9586, 0
  %v9731 = vsel %vm9642, %v9587, 0
  %v9734 = vsel %vm9642, %v9588, 0
  %v9737 = vsel %vm9642, %v9589, 0
  %v9740 = vsel %vm9642, %v9590, 0
  %v9743 = vsel %vm9642, %v9591, 0
  %v9746 = vsel %vm9642, %v9592, 0
  %v9749 = vsel %vm9642, %v9593, 0
  %v9752 = vsel %vm9642, %v9594, 0
  %v9755 = vsel %vm9642, %v9595, 0
  %v9758 = vsel %vm9642, %v9596, 0
  %v9761 = vsel %vm9642, %v9597, 0
  %v9764 = vsel %vm9642, %v9598, 0
  %v9767 = vsel %vm9642, %v9599, 0
  %v9770 = vsel %vm9642, %v9600, 0
  %v9773 = vsel %vm9642, %v9601, 0
  %v9776 = vsel %vm9642, %v9602, 0
  %v9779 = vsel %vm9642, %v9603, 0
  %v9782 = vsel %vm9642, %v9604, 0
  %v9785 = vsel %vm9642, %v9605, 0
  %v9788 = vsel %vm9642, %v9606, 0
  %v9791 = vsel %vm9642, %v9607, 0
  %v9794 = vsel %vm9642, %v9608, 0
  %v9797 = vsel %vm9642, %v9609, 0
  %v9800 = vsel %vm9642, %v9610, 0
  %v9803 = vsel %vm9642, %v9611, 0
  %v9806 = vsel %vm9642, %v9612, 0
  %v9809 = vsel %vm9642, %v9613, 0
  %v9812 = vsel %vm9642, %v9614, 0
  %v9815 = vsel %vm9642, %v9615, 0
  %v9818 = vsel %vm9642, %v9616, 0
  %v9821 = vsel %vm9642, %v9617, 0
  %v9824 = vsel %vm9642, %v9618, 0
  %v9827 = vsel %vm9642, %v9619, 0
  %v9830 = vsel %vm9642, %v9620, 0
  %v9833 = vsel %vm9642, %v9621, 0
  %v9836 = vsel %vm9642, %v9622, 0
  %v9839 = vsel %vm9642, %v9623, 0
  %v9842 = vsel %vm9642, %v9624, 0
  %v9845 = vsel %vm9642, %v9625, 0
  %v9848 = vsel %vm9642, %v9626, 0
  %v9851 = vsel %vm9642, %v9627, 0
  %v9854 = vsel %vm9642, %v9628, 0
  %v9857 = vsel %vm9642, %v9629, 0
  %v9860 = vsel %vm9642, %v9630, 0
  %v9863 = vsel %vm9642, %v9631, 0
  %v9866 = vsel %vm9642, %v9632, 0
  %v9869 = vsel %vm9642, %v9633, 0
  %v9872 = vsel %vm9642, %v9634, 0
  %v9875 = vsel %vm9642, %v9635, 0
  %v9878 = vsel %vm9642, %v9636, 0
  %v9881 = vsel %vm9642, %v9637, 0
  %v9884 = vsel %vm9642, %v9638, 0
  %9886 = vmatpush.msra.mxu0 0.0
  %9887 = vmatpush.msra.mxu0 0.0
  %9888 = vmatpush.msra.mxu0 0.0
  %9889 = vmatpush.msra.mxu0 0.0
  %9890 = vmatpush.msra.mxu0 0.0
  %9891 = vmatpush.msra.mxu0 0.0
  %9892 = vmatpush.msra.mxu0 0.0
  %9893 = vmatpush.msra.mxu0 %v5889
  %9894 = vmatpush.msra.mxu0 %v5888
  %9895 = vmatpush.msra.mxu0 %v5887
  %9896 = vmatpush.msra.mxu0 %v5886
  %9897 = vmatpush.msra.mxu0 %v5885
  %9898 = vmatpush.msra.mxu0 %v5884
  %9899 = vmatpush.msra.mxu0 %v5883
  %9900 = vmatpush.msra.mxu0 %v5882
  %9901 = vmatpush.msra.mxu0 %v5881
  %9902 = vmatmul.f32.gmra.mxu0 %v9644
  %v9903 = vpop.f32.mrf.mxu0
  %v9904 = vadd.f32 %v9640, %v9903
  %9905 = vmatmul.f32.gmra.mxu0 %v9647
  %v9906 = vpop.f32.mrf.mxu0
  %v9907 = vadd.f32 %v9640, %v9906
  %9908 = vmatmul.f32.gmra.mxu0 %v9650
  %v9909 = vpop.f32.mrf.mxu0
  %v9910 = vadd.f32 %v9640, %v9909
  %9911 = vmatmul.f32.gmra.mxu0 %v9653
  %v9912 = vpop.f32.mrf.mxu0
  %v9913 = vadd.f32 %v9640, %v9912
  %9914 = vmatmul.f32.gmra.mxu0 %v9656
  %v9915 = vpop.f32.mrf.mxu0
  %v9916 = vadd.f32 %v9640, %v9915
  %9917 = vmatmul.f32.gmra.mxu0 %v9659
  %v9918 = vpop.f32.mrf.mxu0
  %v9919 = vadd.f32 %v9640, %v9918
  %9920 = vmatmul.f32.gmra.mxu0 %v9662
  %v9921 = vpop.f32.mrf.mxu0
  %v9922 = vadd.f32 %v9640, %v9921
  %9923 = vmatmul.f32.gmra.mxu0 %v9665
  %v9924 = vpop.f32.mrf.mxu0
  %v9925 = vadd.f32 %v9640, %v9924
  %9926 = vmatmul.f32.gmra.mxu0 %v9668
  %v9927 = vpop.f32.mrf.mxu0
  %v9928 = vadd.f32 %v9640, %v9927
  %9929 = vmatmul.f32.gmra.mxu0 %v9671
  %v9930 = vpop.f32.mrf.mxu0
  %v9931 = vadd.f32 %v9640, %v9930
  %9932 = vmatmul.f32.gmra.mxu0 %v9674
  %v9933 = vpop.f32.mrf.mxu0
  %v9934 = vadd.f32 %v9640, %v9933
  %9935 = vmatmul.f32.gmra.mxu0 %v9677
  %v9936 = vpop.f32.mrf.mxu0
  %v9937 = vadd.f32 %v9640, %v9936
  %9938 = vmatmul.f32.gmra.mxu0 %v9680
  %v9939 = vpop.f32.mrf.mxu0
  %v9940 = vadd.f32 %v9640, %v9939
  %9941 = vmatmul.f32.gmra.mxu0 %v9683
  %v9942 = vpop.f32.mrf.mxu0
  %v9943 = vadd.f32 %v9640, %v9942
  %9944 = vmatmul.f32.gmra.mxu0 %v9686
  %v9945 = vpop.f32.mrf.mxu0
  %v9946 = vadd.f32 %v9640, %v9945
  %9947 = vmatmul.f32.gmra.mxu0 %v9689
  %v9948 = vpop.f32.mrf.mxu0
  %v9949 = vadd.f32 %v9640, %v9948
  %9950 = vmatmul.f32.gmra.mxu0 %v9692
  %v9951 = vpop.f32.mrf.mxu0
  %v9952 = vadd.f32 %v9640, %v9951
  %9953 = vmatmul.f32.gmra.mxu0 %v9695
  %v9954 = vpop.f32.mrf.mxu0
  %v9955 = vadd.f32 %v9640, %v9954
  %9956 = vmatmul.f32.gmra.mxu0 %v9698
  %v9957 = vpop.f32.mrf.mxu0
  %v9958 = vadd.f32 %v9640, %v9957
  %9959 = vmatmul.f32.gmra.mxu0 %v9701
  %v9960 = vpop.f32.mrf.mxu0
  %v9961 = vadd.f32 %v9640, %v9960
  %9962 = vmatmul.f32.gmra.mxu0 %v9704
  %v9963 = vpop.f32.mrf.mxu0
  %v9964 = vadd.f32 %v9640, %v9963
  %9965 = vmatmul.f32.gmra.mxu0 %v9707
  %v9966 = vpop.f32.mrf.mxu0
  %v9967 = vadd.f32 %v9640, %v9966
  %9968 = vmatmul.f32.gmra.mxu0 %v9710
  %v9969 = vpop.f32.mrf.mxu0
  %v9970 = vadd.f32 %v9640, %v9969
  %9971 = vmatmul.f32.gmra.mxu0 %v9713
  %v9972 = vpop.f32.mrf.mxu0
  %v9973 = vadd.f32 %v9640, %v9972
  %9974 = vmatmul.f32.gmra.mxu0 %v9716
  %v9975 = vpop.f32.mrf.mxu0
  %v9976 = vadd.f32 %v9640, %v9975
  %9977 = vmatmul.f32.gmra.mxu0 %v9719
  %v9978 = vpop.f32.mrf.mxu0
  %v9979 = vadd.f32 %v9640, %v9978
  %9980 = vmatmul.f32.gmra.mxu0 %v9722
  %v9981 = vpop.f32.mrf.mxu0
  %v9982 = vadd.f32 %v9640, %v9981
  %9983 = vmatmul.f32.gmra.mxu0 %v9725
  %v9984 = vpop.f32.mrf.mxu0
  %v9985 = vadd.f32 %v9640, %v9984
  %9986 = vmatmul.f32.gmra.mxu0 %v9728
  %v9987 = vpop.f32.mrf.mxu0
  %v9988 = vadd.f32 %v9640, %v9987
  %9989 = vmatmul.f32.gmra.mxu0 %v9731
  %v9990 = vpop.f32.mrf.mxu0
  %v9991 = vadd.f32 %v9640, %v9990
  %9992 = vmatmul.f32.gmra.mxu0 %v9734
  %v9993 = vpop.f32.mrf.mxu0
  %v9994 = vadd.f32 %v9640, %v9993
  %9995 = vmatmul.f32.gmra.mxu0 %v9737
  %v9996 = vpop.f32.mrf.mxu0
  %v9997 = vadd.f32 %v9640, %v9996
  %9998 = vmatmul.f32.gmra.mxu0 %v9740
  %v9999 = vpop.f32.mrf.mxu0
  %v10000 = vadd.f32 %v9640, %v9999
  %10001 = vmatmul.f32.gmra.mxu0 %v9743
  %v10002 = vpop.f32.mrf.mxu0
  %v10003 = vadd.f32 %v9640, %v10002
  %10004 = vmatmul.f32.gmra.mxu0 %v9746
  %v10005 = vpop.f32.mrf.mxu0
  %v10006 = vadd.f32 %v9640, %v10005
  %10007 = vmatmul.f32.gmra.mxu0 %v9749
  %v10008 = vpop.f32.mrf.mxu0
  %v10009 = vadd.f32 %v9640, %v10008
  %10010 = vmatmul.f32.gmra.mxu0 %v9752
  %v10011 = vpop.f32.mrf.mxu0
  %v10012 = vadd.f32 %v9640, %v10011
  %10013 = vmatmul.f32.gmra.mxu0 %v9755
  %v10014 = vpop.f32.mrf.mxu0
  %v10015 = vadd.f32 %v9640, %v10014
  %10016 = vmatmul.f32.gmra.mxu0 %v9758
  %v10017 = vpop.f32.mrf.mxu0
  %v10018 = vadd.f32 %v9640, %v10017
  %10019 = vmatmul.f32.gmra.mxu0 %v9761
  %v10020 = vpop.f32.mrf.mxu0
  %v10021 = vadd.f32 %v9640, %v10020
  %10022 = vmatmul.f32.gmra.mxu0 %v9764
  %v10023 = vpop.f32.mrf.mxu0
  %v10024 = vadd.f32 %v9640, %v10023
  %10025 = vmatmul.f32.gmra.mxu0 %v9767
  %v10026 = vpop.f32.mrf.mxu0
  %v10027 = vadd.f32 %v9640, %v10026
  %10028 = vmatmul.f32.gmra.mxu0 %v9770
  %v10029 = vpop.f32.mrf.mxu0
  %v10030 = vadd.f32 %v9640, %v10029
  %10031 = vmatmul.f32.gmra.mxu0 %v9773
  %v10032 = vpop.f32.mrf.mxu0
  %v10033 = vadd.f32 %v9640, %v10032
  %10034 = vmatmul.f32.gmra.mxu0 %v9776
  %v10035 = vpop.f32.mrf.mxu0
  %v10036 = vadd.f32 %v9640, %v10035
  %10037 = vmatmul.f32.gmra.mxu0 %v9779
  %v10038 = vpop.f32.mrf.mxu0
  %v10039 = vadd.f32 %v9640, %v10038
  %10040 = vmatmul.f32.gmra.mxu0 %v9782
  %v10041 = vpop.f32.mrf.mxu0
  %v10042 = vadd.f32 %v9640, %v10041
  %10043 = vmatmul.f32.gmra.mxu0 %v9785
  %v10044 = vpop.f32.mrf.mxu0
  %v10045 = vadd.f32 %v9640, %v10044
  %10046 = vmatmul.f32.gmra.mxu0 %v9788
  %v10047 = vpop.f32.mrf.mxu0
  %v10048 = vadd.f32 %v9640, %v10047
  %10049 = vmatmul.f32.gmra.mxu0 %v9791
  %v10050 = vpop.f32.mrf.mxu0
  %v10051 = vadd.f32 %v9640, %v10050
  %10052 = vmatmul.f32.gmra.mxu0 %v9794
  %v10053 = vpop.f32.mrf.mxu0
  %v10054 = vadd.f32 %v9640, %v10053
  %10055 = vmatmul.f32.gmra.mxu0 %v9797
  %v10056 = vpop.f32.mrf.mxu0
  %v10057 = vadd.f32 %v9640, %v10056
  %10058 = vmatmul.f32.gmra.mxu0 %v9800
  %v10059 = vpop.f32.mrf.mxu0
  %v10060 = vadd.f32 %v9640, %v10059
  %10061 = vmatmul.f32.gmra.mxu0 %v9803
  %v10062 = vpop.f32.mrf.mxu0
  %v10063 = vadd.f32 %v9640, %v10062
  %10064 = vmatmul.f32.gmra.mxu0 %v9806
  %v10065 = vpop.f32.mrf.mxu0
  %v10066 = vadd.f32 %v9640, %v10065
  %10067 = vmatmul.f32.gmra.mxu0 %v9809
  %v10068 = vpop.f32.mrf.mxu0
  %v10069 = vadd.f32 %v9640, %v10068
  %10070 = vmatmul.f32.gmra.mxu0 %v9812
  %v10071 = vpop.f32.mrf.mxu0
  %v10072 = vadd.f32 %v9640, %v10071
  %10073 = vmatmul.f32.gmra.mxu0 %v9815
  %v10074 = vpop.f32.mrf.mxu0
  %v10075 = vadd.f32 %v9640, %v10074
  %10076 = vmatmul.f32.gmra.mxu0 %v9818
  %v10077 = vpop.f32.mrf.mxu0
  %v10078 = vadd.f32 %v9640, %v10077
  %10079 = vmatmul.f32.gmra.mxu0 %v9821
  %v10080 = vpop.f32.mrf.mxu0
  %v10081 = vadd.f32 %v9640, %v10080
  %10082 = vmatmul.f32.gmra.mxu0 %v9824
  %v10083 = vpop.f32.mrf.mxu0
  %v10084 = vadd.f32 %v9640, %v10083
  %10085 = vmatmul.f32.gmra.mxu0 %v9827
  %v10086 = vpop.f32.mrf.mxu0
  %v10087 = vadd.f32 %v9640, %v10086
  %10088 = vmatmul.f32.gmra.mxu0 %v9830
  %v10089 = vpop.f32.mrf.mxu0
  %v10090 = vadd.f32 %v9640, %v10089
  %10091 = vmatmul.f32.gmra.mxu0 %v9833
  %v10092 = vpop.f32.mrf.mxu0
  %v10093 = vadd.f32 %v9640, %v10092
  %10094 = vmatmul.f32.gmra.mxu0 %v9836
  %v10095 = vpop.f32.mrf.mxu0
  %v10096 = vadd.f32 %v9640, %v10095
  %10097 = vmatmul.f32.gmra.mxu0 %v9839
  %v10098 = vpop.f32.mrf.mxu0
  %v10099 = vadd.f32 %v9640, %v10098
  %10100 = vmatmul.f32.gmra.mxu0 %v9842
  %v10101 = vpop.f32.mrf.mxu0
  %v10102 = vadd.f32 %v9640, %v10101
  %10103 = vmatmul.f32.gmra.mxu0 %v9845
  %v10104 = vpop.f32.mrf.mxu0
  %v10105 = vadd.f32 %v9640, %v10104
  %10106 = vmatmul.f32.gmra.mxu0 %v9848
  %v10107 = vpop.f32.mrf.mxu0
  %v10108 = vadd.f32 %v9640, %v10107
  %10109 = vmatmul.f32.gmra.mxu0 %v9851
  %v10110 = vpop.f32.mrf.mxu0
  %v10111 = vadd.f32 %v9640, %v10110
  %10112 = vmatmul.f32.gmra.mxu0 %v9854
  %v10113 = vpop.f32.mrf.mxu0
  %v10114 = vadd.f32 %v9640, %v10113
  %10115 = vmatmul.f32.gmra.mxu0 %v9857
  %v10116 = vpop.f32.mrf.mxu0
  %v10117 = vadd.f32 %v9640, %v10116
  %10118 = vmatmul.f32.gmra.mxu0 %v9860
  %v10119 = vpop.f32.mrf.mxu0
  %v10120 = vadd.f32 %v9640, %v10119
  %10121 = vmatmul.f32.gmra.mxu0 %v9863
  %v10122 = vpop.f32.mrf.mxu0
  %v10123 = vadd.f32 %v9640, %v10122
  %10124 = vmatmul.f32.gmra.mxu0 %v9866
  %v10125 = vpop.f32.mrf.mxu0
  %v10126 = vadd.f32 %v9640, %v10125
  %10127 = vmatmul.f32.gmra.mxu0 %v9869
  %v10128 = vpop.f32.mrf.mxu0
  %v10129 = vadd.f32 %v9640, %v10128
  %10130 = vmatmul.f32.gmra.mxu0 %v9872
  %v10131 = vpop.f32.mrf.mxu0
  %v10132 = vadd.f32 %v9640, %v10131
  %10133 = vmatmul.f32.gmra.mxu0 %v9875
  %v10134 = vpop.f32.mrf.mxu0
  %v10135 = vadd.f32 %v9640, %v10134
  %10136 = vmatmul.f32.gmra.mxu0 %v9878
  %v10137 = vpop.f32.mrf.mxu0
  %v10138 = vadd.f32 %v9640, %v10137
  %10139 = vmatmul.f32.gmra.mxu0 %v9881
  %v10140 = vpop.f32.mrf.mxu0
  %v10141 = vadd.f32 %v9640, %v10140
  %10142 = vmatmul.f32.gmra.mxu0 %v9884
  %v10143 = vpop.f32.mrf.mxu0
  %v10144 = vadd.f32 %v9640, %v10143
  %10145 = vdwg.mxu0
  %v10146 = vmul.f32 %v9904, %v4475
  %v10147 = vmul.f32 %v9907, %v4480
  %v10148 = vmul.f32 %v9910, %v4485
  %v10149 = vmul.f32 %v9913, %v4490
  %v10150 = vmul.f32 %v9916, %v4495
  %v10151 = vmul.f32 %v9919, %v4500
  %v10152 = vmul.f32 %v9922, %v4505
  %v10153 = vmul.f32 %v9925, %v4510
  %v10154 = vmul.f32 %v9928, %v4515
  %v10155 = vmul.f32 %v9931, %v4520
  %v10156 = vmul.f32 %v9934, %v4525
  %v10157 = vmul.f32 %v9937, %v4530
  %v10158 = vmul.f32 %v9940, %v4535
  %v10159 = vmul.f32 %v9943, %v4540
  %v10160 = vmul.f32 %v9946, %v4545
  %v10161 = vmul.f32 %v9949, %v4550
  %v10162 = vmul.f32 %v9952, %v4555
  %v10163 = vmul.f32 %v9955, %v4560
  %v10164 = vmul.f32 %v9958, %v4565
  %v10165 = vmul.f32 %v9961, %v4570
  %v10166 = vmul.f32 %v9964, %v4575
  %v10167 = vmul.f32 %v9967, %v4580
  %v10168 = vmul.f32 %v9970, %v4585
  %v10169 = vmul.f32 %v9973, %v4590
  %v10170 = vmul.f32 %v9976, %v4595
  %v10171 = vmul.f32 %v9979, %v4600
  %v10172 = vmul.f32 %v9982, %v4605
  %v10173 = vmul.f32 %v9985, %v4610
  %v10174 = vmul.f32 %v9988, %v4615
  %v10175 = vmul.f32 %v9991, %v4620
  %v10176 = vmul.f32 %v9994, %v4625
  %v10177 = vmul.f32 %v9997, %v4630
  %v10178 = vmul.f32 %v10000, %v4635
  %v10179 = vmul.f32 %v10003, %v4640
  %v10180 = vmul.f32 %v10006, %v4645
  %v10181 = vmul.f32 %v10009, %v4650
  %v10182 = vmul.f32 %v10012, %v4655
  %v10183 = vmul.f32 %v10015, %v4660
  %v10184 = vmul.f32 %v10018, %v4665
  %v10185 = vmul.f32 %v10021, %v4670
  %v10186 = vmul.f32 %v10024, %v4675
  %v10187 = vmul.f32 %v10027, %v4680
  %v10188 = vmul.f32 %v10030, %v4685
  %v10189 = vmul.f32 %v10033, %v4690
  %v10190 = vmul.f32 %v10036, %v4695
  %v10191 = vmul.f32 %v10039, %v4700
  %v10192 = vmul.f32 %v10042, %v4705
  %v10193 = vmul.f32 %v10045, %v4710
  %v10194 = vmul.f32 %v10048, %v4715
  %v10195 = vmul.f32 %v10051, %v4720
  %v10196 = vmul.f32 %v10054, %v4725
  %v10197 = vmul.f32 %v10057, %v4730
  %v10198 = vmul.f32 %v10060, %v4735
  %v10199 = vmul.f32 %v10063, %v4740
  %v10200 = vmul.f32 %v10066, %v4745
  %v10201 = vmul.f32 %v10069, %v4750
  %v10202 = vmul.f32 %v10072, %v4755
  %v10203 = vmul.f32 %v10075, %v4760
  %v10204 = vmul.f32 %v10078, %v4765
  %v10205 = vmul.f32 %v10081, %v4770
  %v10206 = vmul.f32 %v10084, %v4775
  %v10207 = vmul.f32 %v10087, %v4780
  %v10208 = vmul.f32 %v10090, %v4785
  %v10209 = vmul.f32 %v10093, %v4790
  %v10210 = vmul.f32 %v10096, %v4795
  %v10211 = vmul.f32 %v10099, %v4800
  %v10212 = vmul.f32 %v10102, %v4805
  %v10213 = vmul.f32 %v10105, %v4810
  %v10214 = vmul.f32 %v10108, %v4815
  %v10215 = vmul.f32 %v10111, %v4820
  %v10216 = vmul.f32 %v10114, %v4825
  %v10217 = vmul.f32 %v10117, %v4830
  %v10218 = vmul.f32 %v10120, %v4835
  %v10219 = vmul.f32 %v10123, %v4840
  %v10220 = vmul.f32 %v10126, %v4845
  %v10221 = vmul.f32 %v10129, %v4850
  %v10222 = vmul.f32 %v10132, %v4855
  %v10223 = vmul.f32 %v10135, %v4860
  %v10224 = vmul.f32 %v10138, %v4865
  %v10225 = vmul.f32 %v10141, %v4870
  %v10226 = vmul.f32 %v10144, %v4875
  %v10227 = vsel %vm3387, %v10146, 0.0
  %v10228 = vsel %vm3387, %v10147, 0.0
  %v10229 = vadd.f32 %v10227, %v10228
  %v10230 = vsel %vm3387, %v10148, 0.0
  %v10231 = vadd.f32 %v10229, %v10230
  %v10232 = vsel %vm3387, %v10149, 0.0
  %v10233 = vadd.f32 %v10231, %v10232
  %v10234 = vsel %vm3387, %v10150, 0.0
  %v10235 = vadd.f32 %v10233, %v10234
  %v10236 = vsel %vm3387, %v10151, 0.0
  %v10237 = vadd.f32 %v10235, %v10236
  %v10238 = vsel %vm3387, %v10152, 0.0
  %v10239 = vadd.f32 %v10237, %v10238
  %v10240 = vsel %vm3387, %v10153, 0.0
  %v10241 = vadd.f32 %v10239, %v10240
  %v10242 = vsel %vm3387, %v10154, 0.0
  %v10243 = vadd.f32 %v10241, %v10242
  %v10244 = vsel %vm3387, %v10155, 0.0
  %v10245 = vadd.f32 %v10243, %v10244
  %v10246 = vsel %vm3387, %v10156, 0.0
  %v10247 = vadd.f32 %v10245, %v10246
  %v10248 = vsel %vm3387, %v10157, 0.0
  %v10249 = vadd.f32 %v10247, %v10248
  %v10250 = vsel %vm3387, %v10158, 0.0
  %v10251 = vadd.f32 %v10249, %v10250
  %v10252 = vsel %vm3387, %v10159, 0.0
  %v10253 = vadd.f32 %v10251, %v10252
  %v10254 = vsel %vm3387, %v10160, 0.0
  %v10255 = vadd.f32 %v10253, %v10254
  %v10256 = vsel %vm3387, %v10161, 0.0
  %v10257 = vadd.f32 %v10255, %v10256
  %v10258 = vsel %vm3387, %v10162, 0.0
  %v10259 = vadd.f32 %v10257, %v10258
  %v10260 = vsel %vm3387, %v10163, 0.0
  %v10261 = vadd.f32 %v10259, %v10260
  %v10262 = vsel %vm3387, %v10164, 0.0
  %v10263 = vadd.f32 %v10261, %v10262
  %v10264 = vsel %vm3387, %v10165, 0.0
  %v10265 = vadd.f32 %v10263, %v10264
  %v10266 = vsel %vm3387, %v10166, 0.0
  %v10267 = vadd.f32 %v10265, %v10266
  %v10268 = vsel %vm3387, %v10167, 0.0
  %v10269 = vadd.f32 %v10267, %v10268
  %v10270 = vsel %vm3387, %v10168, 0.0
  %v10271 = vadd.f32 %v10269, %v10270
  %v10272 = vsel %vm3387, %v10169, 0.0
  %v10273 = vadd.f32 %v10271, %v10272
  %v10274 = vsel %vm3387, %v10170, 0.0
  %v10275 = vadd.f32 %v10273, %v10274
  %v10276 = vsel %vm3387, %v10171, 0.0
  %v10277 = vadd.f32 %v10275, %v10276
  %v10278 = vsel %vm3387, %v10172, 0.0
  %v10279 = vadd.f32 %v10277, %v10278
  %v10280 = vsel %vm3387, %v10173, 0.0
  %v10281 = vadd.f32 %v10279, %v10280
  %v10282 = vsel %vm3387, %v10174, 0.0
  %v10283 = vadd.f32 %v10281, %v10282
  %v10284 = vsel %vm3387, %v10175, 0.0
  %v10285 = vadd.f32 %v10283, %v10284
  %v10286 = vsel %vm3387, %v10176, 0.0
  %v10287 = vadd.f32 %v10285, %v10286
  %v10288 = vsel %vm3387, %v10177, 0.0
  %v10289 = vadd.f32 %v10287, %v10288
  %v10290 = vsel %vm3387, %v10178, 0.0
  %v10291 = vadd.f32 %v10289, %v10290
  %v10292 = vsel %vm3387, %v10179, 0.0
  %v10293 = vadd.f32 %v10291, %v10292
  %v10294 = vsel %vm3387, %v10180, 0.0
  %v10295 = vadd.f32 %v10293, %v10294
  %v10296 = vsel %vm3387, %v10181, 0.0
  %v10297 = vadd.f32 %v10295, %v10296
  %v10298 = vsel %vm3387, %v10182, 0.0
  %v10299 = vadd.f32 %v10297, %v10298
  %v10300 = vsel %vm3387, %v10183, 0.0
  %v10301 = vadd.f32 %v10299, %v10300
  %v10302 = vsel %vm3387, %v10184, 0.0
  %v10303 = vadd.f32 %v10301, %v10302
  %v10304 = vsel %vm3387, %v10185, 0.0
  %v10305 = vadd.f32 %v10303, %v10304
  %v10306 = vsel %vm3387, %v10186, 0.0
  %v10307 = vadd.f32 %v10305, %v10306
  %v10308 = vsel %vm3387, %v10187, 0.0
  %v10309 = vadd.f32 %v10307, %v10308
  %v10310 = vsel %vm3387, %v10188, 0.0
  %v10311 = vadd.f32 %v10309, %v10310
  %v10312 = vsel %vm3387, %v10189, 0.0
  %v10313 = vadd.f32 %v10311, %v10312
  %v10314 = vsel %vm3387, %v10190, 0.0
  %v10315 = vadd.f32 %v10313, %v10314
  %v10316 = vsel %vm3387, %v10191, 0.0
  %v10317 = vadd.f32 %v10315, %v10316
  %v10318 = vsel %vm3387, %v10192, 0.0
  %v10319 = vadd.f32 %v10317, %v10318
  %v10320 = vsel %vm3387, %v10193, 0.0
  %v10321 = vadd.f32 %v10319, %v10320
  %v10322 = vsel %vm3387, %v10194, 0.0
  %v10323 = vadd.f32 %v10321, %v10322
  %v10324 = vsel %vm3387, %v10195, 0.0
  %v10325 = vadd.f32 %v10323, %v10324
  %v10326 = vsel %vm3387, %v10196, 0.0
  %v10327 = vadd.f32 %v10325, %v10326
  %v10328 = vsel %vm3387, %v10197, 0.0
  %v10329 = vadd.f32 %v10327, %v10328
  %v10330 = vsel %vm3387, %v10198, 0.0
  %v10331 = vadd.f32 %v10329, %v10330
  %v10332 = vsel %vm3387, %v10199, 0.0
  %v10333 = vadd.f32 %v10331, %v10332
  %v10334 = vsel %vm3387, %v10200, 0.0
  %v10335 = vadd.f32 %v10333, %v10334
  %v10336 = vsel %vm3387, %v10201, 0.0
  %v10337 = vadd.f32 %v10335, %v10336
  %v10338 = vsel %vm3387, %v10202, 0.0
  %v10339 = vadd.f32 %v10337, %v10338
  %v10340 = vsel %vm3387, %v10203, 0.0
  %v10341 = vadd.f32 %v10339, %v10340
  %v10342 = vsel %vm3387, %v10204, 0.0
  %v10343 = vadd.f32 %v10341, %v10342
  %v10344 = vsel %vm3387, %v10205, 0.0
  %v10345 = vadd.f32 %v10343, %v10344
  %v10346 = vsel %vm3387, %v10206, 0.0
  %v10347 = vadd.f32 %v10345, %v10346
  %v10348 = vsel %vm3387, %v10207, 0.0
  %v10349 = vadd.f32 %v10347, %v10348
  %v10350 = vsel %vm3387, %v10208, 0.0
  %v10351 = vadd.f32 %v10349, %v10350
  %v10352 = vsel %vm3387, %v10209, 0.0
  %v10353 = vadd.f32 %v10351, %v10352
  %v10354 = vsel %vm3387, %v10210, 0.0
  %v10355 = vadd.f32 %v10353, %v10354
  %v10356 = vsel %vm3387, %v10211, 0.0
  %v10357 = vadd.f32 %v10355, %v10356
  %v10358 = vsel %vm3387, %v10212, 0.0
  %v10359 = vadd.f32 %v10357, %v10358
  %v10360 = vsel %vm3387, %v10213, 0.0
  %v10361 = vadd.f32 %v10359, %v10360
  %v10362 = vsel %vm3387, %v10214, 0.0
  %v10363 = vadd.f32 %v10361, %v10362
  %v10364 = vsel %vm3387, %v10215, 0.0
  %v10365 = vadd.f32 %v10363, %v10364
  %v10366 = vsel %vm3387, %v10216, 0.0
  %v10367 = vadd.f32 %v10365, %v10366
  %v10368 = vsel %vm3387, %v10217, 0.0
  %v10369 = vadd.f32 %v10367, %v10368
  %v10370 = vsel %vm3387, %v10218, 0.0
  %v10371 = vadd.f32 %v10369, %v10370
  %v10372 = vsel %vm3387, %v10219, 0.0
  %v10373 = vadd.f32 %v10371, %v10372
  %v10374 = vsel %vm3387, %v10220, 0.0
  %v10375 = vadd.f32 %v10373, %v10374
  %v10376 = vsel %vm3387, %v10221, 0.0
  %v10377 = vadd.f32 %v10375, %v10376
  %v10378 = vsel %vm3387, %v10222, 0.0
  %v10379 = vadd.f32 %v10377, %v10378
  %v10380 = vsel %vm3387, %v10223, 0.0
  %v10381 = vadd.f32 %v10379, %v10380
  %v10382 = vsel %vm3387, %v10224, 0.0
  %v10383 = vadd.f32 %v10381, %v10382
  %v10384 = vsel %vm3387, %v10225, 0.0
  %v10385 = vadd.f32 %v10383, %v10384
  %v10386 = vsel %vm3387, %v10226, 0.0
  %v10387 = vadd.f32 %v10385, %v10386
  %v10388 = vrot.slane %v10387, 4
  %v10389 = vadd.f32 %v10387, %v10388
  %v10390 = vrot.slane %v10389, 2
  %v10391 = vadd.f32 %v10389, %v10390
  %v10392 = vrot.slane %v10391, 1
  %v10393 = vadd.f32 %v10391, %v10392
  %v10394 = vmul.f32 %v10393, 0.001953125
  %v10395 = vsub.f32 %v9904, %v10394
  %v10396 = vsub.f32 %v9907, %v10394
  %v10397 = vsub.f32 %v9910, %v10394
  %v10398 = vsub.f32 %v9913, %v10394
  %v10399 = vsub.f32 %v9916, %v10394
  %v10400 = vsub.f32 %v9919, %v10394
  %v10401 = vsub.f32 %v9922, %v10394
  %v10402 = vsub.f32 %v9925, %v10394
  %v10403 = vsub.f32 %v9928, %v10394
  %v10404 = vsub.f32 %v9931, %v10394
  %v10405 = vsub.f32 %v9934, %v10394
  %v10406 = vsub.f32 %v9937, %v10394
  %v10407 = vsub.f32 %v9940, %v10394
  %v10408 = vsub.f32 %v9943, %v10394
  %v10409 = vsub.f32 %v9946, %v10394
  %v10410 = vsub.f32 %v9949, %v10394
  %v10411 = vsub.f32 %v9952, %v10394
  %v10412 = vsub.f32 %v9955, %v10394
  %v10413 = vsub.f32 %v9958, %v10394
  %v10414 = vsub.f32 %v9961, %v10394
  %v10415 = vsub.f32 %v9964, %v10394
  %v10416 = vsub.f32 %v9967, %v10394
  %v10417 = vsub.f32 %v9970, %v10394
  %v10418 = vsub.f32 %v9973, %v10394
  %v10419 = vsub.f32 %v9976, %v10394
  %v10420 = vsub.f32 %v9979, %v10394
  %v10421 = vsub.f32 %v9982, %v10394
  %v10422 = vsub.f32 %v9985, %v10394
  %v10423 = vsub.f32 %v9988, %v10394
  %v10424 = vsub.f32 %v9991, %v10394
  %v10425 = vsub.f32 %v9994, %v10394
  %v10426 = vsub.f32 %v9997, %v10394
  %v10427 = vsub.f32 %v10000, %v10394
  %v10428 = vsub.f32 %v10003, %v10394
  %v10429 = vsub.f32 %v10006, %v10394
  %v10430 = vsub.f32 %v10009, %v10394
  %v10431 = vsub.f32 %v10012, %v10394
  %v10432 = vsub.f32 %v10015, %v10394
  %v10433 = vsub.f32 %v10018, %v10394
  %v10434 = vsub.f32 %v10021, %v10394
  %v10435 = vsub.f32 %v10024, %v10394
  %v10436 = vsub.f32 %v10027, %v10394
  %v10437 = vsub.f32 %v10030, %v10394
  %v10438 = vsub.f32 %v10033, %v10394
  %v10439 = vsub.f32 %v10036, %v10394
  %v10440 = vsub.f32 %v10039, %v10394
  %v10441 = vsub.f32 %v10042, %v10394
  %v10442 = vsub.f32 %v10045, %v10394
  %v10443 = vsub.f32 %v10048, %v10394
  %v10444 = vsub.f32 %v10051, %v10394
  %v10445 = vsub.f32 %v10054, %v10394
  %v10446 = vsub.f32 %v10057, %v10394
  %v10447 = vsub.f32 %v10060, %v10394
  %v10448 = vsub.f32 %v10063, %v10394
  %v10449 = vsub.f32 %v10066, %v10394
  %v10450 = vsub.f32 %v10069, %v10394
  %v10451 = vsub.f32 %v10072, %v10394
  %v10452 = vsub.f32 %v10075, %v10394
  %v10453 = vsub.f32 %v10078, %v10394
  %v10454 = vsub.f32 %v10081, %v10394
  %v10455 = vsub.f32 %v10084, %v10394
  %v10456 = vsub.f32 %v10087, %v10394
  %v10457 = vsub.f32 %v10090, %v10394
  %v10458 = vsub.f32 %v10093, %v10394
  %v10459 = vsub.f32 %v10096, %v10394
  %v10460 = vsub.f32 %v10099, %v10394
  %v10461 = vsub.f32 %v10102, %v10394
  %v10462 = vsub.f32 %v10105, %v10394
  %v10463 = vsub.f32 %v10108, %v10394
  %v10464 = vsub.f32 %v10111, %v10394
  %v10465 = vsub.f32 %v10114, %v10394
  %v10466 = vsub.f32 %v10117, %v10394
  %v10467 = vsub.f32 %v10120, %v10394
  %v10468 = vsub.f32 %v10123, %v10394
  %v10469 = vsub.f32 %v10126, %v10394
  %v10470 = vsub.f32 %v10129, %v10394
  %v10471 = vsub.f32 %v10132, %v10394
  %v10472 = vsub.f32 %v10135, %v10394
  %v10473 = vsub.f32 %v10138, %v10394
  %v10474 = vsub.f32 %v10141, %v10394
  %v10475 = vsub.f32 %v10144, %v10394
  %v10476 = vmul.f32 %v10395, %v4475
  %v10477 = vmul.f32 %v10396, %v4480
  %v10478 = vmul.f32 %v10397, %v4485
  %v10479 = vmul.f32 %v10398, %v4490
  %v10480 = vmul.f32 %v10399, %v4495
  %v10481 = vmul.f32 %v10400, %v4500
  %v10482 = vmul.f32 %v10401, %v4505
  %v10483 = vmul.f32 %v10402, %v4510
  %v10484 = vmul.f32 %v10403, %v4515
  %v10485 = vmul.f32 %v10404, %v4520
  %v10486 = vmul.f32 %v10405, %v4525
  %v10487 = vmul.f32 %v10406, %v4530
  %v10488 = vmul.f32 %v10407, %v4535
  %v10489 = vmul.f32 %v10408, %v4540
  %v10490 = vmul.f32 %v10409, %v4545
  %v10491 = vmul.f32 %v10410, %v4550
  %v10492 = vmul.f32 %v10411, %v4555
  %v10493 = vmul.f32 %v10412, %v4560
  %v10494 = vmul.f32 %v10413, %v4565
  %v10495 = vmul.f32 %v10414, %v4570
  %v10496 = vmul.f32 %v10415, %v4575
  %v10497 = vmul.f32 %v10416, %v4580
  %v10498 = vmul.f32 %v10417, %v4585
  %v10499 = vmul.f32 %v10418, %v4590
  %v10500 = vmul.f32 %v10419, %v4595
  %v10501 = vmul.f32 %v10420, %v4600
  %v10502 = vmul.f32 %v10421, %v4605
  %v10503 = vmul.f32 %v10422, %v4610
  %v10504 = vmul.f32 %v10423, %v4615
  %v10505 = vmul.f32 %v10424, %v4620
  %v10506 = vmul.f32 %v10425, %v4625
  %v10507 = vmul.f32 %v10426, %v4630
  %v10508 = vmul.f32 %v10427, %v4635
  %v10509 = vmul.f32 %v10428, %v4640
  %v10510 = vmul.f32 %v10429, %v4645
  %v10511 = vmul.f32 %v10430, %v4650
  %v10512 = vmul.f32 %v10431, %v4655
  %v10513 = vmul.f32 %v10432, %v4660
  %v10514 = vmul.f32 %v10433, %v4665
  %v10515 = vmul.f32 %v10434, %v4670
  %v10516 = vmul.f32 %v10435, %v4675
  %v10517 = vmul.f32 %v10436, %v4680
  %v10518 = vmul.f32 %v10437, %v4685
  %v10519 = vmul.f32 %v10438, %v4690
  %v10520 = vmul.f32 %v10439, %v4695
  %v10521 = vmul.f32 %v10440, %v4700
  %v10522 = vmul.f32 %v10441, %v4705
  %v10523 = vmul.f32 %v10442, %v4710
  %v10524 = vmul.f32 %v10443, %v4715
  %v10525 = vmul.f32 %v10444, %v4720
  %v10526 = vmul.f32 %v10445, %v4725
  %v10527 = vmul.f32 %v10446, %v4730
  %v10528 = vmul.f32 %v10447, %v4735
  %v10529 = vmul.f32 %v10448, %v4740
  %v10530 = vmul.f32 %v10449, %v4745
  %v10531 = vmul.f32 %v10450, %v4750
  %v10532 = vmul.f32 %v10451, %v4755
  %v10533 = vmul.f32 %v10452, %v4760
  %v10534 = vmul.f32 %v10453, %v4765
  %v10535 = vmul.f32 %v10454, %v4770
  %v10536 = vmul.f32 %v10455, %v4775
  %v10537 = vmul.f32 %v10456, %v4780
  %v10538 = vmul.f32 %v10457, %v4785
  %v10539 = vmul.f32 %v10458, %v4790
  %v10540 = vmul.f32 %v10459, %v4795
  %v10541 = vmul.f32 %v10460, %v4800
  %v10542 = vmul.f32 %v10461, %v4805
  %v10543 = vmul.f32 %v10462, %v4810
  %v10544 = vmul.f32 %v10463, %v4815
  %v10545 = vmul.f32 %v10464, %v4820
  %v10546 = vmul.f32 %v10465, %v4825
  %v10547 = vmul.f32 %v10466, %v4830
  %v10548 = vmul.f32 %v10467, %v4835
  %v10549 = vmul.f32 %v10468, %v4840
  %v10550 = vmul.f32 %v10469, %v4845
  %v10551 = vmul.f32 %v10470, %v4850
  %v10552 = vmul.f32 %v10471, %v4855
  %v10553 = vmul.f32 %v10472, %v4860
  %v10554 = vmul.f32 %v10473, %v4865
  %v10555 = vmul.f32 %v10474, %v4870
  %v10556 = vmul.f32 %v10475, %v4875
  %v10557 = vmul.f32 %v10476, %v10476
  %v10558 = vmul.f32 %v10477, %v10477
  %v10559 = vmul.f32 %v10478, %v10478
  %v10560 = vmul.f32 %v10479, %v10479
  %v10561 = vmul.f32 %v10480, %v10480
  %v10562 = vmul.f32 %v10481, %v10481
  %v10563 = vmul.f32 %v10482, %v10482
  %v10564 = vmul.f32 %v10483, %v10483
  %v10565 = vmul.f32 %v10484, %v10484
  %v10566 = vmul.f32 %v10485, %v10485
  %v10567 = vmul.f32 %v10486, %v10486
  %v10568 = vmul.f32 %v10487, %v10487
  %v10569 = vmul.f32 %v10488, %v10488
  %v10570 = vmul.f32 %v10489, %v10489
  %v10571 = vmul.f32 %v10490, %v10490
  %v10572 = vmul.f32 %v10491, %v10491
  %v10573 = vmul.f32 %v10492, %v10492
  %v10574 = vmul.f32 %v10493, %v10493
  %v10575 = vmul.f32 %v10494, %v10494
  %v10576 = vmul.f32 %v10495, %v10495
  %v10577 = vmul.f32 %v10496, %v10496
  %v10578 = vmul.f32 %v10497, %v10497
  %v10579 = vmul.f32 %v10498, %v10498
  %v10580 = vmul.f32 %v10499, %v10499
  %v10581 = vmul.f32 %v10500, %v10500
  %v10582 = vmul.f32 %v10501, %v10501
  %v10583 = vmul.f32 %v10502, %v10502
  %v10584 = vmul.f32 %v10503, %v10503
  %v10585 = vmul.f32 %v10504, %v10504
  %v10586 = vmul.f32 %v10505, %v10505
  %v10587 = vmul.f32 %v10506, %v10506
  %v10588 = vmul.f32 %v10507, %v10507
  %v10589 = vmul.f32 %v10508, %v10508
  %v10590 = vmul.f32 %v10509, %v10509
  %v10591 = vmul.f32 %v10510, %v10510
  %v10592 = vmul.f32 %v10511, %v10511
  %v10593 = vmul.f32 %v10512, %v10512
  %v10594 = vmul.f32 %v10513, %v10513
  %v10595 = vmul.f32 %v10514, %v10514
  %v10596 = vmul.f32 %v10515, %v10515
  %v10597 = vmul.f32 %v10516, %v10516
  %v10598 = vmul.f32 %v10517, %v10517
  %v10599 = vmul.f32 %v10518, %v10518
  %v10600 = vmul.f32 %v10519, %v10519
  %v10601 = vmul.f32 %v10520, %v10520
  %v10602 = vmul.f32 %v10521, %v10521
  %v10603 = vmul.f32 %v10522, %v10522
  %v10604 = vmul.f32 %v10523, %v10523
  %v10605 = vmul.f32 %v10524, %v10524
  %v10606 = vmul.f32 %v10525, %v10525
  %v10607 = vmul.f32 %v10526, %v10526
  %v10608 = vmul.f32 %v10527, %v10527
  %v10609 = vmul.f32 %v10528, %v10528
  %v10610 = vmul.f32 %v10529, %v10529
  %v10611 = vmul.f32 %v10530, %v10530
  %v10612 = vmul.f32 %v10531, %v10531
  %v10613 = vmul.f32 %v10532, %v10532
  %v10614 = vmul.f32 %v10533, %v10533
  %v10615 = vmul.f32 %v10534, %v10534
  %v10616 = vmul.f32 %v10535, %v10535
  %v10617 = vmul.f32 %v10536, %v10536
  %v10618 = vmul.f32 %v10537, %v10537
  %v10619 = vmul.f32 %v10538, %v10538
  %v10620 = vmul.f32 %v10539, %v10539
  %v10621 = vmul.f32 %v10540, %v10540
  %v10622 = vmul.f32 %v10541, %v10541
  %v10623 = vmul.f32 %v10542, %v10542
  %v10624 = vmul.f32 %v10543, %v10543
  %v10625 = vmul.f32 %v10544, %v10544
  %v10626 = vmul.f32 %v10545, %v10545
  %v10627 = vmul.f32 %v10546, %v10546
  %v10628 = vmul.f32 %v10547, %v10547
  %v10629 = vmul.f32 %v10548, %v10548
  %v10630 = vmul.f32 %v10549, %v10549
  %v10631 = vmul.f32 %v10550, %v10550
  %v10632 = vmul.f32 %v10551, %v10551
  %v10633 = vmul.f32 %v10552, %v10552
  %v10634 = vmul.f32 %v10553, %v10553
  %v10635 = vmul.f32 %v10554, %v10554
  %v10636 = vmul.f32 %v10555, %v10555
  %v10637 = vmul.f32 %v10556, %v10556
  %v10638 = vsel %vm3387, %v10557, 0.0
  %v10639 = vsel %vm3387, %v10558, 0.0
  %v10640 = vadd.f32 %v10638, %v10639
  %v10641 = vsel %vm3387, %v10559, 0.0
  %v10642 = vadd.f32 %v10640, %v10641
  %v10643 = vsel %vm3387, %v10560, 0.0
  %v10644 = vadd.f32 %v10642, %v10643
  %v10645 = vsel %vm3387, %v10561, 0.0
  %v10646 = vadd.f32 %v10644, %v10645
  %v10647 = vsel %vm3387, %v10562, 0.0
  %v10648 = vadd.f32 %v10646, %v10647
  %v10649 = vsel %vm3387, %v10563, 0.0
  %v10650 = vadd.f32 %v10648, %v10649
  %v10651 = vsel %vm3387, %v10564, 0.0
  %v10652 = vadd.f32 %v10650, %v10651
  %v10653 = vsel %vm3387, %v10565, 0.0
  %v10654 = vadd.f32 %v10652, %v10653
  %v10655 = vsel %vm3387, %v10566, 0.0
  %v10656 = vadd.f32 %v10654, %v10655
  %v10657 = vsel %vm3387, %v10567, 0.0
  %v10658 = vadd.f32 %v10656, %v10657
  %v10659 = vsel %vm3387, %v10568, 0.0
  %v10660 = vadd.f32 %v10658, %v10659
  %v10661 = vsel %vm3387, %v10569, 0.0
  %v10662 = vadd.f32 %v10660, %v10661
  %v10663 = vsel %vm3387, %v10570, 0.0
  %v10664 = vadd.f32 %v10662, %v10663
  %v10665 = vsel %vm3387, %v10571, 0.0
  %v10666 = vadd.f32 %v10664, %v10665
  %v10667 = vsel %vm3387, %v10572, 0.0
  %v10668 = vadd.f32 %v10666, %v10667
  %v10669 = vsel %vm3387, %v10573, 0.0
  %v10670 = vadd.f32 %v10668, %v10669
  %v10671 = vsel %vm3387, %v10574, 0.0
  %v10672 = vadd.f32 %v10670, %v10671
  %v10673 = vsel %vm3387, %v10575, 0.0
  %v10674 = vadd.f32 %v10672, %v10673
  %v10675 = vsel %vm3387, %v10576, 0.0
  %v10676 = vadd.f32 %v10674, %v10675
  %v10677 = vsel %vm3387, %v10577, 0.0
  %v10678 = vadd.f32 %v10676, %v10677
  %v10679 = vsel %vm3387, %v10578, 0.0
  %v10680 = vadd.f32 %v10678, %v10679
  %v10681 = vsel %vm3387, %v10579, 0.0
  %v10682 = vadd.f32 %v10680, %v10681
  %v10683 = vsel %vm3387, %v10580, 0.0
  %v10684 = vadd.f32 %v10682, %v10683
  %v10685 = vsel %vm3387, %v10581, 0.0
  %v10686 = vadd.f32 %v10684, %v10685
  %v10687 = vsel %vm3387, %v10582, 0.0
  %v10688 = vadd.f32 %v10686, %v10687
  %v10689 = vsel %vm3387, %v10583, 0.0
  %v10690 = vadd.f32 %v10688, %v10689
  %v10691 = vsel %vm3387, %v10584, 0.0
  %v10692 = vadd.f32 %v10690, %v10691
  %v10693 = vsel %vm3387, %v10585, 0.0
  %v10694 = vadd.f32 %v10692, %v10693
  %v10695 = vsel %vm3387, %v10586, 0.0
  %v10696 = vadd.f32 %v10694, %v10695
  %v10697 = vsel %vm3387, %v10587, 0.0
  %v10698 = vadd.f32 %v10696, %v10697
  %v10699 = vsel %vm3387, %v10588, 0.0
  %v10700 = vadd.f32 %v10698, %v10699
  %v10701 = vsel %vm3387, %v10589, 0.0
  %v10702 = vadd.f32 %v10700, %v10701
  %v10703 = vsel %vm3387, %v10590, 0.0
  %v10704 = vadd.f32 %v10702, %v10703
  %v10705 = vsel %vm3387, %v10591, 0.0
  %v10706 = vadd.f32 %v10704, %v10705
  %v10707 = vsel %vm3387, %v10592, 0.0
  %v10708 = vadd.f32 %v10706, %v10707
  %v10709 = vsel %vm3387, %v10593, 0.0
  %v10710 = vadd.f32 %v10708, %v10709
  %v10711 = vsel %vm3387, %v10594, 0.0
  %v10712 = vadd.f32 %v10710, %v10711
  %v10713 = vsel %vm3387, %v10595, 0.0
  %v10714 = vadd.f32 %v10712, %v10713
  %v10715 = vsel %vm3387, %v10596, 0.0
  %v10716 = vadd.f32 %v10714, %v10715
  %v10717 = vsel %vm3387, %v10597, 0.0
  %v10718 = vadd.f32 %v10716, %v10717
  %v10719 = vsel %vm3387, %v10598, 0.0
  %v10720 = vadd.f32 %v10718, %v10719
  %v10721 = vsel %vm3387, %v10599, 0.0
  %v10722 = vadd.f32 %v10720, %v10721
  %v10723 = vsel %vm3387, %v10600, 0.0
  %v10724 = vadd.f32 %v10722, %v10723
  %v10725 = vsel %vm3387, %v10601, 0.0
  %v10726 = vadd.f32 %v10724, %v10725
  %v10727 = vsel %vm3387, %v10602, 0.0
  %v10728 = vadd.f32 %v10726, %v10727
  %v10729 = vsel %vm3387, %v10603, 0.0
  %v10730 = vadd.f32 %v10728, %v10729
  %v10731 = vsel %vm3387, %v10604, 0.0
  %v10732 = vadd.f32 %v10730, %v10731
  %v10733 = vsel %vm3387, %v10605, 0.0
  %v10734 = vadd.f32 %v10732, %v10733
  %v10735 = vsel %vm3387, %v10606, 0.0
  %v10736 = vadd.f32 %v10734, %v10735
  %v10737 = vsel %vm3387, %v10607, 0.0
  %v10738 = vadd.f32 %v10736, %v10737
  %v10739 = vsel %vm3387, %v10608, 0.0
  %v10740 = vadd.f32 %v10738, %v10739
  %v10741 = vsel %vm3387, %v10609, 0.0
  %v10742 = vadd.f32 %v10740, %v10741
  %v10743 = vsel %vm3387, %v10610, 0.0
  %v10744 = vadd.f32 %v10742, %v10743
  %v10745 = vsel %vm3387, %v10611, 0.0
  %v10746 = vadd.f32 %v10744, %v10745
  %v10747 = vsel %vm3387, %v10612, 0.0
  %v10748 = vadd.f32 %v10746, %v10747
  %v10749 = vsel %vm3387, %v10613, 0.0
  %v10750 = vadd.f32 %v10748, %v10749
  %v10751 = vsel %vm3387, %v10614, 0.0
  %v10752 = vadd.f32 %v10750, %v10751
  %v10753 = vsel %vm3387, %v10615, 0.0
  %v10754 = vadd.f32 %v10752, %v10753
  %v10755 = vsel %vm3387, %v10616, 0.0
  %v10756 = vadd.f32 %v10754, %v10755
  %v10757 = vsel %vm3387, %v10617, 0.0
  %v10758 = vadd.f32 %v10756, %v10757
  %v10759 = vsel %vm3387, %v10618, 0.0
  %v10760 = vadd.f32 %v10758, %v10759
  %v10761 = vsel %vm3387, %v10619, 0.0
  %v10762 = vadd.f32 %v10760, %v10761
  %v10763 = vsel %vm3387, %v10620, 0.0
  %v10764 = vadd.f32 %v10762, %v10763
  %v10765 = vsel %vm3387, %v10621, 0.0
  %v10766 = vadd.f32 %v10764, %v10765
  %v10767 = vsel %vm3387, %v10622, 0.0
  %v10768 = vadd.f32 %v10766, %v10767
  %v10769 = vsel %vm3387, %v10623, 0.0
  %v10770 = vadd.f32 %v10768, %v10769
  %v10771 = vsel %vm3387, %v10624, 0.0
  %v10772 = vadd.f32 %v10770, %v10771
  %v10773 = vsel %vm3387, %v10625, 0.0
  %v10774 = vadd.f32 %v10772, %v10773
  %v10775 = vsel %vm3387, %v10626, 0.0
  %v10776 = vadd.f32 %v10774, %v10775
  %v10777 = vsel %vm3387, %v10627, 0.0
  %v10778 = vadd.f32 %v10776, %v10777
  %v10779 = vsel %vm3387, %v10628, 0.0
  %v10780 = vadd.f32 %v10778, %v10779
  %v10781 = vsel %vm3387, %v10629, 0.0
  %v10782 = vadd.f32 %v10780, %v10781
  %v10783 = vsel %vm3387, %v10630, 0.0
  %v10784 = vadd.f32 %v10782, %v10783
  %v10785 = vsel %vm3387, %v10631, 0.0
  %v10786 = vadd.f32 %v10784, %v10785
  %v10787 = vsel %vm3387, %v10632, 0.0
  %v10788 = vadd.f32 %v10786, %v10787
  %v10789 = vsel %vm3387, %v10633, 0.0
  %v10790 = vadd.f32 %v10788, %v10789
  %v10791 = vsel %vm3387, %v10634, 0.0
  %v10792 = vadd.f32 %v10790, %v10791
  %v10793 = vsel %vm3387, %v10635, 0.0
  %v10794 = vadd.f32 %v10792, %v10793
  %v10795 = vsel %vm3387, %v10636, 0.0
  %v10796 = vadd.f32 %v10794, %v10795
  %v10797 = vsel %vm3387, %v10637, 0.0
  %v10798 = vadd.f32 %v10796, %v10797
  %v10799 = vrot.slane %v10798, 4
  %v10800 = vadd.f32 %v10798, %v10799
  %v10801 = vrot.slane %v10800, 2
  %v10802 = vadd.f32 %v10800, %v10801
  %v10803 = vrot.slane %v10802, 1
  %v10804 = vadd.f32 %v10802, %v10803
  %v10805 = vmul.f32 %v10804, 0.001953125
  %v10806 = vadd.f32 %v10805, 1e-05
  %v10807 = vrsqrt.pop %v10806
  %v10808 = vmul.f32 %v10807, %v10806
  %v10809 = vmul.f32 %v10808, %v10807
  %v10810 = vmul.f32 0.5, %v10809
  %v10811 = vsub.f32 1.5, %v10810
  %v10812 = vmul.f32 %v10807, %v10811
  %vm10813 = vweird.f32 %v10806
  %vm10814 = vweird.f32 %v10807
  %vm10815 = vmor %vm10813, %vm10814
  %v10816 = vsel %vm10815, %v10807, %v10812
  %v10817 = vmul.f32 %v5891, %v10816
  %v10818 = vmul.f32 %v10394, %v10817
  %v10819 = vsub.f32 %v5892, %v10818
  %v10821 = vperm.slane %v10817, 0
  %v10823 = vmul.f32 %v9904, %v10821
  %v10824 = vmul.f32 %v9907, %v10821
  %v10825 = vmul.f32 %v9910, %v10821
  %v10826 = vmul.f32 %v9913, %v10821
  %v10827 = vmul.f32 %v9916, %v10821
  %v10828 = vmul.f32 %v9919, %v10821
  %v10829 = vmul.f32 %v9922, %v10821
  %v10830 = vmul.f32 %v9925, %v10821
  %v10831 = vmul.f32 %v9928, %v10821
  %v10832 = vmul.f32 %v9931, %v10821
  %v10833 = vmul.f32 %v9934, %v10821
  %v10834 = vmul.f32 %v9937, %v10821
  %v10835 = vmul.f32 %v9940, %v10821
  %v10836 = vmul.f32 %v9943, %v10821
  %v10837 = vmul.f32 %v9946, %v10821
  %v10838 = vmul.f32 %v9949, %v10821
  %v10839 = vmul.f32 %v9952, %v10821
  %v10840 = vmul.f32 %v9955, %v10821
  %v10841 = vmul.f32 %v9958, %v10821
  %v10842 = vmul.f32 %v9961, %v10821
  %v10843 = vmul.f32 %v9964, %v10821
  %v10844 = vmul.f32 %v9967, %v10821
  %v10845 = vmul.f32 %v9970, %v10821
  %v10846 = vmul.f32 %v9973, %v10821
  %v10847 = vmul.f32 %v9976, %v10821
  %v10848 = vmul.f32 %v9979, %v10821
  %v10849 = vmul.f32 %v9982, %v10821
  %v10850 = vmul.f32 %v9985, %v10821
  %v10851 = vmul.f32 %v9988, %v10821
  %v10852 = vmul.f32 %v9991, %v10821
  %v10853 = vmul.f32 %v9994, %v10821
  %v10854 = vmul.f32 %v9997, %v10821
  %v10855 = vmul.f32 %v10000, %v10821
  %v10856 = vmul.f32 %v10003, %v10821
  %v10857 = vmul.f32 %v10006, %v10821
  %v10858 = vmul.f32 %v10009, %v10821
  %v10859 = vmul.f32 %v10012, %v10821
  %v10860 = vmul.f32 %v10015, %v10821
  %v10861 = vmul.f32 %v10018, %v10821
  %v10862 = vmul.f32 %v10021, %v10821
  %v10863 = vmul.f32 %v10024, %v10821
  %v10864 = vmul.f32 %v10027, %v10821
  %v10865 = vmul.f32 %v10030, %v10821
  %v10866 = vmul.f32 %v10033, %v10821
  %v10867 = vmul.f32 %v10036, %v10821
  %v10868 = vmul.f32 %v10039, %v10821
  %v10869 = vmul.f32 %v10042, %v10821
  %v10870 = vmul.f32 %v10045, %v10821
  %v10871 = vmul.f32 %v10048, %v10821
  %v10872 = vmul.f32 %v10051, %v10821
  %v10873 = vmul.f32 %v10054, %v10821
  %v10874 = vmul.f32 %v10057, %v10821
  %v10875 = vmul.f32 %v10060, %v10821
  %v10876 = vmul.f32 %v10063, %v10821
  %v10877 = vmul.f32 %v10066, %v10821
  %v10878 = vmul.f32 %v10069, %v10821
  %v10879 = vmul.f32 %v10072, %v10821
  %v10880 = vmul.f32 %v10075, %v10821
  %v10881 = vmul.f32 %v10078, %v10821
  %v10882 = vmul.f32 %v10081, %v10821
  %v10883 = vmul.f32 %v10084, %v10821
  %v10884 = vmul.f32 %v10087, %v10821
  %v10885 = vmul.f32 %v10090, %v10821
  %v10886 = vmul.f32 %v10093, %v10821
  %v10887 = vmul.f32 %v10096, %v10821
  %v10888 = vmul.f32 %v10099, %v10821
  %v10889 = vmul.f32 %v10102, %v10821
  %v10890 = vmul.f32 %v10105, %v10821
  %v10891 = vmul.f32 %v10108, %v10821
  %v10892 = vmul.f32 %v10111, %v10821
  %v10893 = vmul.f32 %v10114, %v10821
  %v10894 = vmul.f32 %v10117, %v10821
  %v10895 = vmul.f32 %v10120, %v10821
  %v10896 = vmul.f32 %v10123, %v10821
  %v10897 = vmul.f32 %v10126, %v10821
  %v10898 = vmul.f32 %v10129, %v10821
  %v10899 = vmul.f32 %v10132, %v10821
  %v10900 = vmul.f32 %v10135, %v10821
  %v10901 = vmul.f32 %v10138, %v10821
  %v10902 = vmul.f32 %v10141, %v10821
  %v10903 = vmul.f32 %v10144, %v10821
  %v10905 = vperm.slane %v10819, 0
  %v10907 = vadd.f32 %v10823, %v10905
  %v10908 = vadd.f32 %v10824, %v10905
  %v10909 = vadd.f32 %v10825, %v10905
  %v10910 = vadd.f32 %v10826, %v10905
  %v10911 = vadd.f32 %v10827, %v10905
  %v10912 = vadd.f32 %v10828, %v10905
  %v10913 = vadd.f32 %v10829, %v10905
  %v10914 = vadd.f32 %v10830, %v10905
  %v10915 = vadd.f32 %v10831, %v10905
  %v10916 = vadd.f32 %v10832, %v10905
  %v10917 = vadd.f32 %v10833, %v10905
  %v10918 = vadd.f32 %v10834, %v10905
  %v10919 = vadd.f32 %v10835, %v10905
  %v10920 = vadd.f32 %v10836, %v10905
  %v10921 = vadd.f32 %v10837, %v10905
  %v10922 = vadd.f32 %v10838, %v10905
  %v10923 = vadd.f32 %v10839, %v10905
  %v10924 = vadd.f32 %v10840, %v10905
  %v10925 = vadd.f32 %v10841, %v10905
  %v10926 = vadd.f32 %v10842, %v10905
  %v10927 = vadd.f32 %v10843, %v10905
  %v10928 = vadd.f32 %v10844, %v10905
  %v10929 = vadd.f32 %v10845, %v10905
  %v10930 = vadd.f32 %v10846, %v10905
  %v10931 = vadd.f32 %v10847, %v10905
  %v10932 = vadd.f32 %v10848, %v10905
  %v10933 = vadd.f32 %v10849, %v10905
  %v10934 = vadd.f32 %v10850, %v10905
  %v10935 = vadd.f32 %v10851, %v10905
  %v10936 = vadd.f32 %v10852, %v10905
  %v10937 = vadd.f32 %v10853, %v10905
  %v10938 = vadd.f32 %v10854, %v10905
  %v10939 = vadd.f32 %v10855, %v10905
  %v10940 = vadd.f32 %v10856, %v10905
  %v10941 = vadd.f32 %v10857, %v10905
  %v10942 = vadd.f32 %v10858, %v10905
  %v10943 = vadd.f32 %v10859, %v10905
  %v10944 = vadd.f32 %v10860, %v10905
  %v10945 = vadd.f32 %v10861, %v10905
  %v10946 = vadd.f32 %v10862, %v10905
  %v10947 = vadd.f32 %v10863, %v10905
  %v10948 = vadd.f32 %v10864, %v10905
  %v10949 = vadd.f32 %v10865, %v10905
  %v10950 = vadd.f32 %v10866, %v10905
  %v10951 = vadd.f32 %v10867, %v10905
  %v10952 = vadd.f32 %v10868, %v10905
  %v10953 = vadd.f32 %v10869, %v10905
  %v10954 = vadd.f32 %v10870, %v10905
  %v10955 = vadd.f32 %v10871, %v10905
  %v10956 = vadd.f32 %v10872, %v10905
  %v10957 = vadd.f32 %v10873, %v10905
  %v10958 = vadd.f32 %v10874, %v10905
  %v10959 = vadd.f32 %v10875, %v10905
  %v10960 = vadd.f32 %v10876, %v10905
  %v10961 = vadd.f32 %v10877, %v10905
  %v10962 = vadd.f32 %v10878, %v10905
  %v10963 = vadd.f32 %v10879, %v10905
  %v10964 = vadd.f32 %v10880, %v10905
  %v10965 = vadd.f32 %v10881, %v10905
  %v10966 = vadd.f32 %v10882, %v10905
  %v10967 = vadd.f32 %v10883, %v10905
  %v10968 = vadd.f32 %v10884, %v10905
  %v10969 = vadd.f32 %v10885, %v10905
  %v10970 = vadd.f32 %v10886, %v10905
  %v10971 = vadd.f32 %v10887, %v10905
  %v10972 = vadd.f32 %v10888, %v10905
  %v10973 = vadd.f32 %v10889, %v10905
  %v10974 = vadd.f32 %v10890, %v10905
  %v10975 = vadd.f32 %v10891, %v10905
  %v10976 = vadd.f32 %v10892, %v10905
  %v10977 = vadd.f32 %v10893, %v10905
  %v10978 = vadd.f32 %v10894, %v10905
  %v10979 = vadd.f32 %v10895, %v10905
  %v10980 = vadd.f32 %v10896, %v10905
  %v10981 = vadd.f32 %v10897, %v10905
  %v10982 = vadd.f32 %v10898, %v10905
  %v10983 = vadd.f32 %v10899, %v10905
  %v10984 = vadd.f32 %v10900, %v10905
  %v10985 = vadd.f32 %v10901, %v10905
  %v10986 = vadd.f32 %v10902, %v10905
  %v10987 = vadd.f32 %v10903, %v10905
  %v10988 = vmax.f32 %v10907, 0.0
  %v10989 = vmax.f32 %v10908, 0.0
  %v10990 = vmax.f32 %v10909, 0.0
  %v10991 = vmax.f32 %v10910, 0.0
  %v10992 = vmax.f32 %v10911, 0.0
  %v10993 = vmax.f32 %v10912, 0.0
  %v10994 = vmax.f32 %v10913, 0.0
  %v10995 = vmax.f32 %v10914, 0.0
  %v10996 = vmax.f32 %v10915, 0.0
  %v10997 = vmax.f32 %v10916, 0.0
  %v10998 = vmax.f32 %v10917, 0.0
  %v10999 = vmax.f32 %v10918, 0.0
  %v11000 = vmax.f32 %v10919, 0.0
  %v11001 = vmax.f32 %v10920, 0.0
  %v11002 = vmax.f32 %v10921, 0.0
  %v11003 = vmax.f32 %v10922, 0.0
  %v11004 = vmax.f32 %v10923, 0.0
  %v11005 = vmax.f32 %v10924, 0.0
  %v11006 = vmax.f32 %v10925, 0.0
  %v11007 = vmax.f32 %v10926, 0.0
  %v11008 = vmax.f32 %v10927, 0.0
  %v11009 = vmax.f32 %v10928, 0.0
  %v11010 = vmax.f32 %v10929, 0.0
  %v11011 = vmax.f32 %v10930, 0.0
  %v11012 = vmax.f32 %v10931, 0.0
  %v11013 = vmax.f32 %v10932, 0.0
  %v11014 = vmax.f32 %v10933, 0.0
  %v11015 = vmax.f32 %v10934, 0.0
  %v11016 = vmax.f32 %v10935, 0.0
  %v11017 = vmax.f32 %v10936, 0.0
  %v11018 = vmax.f32 %v10937, 0.0
  %v11019 = vmax.f32 %v10938, 0.0
  %v11020 = vmax.f32 %v10939, 0.0
  %v11021 = vmax.f32 %v10940, 0.0
  %v11022 = vmax.f32 %v10941, 0.0
  %v11023 = vmax.f32 %v10942, 0.0
  %v11024 = vmax.f32 %v10943, 0.0
  %v11025 = vmax.f32 %v10944, 0.0
  %v11026 = vmax.f32 %v10945, 0.0
  %v11027 = vmax.f32 %v10946, 0.0
  %v11028 = vmax.f32 %v10947, 0.0
  %v11029 = vmax.f32 %v10948, 0.0
  %v11030 = vmax.f32 %v10949, 0.0
  %v11031 = vmax.f32 %v10950, 0.0
  %v11032 = vmax.f32 %v10951, 0.0
  %v11033 = vmax.f32 %v10952, 0.0
  %v11034 = vmax.f32 %v10953, 0.0
  %v11035 = vmax.f32 %v10954, 0.0
  %v11036 = vmax.f32 %v10955, 0.0
  %v11037 = vmax.f32 %v10956, 0.0
  %v11038 = vmax.f32 %v10957, 0.0
  %v11039 = vmax.f32 %v10958, 0.0
  %v11040 = vmax.f32 %v10959, 0.0
  %v11041 = vmax.f32 %v10960, 0.0
  %v11042 = vmax.f32 %v10961, 0.0
  %v11043 = vmax.f32 %v10962, 0.0
  %v11044 = vmax.f32 %v10963, 0.0
  %v11045 = vmax.f32 %v10964, 0.0
  %v11046 = vmax.f32 %v10965, 0.0
  %v11047 = vmax.f32 %v10966, 0.0
  %v11048 = vmax.f32 %v10967, 0.0
  %v11049 = vmax.f32 %v10968, 0.0
  %v11050 = vmax.f32 %v10969, 0.0
  %v11051 = vmax.f32 %v10970, 0.0
  %v11052 = vmax.f32 %v10971, 0.0
  %v11053 = vmax.f32 %v10972, 0.0
  %v11054 = vmax.f32 %v10973, 0.0
  %v11055 = vmax.f32 %v10974, 0.0
  %v11056 = vmax.f32 %v10975, 0.0
  %v11057 = vmax.f32 %v10976, 0.0
  %v11058 = vmax.f32 %v10977, 0.0
  %v11059 = vmax.f32 %v10978, 0.0
  %v11060 = vmax.f32 %v10979, 0.0
  %v11061 = vmax.f32 %v10980, 0.0
  %v11062 = vmax.f32 %v10981, 0.0
  %v11063 = vmax.f32 %v10982, 0.0
  %v11064 = vmax.f32 %v10983, 0.0
  %v11065 = vmax.f32 %v10984, 0.0
  %v11066 = vmax.f32 %v10985, 0.0
  %v11067 = vmax.f32 %v10986, 0.0
  %v11068 = vmax.f32 %v10987, 0.0
  %v11069 = vmul.f32 %v10988, %v4475
  %v11070 = vmul.f32 %v10989, %v4480
  %v11071 = vmul.f32 %v10990, %v4485
  %v11072 = vmul.f32 %v10991, %v4490
  %v11073 = vmul.f32 %v10992, %v4495
  %v11074 = vmul.f32 %v10993, %v4500
  %v11075 = vmul.f32 %v10994, %v4505
  %v11076 = vmul.f32 %v10995, %v4510
  %v11077 = vmul.f32 %v10996, %v4515
  %v11078 = vmul.f32 %v10997, %v4520
  %v11079 = vmul.f32 %v10998, %v4525
  %v11080 = vmul.f32 %v10999, %v4530
  %v11081 = vmul.f32 %v11000, %v4535
  %v11082 = vmul.f32 %v11001, %v4540
  %v11083 = vmul.f32 %v11002, %v4545
  %v11084 = vmul.f32 %v11003, %v4550
  %v11085 = vmul.f32 %v11004, %v4555
  %v11086 = vmul.f32 %v11005, %v4560
  %v11087 = vmul.f32 %v11006, %v4565
  %v11088 = vmul.f32 %v11007, %v4570
  %v11089 = vmul.f32 %v11008, %v4575
  %v11090 = vmul.f32 %v11009, %v4580
  %v11091 = vmul.f32 %v11010, %v4585
  %v11092 = vmul.f32 %v11011, %v4590
  %v11093 = vmul.f32 %v11012, %v4595
  %v11094 = vmul.f32 %v11013, %v4600
  %v11095 = vmul.f32 %v11014, %v4605
  %v11096 = vmul.f32 %v11015, %v4610
  %v11097 = vmul.f32 %v11016, %v4615
  %v11098 = vmul.f32 %v11017, %v4620
  %v11099 = vmul.f32 %v11018, %v4625
  %v11100 = vmul.f32 %v11019, %v4630
  %v11101 = vmul.f32 %v11020, %v4635
  %v11102 = vmul.f32 %v11021, %v4640
  %v11103 = vmul.f32 %v11022, %v4645
  %v11104 = vmul.f32 %v11023, %v4650
  %v11105 = vmul.f32 %v11024, %v4655
  %v11106 = vmul.f32 %v11025, %v4660
  %v11107 = vmul.f32 %v11026, %v4665
  %v11108 = vmul.f32 %v11027, %v4670
  %v11109 = vmul.f32 %v11028, %v4675
  %v11110 = vmul.f32 %v11029, %v4680
  %v11111 = vmul.f32 %v11030, %v4685
  %v11112 = vmul.f32 %v11031, %v4690
  %v11113 = vmul.f32 %v11032, %v4695
  %v11114 = vmul.f32 %v11033, %v4700
  %v11115 = vmul.f32 %v11034, %v4705
  %v11116 = vmul.f32 %v11035, %v4710
  %v11117 = vmul.f32 %v11036, %v4715
  %v11118 = vmul.f32 %v11037, %v4720
  %v11119 = vmul.f32 %v11038, %v4725
  %v11120 = vmul.f32 %v11039, %v4730
  %v11121 = vmul.f32 %v11040, %v4735
  %v11122 = vmul.f32 %v11041, %v4740
  %v11123 = vmul.f32 %v11042, %v4745
  %v11124 = vmul.f32 %v11043, %v4750
  %v11125 = vmul.f32 %v11044, %v4755
  %v11126 = vmul.f32 %v11045, %v4760
  %v11127 = vmul.f32 %v11046, %v4765
  %v11128 = vmul.f32 %v11047, %v4770
  %v11129 = vmul.f32 %v11048, %v4775
  %v11130 = vmul.f32 %v11049, %v4780
  %v11131 = vmul.f32 %v11050, %v4785
  %v11132 = vmul.f32 %v11051, %v4790
  %v11133 = vmul.f32 %v11052, %v4795
  %v11134 = vmul.f32 %v11053, %v4800
  %v11135 = vmul.f32 %v11054, %v4805
  %v11136 = vmul.f32 %v11055, %v4810
  %v11137 = vmul.f32 %v11056, %v4815
  %v11138 = vmul.f32 %v11057, %v4820
  %v11139 = vmul.f32 %v11058, %v4825
  %v11140 = vmul.f32 %v11059, %v4830
  %v11141 = vmul.f32 %v11060, %v4835
  %v11142 = vmul.f32 %v11061, %v4840
  %v11143 = vmul.f32 %v11062, %v4845
  %v11144 = vmul.f32 %v11063, %v4850
  %v11145 = vmul.f32 %v11064, %v4855
  %v11146 = vmul.f32 %v11065, %v4860
  %v11147 = vmul.f32 %v11066, %v4865
  %v11148 = vmul.f32 %v11067, %v4870
  %v11149 = vmul.f32 %v11068, %v4875
  %11150 = vst.msk [vmem:[%s10] sm:$0xff] %vm3387, %v11069
  %11151 = vst.msk [vmem:[%s10 + $0x8] sm:$0xff] %vm3387, %v11070
  %11152 = vst.msk [vmem:[%s10 + $0x10] sm:$0xff] %vm3387, %v11071
  %11153 = vst.msk [vmem:[%s10 + $0x18] sm:$0xff] %vm3387, %v11072
  %11154 = vst.msk [vmem:[%s10 + $0x20] sm:$0xff] %vm3387, %v11073
  %11155 = vst.msk [vmem:[%s10 + $0x28] sm:$0xff] %vm3387, %v11074
  %11156 = vst.msk [vmem:[%s10 + $0x30] sm:$0xff] %vm3387, %v11075
  %11157 = vst.msk [vmem:[%s10 + $0x38] sm:$0xff] %vm3387, %v11076
  %11158 = vst.msk [vmem:[%s10 + $0x40] sm:$0xff] %vm3387, %v11077
  %11159 = vst.msk [vmem:[%s10 + $0x48] sm:$0xff] %vm3387, %v11078
  %11160 = vst.msk [vmem:[%s10 + $0x50] sm:$0xff] %vm3387, %v11079
  %11161 = vst.msk [vmem:[%s10 + $0x58] sm:$0xff] %vm3387, %v11080
  %11162 = vst.msk [vmem:[%s10 + $0x60] sm:$0xff] %vm3387, %v11081
  %11163 = vst.msk [vmem:[%s10 + $0x68] sm:$0xff] %vm3387, %v11082
  %11164 = vst.msk [vmem:[%s10 + $0x70] sm:$0xff] %vm3387, %v11083
  %11165 = vst.msk [vmem:[%s10 + $0x78] sm:$0xff] %vm3387, %v11084
  %11166 = vst.msk [vmem:[%s10 + $0x80] sm:$0xff] %vm3387, %v11085
  %11167 = vst.msk [vmem:[%s10 + $0x88] sm:$0xff] %vm3387, %v11086
  %11168 = vst.msk [vmem:[%s10 + $0x90] sm:$0xff] %vm3387, %v11087
  %11169 = vst.msk [vmem:[%s10 + $0x98] sm:$0xff] %vm3387, %v11088
  %11170 = vst.msk [vmem:[%s10 + $0xa0] sm:$0xff] %vm3387, %v11089
  %11171 = vst.msk [vmem:[%s10 + $0xa8] sm:$0xff] %vm3387, %v11090
  %11172 = vst.msk [vmem:[%s10 + $0xb0] sm:$0xff] %vm3387, %v11091
  %11173 = vst.msk [vmem:[%s10 + $0xb8] sm:$0xff] %vm3387, %v11092
  %11174 = vst.msk [vmem:[%s10 + $0xc0] sm:$0xff] %vm3387, %v11093
  %11175 = vst.msk [vmem:[%s10 + $0xc8] sm:$0xff] %vm3387, %v11094
  %11176 = vst.msk [vmem:[%s10 + $0xd0] sm:$0xff] %vm3387, %v11095
  %11177 = vst.msk [vmem:[%s10 + $0xd8] sm:$0xff] %vm3387, %v11096
  %11178 = vst.msk [vmem:[%s10 + $0xe0] sm:$0xff] %vm3387, %v11097
  %11179 = vst.msk [vmem:[%s10 + $0xe8] sm:$0xff] %vm3387, %v11098
  %11180 = vst.msk [vmem:[%s10 + $0xf0] sm:$0xff] %vm3387, %v11099
  %11181 = vst.msk [vmem:[%s10 + $0xf8] sm:$0xff] %vm3387, %v11100
  %11182 = vst.msk [vmem:[%s10 + $0x100] sm:$0xff] %vm3387, %v11101
  %11183 = vst.msk [vmem:[%s10 + $0x108] sm:$0xff] %vm3387, %v11102
  %11184 = vst.msk [vmem:[%s10 + $0x110] sm:$0xff] %vm3387, %v11103
  %11185 = vst.msk [vmem:[%s10 + $0x118] sm:$0xff] %vm3387, %v11104
  %11186 = vst.msk [vmem:[%s10 + $0x120] sm:$0xff] %vm3387, %v11105
  %11187 = vst.msk [vmem:[%s10 + $0x128] sm:$0xff] %vm3387, %v11106
  %11188 = vst.msk [vmem:[%s10 + $0x130] sm:$0xff] %vm3387, %v11107
  %11189 = vst.msk [vmem:[%s10 + $0x138] sm:$0xff] %vm3387, %v11108
  %11190 = vst.msk [vmem:[%s10 + $0x140] sm:$0xff] %vm3387, %v11109
  %11191 = vst.msk [vmem:[%s10 + $0x148] sm:$0xff] %vm3387, %v11110
  %11192 = vst.msk [vmem:[%s10 + $0x150] sm:$0xff] %vm3387, %v11111
  %11193 = vst.msk [vmem:[%s10 + $0x158] sm:$0xff] %vm3387, %v11112
  %11194 = vst.msk [vmem:[%s10 + $0x160] sm:$0xff] %vm3387, %v11113
  %11195 = vst.msk [vmem:[%s10 + $0x168] sm:$0xff] %vm3387, %v11114
  %11196 = vst.msk [vmem:[%s10 + $0x170] sm:$0xff] %vm3387, %v11115
  %11197 = vst.msk [vmem:[%s10 + $0x178] sm:$0xff] %vm3387, %v11116
  %11198 = vst.msk [vmem:[%s10 + $0x180] sm:$0xff] %vm3387, %v11117
  %11199 = vst.msk [vmem:[%s10 + $0x188] sm:$0xff] %vm3387, %v11118
  %11200 = vst.msk [vmem:[%s10 + $0x190] sm:$0xff] %vm3387, %v11119
  %11201 = vst.msk [vmem:[%s10 + $0x198] sm:$0xff] %vm3387, %v11120
  %11202 = vst.msk [vmem:[%s10 + $0x1a0] sm:$0xff] %vm3387, %v11121
  %11203 = vst.msk [vmem:[%s10 + $0x1a8] sm:$0xff] %vm3387, %v11122
  %11204 = vst.msk [vmem:[%s10 + $0x1b0] sm:$0xff] %vm3387, %v11123
  %11205 = vst.msk [vmem:[%s10 + $0x1b8] sm:$0xff] %vm3387, %v11124
  %11206 = vst.msk [vmem:[%s10 + $0x1c0] sm:$0xff] %vm3387, %v11125
  %11207 = vst.msk [vmem:[%s10 + $0x1c8] sm:$0xff] %vm3387, %v11126
  %11208 = vst.msk [vmem:[%s10 + $0x1d0] sm:$0xff] %vm3387, %v11127
  %11209 = vst.msk [vmem:[%s10 + $0x1d8] sm:$0xff] %vm3387, %v11128
  %11210 = vst.msk [vmem:[%s10 + $0x1e0] sm:$0xff] %vm3387, %v11129
  %11211 = vst.msk [vmem:[%s10 + $0x1e8] sm:$0xff] %vm3387, %v11130
  %11212 = vst.msk [vmem:[%s10 + $0x1f0] sm:$0xff] %vm3387, %v11131
  %11213 = vst.msk [vmem:[%s10 + $0x1f8] sm:$0xff] %vm3387, %v11132
  %11214 = vst.msk [vmem:[%s10 + $0x200] sm:$0xff] %vm3387, %v11133
  %11215 = vst.msk [vmem:[%s10 + $0x208] sm:$0xff] %vm3387, %v11134
  %11216 = vst.msk [vmem:[%s10 + $0x210] sm:$0xff] %vm3387, %v11135
  %11217 = vst.msk [vmem:[%s10 + $0x218] sm:$0xff] %vm3387, %v11136
  %11218 = vst.msk [vmem:[%s10 + $0x220] sm:$0xff] %vm3387, %v11137
  %11219 = vst.msk [vmem:[%s10 + $0x228] sm:$0xff] %vm3387, %v11138
  %11220 = vst.msk [vmem:[%s10 + $0x230] sm:$0xff] %vm3387, %v11139
  %11221 = vst.msk [vmem:[%s10 + $0x238] sm:$0xff] %vm3387, %v11140
  %11222 = vst.msk [vmem:[%s10 + $0x240] sm:$0xff] %vm3387, %v11141
  %11223 = vst.msk [vmem:[%s10 + $0x248] sm:$0xff] %vm3387, %v11142
  %11224 = vst.msk [vmem:[%s10 + $0x250] sm:$0xff] %vm3387, %v11143
  %11225 = vst.msk [vmem:[%s10 + $0x258] sm:$0xff] %vm3387, %v11144
  %11226 = vst.msk [vmem:[%s10 + $0x260] sm:$0xff] %vm3387, %v11145
  %11227 = vst.msk [vmem:[%s10 + $0x268] sm:$0xff] %vm3387, %v11146
  %11228 = vst.msk [vmem:[%s10 + $0x270] sm:$0xff] %vm3387, %v11147
  %11229 = vst.msk [vmem:[%s10 + $0x278] sm:$0xff] %vm3387, %v11148
  %11230 = vst.msk [vmem:[%s10 + $0x280] sm:$0xff] %vm3387, %v11149
  // Predicated region
  $region42: #{create_deconv_2_in_forward.1} parent=0 // pred_check
    _
  $region43: #{create_deconv_2_in_forward.1} parent=0 // pred_check_branch
    %11232 = sbr.rel (0) target = $region45
  $region44: #{create_deconv_2_in_forward.1} parent=0 // pred_region
    _
  $region45: #{create_deconv_2_in_forward.1} parent=0 // pred_fallthru
    _
  // Predicated region
  $region46: #{create_deconv_2_in_forward.1} parent=0 // pred_check
    _
  $region47: #{create_deconv_2_in_forward.1} parent=0 // pred_check_branch
    %11234 = sbr.rel (0) target = $region49
  $region48: #{create_deconv_2_in_forward.1} parent=0 // pred_region
    _
  $region49: #{create_deconv_2_in_forward.1} parent=0 // pred_fallthru
    _

</llo_original>
